<compile_context>
chip_gen: v7x
topology: tpu7x:2x2x1
jax: 0.10.0
libtpu: 0.0.40
codegen_flags: <defaults>
</compile_context>

<pallas_src>
import functools

import numpy as np
import jax
import jax.numpy as jnp
from jax import lax
from jax.experimental import pallas as pl
from jax.experimental.pallas import tpu as pltpu

BN_EPS = 1e-5
C = 32            # working channel width (3 real channels + 29 zero-padded)
CIN = 3           # real I/O channels of the PyTorch module
KH = KW = 3       # conv kernel size
N_BASE = 8        # 2 sequential x 2 composite x 2 base modules
N_CONV = 2 * N_BASE
BIAS = 1.0        # torch.ones(1)


# ------------------------------ fused kernel --------------------------------

def _net_kernel(x_ref, mask_ref, w_ref, o_ref, apad_ref, patch_ref, *, N, H, W):
    """Whole ModuleListModule forward, one invocation, all VMEM-resident.

    x_ref:     (3, L)            input; zero-padded spatial domain flattened on lanes
    mask_ref:  (1, L)            1.0 at interior (real) pixels, 0.0 on the pad ring
    w_ref:     (16, 32, 288)     im2col conv weights in execution order,
                                 columns ordered (kh, kw, cin) to match patch stacking
    o_ref:     (3, L)            output (real channels only), same layout as x_ref
    apad_ref:  (32, L + 2*G)     guard-banded activation buffer (conv tap source)
    patch_ref: (288, L)          im2col patch-matrix scratch
    """
    Hp, Wp = H + 2, W + 2
    L = N * Hp * Wp
    G = Wp + 1                        # guard band: every tap offset stays in-bounds
    inv_m = 1.0 / float(N * H * W)    # BN sample count = interior pixels only
    tap_off = [(kh - 1) * Wp + (kw - 1) for kh in range(KH) for kw in range(KW)]

    mask = mask_ref[...]              # (1, L); broadcasts over the 32 channels

    # Zero once (guard bands included); only the window [G, G+L) is ever
    # rewritten afterwards, and written activations always have a zero pad
    # ring, so every conv tap reads correct zero padding.
    apad_ref[...] = jnp.zeros_like(apad_ref)

    def conv(act, widx):
        # act: (32, L) with zero pad-ring lanes.  One im2col MXU matmul.
        apad_ref[:, G:G + L] = act
        for t, off in enumerate(tap_off):
            patch_ref[t * C:(t + 1) * C, :] = apad_ref[:, G + off:G + off + L]
        return jnp.dot(w_ref[widx], patch_ref[...],
                       preferred_element_type=jnp.float32)

    def bn_relu(z):
        # BatchNorm2d, training-mode batch statistics (gamma=1, beta=0, biased
        # variance, stats over interior pixels only) in one fused pass, + ReLU.
        # Final *mask forces the pad ring back to zero for the next conv.
        zm = z * mask
        s1 = jnp.sum(zm, axis=1, keepdims=True)
        s2 = jnp.sum(zm * zm, axis=1, keepdims=True)
        mean = s1 * inv_m
        var = jnp.maximum(s2 * inv_m - mean * mean, 0.0)
        y = (z - mean) * lax.rsqrt(var + BN_EPS)
        return jnp.maximum(y, 0.0) * mask

    def base_module(act, widx):
        # conv1 -> (*2 dropped: cancels exactly in batch-stat bn1) -> bn1 -> relu
        # -> conv2 -> bn2 -> relu
        h = bn_relu(conv(act, widx))
        return bn_relu(conv(h, widx + 1))

    def composite(act, widx):
        # (x = x + x dropped: pure scale, cancels through bias-free conv1 + bn1)
        y1 = base_module(act, widx)
        act = y1 + y1 + BIAS * mask       # x1 + x2 + bias  (bias only at interior,
        y2 = base_module(act, widx + 2)   #  so the zero pad ring is preserved)
        act = y2 + y2 + BIAS * mask
        return act * 2.0

    # Initial activation: 3 real channels from the input, remaining 29 zero.
    act0 = jnp.concatenate(
        [x_ref[...], jnp.zeros((C - CIN, L), jnp.float32)], axis=0)

    # 2 SequentialModules x 2 CompositeModules = 4 composites, run sequentially.
    act = lax.fori_loop(0, 4, lambda c, a: composite(a, 4 * c), act0)

    o_ref[...] = act[:CIN, :]

    # TODO(synk): BatchNorm running-stats update (training-time bookkeeping) is
    # omitted -- it does not affect the forward output.


# --------------------------------- wrapper ----------------------------------

@jax.jit
def forward(x_nchw, w_im2col):
    N, Cin, H, W = x_nchw.shape
    Hp, Wp = H + 2, W + 2
    L = N * Hp * Wp
    G = Wp + 1

    # (N,C,H,W) -> (C,N,Hp,Wp) zero-padded -> (C, L): channels on sublanes,
    # flattened padded spatial on lanes.  Cheap layout plumbing only.
    x_flat = jnp.pad(jnp.transpose(x_nchw, (1, 0, 2, 3)),
                     ((0, 0), (0, 0), (1, 1), (1, 1))).reshape(Cin, L)

    # Interior-pixel mask (compile-time constant).
    hp = np.arange(Hp)[:, None]
    wp = np.arange(Wp)[None, :]
    interior = ((hp >= 1) & (hp <= H) & (wp >= 1) & (wp <= W)).astype(np.float32)
    mask = jnp.asarray(np.tile(interior[None], (N, 1, 1)).reshape(1, L))

    kern = functools.partial(_net_kernel, N=N, H=H, W=W)
    vmem = pl.BlockSpec(memory_space=pltpu.MemorySpace.VMEM)
    y = pl.pallas_call(
        kern,
        out_shape=jax.ShapeDtypeStruct((Cin, L), jnp.float32),
        in_specs=[vmem, vmem, vmem],
        out_specs=vmem,
        scratch_shapes=[pltpu.VMEM((C, L + 2 * G), jnp.float32),
                        pltpu.VMEM((KH * KW * C, L), jnp.float32)],
    )(x_flat, mask, w_im2col)

    # (C, L) -> (N, C, H, W): strip the pad ring, back to PyTorch layout.
    y = y.reshape(Cin, N, Hp, Wp)[:, :, 1:H + 1, 1:W + 1]
    return jnp.transpose(y, (1, 0, 2, 3))


# ----------------------- deterministic parameter init -----------------------

def init_params(key):
    """Stacked im2col conv weights (16, 32, 288) in execution order.

    Row = output channel; column = (kh, kw, cin), matching the order the kernel
    stacks its 9 shifted activation copies.  conv1 (3->32) is zero-padded on
    its input channels, conv2 (32->3) on its output channels, so the padded
    math is identical to the original 3-channel module.
    """
    # TODO(synk): PyTorch's default Conv2d init is kaiming-uniform; a scaled
    # normal is used here (forward-pass structure/semantics are unchanged).
    keys = jax.random.split(key, N_CONV)
    ws = []
    for m in range(N_BASE):
        k1, k2 = keys[2 * m], keys[2 * m + 1]
        w1 = jax.random.normal(k1, (32, 3, KH, KW), jnp.float32) / (27.0 ** 0.5)
        w2 = jax.random.normal(k2, (3, 32, KH, KW), jnp.float32) / (288.0 ** 0.5)
        w1p = jnp.zeros((C, C, KH, KW), jnp.float32).at[:, :CIN].set(w1)
        w2p = jnp.zeros((C, C, KH, KW), jnp.float32).at[:CIN, :].set(w2)
        ws += [w1p, w2p]
    wt = jnp.stack(ws)                                   # (16, co, ci, kh, kw)
    return jnp.transpose(wt, (0, 1, 3, 4, 2)).reshape(N_CONV, C, KH * KW * C)


# ----------------------------------- main ------------------------------------

if __name__ == "__main__":
    key = jax.random.PRNGKey(0)
    pkey, xkey = jax.random.split(key)
    params = init_params(pkey)

    # PyTorch-style NCHW input: (batch=2, channels=3, H=16, W=16)
    x_nchw = jax.random.normal(xkey, (2, 3, 16, 16), jnp.float32)

    out = forward(x_nchw, params)
    jax.block_until_ready(out)
    assert out.shape == (2, 3, 16, 16)
    assert bool(jnp.all(jnp.isfinite(out)))
    print("KERNEL_OK")
</pallas_src>

<mosaic_0001>
module attributes {stable_mosaic.version = 11 : i64} {
  func.func @_net_kernel(%arg0: memref<3x648xf32, #tpu.memory_space<vmem>>, %arg1: memref<1x648xf32, #tpu.memory_space<vmem>>, %arg2: memref<16x32x288xf32, #tpu.memory_space<vmem>>, %arg3: memref<3x648xf32, #tpu.memory_space<vmem>>, %arg4: memref<32x686xf32, #tpu.memory_space<vmem>>, %arg5: memref<288x648xf32, #tpu.memory_space<vmem>>) attributes {dimension_semantics = [], scalar_prefetch = 0 : i64, scratch_operands = 2 : i64, tpu.core_type = #tpu.core_type<tc>} {
    %c0 = arith.constant 0 : index
    %c0_0 = arith.constant 0 : index
    %0 = vector.load %arg1[%c0, %c0_0] : memref<1x648xf32, #tpu.memory_space<vmem>>, vector<1x648xf32>
    %cst = arith.constant 0.000000e+00 : f32
    %1 = vector.broadcast %cst : f32 to vector<32x686xf32>
    %c0_1 = arith.constant 0 : index
    %c0_2 = arith.constant 0 : index
    %2 = vector.load %arg4[%c0_1, %c0_2] : memref<32x686xf32, #tpu.memory_space<vmem>>, vector<32x686xf32>
    tpu.vector_store %arg4[%c0_1, %c0_2], %1 {strides = array<i32>} : memref<32x686xf32, #tpu.memory_space<vmem>>, vector<32x686xf32>,
    %c0_3 = arith.constant 0 : index
    %c0_4 = arith.constant 0 : index
    %3 = vector.load %arg0[%c0_3, %c0_4] : memref<3x648xf32, #tpu.memory_space<vmem>>, vector<3x648xf32>
    %cst_5 = arith.constant 0.000000e+00 : f32
    %4 = vector.broadcast %cst_5 : f32 to vector<29x648xf32>
    %5 = tpu.concatenate %3, %4 in 0 : vector<3x648xf32>, vector<29x648xf32> -> vector<32x648xf32>
    %c0_i32 = arith.constant 0 : i32
    %c4_i32 = arith.constant 4 : i32
    %6 = arith.addi %c0_i32, %c4_i32 : i32
    %c1_i32 = arith.constant 1 : i32
    %7 = scf.for %arg6 = %c0_i32 to %6 step %c1_i32 iter_args(%arg7 = %5) -> (vector<32x648xf32>)  : i32 {
      %c4_i32_9 = arith.constant 4 : i32
      %10 = arith.muli %c4_i32_9, %arg6 : i32
      %c0_10 = arith.constant 0 : index
      %c19 = arith.constant 19 : index
      %11 = vector.load %arg4[%c0_10, %c19] : memref<32x686xf32, #tpu.memory_space<vmem>>, vector<32x648xf32>
      tpu.vector_store %arg4[%c0_10, %c19], %arg7 {strides = array<i32>} : memref<32x686xf32, #tpu.memory_space<vmem>>, vector<32x648xf32>,
      %c0_11 = arith.constant 0 : index
      %c0_12 = arith.constant 0 : index
      %12 = vector.load %arg4[%c0_11, %c0_12] : memref<32x686xf32, #tpu.memory_space<vmem>>, vector<32x648xf32>
      %c0_13 = arith.constant 0 : index
      %c0_14 = arith.constant 0 : index
      %13 = vector.load %arg5[%c0_13, %c0_14] : memref<288x648xf32, #tpu.memory_space<vmem>>, vector<32x648xf32>
      tpu.vector_store %arg5[%c0_13, %c0_14], %12 {strides = array<i32>} : memref<288x648xf32, #tpu.memory_space<vmem>>, vector<32x648xf32>,
      %c0_15 = arith.constant 0 : index
      %c1 = arith.constant 1 : index
      %14 = vector.load %arg4[%c0_15, %c1] : memref<32x686xf32, #tpu.memory_space<vmem>>, vector<32x648xf32>
      %c32 = arith.constant 32 : index
      %c0_16 = arith.constant 0 : index
      %15 = vector.load %arg5[%c32, %c0_16] : memref<288x648xf32, #tpu.memory_space<vmem>>, vector<32x648xf32>
      tpu.vector_store %arg5[%c32, %c0_16], %14 {strides = array<i32>} : memref<288x648xf32, #tpu.memory_space<vmem>>, vector<32x648xf32>,
      %c0_17 = arith.constant 0 : index
      %c2 = arith.constant 2 : index
      %16 = vector.load %arg4[%c0_17, %c2] : memref<32x686xf32, #tpu.memory_space<vmem>>, vector<32x648xf32>
      %c64 = arith.constant 64 : index
      %c0_18 = arith.constant 0 : index
      %17 = vector.load %arg5[%c64, %c0_18] : memref<288x648xf32, #tpu.memory_space<vmem>>, vector<32x648xf32>
      tpu.vector_store %arg5[%c64, %c0_18], %16 {strides = array<i32>} : memref<288x648xf32, #tpu.memory_space<vmem>>, vector<32x648xf32>,
      %c0_19 = arith.constant 0 : index
      %c18 = arith.constant 18 : index
      %18 = vector.load %arg4[%c0_19, %c18] : memref<32x686xf32, #tpu.memory_space<vmem>>, vector<32x648xf32>
      %c96 = arith.constant 96 : index
      %c0_20 = arith.constant 0 : index
      %19 = vector.load %arg5[%c96, %c0_20] : memref<288x648xf32, #tpu.memory_space<vmem>>, vector<32x648xf32>
      tpu.vector_store %arg5[%c96, %c0_20], %18 {strides = array<i32>} : memref<288x648xf32, #tpu.memory_space<vmem>>, vector<32x648xf32>,
      %c0_21 = arith.constant 0 : index
      %c19_22 = arith.constant 19 : index
      %20 = vector.load %arg4[%c0_21, %c19_22] : memref<32x686xf32, #tpu.memory_space<vmem>>, vector<32x648xf32>
      %c128 = arith.constant 128 : index
      %c0_23 = arith.constant 0 : index
      %21 = vector.load %arg5[%c128, %c0_23] : memref<288x648xf32, #tpu.memory_space<vmem>>, vector<32x648xf32>
      tpu.vector_store %arg5[%c128, %c0_23], %20 {strides = array<i32>} : memref<288x648xf32, #tpu.memory_space<vmem>>, vector<32x648xf32>,
      %c0_24 = arith.constant 0 : index
      %c20 = arith.constant 20 : index
      %22 = vector.load %arg4[%c0_24, %c20] : memref<32x686xf32, #tpu.memory_space<vmem>>, vector<32x648xf32>
      %c160 = arith.constant 160 : index
      %c0_25 = arith.constant 0 : index
      %23 = vector.load %arg5[%c160, %c0_25] : memref<288x648xf32, #tpu.memory_space<vmem>>, vector<32x648xf32>
      tpu.vector_store %arg5[%c160, %c0_25], %22 {strides = array<i32>} : memref<288x648xf32, #tpu.memory_space<vmem>>, vector<32x648xf32>,
      %c0_26 = arith.constant 0 : index
      %c36 = arith.constant 36 : index
      %24 = vector.load %arg4[%c0_26, %c36] : memref<32x686xf32, #tpu.memory_space<vmem>>, vector<32x648xf32>
      %c192 = arith.constant 192 : index
      %c0_27 = arith.constant 0 : index
      %25 = vector.load %arg5[%c192, %c0_27] : memref<288x648xf32, #tpu.memory_space<vmem>>, vector<32x648xf32>
      tpu.vector_store %arg5[%c192, %c0_27], %24 {strides = array<i32>} : memref<288x648xf32, #tpu.memory_space<vmem>>, vector<32x648xf32>,
      %c0_28 = arith.constant 0 : index
      %c37 = arith.constant 37 : index
      %26 = vector.load %arg4[%c0_28, %c37] : memref<32x686xf32, #tpu.memory_space<vmem>>, vector<32x648xf32>
      %c224 = arith.constant 224 : index
      %c0_29 = arith.constant 0 : index
      %27 = vector.load %arg5[%c224, %c0_29] : memref<288x648xf32, #tpu.memory_space<vmem>>, vector<32x648xf32>
      tpu.vector_store %arg5[%c224, %c0_29], %26 {strides = array<i32>} : memref<288x648xf32, #tpu.memory_space<vmem>>, vector<32x648xf32>,
      %c0_30 = arith.constant 0 : index
      %c38 = arith.constant 38 : index
      %28 = vector.load %arg4[%c0_30, %c38] : memref<32x686xf32, #tpu.memory_space<vmem>>, vector<32x648xf32>
      %c256 = arith.constant 256 : index
      %c0_31 = arith.constant 0 : index
      %29 = vector.load %arg5[%c256, %c0_31] : memref<288x648xf32, #tpu.memory_space<vmem>>, vector<32x648xf32>
      tpu.vector_store %arg5[%c256, %c0_31], %28 {strides = array<i32>} : memref<288x648xf32, #tpu.memory_space<vmem>>, vector<32x648xf32>,
      %30 = arith.index_cast %10 : i32 to index
      %c0_32 = arith.constant 0 : index
      %c0_33 = arith.constant 0 : index
      %31 = vector.load %arg2[%30, %c0_32, %c0_33] : memref<16x32x288xf32, #tpu.memory_space<vmem>>, vector<1x32x288xf32>
      %32 = vector.shape_cast %31 : vector<1x32x288xf32> to vector<32x288xf32>
      %c0_34 = arith.constant 0 : index
      %c0_35 = arith.constant 0 : index
      %33 = vector.load %arg5[%c0_34, %c0_35] : memref<288x648xf32, #tpu.memory_space<vmem>>, vector<288x648xf32>
      %cst_36 = arith.constant dense<0.000000e+00> : vector<32x648xf32>
      %34 = tpu.matmul %32, %33, %cst_36 {dimension_numbers = #tpu.dot_dimension_numbers<[1], [0], [0], [1], [0, 0, 1, 1], [], []>} : vector<32x288xf32>, vector<288x648xf32>, vector<32x648xf32> -> vector<32x648xf32>
      %35 = vector.broadcast %0 : vector<1x648xf32> to vector<32x648xf32>
      %36 = arith.mulf %34, %35 : vector<32x648xf32>
      %cst_37 = arith.constant dense<0.000000e+00> : vector<32xf32>
      %37 = vector.multi_reduction <add>, %36, %cst_37 [1] : vector<32x648xf32> to vector<32xf32>
      %38 = vector.shape_cast %37 : vector<32xf32> to vector<32x1xf32>
      %39 = arith.mulf %36, %36 : vector<32x648xf32>
      %cst_38 = arith.constant dense<0.000000e+00> : vector<32xf32>
      %40 = vector.multi_reduction <add>, %39, %cst_38 [1] : vector<32x648xf32> to vector<32xf32>
      %41 = vector.shape_cast %40 : vector<32xf32> to vector<32x1xf32>
      %cst_39 = arith.constant 0.001953125 : f32
      %42 = vector.broadcast %cst_39 : f32 to vector<32x1xf32>
      %43 = arith.mulf %38, %42 : vector<32x1xf32>
      %cst_40 = arith.constant 0.001953125 : f32
      %44 = vector.broadcast %cst_40 : f32 to vector<32x1xf32>
      %45 = arith.mulf %41, %44 : vector<32x1xf32>
      %46 = arith.mulf %43, %43 : vector<32x1xf32>
      %47 = arith.subf %45, %46 : vector<32x1xf32>
      %cst_41 = arith.constant 0.000000e+00 : f32
      %48 = vector.broadcast %cst_41 : f32 to vector<32x1xf32>
      %49 = arith.maximumf %47, %48 : vector<32x1xf32>
      %50 = vector.broadcast %43 : vector<32x1xf32> to vector<32x648xf32>
      %51 = arith.subf %34, %50 : vector<32x648xf32>
      %cst_42 = arith.constant 9.99999974E-6 : f32
      %52 = vector.broadcast %cst_42 : f32 to vector<32x1xf32>
      %53 = arith.addf %49, %52 : vector<32x1xf32>
      %54 = math.rsqrt %53 : vector<32x1xf32>
      %55 = vector.broadcast %54 : vector<32x1xf32> to vector<32x648xf32>
      %56 = arith.mulf %51, %55 : vector<32x648xf32>
      %cst_43 = arith.constant 0.000000e+00 : f32
      %57 = vector.broadcast %cst_43 : f32 to vector<32x648xf32>
      %58 = arith.maximumf %56, %57 : vector<32x648xf32>
      %59 = vector.broadcast %0 : vector<1x648xf32> to vector<32x648xf32>
      %60 = arith.mulf %58, %59 : vector<32x648xf32>
      %c1_i32_44 = arith.constant 1 : i32
      %61 = arith.addi %10, %c1_i32_44 : i32
      %c0_45 = arith.constant 0 : index
      %c19_46 = arith.constant 19 : index
      %62 = vector.load %arg4[%c0_45, %c19_46] : memref<32x686xf32, #tpu.memory_space<vmem>>, vector<32x648xf32>
      tpu.vector_store %arg4[%c0_45, %c19_46], %60 {strides = array<i32>} : memref<32x686xf32, #tpu.memory_space<vmem>>, vector<32x648xf32>,
      %c0_47 = arith.constant 0 : index
      %c0_48 = arith.constant 0 : index
      %63 = vector.load %arg4[%c0_47, %c0_48] : memref<32x686xf32, #tpu.memory_space<vmem>>, vector<32x648xf32>
      %c0_49 = arith.constant 0 : index
      %c0_50 = arith.constant 0 : index
      %64 = vector.load %arg5[%c0_49, %c0_50] : memref<288x648xf32, #tpu.memory_space<vmem>>, vector<32x648xf32>
      tpu.vector_store %arg5[%c0_49, %c0_50], %63 {strides = array<i32>} : memref<288x648xf32, #tpu.memory_space<vmem>>, vector<32x648xf32>,
      %c0_51 = arith.constant 0 : index
      %c1_52 = arith.constant 1 : index
      %65 = vector.load %arg4[%c0_51, %c1_52] : memref<32x686xf32, #tpu.memory_space<vmem>>, vector<32x648xf32>
      %c32_53 = arith.constant 32 : index
      %c0_54 = arith.constant 0 : index
      %66 = vector.load %arg5[%c32_53, %c0_54] : memref<288x648xf32, #tpu.memory_space<vmem>>, vector<32x648xf32>
      tpu.vector_store %arg5[%c32_53, %c0_54], %65 {strides = array<i32>} : memref<288x648xf32, #tpu.memory_space<vmem>>, vector<32x648xf32>,
      %c0_55 = arith.constant 0 : index
      %c2_56 = arith.constant 2 : index
      %67 = vector.load %arg4[%c0_55, %c2_56] : memref<32x686xf32, #tpu.memory_space<vmem>>, vector<32x648xf32>
      %c64_57 = arith.constant 64 : index
      %c0_58 = arith.constant 0 : index
      %68 = vector.load %arg5[%c64_57, %c0_58] : memref<288x648xf32, #tpu.memory_space<vmem>>, vector<32x648xf32>
      tpu.vector_store %arg5[%c64_57, %c0_58], %67 {strides = array<i32>} : memref<288x648xf32, #tpu.memory_space<vmem>>, vector<32x648xf32>,
      %c0_59 = arith.constant 0 : index
      %c18_60 = arith.constant 18 : index
      %69 = vector.load %arg4[%c0_59, %c18_60] : memref<32x686xf32, #tpu.memory_space<vmem>>, vector<32x648xf32>
      %c96_61 = arith.constant 96 : index
      %c0_62 = arith.constant 0 : index
      %70 = vector.load %arg5[%c96_61, %c0_62] : memref<288x648xf32, #tpu.memory_space<vmem>>, vector<32x648xf32>
      tpu.vector_store %arg5[%c96_61, %c0_62], %69 {strides = array<i32>} : memref<288x648xf32, #tpu.memory_space<vmem>>, vector<32x648xf32>,
      %c0_63 = arith.constant 0 : index
      %c19_64 = arith.constant 19 : index
      %71 = vector.load %arg4[%c0_63, %c19_64] : memref<32x686xf32, #tpu.memory_space<vmem>>, vector<32x648xf32>
      %c128_65 = arith.constant 128 : index
      %c0_66 = arith.constant 0 : index
      %72 = vector.load %arg5[%c128_65, %c0_66] : memref<288x648xf32, #tpu.memory_space<vmem>>, vector<32x648xf32>
      tpu.vector_store %arg5[%c128_65, %c0_66], %71 {strides = array<i32>} : memref<288x648xf32, #tpu.memory_space<vmem>>, vector<32x648xf32>,
      %c0_67 = arith.constant 0 : index
      %c20_68 = arith.constant 20 : index
      %73 = vector.load %arg4[%c0_67, %c20_68] : memref<32x686xf32, #tpu.memory_space<vmem>>, vector<32x648xf32>
      %c160_69 = arith.constant 160 : index
      %c0_70 = arith.constant 0 : index
      %74 = vector.load %arg5[%c160_69, %c0_70] : memref<288x648xf32, #tpu.memory_space<vmem>>, vector<32x648xf32>
      tpu.vector_store %arg5[%c160_69, %c0_70], %73 {strides = array<i32>} : memref<288x648xf32, #tpu.memory_space<vmem>>, vector<32x648xf32>,
      %c0_71 = arith.constant 0 : index
      %c36_72 = arith.constant 36 : index
      %75 = vector.load %arg4[%c0_71, %c36_72] : memref<32x686xf32, #tpu.memory_space<vmem>>, vector<32x648xf32>
      %c192_73 = arith.constant 192 : index
      %c0_74 = arith.constant 0 : index
      %76 = vector.load %arg5[%c192_73, %c0_74] : memref<288x648xf32, #tpu.memory_space<vmem>>, vector<32x648xf32>
      tpu.vector_store %arg5[%c192_73, %c0_74], %75 {strides = array<i32>} : memref<288x648xf32, #tpu.memory_space<vmem>>, vector<32x648xf32>,
      %c0_75 = arith.constant 0 : index
      %c37_76 = arith.constant 37 : index
      %77 = vector.load %arg4[%c0_75, %c37_76] : memref<32x686xf32, #tpu.memory_space<vmem>>, vector<32x648xf32>
      %c224_77 = arith.constant 224 : index
      %c0_78 = arith.constant 0 : index
      %78 = vector.load %arg5[%c224_77, %c0_78] : memref<288x648xf32, #tpu.memory_space<vmem>>, vector<32x648xf32>
      tpu.vector_store %arg5[%c224_77, %c0_78], %77 {strides = array<i32>} : memref<288x648xf32, #tpu.memory_space<vmem>>, vector<32x648xf32>,
      %c0_79 = arith.constant 0 : index
      %c38_80 = arith.constant 38 : index
      %79 = vector.load %arg4[%c0_79, %c38_80] : memref<32x686xf32, #tpu.memory_space<vmem>>, vector<32x648xf32>
      %c256_81 = arith.constant 256 : index
      %c0_82 = arith.constant 0 : index
      %80 = vector.load %arg5[%c256_81, %c0_82] : memref<288x648xf32, #tpu.memory_space<vmem>>, vector<32x648xf32>
      tpu.vector_store %arg5[%c256_81, %c0_82], %79 {strides = array<i32>} : memref<288x648xf32, #tpu.memory_space<vmem>>, vector<32x648xf32>,
      %81 = arith.index_cast %61 : i32 to index
      %c0_83 = arith.constant 0 : index
      %c0_84 = arith.constant 0 : index
      %82 = vector.load %arg2[%81, %c0_83, %c0_84] : memref<16x32x288xf32, #tpu.memory_space<vmem>>, vector<1x32x288xf32>
      %83 = vector.shape_cast %82 : vector<1x32x288xf32> to vector<32x288xf32>
      %c0_85 = arith.constant 0 : index
      %c0_86 = arith.constant 0 : index
      %84 = vector.load %arg5[%c0_85, %c0_86] : memref<288x648xf32, #tpu.memory_space<vmem>>, vector<288x648xf32>
      %cst_87 = arith.constant dense<0.000000e+00> : vector<32x648xf32>
      %85 = tpu.matmul %83, %84, %cst_87 {dimension_numbers = #tpu.dot_dimension_numbers<[1], [0], [0], [1], [0, 0, 1, 1], [], []>} : vector<32x288xf32>, vector<288x648xf32>, vector<32x648xf32> -> vector<32x648xf32>
      %86 = vector.broadcast %0 : vector<1x648xf32> to vector<32x648xf32>
      %87 = arith.mulf %85, %86 : vector<32x648xf32>
      %cst_88 = arith.constant dense<0.000000e+00> : vector<32xf32>
      %88 = vector.multi_reduction <add>, %87, %cst_88 [1] : vector<32x648xf32> to vector<32xf32>
      %89 = vector.shape_cast %88 : vector<32xf32> to vector<32x1xf32>
      %90 = arith.mulf %87, %87 : vector<32x648xf32>
      %cst_89 = arith.constant dense<0.000000e+00> : vector<32xf32>
      %91 = vector.multi_reduction <add>, %90, %cst_89 [1] : vector<32x648xf32> to vector<32xf32>
      %92 = vector.shape_cast %91 : vector<32xf32> to vector<32x1xf32>
      %cst_90 = arith.constant 0.001953125 : f32
      %93 = vector.broadcast %cst_90 : f32 to vector<32x1xf32>
      %94 = arith.mulf %89, %93 : vector<32x1xf32>
      %cst_91 = arith.constant 0.001953125 : f32
      %95 = vector.broadcast %cst_91 : f32 to vector<32x1xf32>
      %96 = arith.mulf %92, %95 : vector<32x1xf32>
      %97 = arith.mulf %94, %94 : vector<32x1xf32>
      %98 = arith.subf %96, %97 : vector<32x1xf32>
      %cst_92 = arith.constant 0.000000e+00 : f32
      %99 = vector.broadcast %cst_92 : f32 to vector<32x1xf32>
      %100 = arith.maximumf %98, %99 : vector<32x1xf32>
      %101 = vector.broadcast %94 : vector<32x1xf32> to vector<32x648xf32>
      %102 = arith.subf %85, %101 : vector<32x648xf32>
      %cst_93 = arith.constant 9.99999974E-6 : f32
      %103 = vector.broadcast %cst_93 : f32 to vector<32x1xf32>
      %104 = arith.addf %100, %103 : vector<32x1xf32>
      %105 = math.rsqrt %104 : vector<32x1xf32>
      %106 = vector.broadcast %105 : vector<32x1xf32> to vector<32x648xf32>
      %107 = arith.mulf %102, %106 : vector<32x648xf32>
      %cst_94 = arith.constant 0.000000e+00 : f32
      %108 = vector.broadcast %cst_94 : f32 to vector<32x648xf32>
      %109 = arith.maximumf %107, %108 : vector<32x648xf32>
      %110 = vector.broadcast %0 : vector<1x648xf32> to vector<32x648xf32>
      %111 = arith.mulf %109, %110 : vector<32x648xf32>
      %112 = arith.addf %111, %111 : vector<32x648xf32>
      %cst_95 = arith.constant 1.000000e+00 : f32
      %113 = vector.broadcast %cst_95 : f32 to vector<1x648xf32>
      %114 = arith.mulf %113, %0 : vector<1x648xf32>
      %115 = vector.broadcast %114 : vector<1x648xf32> to vector<32x648xf32>
      %116 = arith.addf %112, %115 : vector<32x648xf32>
      %c2_i32 = arith.constant 2 : i32
      %117 = arith.addi %10, %c2_i32 : i32
      %c0_96 = arith.constant 0 : index
      %c19_97 = arith.constant 19 : index
      %118 = vector.load %arg4[%c0_96, %c19_97] : memref<32x686xf32, #tpu.memory_space<vmem>>, vector<32x648xf32>
      tpu.vector_store %arg4[%c0_96, %c19_97], %116 {strides = array<i32>} : memref<32x686xf32, #tpu.memory_space<vmem>>, vector<32x648xf32>,
      %c0_98 = arith.constant 0 : index
      %c0_99 = arith.constant 0 : index
      %119 = vector.load %arg4[%c0_98, %c0_99] : memref<32x686xf32, #tpu.memory_space<vmem>>, vector<32x648xf32>
      %c0_100 = arith.constant 0 : index
      %c0_101 = arith.constant 0 : index
      %120 = vector.load %arg5[%c0_100, %c0_101] : memref<288x648xf32, #tpu.memory_space<vmem>>, vector<32x648xf32>
      tpu.vector_store %arg5[%c0_100, %c0_101], %119 {strides = array<i32>} : memref<288x648xf32, #tpu.memory_space<vmem>>, vector<32x648xf32>,
      %c0_102 = arith.constant 0 : index
      %c1_103 = arith.constant 1 : index
      %121 = vector.load %arg4[%c0_102, %c1_103] : memref<32x686xf32, #tpu.memory_space<vmem>>, vector<32x648xf32>
      %c32_104 = arith.constant 32 : index
      %c0_105 = arith.constant 0 : index
      %122 = vector.load %arg5[%c32_104, %c0_105] : memref<288x648xf32, #tpu.memory_space<vmem>>, vector<32x648xf32>
      tpu.vector_store %arg5[%c32_104, %c0_105], %121 {strides = array<i32>} : memref<288x648xf32, #tpu.memory_space<vmem>>, vector<32x648xf32>,
      %c0_106 = arith.constant 0 : index
      %c2_107 = arith.constant 2 : index
      %123 = vector.load %arg4[%c0_106, %c2_107] : memref<32x686xf32, #tpu.memory_space<vmem>>, vector<32x648xf32>
      %c64_108 = arith.constant 64 : index
      %c0_109 = arith.constant 0 : index
      %124 = vector.load %arg5[%c64_108, %c0_109] : memref<288x648xf32, #tpu.memory_space<vmem>>, vector<32x648xf32>
      tpu.vector_store %arg5[%c64_108, %c0_109], %123 {strides = array<i32>} : memref<288x648xf32, #tpu.memory_space<vmem>>, vector<32x648xf32>,
      %c0_110 = arith.constant 0 : index
      %c18_111 = arith.constant 18 : index
      %125 = vector.load %arg4[%c0_110, %c18_111] : memref<32x686xf32, #tpu.memory_space<vmem>>, vector<32x648xf32>
      %c96_112 = arith.constant 96 : index
      %c0_113 = arith.constant 0 : index
      %126 = vector.load %arg5[%c96_112, %c0_113] : memref<288x648xf32, #tpu.memory_space<vmem>>, vector<32x648xf32>
      tpu.vector_store %arg5[%c96_112, %c0_113], %125 {strides = array<i32>} : memref<288x648xf32, #tpu.memory_space<vmem>>, vector<32x648xf32>,
      %c0_114 = arith.constant 0 : index
      %c19_115 = arith.constant 19 : index
      %127 = vector.load %arg4[%c0_114, %c19_115] : memref<32x686xf32, #tpu.memory_space<vmem>>, vector<32x648xf32>
      %c128_116 = arith.constant 128 : index
      %c0_117 = arith.constant 0 : index
      %128 = vector.load %arg5[%c128_116, %c0_117] : memref<288x648xf32, #tpu.memory_space<vmem>>, vector<32x648xf32>
      tpu.vector_store %arg5[%c128_116, %c0_117], %127 {strides = array<i32>} : memref<288x648xf32, #tpu.memory_space<vmem>>, vector<32x648xf32>,
      %c0_118 = arith.constant 0 : index
      %c20_119 = arith.constant 20 : index
      %129 = vector.load %arg4[%c0_118, %c20_119] : memref<32x686xf32, #tpu.memory_space<vmem>>, vector<32x648xf32>
      %c160_120 = arith.constant 160 : index
      %c0_121 = arith.constant 0 : index
      %130 = vector.load %arg5[%c160_120, %c0_121] : memref<288x648xf32, #tpu.memory_space<vmem>>, vector<32x648xf32>
      tpu.vector_store %arg5[%c160_120, %c0_121], %129 {strides = array<i32>} : memref<288x648xf32, #tpu.memory_space<vmem>>, vector<32x648xf32>,
      %c0_122 = arith.constant 0 : index
      %c36_123 = arith.constant 36 : index
      %131 = vector.load %arg4[%c0_122, %c36_123] : memref<32x686xf32, #tpu.memory_space<vmem>>, vector<32x648xf32>
      %c192_124 = arith.constant 192 : index
      %c0_125 = arith.constant 0 : index
      %132 = vector.load %arg5[%c192_124, %c0_125] : memref<288x648xf32, #tpu.memory_space<vmem>>, vector<32x648xf32>
      tpu.vector_store %arg5[%c192_124, %c0_125], %131 {strides = array<i32>} : memref<288x648xf32, #tpu.memory_space<vmem>>, vector<32x648xf32>,
      %c0_126 = arith.constant 0 : index
      %c37_127 = arith.constant 37 : index
      %133 = vector.load %arg4[%c0_126, %c37_127] : memref<32x686xf32, #tpu.memory_space<vmem>>, vector<32x648xf32>
      %c224_128 = arith.constant 224 : index
      %c0_129 = arith.constant 0 : index
      %134 = vector.load %arg5[%c224_128, %c0_129] : memref<288x648xf32, #tpu.memory_space<vmem>>, vector<32x648xf32>
      tpu.vector_store %arg5[%c224_128, %c0_129], %133 {strides = array<i32>} : memref<288x648xf32, #tpu.memory_space<vmem>>, vector<32x648xf32>,
      %c0_130 = arith.constant 0 : index
      %c38_131 = arith.constant 38 : index
      %135 = vector.load %arg4[%c0_130, %c38_131] : memref<32x686xf32, #tpu.memory_space<vmem>>, vector<32x648xf32>
      %c256_132 = arith.constant 256 : index
      %c0_133 = arith.constant 0 : index
      %136 = vector.load %arg5[%c256_132, %c0_133] : memref<288x648xf32, #tpu.memory_space<vmem>>, vector<32x648xf32>
      tpu.vector_store %arg5[%c256_132, %c0_133], %135 {strides = array<i32>} : memref<288x648xf32, #tpu.memory_space<vmem>>, vector<32x648xf32>,
      %137 = arith.index_cast %117 : i32 to index
      %c0_134 = arith.constant 0 : index
      %c0_135 = arith.constant 0 : index
      %138 = vector.load %arg2[%137, %c0_134, %c0_135] : memref<16x32x288xf32, #tpu.memory_space<vmem>>, vector<1x32x288xf32>
      %139 = vector.shape_cast %138 : vector<1x32x288xf32> to vector<32x288xf32>
      %c0_136 = arith.constant 0 : index
      %c0_137 = arith.constant 0 : index
      %140 = vector.load %arg5[%c0_136, %c0_137] : memref<288x648xf32, #tpu.memory_space<vmem>>, vector<288x648xf32>
      %cst_138 = arith.constant dense<0.000000e+00> : vector<32x648xf32>
      %141 = tpu.matmul %139, %140, %cst_138 {dimension_numbers = #tpu.dot_dimension_numbers<[1], [0], [0], [1], [0, 0, 1, 1], [], []>} : vector<32x288xf32>, vector<288x648xf32>, vector<32x648xf32> -> vector<32x648xf32>
      %142 = vector.broadcast %0 : vector<1x648xf32> to vector<32x648xf32>
      %143 = arith.mulf %141, %142 : vector<32x648xf32>
      %cst_139 = arith.constant dense<0.000000e+00> : vector<32xf32>
      %144 = vector.multi_reduction <add>, %143, %cst_139 [1] : vector<32x648xf32> to vector<32xf32>
      %145 = vector.shape_cast %144 : vector<32xf32> to vector<32x1xf32>
      %146 = arith.mulf %143, %143 : vector<32x648xf32>
      %cst_140 = arith.constant dense<0.000000e+00> : vector<32xf32>
      %147 = vector.multi_reduction <add>, %146, %cst_140 [1] : vector<32x648xf32> to vector<32xf32>
      %148 = vector.shape_cast %147 : vector<32xf32> to vector<32x1xf32>
      %cst_141 = arith.constant 0.001953125 : f32
      %149 = vector.broadcast %cst_141 : f32 to vector<32x1xf32>
      %150 = arith.mulf %145, %149 : vector<32x1xf32>
      %cst_142 = arith.constant 0.001953125 : f32
      %151 = vector.broadcast %cst_142 : f32 to vector<32x1xf32>
      %152 = arith.mulf %148, %151 : vector<32x1xf32>
      %153 = arith.mulf %150, %150 : vector<32x1xf32>
      %154 = arith.subf %152, %153 : vector<32x1xf32>
      %cst_143 = arith.constant 0.000000e+00 : f32
      %155 = vector.broadcast %cst_143 : f32 to vector<32x1xf32>
      %156 = arith.maximumf %154, %155 : vector<32x1xf32>
      %157 = vector.broadcast %150 : vector<32x1xf32> to vector<32x648xf32>
      %158 = arith.subf %141, %157 : vector<32x648xf32>
      %cst_144 = arith.constant 9.99999974E-6 : f32
      %159 = vector.broadcast %cst_144 : f32 to vector<32x1xf32>
      %160 = arith.addf %156, %159 : vector<32x1xf32>
      %161 = math.rsqrt %160 : vector<32x1xf32>
      %162 = vector.broadcast %161 : vector<32x1xf32> to vector<32x648xf32>
      %163 = arith.mulf %158, %162 : vector<32x648xf32>
      %cst_145 = arith.constant 0.000000e+00 : f32
      %164 = vector.broadcast %cst_145 : f32 to vector<32x648xf32>
      %165 = arith.maximumf %163, %164 : vector<32x648xf32>
      %166 = vector.broadcast %0 : vector<1x648xf32> to vector<32x648xf32>
      %167 = arith.mulf %165, %166 : vector<32x648xf32>
      %c1_i32_146 = arith.constant 1 : i32
      %168 = arith.addi %117, %c1_i32_146 : i32
      %c0_147 = arith.constant 0 : index
      %c19_148 = arith.constant 19 : index
      %169 = vector.load %arg4[%c0_147, %c19_148] : memref<32x686xf32, #tpu.memory_space<vmem>>, vector<32x648xf32>
      tpu.vector_store %arg4[%c0_147, %c19_148], %167 {strides = array<i32>} : memref<32x686xf32, #tpu.memory_space<vmem>>, vector<32x648xf32>,
      %c0_149 = arith.constant 0 : index
      %c0_150 = arith.constant 0 : index
      %170 = vector.load %arg4[%c0_149, %c0_150] : memref<32x686xf32, #tpu.memory_space<vmem>>, vector<32x648xf32>
      %c0_151 = arith.constant 0 : index
      %c0_152 = arith.constant 0 : index
      %171 = vector.load %arg5[%c0_151, %c0_152] : memref<288x648xf32, #tpu.memory_space<vmem>>, vector<32x648xf32>
      tpu.vector_store %arg5[%c0_151, %c0_152], %170 {strides = array<i32>} : memref<288x648xf32, #tpu.memory_space<vmem>>, vector<32x648xf32>,
      %c0_153 = arith.constant 0 : index
      %c1_154 = arith.constant 1 : index
      %172 = vector.load %arg4[%c0_153, %c1_154] : memref<32x686xf32, #tpu.memory_space<vmem>>, vector<32x648xf32>
      %c32_155 = arith.constant 32 : index
      %c0_156 = arith.constant 0 : index
      %173 = vector.load %arg5[%c32_155, %c0_156] : memref<288x648xf32, #tpu.memory_space<vmem>>, vector<32x648xf32>
      tpu.vector_store %arg5[%c32_155, %c0_156], %172 {strides = array<i32>} : memref<288x648xf32, #tpu.memory_space<vmem>>, vector<32x648xf32>,
      %c0_157 = arith.constant 0 : index
      %c2_158 = arith.constant 2 : index
      %174 = vector.load %arg4[%c0_157, %c2_158] : memref<32x686xf32, #tpu.memory_space<vmem>>, vector<32x648xf32>
      %c64_159 = arith.constant 64 : index
      %c0_160 = arith.constant 0 : index
      %175 = vector.load %arg5[%c64_159, %c0_160] : memref<288x648xf32, #tpu.memory_space<vmem>>, vector<32x648xf32>
      tpu.vector_store %arg5[%c64_159, %c0_160], %174 {strides = array<i32>} : memref<288x648xf32, #tpu.memory_space<vmem>>, vector<32x648xf32>,
      %c0_161 = arith.constant 0 : index
      %c18_162 = arith.constant 18 : index
      %176 = vector.load %arg4[%c0_161, %c18_162] : memref<32x686xf32, #tpu.memory_space<vmem>>, vector<32x648xf32>
      %c96_163 = arith.constant 96 : index
      %c0_164 = arith.constant 0 : index
      %177 = vector.load %arg5[%c96_163, %c0_164] : memref<288x648xf32, #tpu.memory_space<vmem>>, vector<32x648xf32>
      tpu.vector_store %arg5[%c96_163, %c0_164], %176 {strides = array<i32>} : memref<288x648xf32, #tpu.memory_space<vmem>>, vector<32x648xf32>,
      %c0_165 = arith.constant 0 : index
      %c19_166 = arith.constant 19 : index
      %178 = vector.load %arg4[%c0_165, %c19_166] : memref<32x686xf32, #tpu.memory_space<vmem>>, vector<32x648xf32>
      %c128_167 = arith.constant 128 : index
      %c0_168 = arith.constant 0 : index
      %179 = vector.load %arg5[%c128_167, %c0_168] : memref<288x648xf32, #tpu.memory_space<vmem>>, vector<32x648xf32>
      tpu.vector_store %arg5[%c128_167, %c0_168], %178 {strides = array<i32>} : memref<288x648xf32, #tpu.memory_space<vmem>>, vector<32x648xf32>,
      %c0_169 = arith.constant 0 : index
      %c20_170 = arith.constant 20 : index
      %180 = vector.load %arg4[%c0_169, %c20_170] : memref<32x686xf32, #tpu.memory_space<vmem>>, vector<32x648xf32>
      %c160_171 = arith.constant 160 : index
      %c0_172 = arith.constant 0 : index
      %181 = vector.load %arg5[%c160_171, %c0_172] : memref<288x648xf32, #tpu.memory_space<vmem>>, vector<32x648xf32>
      tpu.vector_store %arg5[%c160_171, %c0_172], %180 {strides = array<i32>} : memref<288x648xf32, #tpu.memory_space<vmem>>, vector<32x648xf32>,
      %c0_173 = arith.constant 0 : index
      %c36_174 = arith.constant 36 : index
      %182 = vector.load %arg4[%c0_173, %c36_174] : memref<32x686xf32, #tpu.memory_space<vmem>>, vector<32x648xf32>
      %c192_175 = arith.constant 192 : index
      %c0_176 = arith.constant 0 : index
      %183 = vector.load %arg5[%c192_175, %c0_176] : memref<288x648xf32, #tpu.memory_space<vmem>>, vector<32x648xf32>
      tpu.vector_store %arg5[%c192_175, %c0_176], %182 {strides = array<i32>} : memref<288x648xf32, #tpu.memory_space<vmem>>, vector<32x648xf32>,
      %c0_177 = arith.constant 0 : index
      %c37_178 = arith.constant 37 : index
      %184 = vector.load %arg4[%c0_177, %c37_178] : memref<32x686xf32, #tpu.memory_space<vmem>>, vector<32x648xf32>
      %c224_179 = arith.constant 224 : index
      %c0_180 = arith.constant 0 : index
      %185 = vector.load %arg5[%c224_179, %c0_180] : memref<288x648xf32, #tpu.memory_space<vmem>>, vector<32x648xf32>
      tpu.vector_store %arg5[%c224_179, %c0_180], %184 {strides = array<i32>} : memref<288x648xf32, #tpu.memory_space<vmem>>, vector<32x648xf32>,
      %c0_181 = arith.constant 0 : index
      %c38_182 = arith.constant 38 : index
      %186 = vector.load %arg4[%c0_181, %c38_182] : memref<32x686xf32, #tpu.memory_space<vmem>>, vector<32x648xf32>
      %c256_183 = arith.constant 256 : index
      %c0_184 = arith.constant 0 : index
      %187 = vector.load %arg5[%c256_183, %c0_184] : memref<288x648xf32, #tpu.memory_space<vmem>>, vector<32x648xf32>
      tpu.vector_store %arg5[%c256_183, %c0_184], %186 {strides = array<i32>} : memref<288x648xf32, #tpu.memory_space<vmem>>, vector<32x648xf32>,
      %188 = arith.index_cast %168 : i32 to index
      %c0_185 = arith.constant 0 : index
      %c0_186 = arith.constant 0 : index
      %189 = vector.load %arg2[%188, %c0_185, %c0_186] : memref<16x32x288xf32, #tpu.memory_space<vmem>>, vector<1x32x288xf32>
      %190 = vector.shape_cast %189 : vector<1x32x288xf32> to vector<32x288xf32>
      %c0_187 = arith.constant 0 : index
      %c0_188 = arith.constant 0 : index
      %191 = vector.load %arg5[%c0_187, %c0_188] : memref<288x648xf32, #tpu.memory_space<vmem>>, vector<288x648xf32>
      %cst_189 = arith.constant dense<0.000000e+00> : vector<32x648xf32>
      %192 = tpu.matmul %190, %191, %cst_189 {dimension_numbers = #tpu.dot_dimension_numbers<[1], [0], [0], [1], [0, 0, 1, 1], [], []>} : vector<32x288xf32>, vector<288x648xf32>, vector<32x648xf32> -> vector<32x648xf32>
      %193 = vector.broadcast %0 : vector<1x648xf32> to vector<32x648xf32>
      %194 = arith.mulf %192, %193 : vector<32x648xf32>
      %cst_190 = arith.constant dense<0.000000e+00> : vector<32xf32>
      %195 = vector.multi_reduction <add>, %194, %cst_190 [1] : vector<32x648xf32> to vector<32xf32>
      %196 = vector.shape_cast %195 : vector<32xf32> to vector<32x1xf32>
      %197 = arith.mulf %194, %194 : vector<32x648xf32>
      %cst_191 = arith.constant dense<0.000000e+00> : vector<32xf32>
      %198 = vector.multi_reduction <add>, %197, %cst_191 [1] : vector<32x648xf32> to vector<32xf32>
      %199 = vector.shape_cast %198 : vector<32xf32> to vector<32x1xf32>
      %cst_192 = arith.constant 0.001953125 : f32
      %200 = vector.broadcast %cst_192 : f32 to vector<32x1xf32>
      %201 = arith.mulf %196, %200 : vector<32x1xf32>
      %cst_193 = arith.constant 0.001953125 : f32
      %202 = vector.broadcast %cst_193 : f32 to vector<32x1xf32>
      %203 = arith.mulf %199, %202 : vector<32x1xf32>
      %204 = arith.mulf %201, %201 : vector<32x1xf32>
      %205 = arith.subf %203, %204 : vector<32x1xf32>
      %cst_194 = arith.constant 0.000000e+00 : f32
      %206 = vector.broadcast %cst_194 : f32 to vector<32x1xf32>
      %207 = arith.maximumf %205, %206 : vector<32x1xf32>
      %208 = vector.broadcast %201 : vector<32x1xf32> to vector<32x648xf32>
      %209 = arith.subf %192, %208 : vector<32x648xf32>
      %cst_195 = arith.constant 9.99999974E-6 : f32
      %210 = vector.broadcast %cst_195 : f32 to vector<32x1xf32>
      %211 = arith.addf %207, %210 : vector<32x1xf32>
      %212 = math.rsqrt %211 : vector<32x1xf32>
      %213 = vector.broadcast %212 : vector<32x1xf32> to vector<32x648xf32>
      %214 = arith.mulf %209, %213 : vector<32x648xf32>
      %cst_196 = arith.constant 0.000000e+00 : f32
      %215 = vector.broadcast %cst_196 : f32 to vector<32x648xf32>
      %216 = arith.maximumf %214, %215 : vector<32x648xf32>
      %217 = vector.broadcast %0 : vector<1x648xf32> to vector<32x648xf32>
      %218 = arith.mulf %216, %217 : vector<32x648xf32>
      %219 = arith.addf %218, %218 : vector<32x648xf32>
      %cst_197 = arith.constant 1.000000e+00 : f32
      %220 = vector.broadcast %cst_197 : f32 to vector<1x648xf32>
      %221 = arith.mulf %220, %0 : vector<1x648xf32>
      %222 = vector.broadcast %221 : vector<1x648xf32> to vector<32x648xf32>
      %223 = arith.addf %219, %222 : vector<32x648xf32>
      %cst_198 = arith.constant 2.000000e+00 : f32
      %224 = vector.broadcast %cst_198 : f32 to vector<32x648xf32>
      %225 = arith.mulf %223, %224 : vector<32x648xf32>
      scf.yield %225 : vector<32x648xf32>
    }
    %c4_i32_6 = arith.constant 4 : i32
    %8 = vector.extract_strided_slice %7 {offsets = [0, 0], sizes = [3, 648], strides = [1, 1]} : vector<32x648xf32> to vector<3x648xf32>
    %c0_7 = arith.constant 0 : index
    %c0_8 = arith.constant 0 : index
    %9 = vector.load %arg3[%c0_7, %c0_8] : memref<3x648xf32, #tpu.memory_space<vmem>>, vector<3x648xf32>
    tpu.vector_store %arg3[%c0_7, %c0_8], %8 {strides = array<i32>} : memref<3x648xf32, #tpu.memory_space<vmem>>, vector<3x648xf32>,
    return
  }
}

</mosaic_0001>

<llo_original>
// kernel: forward.1
$region0: #{forward.1}
  #allocation0 [shape = 'u32[]', space=smem, size = 0x4, offset = 0x4, fixed_abs, tag = 'smem constant byte address 0x4 - core index']
  #allocation1 [shape = 'u32[144,128]{1,0:T(1,128)}', space=vmem, size = 0x12000, scoped, tag = 'internal scratch']
  #allocation2 [shape = 'f32[32,686]{1,0:T(8,128)}', space=vmem, size = 0x18000, scoped, tag = 'scratch operand']
  #allocation3 [shape = 'f32[288,648]{1,0:T(8,128)}', space=vmem, size = 0xd8000, scoped, tag = 'scratch operand']
  %s0 = inlined_call_operand.vmem [shape: f32[3,648], index: 0, kind: input, shape index: {}]
  %s1 = inlined_call_operand.vmem [shape: f32[1,648], index: 1, kind: input, shape index: {}]
  %s2 = inlined_call_operand.hbm [shape: f32[16,32,288], index: 2, kind: input, shape index: {}]
  %s3 = inlined_call_operand.vmem [shape: f32[3,648], index: 3, kind: output, shape index: {}]
  %s4 = sld [smem:[#allocation0]]
  $region33: #{forward.1} parent=0
    _
  %s6 = ssub.s32 1, %s4
  %s7 = scalar_select 0, %s6, %s4
  $region1: #{forward.1} parent=0
    #allocation4 [shape = 'u8[786432]{0}', space=vmem, size = 0xc0000, scoped, tag = 'input window, operand 2, single buffered']
    #allocation5 [shape = 's32[1]{0}', space=sflag, size = 0x4, scoped, tag = 'scoped memory for forward.1']
    %8 = vsyncpa [#allocation5], 0
    // Predicated region
    $region2: #{forward.1} parent=1 // pred_check
      _
    $region3: #{forward.1} parent=1 // pred_check_branch
      %10 = sbr.rel (0) target = $region5
    $region4: #{forward.1} parent=1 // pred_region
      _
    $region5: #{forward.1} parent=1 // pred_fallthru
      _
    // Predicated region
    $region6: #{forward.1} parent=1 // pred_check
      _
    $region7: #{forward.1} parent=1 // pred_check_branch
      %12 = sbr.rel (0) target = $region9
    $region8: #{forward.1} parent=1 // pred_region
      _
    $region9: #{forward.1} parent=1 // pred_fallthru
      _
    // Predicated region
    $region10: #{forward.1} parent=1 // pred_check
      _
    $region11: #{forward.1} parent=1 // pred_check_branch
      %14 = sbr.rel (0) target = $region13
    $region12: #{forward.1} parent=1 // pred_region
      %s16 = ssub.s32 24576, 24576
      %17 = vsyncadd [#allocation5], %s16
      %s18 = sshll.u32 [#allocation4], 4
      %s19 = int_to_ptr.vmem [resolvable:$true] %s18
      %24 = dma.hbm_to_vmem [thread:$0]  %s2, 24576, %s19, [#allocation5], 384, 384, 24
    $region13: #{forward.1} parent=1 // pred_fallthru
      _
    // Predicated region
    $region14: #{forward.1} parent=1 // pred_check
      _
    $region15: #{forward.1} parent=1 // pred_check_branch
      %26 = sbr.rel (0) target = $region17
    $region16: #{forward.1} parent=1 // pred_region
      %27 = dma.done [#allocation5], 24576
    $region17: #{forward.1} parent=1 // pred_fallthru
      _
    %v28 = vld [vmem:[%s1] sm:$0x3f]
    %29 = vst [vmem:[#allocation2] sm:$0xff] 0.0
    %30 = vst [vmem:[#allocation2 + $0x8] sm:$0xff] 0.0
    %31 = vst [vmem:[#allocation2 + $0x10] sm:$0xff] 0.0
    %32 = vst [vmem:[#allocation2 + $0x18] sm:$0xff] 0.0
    %33 = vst [vmem:[#allocation2 + $0x20] sm:$0xff] 0.0
    %vm34 = vcmask 375808
    %35 = vst.msk [vmem:[#allocation2 + $0x28] sm:$0xff] %vm34, 0.0
    %36 = vst [vmem:[#allocation2 + $0x30] sm:$0xff] 0.0
    %37 = vst [vmem:[#allocation2 + $0x38] sm:$0xff] 0.0
    %38 = vst [vmem:[#allocation2 + $0x40] sm:$0xff] 0.0
    %39 = vst [vmem:[#allocation2 + $0x48] sm:$0xff] 0.0
    %40 = vst [vmem:[#allocation2 + $0x50] sm:$0xff] 0.0
    %41 = vst.msk [vmem:[#allocation2 + $0x58] sm:$0xff] %vm34, 0.0
    %42 = vst [vmem:[#allocation2 + $0x60] sm:$0xff] 0.0
    %43 = vst [vmem:[#allocation2 + $0x68] sm:$0xff] 0.0
    %44 = vst [vmem:[#allocation2 + $0x70] sm:$0xff] 0.0
    %45 = vst [vmem:[#allocation2 + $0x78] sm:$0xff] 0.0
    %46 = vst [vmem:[#allocation2 + $0x80] sm:$0xff] 0.0
    %47 = vst.msk [vmem:[#allocation2 + $0x88] sm:$0xff] %vm34, 0.0
    %48 = vst [vmem:[#allocation2 + $0x90] sm:$0xff] 0.0
    %49 = vst [vmem:[#allocation2 + $0x98] sm:$0xff] 0.0
    %50 = vst [vmem:[#allocation2 + $0xa0] sm:$0xff] 0.0
    %51 = vst [vmem:[#allocation2 + $0xa8] sm:$0xff] 0.0
    %52 = vst [vmem:[#allocation2 + $0xb0] sm:$0xff] 0.0
    %53 = vst.msk [vmem:[#allocation2 + $0xb8] sm:$0xff] %vm34, 0.0
    %v54 = vld [vmem:[%s0] sm:$0x77]
    %v55 = vld [vmem:[%s0 + $0x8] sm:$0x77]
    %v56 = vld [vmem:[%s0 + $0x10] sm:$0x77]
    %v60 = vcombine.high %v54, %v54
    %v61 = vcombine.high %v55, %v55
    %v62 = vcombine.high %v56, %v56
    %vm66 = vcmask 1042432
    %v67 = vsel %vm66, %v54, 0.0
    %v68 = vsel %vm66, %v60, 0.0
    %v69 = vsel %vm66, %v55, 0.0
    %v70 = vsel %vm66, %v61, 0.0
    %v71 = vsel %vm66, %v56, 0.0
    %v72 = vsel %vm66, %v62, 0.0
    loop: start=0, step=1, limit=4
    $region18: #{forward.1} parent=1 // loop_pre_header
      _
    $region19: #{forward.1} parent=1 // loop_header
      %s74 = sphi 0, %s78
      %p75 = scmp.ge.s32.totalorder %s74, 4
      %v79 = vphi %v67, %v10299
      %v80 = vphi %v68, %v10300
      %v81 = vphi %v69, %v10301
      %v82 = vphi %v70, %v10302
      %v83 = vphi %v71, %v10303
      %v84 = vphi %v72, %v10304
      %v85 = vphi 0.0, %v10305
      %v86 = vphi 0.0, %v10306
      %v87 = vphi 0.0, %v10307
      %v88 = vphi 0.0, %v10308
      %v89 = vphi 0.0, %v10309
      %v90 = vphi 0.0, %v10310
      %v91 = vphi 0.0, %v10311
      %v92 = vphi 0.0, %v10312
      %v93 = vphi 0.0, %v10313
      %v94 = vphi 0.0, %v10314
      %v95 = vphi 0.0, %v10315
      %v96 = vphi 0.0, %v10316
      %v97 = vphi 0.0, %v10317
      %v98 = vphi 0.0, %v10318
      %v99 = vphi 0.0, %v10319
      %v100 = vphi 0.0, %v10320
      %v101 = vphi 0.0, %v10321
      %v102 = vphi 0.0, %v10322
    $region20: #{forward.1} parent=1 // loop_header_branch
      %77 = sbr.rel (%p75) target = $region24
    $region21: #{forward.1} parent=1 // loop_body
      %s103 = smul.u32 %s74, 4
      %128 = vrot.lane.b32.xlu0 %v79, 19
      %v129 = vpop.permute.xlu0 %128
      %130 = vrot.lane.b32.xlu0 %v80, 19
      %v131 = vpop.permute.xlu0 %130
      %132 = vrot.lane.b32.xlu0 %v81, 19
      %v133 = vpop.permute.xlu0 %132
      %134 = vrot.lane.b32.xlu0 %v82, 19
      %v135 = vpop.permute.xlu0 %134
      %136 = vrot.lane.b32.xlu0 %v83, 19
      %v137 = vpop.permute.xlu0 %136
      %138 = vrot.lane.b32.xlu0 %v84, 19
      %v139 = vpop.permute.xlu0 %138
      %140 = vrot.lane.b32.xlu0 %v85, 19
      %v141 = vpop.permute.xlu0 %140
      %142 = vrot.lane.b32.xlu0 %v86, 19
      %v143 = vpop.permute.xlu0 %142
      %144 = vrot.lane.b32.xlu0 %v87, 19
      %v145 = vpop.permute.xlu0 %144
      %146 = vrot.lane.b32.xlu0 %v88, 19
      %v147 = vpop.permute.xlu0 %146
      %148 = vrot.lane.b32.xlu0 %v89, 19
      %v149 = vpop.permute.xlu0 %148
      %150 = vrot.lane.b32.xlu0 %v90, 19
      %v151 = vpop.permute.xlu0 %150
      %152 = vrot.lane.b32.xlu0 %v91, 19
      %v153 = vpop.permute.xlu0 %152
      %154 = vrot.lane.b32.xlu0 %v92, 19
      %v155 = vpop.permute.xlu0 %154
      %156 = vrot.lane.b32.xlu0 %v93, 19
      %v157 = vpop.permute.xlu0 %156
      %158 = vrot.lane.b32.xlu0 %v94, 19
      %v159 = vpop.permute.xlu0 %158
      %160 = vrot.lane.b32.xlu0 %v95, 19
      %v161 = vpop.permute.xlu0 %160
      %162 = vrot.lane.b32.xlu0 %v96, 19
      %v163 = vpop.permute.xlu0 %162
      %164 = vrot.lane.b32.xlu0 %v97, 19
      %v165 = vpop.permute.xlu0 %164
      %166 = vrot.lane.b32.xlu0 %v98, 19
      %v167 = vpop.permute.xlu0 %166
      %168 = vrot.lane.b32.xlu0 %v99, 19
      %v169 = vpop.permute.xlu0 %168
      %170 = vrot.lane.b32.xlu0 %v100, 19
      %v171 = vpop.permute.xlu0 %170
      %172 = vrot.lane.b32.xlu0 %v101, 19
      %v173 = vpop.permute.xlu0 %172
      %174 = vrot.lane.b32.xlu0 %v102, 19
      %v175 = vpop.permute.xlu0 %174
      %vm176 = vcmask 154624
      %v177 = vsel %vm176, %v129, %v131
      %v178 = vsel %vm176, %v131, %v133
      %v179 = vsel %vm176, %v133, %v135
      %v180 = vsel %vm176, %v135, %v137
      %v181 = vsel %vm176, %v137, %v139
      %v182 = vsel %vm176, %v141, %v143
      %v183 = vsel %vm176, %v143, %v145
      %v184 = vsel %vm176, %v145, %v147
      %v185 = vsel %vm176, %v147, %v149
      %v186 = vsel %vm176, %v149, %v151
      %v187 = vsel %vm176, %v153, %v155
      %v188 = vsel %vm176, %v155, %v157
      %v189 = vsel %vm176, %v157, %v159
      %v190 = vsel %vm176, %v159, %v161
      %v191 = vsel %vm176, %v161, %v163
      %v192 = vsel %vm176, %v165, %v167
      %v193 = vsel %vm176, %v167, %v169
      %v194 = vsel %vm176, %v169, %v171
      %v195 = vsel %vm176, %v171, %v173
      %v196 = vsel %vm176, %v173, %v175
      %vm221 = vcmask 1047704
      %222 = vst.msk [vmem:[#allocation2] sm:$0xff] %vm221, %v129
      %223 = vst [vmem:[#allocation2 + $0x8] sm:$0xff] %v177
      %224 = vst [vmem:[#allocation2 + $0x10] sm:$0xff] %v178
      %225 = vst [vmem:[#allocation2 + $0x18] sm:$0xff] %v179
      %226 = vst [vmem:[#allocation2 + $0x20] sm:$0xff] %v180
      %vm227 = vcmask 220160
      %228 = vst.msk [vmem:[#allocation2 + $0x28] sm:$0xff] %vm227, %v181
      %229 = vst.msk [vmem:[#allocation2 + $0x30] sm:$0xff] %vm221, %v141
      %230 = vst [vmem:[#allocation2 + $0x38] sm:$0xff] %v182
      %231 = vst [vmem:[#allocation2 + $0x40] sm:$0xff] %v183
      %232 = vst [vmem:[#allocation2 + $0x48] sm:$0xff] %v184
      %233 = vst [vmem:[#allocation2 + $0x50] sm:$0xff] %v185
      %234 = vst.msk [vmem:[#allocation2 + $0x58] sm:$0xff] %vm227, %v186
      %235 = vst.msk [vmem:[#allocation2 + $0x60] sm:$0xff] %vm221, %v153
      %236 = vst [vmem:[#allocation2 + $0x68] sm:$0xff] %v187
      %237 = vst [vmem:[#allocation2 + $0x70] sm:$0xff] %v188
      %238 = vst [vmem:[#allocation2 + $0x78] sm:$0xff] %v189
      %239 = vst [vmem:[#allocation2 + $0x80] sm:$0xff] %v190
      %240 = vst.msk [vmem:[#allocation2 + $0x88] sm:$0xff] %vm227, %v191
      %241 = vst.msk [vmem:[#allocation2 + $0x90] sm:$0xff] %vm221, %v165
      %242 = vst [vmem:[#allocation2 + $0x98] sm:$0xff] %v192
      %243 = vst [vmem:[#allocation2 + $0xa0] sm:$0xff] %v193
      %244 = vst [vmem:[#allocation2 + $0xa8] sm:$0xff] %v194
      %245 = vst [vmem:[#allocation2 + $0xb0] sm:$0xff] %v195
      %246 = vst.msk [vmem:[#allocation2 + $0xb8] sm:$0xff] %vm227, %v196
      %v247 = vld [vmem:[#allocation2] sm:$0xff]
      %v248 = vld [vmem:[#allocation2 + $0x8] sm:$0xff]
      %v249 = vld [vmem:[#allocation2 + $0x10] sm:$0xff]
      %v250 = vld [vmem:[#allocation2 + $0x18] sm:$0xff]
      %v251 = vld [vmem:[#allocation2 + $0x20] sm:$0xff]
      %v252 = vld [vmem:[#allocation2 + $0x28] sm:$0xff]
      %v253 = vld [vmem:[#allocation2 + $0x30] sm:$0xff]
      %v254 = vld [vmem:[#allocation2 + $0x38] sm:$0xff]
      %v255 = vld [vmem:[#allocation2 + $0x40] sm:$0xff]
      %v256 = vld [vmem:[#allocation2 + $0x48] sm:$0xff]
      %v257 = vld [vmem:[#allocation2 + $0x50] sm:$0xff]
      %v258 = vld [vmem:[#allocation2 + $0x58] sm:$0xff]
      %v259 = vld [vmem:[#allocation2 + $0x60] sm:$0xff]
      %v260 = vld [vmem:[#allocation2 + $0x68] sm:$0xff]
      %v261 = vld [vmem:[#allocation2 + $0x70] sm:$0xff]
      %v262 = vld [vmem:[#allocation2 + $0x78] sm:$0xff]
      %v263 = vld [vmem:[#allocation2 + $0x80] sm:$0xff]
      %v264 = vld [vmem:[#allocation2 + $0x88] sm:$0xff]
      %v265 = vld [vmem:[#allocation2 + $0x90] sm:$0xff]
      %v266 = vld [vmem:[#allocation2 + $0x98] sm:$0xff]
      %v267 = vld [vmem:[#allocation2 + $0xa0] sm:$0xff]
      %v268 = vld [vmem:[#allocation2 + $0xa8] sm:$0xff]
      %v269 = vld [vmem:[#allocation2 + $0xb0] sm:$0xff]
      %v270 = vld [vmem:[#allocation2 + $0xb8] sm:$0xff]
      %271 = vst [vmem:[#allocation3] sm:$0xff] %v247
      %272 = vst [vmem:[#allocation3 + $0x8] sm:$0xff] %v248
      %273 = vst [vmem:[#allocation3 + $0x10] sm:$0xff] %v249
      %274 = vst [vmem:[#allocation3 + $0x18] sm:$0xff] %v250
      %275 = vst [vmem:[#allocation3 + $0x20] sm:$0xff] %v251
      %vm276 = vcmask 64512
      %277 = vst.msk [vmem:[#allocation3 + $0x28] sm:$0xff] %vm276, %v252
      %278 = vst [vmem:[#allocation3 + $0x30] sm:$0xff] %v253
      %279 = vst [vmem:[#allocation3 + $0x38] sm:$0xff] %v254
      %280 = vst [vmem:[#allocation3 + $0x40] sm:$0xff] %v255
      %281 = vst [vmem:[#allocation3 + $0x48] sm:$0xff] %v256
      %282 = vst [vmem:[#allocation3 + $0x50] sm:$0xff] %v257
      %283 = vst.msk [vmem:[#allocation3 + $0x58] sm:$0xff] %vm276, %v258
      %284 = vst [vmem:[#allocation3 + $0x60] sm:$0xff] %v259
      %285 = vst [vmem:[#allocation3 + $0x68] sm:$0xff] %v260
      %286 = vst [vmem:[#allocation3 + $0x70] sm:$0xff] %v261
      %287 = vst [vmem:[#allocation3 + $0x78] sm:$0xff] %v262
      %288 = vst [vmem:[#allocation3 + $0x80] sm:$0xff] %v263
      %289 = vst.msk [vmem:[#allocation3 + $0x88] sm:$0xff] %vm276, %v264
      %290 = vst [vmem:[#allocation3 + $0x90] sm:$0xff] %v265
      %291 = vst [vmem:[#allocation3 + $0x98] sm:$0xff] %v266
      %292 = vst [vmem:[#allocation3 + $0xa0] sm:$0xff] %v267
      %293 = vst [vmem:[#allocation3 + $0xa8] sm:$0xff] %v268
      %294 = vst [vmem:[#allocation3 + $0xb0] sm:$0xff] %v269
      %295 = vst.msk [vmem:[#allocation3 + $0xb8] sm:$0xff] %vm276, %v270
      %v296 = vld [vmem:[#allocation2] sm:$0xff]
      %v297 = vld [vmem:[#allocation2 + $0x8] sm:$0xff]
      %v298 = vld [vmem:[#allocation2 + $0x10] sm:$0xff]
      %v299 = vld [vmem:[#allocation2 + $0x18] sm:$0xff]
      %v300 = vld [vmem:[#allocation2 + $0x20] sm:$0xff]
      %v301 = vld [vmem:[#allocation2 + $0x28] sm:$0xff]
      %v302 = vld [vmem:[#allocation2 + $0x30] sm:$0xff]
      %v303 = vld [vmem:[#allocation2 + $0x38] sm:$0xff]
      %v304 = vld [vmem:[#allocation2 + $0x40] sm:$0xff]
      %v305 = vld [vmem:[#allocation2 + $0x48] sm:$0xff]
      %v306 = vld [vmem:[#allocation2 + $0x50] sm:$0xff]
      %v307 = vld [vmem:[#allocation2 + $0x58] sm:$0xff]
      %v308 = vld [vmem:[#allocation2 + $0x60] sm:$0xff]
      %v309 = vld [vmem:[#allocation2 + $0x68] sm:$0xff]
      %v310 = vld [vmem:[#allocation2 + $0x70] sm:$0xff]
      %v311 = vld [vmem:[#allocation2 + $0x78] sm:$0xff]
      %v312 = vld [vmem:[#allocation2 + $0x80] sm:$0xff]
      %v313 = vld [vmem:[#allocation2 + $0x88] sm:$0xff]
      %v314 = vld [vmem:[#allocation2 + $0x90] sm:$0xff]
      %v315 = vld [vmem:[#allocation2 + $0x98] sm:$0xff]
      %v316 = vld [vmem:[#allocation2 + $0xa0] sm:$0xff]
      %v317 = vld [vmem:[#allocation2 + $0xa8] sm:$0xff]
      %v318 = vld [vmem:[#allocation2 + $0xb0] sm:$0xff]
      %v319 = vld [vmem:[#allocation2 + $0xb8] sm:$0xff]
      %344 = vrot.lane.b32.xlu0 %v296, 127
      %v345 = vpop.permute.xlu0 %344
      %346 = vrot.lane.b32.xlu0 %v297, 127
      %v347 = vpop.permute.xlu0 %346
      %348 = vrot.lane.b32.xlu0 %v298, 127
      %v349 = vpop.permute.xlu0 %348
      %350 = vrot.lane.b32.xlu0 %v299, 127
      %v351 = vpop.permute.xlu0 %350
      %352 = vrot.lane.b32.xlu0 %v300, 127
      %v353 = vpop.permute.xlu0 %352
      %354 = vrot.lane.b32.xlu0 %v301, 127
      %v355 = vpop.permute.xlu0 %354
      %356 = vrot.lane.b32.xlu0 %v302, 127
      %v357 = vpop.permute.xlu0 %356
      %358 = vrot.lane.b32.xlu0 %v303, 127
      %v359 = vpop.permute.xlu0 %358
      %360 = vrot.lane.b32.xlu0 %v304, 127
      %v361 = vpop.permute.xlu0 %360
      %362 = vrot.lane.b32.xlu0 %v305, 127
      %v363 = vpop.permute.xlu0 %362
      %364 = vrot.lane.b32.xlu0 %v306, 127
      %v365 = vpop.permute.xlu0 %364
      %366 = vrot.lane.b32.xlu0 %v307, 127
      %v367 = vpop.permute.xlu0 %366
      %368 = vrot.lane.b32.xlu0 %v308, 127
      %v369 = vpop.permute.xlu0 %368
      %370 = vrot.lane.b32.xlu0 %v309, 127
      %v371 = vpop.permute.xlu0 %370
      %372 = vrot.lane.b32.xlu0 %v310, 127
      %v373 = vpop.permute.xlu0 %372
      %374 = vrot.lane.b32.xlu0 %v311, 127
      %v375 = vpop.permute.xlu0 %374
      %376 = vrot.lane.b32.xlu0 %v312, 127
      %v377 = vpop.permute.xlu0 %376
      %378 = vrot.lane.b32.xlu0 %v313, 127
      %v379 = vpop.permute.xlu0 %378
      %380 = vrot.lane.b32.xlu0 %v314, 127
      %v381 = vpop.permute.xlu0 %380
      %382 = vrot.lane.b32.xlu0 %v315, 127
      %v383 = vpop.permute.xlu0 %382
      %384 = vrot.lane.b32.xlu0 %v316, 127
      %v385 = vpop.permute.xlu0 %384
      %386 = vrot.lane.b32.xlu0 %v317, 127
      %v387 = vpop.permute.xlu0 %386
      %388 = vrot.lane.b32.xlu0 %v318, 127
      %v389 = vpop.permute.xlu0 %388
      %390 = vrot.lane.b32.xlu0 %v319, 127
      %v391 = vpop.permute.xlu0 %390
      %vm392 = vcmask 1039360
      %v393 = vsel %vm392, %v345, %v347
      %v394 = vsel %vm392, %v347, %v349
      %v395 = vsel %vm392, %v349, %v351
      %v396 = vsel %vm392, %v351, %v353
      %v397 = vsel %vm392, %v353, %v355
      %v398 = vsel %vm392, %v357, %v359
      %v399 = vsel %vm392, %v359, %v361
      %v400 = vsel %vm392, %v361, %v363
      %v401 = vsel %vm392, %v363, %v365
      %v402 = vsel %vm392, %v365, %v367
      %v403 = vsel %vm392, %v369, %v371
      %v404 = vsel %vm392, %v371, %v373
      %v405 = vsel %vm392, %v373, %v375
      %v406 = vsel %vm392, %v375, %v377
      %v407 = vsel %vm392, %v377, %v379
      %v408 = vsel %vm392, %v381, %v383
      %v409 = vsel %vm392, %v383, %v385
      %v410 = vsel %vm392, %v385, %v387
      %v411 = vsel %vm392, %v387, %v389
      %v412 = vsel %vm392, %v389, %v391
      %437 = vst [vmem:[#allocation3 + $0xc0] sm:$0xff] %v393
      %438 = vst [vmem:[#allocation3 + $0xc8] sm:$0xff] %v394
      %439 = vst [vmem:[#allocation3 + $0xd0] sm:$0xff] %v395
      %440 = vst [vmem:[#allocation3 + $0xd8] sm:$0xff] %v396
      %441 = vst [vmem:[#allocation3 + $0xe0] sm:$0xff] %v397
      %442 = vst.msk [vmem:[#allocation3 + $0xe8] sm:$0xff] %vm276, %v355
      %443 = vst [vmem:[#allocation3 + $0xf0] sm:$0xff] %v398
      %444 = vst [vmem:[#allocation3 + $0xf8] sm:$0xff] %v399
      %445 = vst [vmem:[#allocation3 + $0x100] sm:$0xff] %v400
      %446 = vst [vmem:[#allocation3 + $0x108] sm:$0xff] %v401
      %447 = vst [vmem:[#allocation3 + $0x110] sm:$0xff] %v402
      %448 = vst.msk [vmem:[#allocation3 + $0x118] sm:$0xff] %vm276, %v367
      %449 = vst [vmem:[#allocation3 + $0x120] sm:$0xff] %v403
      %450 = vst [vmem:[#allocation3 + $0x128] sm:$0xff] %v404
      %451 = vst [vmem:[#allocation3 + $0x130] sm:$0xff] %v405
      %452 = vst [vmem:[#allocation3 + $0x138] sm:$0xff] %v406
      %453 = vst [vmem:[#allocation3 + $0x140] sm:$0xff] %v407
      %454 = vst.msk [vmem:[#allocation3 + $0x148] sm:$0xff] %vm276, %v379
      %455 = vst [vmem:[#allocation3 + $0x150] sm:$0xff] %v408
      %456 = vst [vmem:[#allocation3 + $0x158] sm:$0xff] %v409
      %457 = vst [vmem:[#allocation3 + $0x160] sm:$0xff] %v410
      %458 = vst [vmem:[#allocation3 + $0x168] sm:$0xff] %v411
      %459 = vst [vmem:[#allocation3 + $0x170] sm:$0xff] %v412
      %460 = vst.msk [vmem:[#allocation3 + $0x178] sm:$0xff] %vm276, %v391
      %v461 = vld [vmem:[#allocation2] sm:$0xff]
      %v462 = vld [vmem:[#allocation2 + $0x8] sm:$0xff]
      %v463 = vld [vmem:[#allocation2 + $0x10] sm:$0xff]
      %v464 = vld [vmem:[#allocation2 + $0x18] sm:$0xff]
      %v465 = vld [vmem:[#allocation2 + $0x20] sm:$0xff]
      %v466 = vld [vmem:[#allocation2 + $0x28] sm:$0xff]
      %v467 = vld [vmem:[#allocation2 + $0x30] sm:$0xff]
      %v468 = vld [vmem:[#allocation2 + $0x38] sm:$0xff]
      %v469 = vld [vmem:[#allocation2 + $0x40] sm:$0xff]
      %v470 = vld [vmem:[#allocation2 + $0x48] sm:$0xff]
      %v471 = vld [vmem:[#allocation2 + $0x50] sm:$0xff]
      %v472 = vld [vmem:[#allocation2 + $0x58] sm:$0xff]
      %v473 = vld [vmem:[#allocation2 + $0x60] sm:$0xff]
      %v474 = vld [vmem:[#allocation2 + $0x68] sm:$0xff]
      %v475 = vld [vmem:[#allocation2 + $0x70] sm:$0xff]
      %v476 = vld [vmem:[#allocation2 + $0x78] sm:$0xff]
      %v477 = vld [vmem:[#allocation2 + $0x80] sm:$0xff]
      %v478 = vld [vmem:[#allocation2 + $0x88] sm:$0xff]
      %v479 = vld [vmem:[#allocation2 + $0x90] sm:$0xff]
      %v480 = vld [vmem:[#allocation2 + $0x98] sm:$0xff]
      %v481 = vld [vmem:[#allocation2 + $0xa0] sm:$0xff]
      %v482 = vld [vmem:[#allocation2 + $0xa8] sm:$0xff]
      %v483 = vld [vmem:[#allocation2 + $0xb0] sm:$0xff]
      %v484 = vld [vmem:[#allocation2 + $0xb8] sm:$0xff]
      %509 = vrot.lane.b32.xlu0 %v461, 126
      %v510 = vpop.permute.xlu0 %509
      %511 = vrot.lane.b32.xlu0 %v462, 126
      %v512 = vpop.permute.xlu0 %511
      %513 = vrot.lane.b32.xlu0 %v463, 126
      %v514 = vpop.permute.xlu0 %513
      %515 = vrot.lane.b32.xlu0 %v464, 126
      %v516 = vpop.permute.xlu0 %515
      %517 = vrot.lane.b32.xlu0 %v465, 126
      %v518 = vpop.permute.xlu0 %517
      %519 = vrot.lane.b32.xlu0 %v466, 126
      %v520 = vpop.permute.xlu0 %519
      %521 = vrot.lane.b32.xlu0 %v467, 126
      %v522 = vpop.permute.xlu0 %521
      %523 = vrot.lane.b32.xlu0 %v468, 126
      %v524 = vpop.permute.xlu0 %523
      %525 = vrot.lane.b32.xlu0 %v469, 126
      %v526 = vpop.permute.xlu0 %525
      %527 = vrot.lane.b32.xlu0 %v470, 126
      %v528 = vpop.permute.xlu0 %527
      %529 = vrot.lane.b32.xlu0 %v471, 126
      %v530 = vpop.permute.xlu0 %529
      %531 = vrot.lane.b32.xlu0 %v472, 126
      %v532 = vpop.permute.xlu0 %531
      %533 = vrot.lane.b32.xlu0 %v473, 126
      %v534 = vpop.permute.xlu0 %533
      %535 = vrot.lane.b32.xlu0 %v474, 126
      %v536 = vpop.permute.xlu0 %535
      %537 = vrot.lane.b32.xlu0 %v475, 126
      %v538 = vpop.permute.xlu0 %537
      %539 = vrot.lane.b32.xlu0 %v476, 126
      %v540 = vpop.permute.xlu0 %539
      %541 = vrot.lane.b32.xlu0 %v477, 126
      %v542 = vpop.permute.xlu0 %541
      %543 = vrot.lane.b32.xlu0 %v478, 126
      %v544 = vpop.permute.xlu0 %543
      %545 = vrot.lane.b32.xlu0 %v479, 126
      %v546 = vpop.permute.xlu0 %545
      %547 = vrot.lane.b32.xlu0 %v480, 126
      %v548 = vpop.permute.xlu0 %547
      %549 = vrot.lane.b32.xlu0 %v481, 126
      %v550 = vpop.permute.xlu0 %549
      %551 = vrot.lane.b32.xlu0 %v482, 126
      %v552 = vpop.permute.xlu0 %551
      %553 = vrot.lane.b32.xlu0 %v483, 126
      %v554 = vpop.permute.xlu0 %553
      %555 = vrot.lane.b32.xlu0 %v484, 126
      %v556 = vpop.permute.xlu0 %555
      %vm557 = vcmask 1031168
      %v558 = vsel %vm557, %v510, %v512
      %v559 = vsel %vm557, %v512, %v514
      %v560 = vsel %vm557, %v514, %v516
      %v561 = vsel %vm557, %v516, %v518
      %v562 = vsel %vm557, %v518, %v520
      %v563 = vsel %vm557, %v522, %v524
      %v564 = vsel %vm557, %v524, %v526
      %v565 = vsel %vm557, %v526, %v528
      %v566 = vsel %vm557, %v528, %v530
      %v567 = vsel %vm557, %v530, %v532
      %v568 = vsel %vm557, %v534, %v536
      %v569 = vsel %vm557, %v536, %v538
      %v570 = vsel %vm557, %v538, %v540
      %v571 = vsel %vm557, %v540, %v542
      %v572 = vsel %vm557, %v542, %v544
      %v573 = vsel %vm557, %v546, %v548
      %v574 = vsel %vm557, %v548, %v550
      %v575 = vsel %vm557, %v550, %v552
      %v576 = vsel %vm557, %v552, %v554
      %v577 = vsel %vm557, %v554, %v556
      %602 = vst [vmem:[#allocation3 + $0x180] sm:$0xff] %v558
      %603 = vst [vmem:[#allocation3 + $0x188] sm:$0xff] %v559
      %604 = vst [vmem:[#allocation3 + $0x190] sm:$0xff] %v560
      %605 = vst [vmem:[#allocation3 + $0x198] sm:$0xff] %v561
      %606 = vst [vmem:[#allocation3 + $0x1a0] sm:$0xff] %v562
      %607 = vst.msk [vmem:[#allocation3 + $0x1a8] sm:$0xff] %vm276, %v520
      %608 = vst [vmem:[#allocation3 + $0x1b0] sm:$0xff] %v563
      %609 = vst [vmem:[#allocation3 + $0x1b8] sm:$0xff] %v564
      %610 = vst [vmem:[#allocation3 + $0x1c0] sm:$0xff] %v565
      %611 = vst [vmem:[#allocation3 + $0x1c8] sm:$0xff] %v566
      %612 = vst [vmem:[#allocation3 + $0x1d0] sm:$0xff] %v567
      %613 = vst.msk [vmem:[#allocation3 + $0x1d8] sm:$0xff] %vm276, %v532
      %614 = vst [vmem:[#allocation3 + $0x1e0] sm:$0xff] %v568
      %615 = vst [vmem:[#allocation3 + $0x1e8] sm:$0xff] %v569
      %616 = vst [vmem:[#allocation3 + $0x1f0] sm:$0xff] %v570
      %617 = vst [vmem:[#allocation3 + $0x1f8] sm:$0xff] %v571
      %618 = vst [vmem:[#allocation3 + $0x200] sm:$0xff] %v572
      %619 = vst.msk [vmem:[#allocation3 + $0x208] sm:$0xff] %vm276, %v544
      %620 = vst [vmem:[#allocation3 + $0x210] sm:$0xff] %v573
      %621 = vst [vmem:[#allocation3 + $0x218] sm:$0xff] %v574
      %622 = vst [vmem:[#allocation3 + $0x220] sm:$0xff] %v575
      %623 = vst [vmem:[#allocation3 + $0x228] sm:$0xff] %v576
      %624 = vst [vmem:[#allocation3 + $0x230] sm:$0xff] %v577
      %625 = vst.msk [vmem:[#allocation3 + $0x238] sm:$0xff] %vm276, %v556
      %v626 = vld [vmem:[#allocation2] sm:$0xff]
      %v627 = vld [vmem:[#allocation2 + $0x8] sm:$0xff]
      %v628 = vld [vmem:[#allocation2 + $0x10] sm:$0xff]
      %v629 = vld [vmem:[#allocation2 + $0x18] sm:$0xff]
      %v630 = vld [vmem:[#allocation2 + $0x20] sm:$0xff]
      %v631 = vld [vmem:[#allocation2 + $0x28] sm:$0xff]
      %v632 = vld [vmem:[#allocation2 + $0x30] sm:$0xff]
      %v633 = vld [vmem:[#allocation2 + $0x38] sm:$0xff]
      %v634 = vld [vmem:[#allocation2 + $0x40] sm:$0xff]
      %v635 = vld [vmem:[#allocation2 + $0x48] sm:$0xff]
      %v636 = vld [vmem:[#allocation2 + $0x50] sm:$0xff]
      %v637 = vld [vmem:[#allocation2 + $0x58] sm:$0xff]
      %v638 = vld [vmem:[#allocation2 + $0x60] sm:$0xff]
      %v639 = vld [vmem:[#allocation2 + $0x68] sm:$0xff]
      %v640 = vld [vmem:[#allocation2 + $0x70] sm:$0xff]
      %v641 = vld [vmem:[#allocation2 + $0x78] sm:$0xff]
      %v642 = vld [vmem:[#allocation2 + $0x80] sm:$0xff]
      %v643 = vld [vmem:[#allocation2 + $0x88] sm:$0xff]
      %v644 = vld [vmem:[#allocation2 + $0x90] sm:$0xff]
      %v645 = vld [vmem:[#allocation2 + $0x98] sm:$0xff]
      %v646 = vld [vmem:[#allocation2 + $0xa0] sm:$0xff]
      %v647 = vld [vmem:[#allocation2 + $0xa8] sm:$0xff]
      %v648 = vld [vmem:[#allocation2 + $0xb0] sm:$0xff]
      %v649 = vld [vmem:[#allocation2 + $0xb8] sm:$0xff]
      %674 = vrot.lane.b32.xlu0 %v626, 110
      %v675 = vpop.permute.xlu0 %674
      %676 = vrot.lane.b32.xlu0 %v627, 110
      %v677 = vpop.permute.xlu0 %676
      %678 = vrot.lane.b32.xlu0 %v628, 110
      %v679 = vpop.permute.xlu0 %678
      %680 = vrot.lane.b32.xlu0 %v629, 110
      %v681 = vpop.permute.xlu0 %680
      %682 = vrot.lane.b32.xlu0 %v630, 110
      %v683 = vpop.permute.xlu0 %682
      %684 = vrot.lane.b32.xlu0 %v631, 110
      %v685 = vpop.permute.xlu0 %684
      %686 = vrot.lane.b32.xlu0 %v632, 110
      %v687 = vpop.permute.xlu0 %686
      %688 = vrot.lane.b32.xlu0 %v633, 110
      %v689 = vpop.permute.xlu0 %688
      %690 = vrot.lane.b32.xlu0 %v634, 110
      %v691 = vpop.permute.xlu0 %690
      %692 = vrot.lane.b32.xlu0 %v635, 110
      %v693 = vpop.permute.xlu0 %692
      %694 = vrot.lane.b32.xlu0 %v636, 110
      %v695 = vpop.permute.xlu0 %694
      %696 = vrot.lane.b32.xlu0 %v637, 110
      %v697 = vpop.permute.xlu0 %696
      %698 = vrot.lane.b32.xlu0 %v638, 110
      %v699 = vpop.permute.xlu0 %698
      %700 = vrot.lane.b32.xlu0 %v639, 110
      %v701 = vpop.permute.xlu0 %700
      %702 = vrot.lane.b32.xlu0 %v640, 110
      %v703 = vpop.permute.xlu0 %702
      %704 = vrot.lane.b32.xlu0 %v641, 110
      %v705 = vpop.permute.xlu0 %704
      %706 = vrot.lane.b32.xlu0 %v642, 110
      %v707 = vpop.permute.xlu0 %706
      %708 = vrot.lane.b32.xlu0 %v643, 110
      %v709 = vpop.permute.xlu0 %708
      %710 = vrot.lane.b32.xlu0 %v644, 110
      %v711 = vpop.permute.xlu0 %710
      %712 = vrot.lane.b32.xlu0 %v645, 110
      %v713 = vpop.permute.xlu0 %712
      %714 = vrot.lane.b32.xlu0 %v646, 110
      %v715 = vpop.permute.xlu0 %714
      %716 = vrot.lane.b32.xlu0 %v647, 110
      %v717 = vpop.permute.xlu0 %716
      %718 = vrot.lane.b32.xlu0 %v648, 110
      %v719 = vpop.permute.xlu0 %718
      %720 = vrot.lane.b32.xlu0 %v649, 110
      %v721 = vpop.permute.xlu0 %720
      %vm722 = vcmask 900096
      %v723 = vsel %vm722, %v675, %v677
      %v724 = vsel %vm722, %v677, %v679
      %v725 = vsel %vm722, %v679, %v681
      %v726 = vsel %vm722, %v681, %v683
      %v727 = vsel %vm722, %v683, %v685
      %v728 = vsel %vm722, %v687, %v689
      %v729 = vsel %vm722, %v689, %v691
      %v730 = vsel %vm722, %v691, %v693
      %v731 = vsel %vm722, %v693, %v695
      %v732 = vsel %vm722, %v695, %v697
      %v733 = vsel %vm722, %v699, %v701
      %v734 = vsel %vm722, %v701, %v703
      %v735 = vsel %vm722, %v703, %v705
      %v736 = vsel %vm722, %v705, %v707
      %v737 = vsel %vm722, %v707, %v709
      %v738 = vsel %vm722, %v711, %v713
      %v739 = vsel %vm722, %v713, %v715
      %v740 = vsel %vm722, %v715, %v717
      %v741 = vsel %vm722, %v717, %v719
      %v742 = vsel %vm722, %v719, %v721
      %767 = vst [vmem:[#allocation3 + $0x240] sm:$0xff] %v723
      %768 = vst [vmem:[#allocation3 + $0x248] sm:$0xff] %v724
      %769 = vst [vmem:[#allocation3 + $0x250] sm:$0xff] %v725
      %770 = vst [vmem:[#allocation3 + $0x258] sm:$0xff] %v726
      %771 = vst [vmem:[#allocation3 + $0x260] sm:$0xff] %v727
      %772 = vst.msk [vmem:[#allocation3 + $0x268] sm:$0xff] %vm276, %v685
      %773 = vst [vmem:[#allocation3 + $0x270] sm:$0xff] %v728
      %774 = vst [vmem:[#allocation3 + $0x278] sm:$0xff] %v729
      %775 = vst [vmem:[#allocation3 + $0x280] sm:$0xff] %v730
      %776 = vst [vmem:[#allocation3 + $0x288] sm:$0xff] %v731
      %777 = vst [vmem:[#allocation3 + $0x290] sm:$0xff] %v732
      %778 = vst.msk [vmem:[#allocation3 + $0x298] sm:$0xff] %vm276, %v697
      %779 = vst [vmem:[#allocation3 + $0x2a0] sm:$0xff] %v733
      %780 = vst [vmem:[#allocation3 + $0x2a8] sm:$0xff] %v734
      %781 = vst [vmem:[#allocation3 + $0x2b0] sm:$0xff] %v735
      %782 = vst [vmem:[#allocation3 + $0x2b8] sm:$0xff] %v736
      %783 = vst [vmem:[#allocation3 + $0x2c0] sm:$0xff] %v737
      %784 = vst.msk [vmem:[#allocation3 + $0x2c8] sm:$0xff] %vm276, %v709
      %785 = vst [vmem:[#allocation3 + $0x2d0] sm:$0xff] %v738
      %786 = vst [vmem:[#allocation3 + $0x2d8] sm:$0xff] %v739
      %787 = vst [vmem:[#allocation3 + $0x2e0] sm:$0xff] %v740
      %788 = vst [vmem:[#allocation3 + $0x2e8] sm:$0xff] %v741
      %789 = vst [vmem:[#allocation3 + $0x2f0] sm:$0xff] %v742
      %790 = vst.msk [vmem:[#allocation3 + $0x2f8] sm:$0xff] %vm276, %v721
      %v791 = vld [vmem:[#allocation2] sm:$0xff]
      %v792 = vld [vmem:[#allocation2 + $0x8] sm:$0xff]
      %v793 = vld [vmem:[#allocation2 + $0x10] sm:$0xff]
      %v794 = vld [vmem:[#allocation2 + $0x18] sm:$0xff]
      %v795 = vld [vmem:[#allocation2 + $0x20] sm:$0xff]
      %v796 = vld [vmem:[#allocation2 + $0x28] sm:$0xff]
      %v797 = vld [vmem:[#allocation2 + $0x30] sm:$0xff]
      %v798 = vld [vmem:[#allocation2 + $0x38] sm:$0xff]
      %v799 = vld [vmem:[#allocation2 + $0x40] sm:$0xff]
      %v800 = vld [vmem:[#allocation2 + $0x48] sm:$0xff]
      %v801 = vld [vmem:[#allocation2 + $0x50] sm:$0xff]
      %v802 = vld [vmem:[#allocation2 + $0x58] sm:$0xff]
      %v803 = vld [vmem:[#allocation2 + $0x60] sm:$0xff]
      %v804 = vld [vmem:[#allocation2 + $0x68] sm:$0xff]
      %v805 = vld [vmem:[#allocation2 + $0x70] sm:$0xff]
      %v806 = vld [vmem:[#allocation2 + $0x78] sm:$0xff]
      %v807 = vld [vmem:[#allocation2 + $0x80] sm:$0xff]
      %v808 = vld [vmem:[#allocation2 + $0x88] sm:$0xff]
      %v809 = vld [vmem:[#allocation2 + $0x90] sm:$0xff]
      %v810 = vld [vmem:[#allocation2 + $0x98] sm:$0xff]
      %v811 = vld [vmem:[#allocation2 + $0xa0] sm:$0xff]
      %v812 = vld [vmem:[#allocation2 + $0xa8] sm:$0xff]
      %v813 = vld [vmem:[#allocation2 + $0xb0] sm:$0xff]
      %v814 = vld [vmem:[#allocation2 + $0xb8] sm:$0xff]
      %839 = vrot.lane.b32.xlu0 %v791, 109
      %v840 = vpop.permute.xlu0 %839
      %841 = vrot.lane.b32.xlu0 %v792, 109
      %v842 = vpop.permute.xlu0 %841
      %843 = vrot.lane.b32.xlu0 %v793, 109
      %v844 = vpop.permute.xlu0 %843
      %845 = vrot.lane.b32.xlu0 %v794, 109
      %v846 = vpop.permute.xlu0 %845
      %847 = vrot.lane.b32.xlu0 %v795, 109
      %v848 = vpop.permute.xlu0 %847
      %849 = vrot.lane.b32.xlu0 %v796, 109
      %v850 = vpop.permute.xlu0 %849
      %851 = vrot.lane.b32.xlu0 %v797, 109
      %v852 = vpop.permute.xlu0 %851
      %853 = vrot.lane.b32.xlu0 %v798, 109
      %v854 = vpop.permute.xlu0 %853
      %855 = vrot.lane.b32.xlu0 %v799, 109
      %v856 = vpop.permute.xlu0 %855
      %857 = vrot.lane.b32.xlu0 %v800, 109
      %v858 = vpop.permute.xlu0 %857
      %859 = vrot.lane.b32.xlu0 %v801, 109
      %v860 = vpop.permute.xlu0 %859
      %861 = vrot.lane.b32.xlu0 %v802, 109
      %v862 = vpop.permute.xlu0 %861
      %863 = vrot.lane.b32.xlu0 %v803, 109
      %v864 = vpop.permute.xlu0 %863
      %865 = vrot.lane.b32.xlu0 %v804, 109
      %v866 = vpop.permute.xlu0 %865
      %867 = vrot.lane.b32.xlu0 %v805, 109
      %v868 = vpop.permute.xlu0 %867
      %869 = vrot.lane.b32.xlu0 %v806, 109
      %v870 = vpop.permute.xlu0 %869
      %871 = vrot.lane.b32.xlu0 %v807, 109
      %v872 = vpop.permute.xlu0 %871
      %873 = vrot.lane.b32.xlu0 %v808, 109
      %v874 = vpop.permute.xlu0 %873
      %875 = vrot.lane.b32.xlu0 %v809, 109
      %v876 = vpop.permute.xlu0 %875
      %877 = vrot.lane.b32.xlu0 %v810, 109
      %v878 = vpop.permute.xlu0 %877
      %879 = vrot.lane.b32.xlu0 %v811, 109
      %v880 = vpop.permute.xlu0 %879
      %881 = vrot.lane.b32.xlu0 %v812, 109
      %v882 = vpop.permute.xlu0 %881
      %883 = vrot.lane.b32.xlu0 %v813, 109
      %v884 = vpop.permute.xlu0 %883
      %885 = vrot.lane.b32.xlu0 %v814, 109
      %v886 = vpop.permute.xlu0 %885
      %vm887 = vcmask 891904
      %v888 = vsel %vm887, %v840, %v842
      %v889 = vsel %vm887, %v842, %v844
      %v890 = vsel %vm887, %v844, %v846
      %v891 = vsel %vm887, %v846, %v848
      %v892 = vsel %vm887, %v848, %v850
      %v893 = vsel %vm887, %v852, %v854
      %v894 = vsel %vm887, %v854, %v856
      %v895 = vsel %vm887, %v856, %v858
      %v896 = vsel %vm887, %v858, %v860
      %v897 = vsel %vm887, %v860, %v862
      %v898 = vsel %vm887, %v864, %v866
      %v899 = vsel %vm887, %v866, %v868
      %v900 = vsel %vm887, %v868, %v870
      %v901 = vsel %vm887, %v870, %v872
      %v902 = vsel %vm887, %v872, %v874
      %v903 = vsel %vm887, %v876, %v878
      %v904 = vsel %vm887, %v878, %v880
      %v905 = vsel %vm887, %v880, %v882
      %v906 = vsel %vm887, %v882, %v884
      %v907 = vsel %vm887, %v884, %v886
      %932 = vst [vmem:[#allocation3 + $0x300] sm:$0xff] %v888
      %933 = vst [vmem:[#allocation3 + $0x308] sm:$0xff] %v889
      %934 = vst [vmem:[#allocation3 + $0x310] sm:$0xff] %v890
      %935 = vst [vmem:[#allocation3 + $0x318] sm:$0xff] %v891
      %936 = vst [vmem:[#allocation3 + $0x320] sm:$0xff] %v892
      %937 = vst.msk [vmem:[#allocation3 + $0x328] sm:$0xff] %vm276, %v850
      %938 = vst [vmem:[#allocation3 + $0x330] sm:$0xff] %v893
      %939 = vst [vmem:[#allocation3 + $0x338] sm:$0xff] %v894
      %940 = vst [vmem:[#allocation3 + $0x340] sm:$0xff] %v895
      %941 = vst [vmem:[#allocation3 + $0x348] sm:$0xff] %v896
      %942 = vst [vmem:[#allocation3 + $0x350] sm:$0xff] %v897
      %943 = vst.msk [vmem:[#allocation3 + $0x358] sm:$0xff] %vm276, %v862
      %944 = vst [vmem:[#allocation3 + $0x360] sm:$0xff] %v898
      %945 = vst [vmem:[#allocation3 + $0x368] sm:$0xff] %v899
      %946 = vst [vmem:[#allocation3 + $0x370] sm:$0xff] %v900
      %947 = vst [vmem:[#allocation3 + $0x378] sm:$0xff] %v901
      %948 = vst [vmem:[#allocation3 + $0x380] sm:$0xff] %v902
      %949 = vst.msk [vmem:[#allocation3 + $0x388] sm:$0xff] %vm276, %v874
      %950 = vst [vmem:[#allocation3 + $0x390] sm:$0xff] %v903
      %951 = vst [vmem:[#allocation3 + $0x398] sm:$0xff] %v904
      %952 = vst [vmem:[#allocation3 + $0x3a0] sm:$0xff] %v905
      %953 = vst [vmem:[#allocation3 + $0x3a8] sm:$0xff] %v906
      %954 = vst [vmem:[#allocation3 + $0x3b0] sm:$0xff] %v907
      %955 = vst.msk [vmem:[#allocation3 + $0x3b8] sm:$0xff] %vm276, %v886
      %v956 = vld [vmem:[#allocation2] sm:$0xff]
      %v957 = vld [vmem:[#allocation2 + $0x8] sm:$0xff]
      %v958 = vld [vmem:[#allocation2 + $0x10] sm:$0xff]
      %v959 = vld [vmem:[#allocation2 + $0x18] sm:$0xff]
      %v960 = vld [vmem:[#allocation2 + $0x20] sm:$0xff]
      %v961 = vld [vmem:[#allocation2 + $0x28] sm:$0xff]
      %v962 = vld [vmem:[#allocation2 + $0x30] sm:$0xff]
      %v963 = vld [vmem:[#allocation2 + $0x38] sm:$0xff]
      %v964 = vld [vmem:[#allocation2 + $0x40] sm:$0xff]
      %v965 = vld [vmem:[#allocation2 + $0x48] sm:$0xff]
      %v966 = vld [vmem:[#allocation2 + $0x50] sm:$0xff]
      %v967 = vld [vmem:[#allocation2 + $0x58] sm:$0xff]
      %v968 = vld [vmem:[#allocation2 + $0x60] sm:$0xff]
      %v969 = vld [vmem:[#allocation2 + $0x68] sm:$0xff]
      %v970 = vld [vmem:[#allocation2 + $0x70] sm:$0xff]
      %v971 = vld [vmem:[#allocation2 + $0x78] sm:$0xff]
      %v972 = vld [vmem:[#allocation2 + $0x80] sm:$0xff]
      %v973 = vld [vmem:[#allocation2 + $0x88] sm:$0xff]
      %v974 = vld [vmem:[#allocation2 + $0x90] sm:$0xff]
      %v975 = vld [vmem:[#allocation2 + $0x98] sm:$0xff]
      %v976 = vld [vmem:[#allocation2 + $0xa0] sm:$0xff]
      %v977 = vld [vmem:[#allocation2 + $0xa8] sm:$0xff]
      %v978 = vld [vmem:[#allocation2 + $0xb0] sm:$0xff]
      %v979 = vld [vmem:[#allocation2 + $0xb8] sm:$0xff]
      %1004 = vrot.lane.b32.xlu0 %v956, 108
      %v1005 = vpop.permute.xlu0 %1004
      %1006 = vrot.lane.b32.xlu0 %v957, 108
      %v1007 = vpop.permute.xlu0 %1006
      %1008 = vrot.lane.b32.xlu0 %v958, 108
      %v1009 = vpop.permute.xlu0 %1008
      %1010 = vrot.lane.b32.xlu0 %v959, 108
      %v1011 = vpop.permute.xlu0 %1010
      %1012 = vrot.lane.b32.xlu0 %v960, 108
      %v1013 = vpop.permute.xlu0 %1012
      %1014 = vrot.lane.b32.xlu0 %v961, 108
      %v1015 = vpop.permute.xlu0 %1014
      %1016 = vrot.lane.b32.xlu0 %v962, 108
      %v1017 = vpop.permute.xlu0 %1016
      %1018 = vrot.lane.b32.xlu0 %v963, 108
      %v1019 = vpop.permute.xlu0 %1018
      %1020 = vrot.lane.b32.xlu0 %v964, 108
      %v1021 = vpop.permute.xlu0 %1020
      %1022 = vrot.lane.b32.xlu0 %v965, 108
      %v1023 = vpop.permute.xlu0 %1022
      %1024 = vrot.lane.b32.xlu0 %v966, 108
      %v1025 = vpop.permute.xlu0 %1024
      %1026 = vrot.lane.b32.xlu0 %v967, 108
      %v1027 = vpop.permute.xlu0 %1026
      %1028 = vrot.lane.b32.xlu0 %v968, 108
      %v1029 = vpop.permute.xlu0 %1028
      %1030 = vrot.lane.b32.xlu0 %v969, 108
      %v1031 = vpop.permute.xlu0 %1030
      %1032 = vrot.lane.b32.xlu0 %v970, 108
      %v1033 = vpop.permute.xlu0 %1032
      %1034 = vrot.lane.b32.xlu0 %v971, 108
      %v1035 = vpop.permute.xlu0 %1034
      %1036 = vrot.lane.b32.xlu0 %v972, 108
      %v1037 = vpop.permute.xlu0 %1036
      %1038 = vrot.lane.b32.xlu0 %v973, 108
      %v1039 = vpop.permute.xlu0 %1038
      %1040 = vrot.lane.b32.xlu0 %v974, 108
      %v1041 = vpop.permute.xlu0 %1040
      %1042 = vrot.lane.b32.xlu0 %v975, 108
      %v1043 = vpop.permute.xlu0 %1042
      %1044 = vrot.lane.b32.xlu0 %v976, 108
      %v1045 = vpop.permute.xlu0 %1044
      %1046 = vrot.lane.b32.xlu0 %v977, 108
      %v1047 = vpop.permute.xlu0 %1046
      %1048 = vrot.lane.b32.xlu0 %v978, 108
      %v1049 = vpop.permute.xlu0 %1048
      %1050 = vrot.lane.b32.xlu0 %v979, 108
      %v1051 = vpop.permute.xlu0 %1050
      %vm1052 = vcmask 883712
      %v1053 = vsel %vm1052, %v1005, %v1007
      %v1054 = vsel %vm1052, %v1007, %v1009
      %v1055 = vsel %vm1052, %v1009, %v1011
      %v1056 = vsel %vm1052, %v1011, %v1013
      %v1057 = vsel %vm1052, %v1013, %v1015
      %v1058 = vsel %vm1052, %v1017, %v1019
      %v1059 = vsel %vm1052, %v1019, %v1021
      %v1060 = vsel %vm1052, %v1021, %v1023
      %v1061 = vsel %vm1052, %v1023, %v1025
      %v1062 = vsel %vm1052, %v1025, %v1027
      %v1063 = vsel %vm1052, %v1029, %v1031
      %v1064 = vsel %vm1052, %v1031, %v1033
      %v1065 = vsel %vm1052, %v1033, %v1035
      %v1066 = vsel %vm1052, %v1035, %v1037
      %v1067 = vsel %vm1052, %v1037, %v1039
      %v1068 = vsel %vm1052, %v1041, %v1043
      %v1069 = vsel %vm1052, %v1043, %v1045
      %v1070 = vsel %vm1052, %v1045, %v1047
      %v1071 = vsel %vm1052, %v1047, %v1049
      %v1072 = vsel %vm1052, %v1049, %v1051
      %1097 = vst [vmem:[#allocation3 + $0x3c0] sm:$0xff] %v1053
      %1098 = vst [vmem:[#allocation3 + $0x3c8] sm:$0xff] %v1054
      %1099 = vst [vmem:[#allocation3 + $0x3d0] sm:$0xff] %v1055
      %1100 = vst [vmem:[#allocation3 + $0x3d8] sm:$0xff] %v1056
      %1101 = vst [vmem:[#allocation3 + $0x3e0] sm:$0xff] %v1057
      %1102 = vst.msk [vmem:[#allocation3 + $0x3e8] sm:$0xff] %vm276, %v1015
      %1103 = vst [vmem:[#allocation3 + $0x3f0] sm:$0xff] %v1058
      %1104 = vst [vmem:[#allocation3 + $0x3f8] sm:$0xff] %v1059
      %1105 = vst [vmem:[#allocation3 + $0x400] sm:$0xff] %v1060
      %1106 = vst [vmem:[#allocation3 + $0x408] sm:$0xff] %v1061
      %1107 = vst [vmem:[#allocation3 + $0x410] sm:$0xff] %v1062
      %1108 = vst.msk [vmem:[#allocation3 + $0x418] sm:$0xff] %vm276, %v1027
      %1109 = vst [vmem:[#allocation3 + $0x420] sm:$0xff] %v1063
      %1110 = vst [vmem:[#allocation3 + $0x428] sm:$0xff] %v1064
      %1111 = vst [vmem:[#allocation3 + $0x430] sm:$0xff] %v1065
      %1112 = vst [vmem:[#allocation3 + $0x438] sm:$0xff] %v1066
      %1113 = vst [vmem:[#allocation3 + $0x440] sm:$0xff] %v1067
      %1114 = vst.msk [vmem:[#allocation3 + $0x448] sm:$0xff] %vm276, %v1039
      %1115 = vst [vmem:[#allocation3 + $0x450] sm:$0xff] %v1068
      %1116 = vst [vmem:[#allocation3 + $0x458] sm:$0xff] %v1069
      %1117 = vst [vmem:[#allocation3 + $0x460] sm:$0xff] %v1070
      %1118 = vst [vmem:[#allocation3 + $0x468] sm:$0xff] %v1071
      %1119 = vst [vmem:[#allocation3 + $0x470] sm:$0xff] %v1072
      %1120 = vst.msk [vmem:[#allocation3 + $0x478] sm:$0xff] %vm276, %v1051
      %v1121 = vld [vmem:[#allocation2] sm:$0xff]
      %v1122 = vld [vmem:[#allocation2 + $0x8] sm:$0xff]
      %v1123 = vld [vmem:[#allocation2 + $0x10] sm:$0xff]
      %v1124 = vld [vmem:[#allocation2 + $0x18] sm:$0xff]
      %v1125 = vld [vmem:[#allocation2 + $0x20] sm:$0xff]
      %v1126 = vld [vmem:[#allocation2 + $0x28] sm:$0xff]
      %v1127 = vld [vmem:[#allocation2 + $0x30] sm:$0xff]
      %v1128 = vld [vmem:[#allocation2 + $0x38] sm:$0xff]
      %v1129 = vld [vmem:[#allocation2 + $0x40] sm:$0xff]
      %v1130 = vld [vmem:[#allocation2 + $0x48] sm:$0xff]
      %v1131 = vld [vmem:[#allocation2 + $0x50] sm:$0xff]
      %v1132 = vld [vmem:[#allocation2 + $0x58] sm:$0xff]
      %v1133 = vld [vmem:[#allocation2 + $0x60] sm:$0xff]
      %v1134 = vld [vmem:[#allocation2 + $0x68] sm:$0xff]
      %v1135 = vld [vmem:[#allocation2 + $0x70] sm:$0xff]
      %v1136 = vld [vmem:[#allocation2 + $0x78] sm:$0xff]
      %v1137 = vld [vmem:[#allocation2 + $0x80] sm:$0xff]
      %v1138 = vld [vmem:[#allocation2 + $0x88] sm:$0xff]
      %v1139 = vld [vmem:[#allocation2 + $0x90] sm:$0xff]
      %v1140 = vld [vmem:[#allocation2 + $0x98] sm:$0xff]
      %v1141 = vld [vmem:[#allocation2 + $0xa0] sm:$0xff]
      %v1142 = vld [vmem:[#allocation2 + $0xa8] sm:$0xff]
      %v1143 = vld [vmem:[#allocation2 + $0xb0] sm:$0xff]
      %v1144 = vld [vmem:[#allocation2 + $0xb8] sm:$0xff]
      %1169 = vrot.lane.b32.xlu0 %v1121, 92
      %v1170 = vpop.permute.xlu0 %1169
      %1171 = vrot.lane.b32.xlu0 %v1122, 92
      %v1172 = vpop.permute.xlu0 %1171
      %1173 = vrot.lane.b32.xlu0 %v1123, 92
      %v1174 = vpop.permute.xlu0 %1173
      %1175 = vrot.lane.b32.xlu0 %v1124, 92
      %v1176 = vpop.permute.xlu0 %1175
      %1177 = vrot.lane.b32.xlu0 %v1125, 92
      %v1178 = vpop.permute.xlu0 %1177
      %1179 = vrot.lane.b32.xlu0 %v1126, 92
      %v1180 = vpop.permute.xlu0 %1179
      %1181 = vrot.lane.b32.xlu0 %v1127, 92
      %v1182 = vpop.permute.xlu0 %1181
      %1183 = vrot.lane.b32.xlu0 %v1128, 92
      %v1184 = vpop.permute.xlu0 %1183
      %1185 = vrot.lane.b32.xlu0 %v1129, 92
      %v1186 = vpop.permute.xlu0 %1185
      %1187 = vrot.lane.b32.xlu0 %v1130, 92
      %v1188 = vpop.permute.xlu0 %1187
      %1189 = vrot.lane.b32.xlu0 %v1131, 92
      %v1190 = vpop.permute.xlu0 %1189
      %1191 = vrot.lane.b32.xlu0 %v1132, 92
      %v1192 = vpop.permute.xlu0 %1191
      %1193 = vrot.lane.b32.xlu0 %v1133, 92
      %v1194 = vpop.permute.xlu0 %1193
      %1195 = vrot.lane.b32.xlu0 %v1134, 92
      %v1196 = vpop.permute.xlu0 %1195
      %1197 = vrot.lane.b32.xlu0 %v1135, 92
      %v1198 = vpop.permute.xlu0 %1197
      %1199 = vrot.lane.b32.xlu0 %v1136, 92
      %v1200 = vpop.permute.xlu0 %1199
      %1201 = vrot.lane.b32.xlu0 %v1137, 92
      %v1202 = vpop.permute.xlu0 %1201
      %1203 = vrot.lane.b32.xlu0 %v1138, 92
      %v1204 = vpop.permute.xlu0 %1203
      %1205 = vrot.lane.b32.xlu0 %v1139, 92
      %v1206 = vpop.permute.xlu0 %1205
      %1207 = vrot.lane.b32.xlu0 %v1140, 92
      %v1208 = vpop.permute.xlu0 %1207
      %1209 = vrot.lane.b32.xlu0 %v1141, 92
      %v1210 = vpop.permute.xlu0 %1209
      %1211 = vrot.lane.b32.xlu0 %v1142, 92
      %v1212 = vpop.permute.xlu0 %1211
      %1213 = vrot.lane.b32.xlu0 %v1143, 92
      %v1214 = vpop.permute.xlu0 %1213
      %1215 = vrot.lane.b32.xlu0 %v1144, 92
      %v1216 = vpop.permute.xlu0 %1215
      %vm1217 = vcmask 752640
      %v1218 = vsel %vm1217, %v1170, %v1172
      %v1219 = vsel %vm1217, %v1172, %v1174
      %v1220 = vsel %vm1217, %v1174, %v1176
      %v1221 = vsel %vm1217, %v1176, %v1178
      %v1222 = vsel %vm1217, %v1178, %v1180
      %v1223 = vsel %vm1217, %v1182, %v1184
      %v1224 = vsel %vm1217, %v1184, %v1186
      %v1225 = vsel %vm1217, %v1186, %v1188
      %v1226 = vsel %vm1217, %v1188, %v1190
      %v1227 = vsel %vm1217, %v1190, %v1192
      %v1228 = vsel %vm1217, %v1194, %v1196
      %v1229 = vsel %vm1217, %v1196, %v1198
      %v1230 = vsel %vm1217, %v1198, %v1200
      %v1231 = vsel %vm1217, %v1200, %v1202
      %v1232 = vsel %vm1217, %v1202, %v1204
      %v1233 = vsel %vm1217, %v1206, %v1208
      %v1234 = vsel %vm1217, %v1208, %v1210
      %v1235 = vsel %vm1217, %v1210, %v1212
      %v1236 = vsel %vm1217, %v1212, %v1214
      %v1237 = vsel %vm1217, %v1214, %v1216
      %1262 = vst [vmem:[#allocation3 + $0x480] sm:$0xff] %v1218
      %1263 = vst [vmem:[#allocation3 + $0x488] sm:$0xff] %v1219
      %1264 = vst [vmem:[#allocation3 + $0x490] sm:$0xff] %v1220
      %1265 = vst [vmem:[#allocation3 + $0x498] sm:$0xff] %v1221
      %1266 = vst [vmem:[#allocation3 + $0x4a0] sm:$0xff] %v1222
      %1267 = vst.msk [vmem:[#allocation3 + $0x4a8] sm:$0xff] %vm276, %v1180
      %1268 = vst [vmem:[#allocation3 + $0x4b0] sm:$0xff] %v1223
      %1269 = vst [vmem:[#allocation3 + $0x4b8] sm:$0xff] %v1224
      %1270 = vst [vmem:[#allocation3 + $0x4c0] sm:$0xff] %v1225
      %1271 = vst [vmem:[#allocation3 + $0x4c8] sm:$0xff] %v1226
      %1272 = vst [vmem:[#allocation3 + $0x4d0] sm:$0xff] %v1227
      %1273 = vst.msk [vmem:[#allocation3 + $0x4d8] sm:$0xff] %vm276, %v1192
      %1274 = vst [vmem:[#allocation3 + $0x4e0] sm:$0xff] %v1228
      %1275 = vst [vmem:[#allocation3 + $0x4e8] sm:$0xff] %v1229
      %1276 = vst [vmem:[#allocation3 + $0x4f0] sm:$0xff] %v1230
      %1277 = vst [vmem:[#allocation3 + $0x4f8] sm:$0xff] %v1231
      %1278 = vst [vmem:[#allocation3 + $0x500] sm:$0xff] %v1232
      %1279 = vst.msk [vmem:[#allocation3 + $0x508] sm:$0xff] %vm276, %v1204
      %1280 = vst [vmem:[#allocation3 + $0x510] sm:$0xff] %v1233
      %1281 = vst [vmem:[#allocation3 + $0x518] sm:$0xff] %v1234
      %1282 = vst [vmem:[#allocation3 + $0x520] sm:$0xff] %v1235
      %1283 = vst [vmem:[#allocation3 + $0x528] sm:$0xff] %v1236
      %1284 = vst [vmem:[#allocation3 + $0x530] sm:$0xff] %v1237
      %1285 = vst.msk [vmem:[#allocation3 + $0x538] sm:$0xff] %vm276, %v1216
      %v1286 = vld [vmem:[#allocation2] sm:$0xff]
      %v1287 = vld [vmem:[#allocation2 + $0x8] sm:$0xff]
      %v1288 = vld [vmem:[#allocation2 + $0x10] sm:$0xff]
      %v1289 = vld [vmem:[#allocation2 + $0x18] sm:$0xff]
      %v1290 = vld [vmem:[#allocation2 + $0x20] sm:$0xff]
      %v1291 = vld [vmem:[#allocation2 + $0x28] sm:$0xff]
      %v1292 = vld [vmem:[#allocation2 + $0x30] sm:$0xff]
      %v1293 = vld [vmem:[#allocation2 + $0x38] sm:$0xff]
      %v1294 = vld [vmem:[#allocation2 + $0x40] sm:$0xff]
      %v1295 = vld [vmem:[#allocation2 + $0x48] sm:$0xff]
      %v1296 = vld [vmem:[#allocation2 + $0x50] sm:$0xff]
      %v1297 = vld [vmem:[#allocation2 + $0x58] sm:$0xff]
      %v1298 = vld [vmem:[#allocation2 + $0x60] sm:$0xff]
      %v1299 = vld [vmem:[#allocation2 + $0x68] sm:$0xff]
      %v1300 = vld [vmem:[#allocation2 + $0x70] sm:$0xff]
      %v1301 = vld [vmem:[#allocation2 + $0x78] sm:$0xff]
      %v1302 = vld [vmem:[#allocation2 + $0x80] sm:$0xff]
      %v1303 = vld [vmem:[#allocation2 + $0x88] sm:$0xff]
      %v1304 = vld [vmem:[#allocation2 + $0x90] sm:$0xff]
      %v1305 = vld [vmem:[#allocation2 + $0x98] sm:$0xff]
      %v1306 = vld [vmem:[#allocation2 + $0xa0] sm:$0xff]
      %v1307 = vld [vmem:[#allocation2 + $0xa8] sm:$0xff]
      %v1308 = vld [vmem:[#allocation2 + $0xb0] sm:$0xff]
      %v1309 = vld [vmem:[#allocation2 + $0xb8] sm:$0xff]
      %1334 = vrot.lane.b32.xlu0 %v1286, 91
      %v1335 = vpop.permute.xlu0 %1334
      %1336 = vrot.lane.b32.xlu0 %v1287, 91
      %v1337 = vpop.permute.xlu0 %1336
      %1338 = vrot.lane.b32.xlu0 %v1288, 91
      %v1339 = vpop.permute.xlu0 %1338
      %1340 = vrot.lane.b32.xlu0 %v1289, 91
      %v1341 = vpop.permute.xlu0 %1340
      %1342 = vrot.lane.b32.xlu0 %v1290, 91
      %v1343 = vpop.permute.xlu0 %1342
      %1344 = vrot.lane.b32.xlu0 %v1291, 91
      %v1345 = vpop.permute.xlu0 %1344
      %1346 = vrot.lane.b32.xlu0 %v1292, 91
      %v1347 = vpop.permute.xlu0 %1346
      %1348 = vrot.lane.b32.xlu0 %v1293, 91
      %v1349 = vpop.permute.xlu0 %1348
      %1350 = vrot.lane.b32.xlu0 %v1294, 91
      %v1351 = vpop.permute.xlu0 %1350
      %1352 = vrot.lane.b32.xlu0 %v1295, 91
      %v1353 = vpop.permute.xlu0 %1352
      %1354 = vrot.lane.b32.xlu0 %v1296, 91
      %v1355 = vpop.permute.xlu0 %1354
      %1356 = vrot.lane.b32.xlu0 %v1297, 91
      %v1357 = vpop.permute.xlu0 %1356
      %1358 = vrot.lane.b32.xlu0 %v1298, 91
      %v1359 = vpop.permute.xlu0 %1358
      %1360 = vrot.lane.b32.xlu0 %v1299, 91
      %v1361 = vpop.permute.xlu0 %1360
      %1362 = vrot.lane.b32.xlu0 %v1300, 91
      %v1363 = vpop.permute.xlu0 %1362
      %1364 = vrot.lane.b32.xlu0 %v1301, 91
      %v1365 = vpop.permute.xlu0 %1364
      %1366 = vrot.lane.b32.xlu0 %v1302, 91
      %v1367 = vpop.permute.xlu0 %1366
      %1368 = vrot.lane.b32.xlu0 %v1303, 91
      %v1369 = vpop.permute.xlu0 %1368
      %1370 = vrot.lane.b32.xlu0 %v1304, 91
      %v1371 = vpop.permute.xlu0 %1370
      %1372 = vrot.lane.b32.xlu0 %v1305, 91
      %v1373 = vpop.permute.xlu0 %1372
      %1374 = vrot.lane.b32.xlu0 %v1306, 91
      %v1375 = vpop.permute.xlu0 %1374
      %1376 = vrot.lane.b32.xlu0 %v1307, 91
      %v1377 = vpop.permute.xlu0 %1376
      %1378 = vrot.lane.b32.xlu0 %v1308, 91
      %v1379 = vpop.permute.xlu0 %1378
      %1380 = vrot.lane.b32.xlu0 %v1309, 91
      %v1381 = vpop.permute.xlu0 %1380
      %vm1382 = vcmask 744448
      %v1383 = vsel %vm1382, %v1335, %v1337
      %v1384 = vsel %vm1382, %v1337, %v1339
      %v1385 = vsel %vm1382, %v1339, %v1341
      %v1386 = vsel %vm1382, %v1341, %v1343
      %v1387 = vsel %vm1382, %v1343, %v1345
      %v1388 = vsel %vm1382, %v1347, %v1349
      %v1389 = vsel %vm1382, %v1349, %v1351
      %v1390 = vsel %vm1382, %v1351, %v1353
      %v1391 = vsel %vm1382, %v1353, %v1355
      %v1392 = vsel %vm1382, %v1355, %v1357
      %v1393 = vsel %vm1382, %v1359, %v1361
      %v1394 = vsel %vm1382, %v1361, %v1363
      %v1395 = vsel %vm1382, %v1363, %v1365
      %v1396 = vsel %vm1382, %v1365, %v1367
      %v1397 = vsel %vm1382, %v1367, %v1369
      %v1398 = vsel %vm1382, %v1371, %v1373
      %v1399 = vsel %vm1382, %v1373, %v1375
      %v1400 = vsel %vm1382, %v1375, %v1377
      %v1401 = vsel %vm1382, %v1377, %v1379
      %v1402 = vsel %vm1382, %v1379, %v1381
      %1427 = vst [vmem:[#allocation3 + $0x540] sm:$0xff] %v1383
      %1428 = vst [vmem:[#allocation3 + $0x548] sm:$0xff] %v1384
      %1429 = vst [vmem:[#allocation3 + $0x550] sm:$0xff] %v1385
      %1430 = vst [vmem:[#allocation3 + $0x558] sm:$0xff] %v1386
      %1431 = vst [vmem:[#allocation3 + $0x560] sm:$0xff] %v1387
      %1432 = vst.msk [vmem:[#allocation3 + $0x568] sm:$0xff] %vm276, %v1345
      %1433 = vst [vmem:[#allocation3 + $0x570] sm:$0xff] %v1388
      %1434 = vst [vmem:[#allocation3 + $0x578] sm:$0xff] %v1389
      %1435 = vst [vmem:[#allocation3 + $0x580] sm:$0xff] %v1390
      %1436 = vst [vmem:[#allocation3 + $0x588] sm:$0xff] %v1391
      %1437 = vst [vmem:[#allocation3 + $0x590] sm:$0xff] %v1392
      %1438 = vst.msk [vmem:[#allocation3 + $0x598] sm:$0xff] %vm276, %v1357
      %1439 = vst [vmem:[#allocation3 + $0x5a0] sm:$0xff] %v1393
      %1440 = vst [vmem:[#allocation3 + $0x5a8] sm:$0xff] %v1394
      %1441 = vst [vmem:[#allocation3 + $0x5b0] sm:$0xff] %v1395
      %1442 = vst [vmem:[#allocation3 + $0x5b8] sm:$0xff] %v1396
      %1443 = vst [vmem:[#allocation3 + $0x5c0] sm:$0xff] %v1397
      %1444 = vst.msk [vmem:[#allocation3 + $0x5c8] sm:$0xff] %vm276, %v1369
      %1445 = vst [vmem:[#allocation3 + $0x5d0] sm:$0xff] %v1398
      %1446 = vst [vmem:[#allocation3 + $0x5d8] sm:$0xff] %v1399
      %1447 = vst [vmem:[#allocation3 + $0x5e0] sm:$0xff] %v1400
      %1448 = vst [vmem:[#allocation3 + $0x5e8] sm:$0xff] %v1401
      %1449 = vst [vmem:[#allocation3 + $0x5f0] sm:$0xff] %v1402
      %1450 = vst.msk [vmem:[#allocation3 + $0x5f8] sm:$0xff] %vm276, %v1381
      %v1451 = vld [vmem:[#allocation2] sm:$0xff]
      %v1452 = vld [vmem:[#allocation2 + $0x8] sm:$0xff]
      %v1453 = vld [vmem:[#allocation2 + $0x10] sm:$0xff]
      %v1454 = vld [vmem:[#allocation2 + $0x18] sm:$0xff]
      %v1455 = vld [vmem:[#allocation2 + $0x20] sm:$0xff]
      %v1456 = vld [vmem:[#allocation2 + $0x28] sm:$0xff]
      %v1457 = vld [vmem:[#allocation2 + $0x30] sm:$0xff]
      %v1458 = vld [vmem:[#allocation2 + $0x38] sm:$0xff]
      %v1459 = vld [vmem:[#allocation2 + $0x40] sm:$0xff]
      %v1460 = vld [vmem:[#allocation2 + $0x48] sm:$0xff]
      %v1461 = vld [vmem:[#allocation2 + $0x50] sm:$0xff]
      %v1462 = vld [vmem:[#allocation2 + $0x58] sm:$0xff]
      %v1463 = vld [vmem:[#allocation2 + $0x60] sm:$0xff]
      %v1464 = vld [vmem:[#allocation2 + $0x68] sm:$0xff]
      %v1465 = vld [vmem:[#allocation2 + $0x70] sm:$0xff]
      %v1466 = vld [vmem:[#allocation2 + $0x78] sm:$0xff]
      %v1467 = vld [vmem:[#allocation2 + $0x80] sm:$0xff]
      %v1468 = vld [vmem:[#allocation2 + $0x88] sm:$0xff]
      %v1469 = vld [vmem:[#allocation2 + $0x90] sm:$0xff]
      %v1470 = vld [vmem:[#allocation2 + $0x98] sm:$0xff]
      %v1471 = vld [vmem:[#allocation2 + $0xa0] sm:$0xff]
      %v1472 = vld [vmem:[#allocation2 + $0xa8] sm:$0xff]
      %v1473 = vld [vmem:[#allocation2 + $0xb0] sm:$0xff]
      %v1474 = vld [vmem:[#allocation2 + $0xb8] sm:$0xff]
      %1499 = vrot.lane.b32.xlu0 %v1451, 90
      %v1500 = vpop.permute.xlu0 %1499
      %1501 = vrot.lane.b32.xlu0 %v1452, 90
      %v1502 = vpop.permute.xlu0 %1501
      %1503 = vrot.lane.b32.xlu0 %v1453, 90
      %v1504 = vpop.permute.xlu0 %1503
      %1505 = vrot.lane.b32.xlu0 %v1454, 90
      %v1506 = vpop.permute.xlu0 %1505
      %1507 = vrot.lane.b32.xlu0 %v1455, 90
      %v1508 = vpop.permute.xlu0 %1507
      %1509 = vrot.lane.b32.xlu0 %v1456, 90
      %v1510 = vpop.permute.xlu0 %1509
      %1511 = vrot.lane.b32.xlu0 %v1457, 90
      %v1512 = vpop.permute.xlu0 %1511
      %1513 = vrot.lane.b32.xlu0 %v1458, 90
      %v1514 = vpop.permute.xlu0 %1513
      %1515 = vrot.lane.b32.xlu0 %v1459, 90
      %v1516 = vpop.permute.xlu0 %1515
      %1517 = vrot.lane.b32.xlu0 %v1460, 90
      %v1518 = vpop.permute.xlu0 %1517
      %1519 = vrot.lane.b32.xlu0 %v1461, 90
      %v1520 = vpop.permute.xlu0 %1519
      %1521 = vrot.lane.b32.xlu0 %v1462, 90
      %v1522 = vpop.permute.xlu0 %1521
      %1523 = vrot.lane.b32.xlu0 %v1463, 90
      %v1524 = vpop.permute.xlu0 %1523
      %1525 = vrot.lane.b32.xlu0 %v1464, 90
      %v1526 = vpop.permute.xlu0 %1525
      %1527 = vrot.lane.b32.xlu0 %v1465, 90
      %v1528 = vpop.permute.xlu0 %1527
      %1529 = vrot.lane.b32.xlu0 %v1466, 90
      %v1530 = vpop.permute.xlu0 %1529
      %1531 = vrot.lane.b32.xlu0 %v1467, 90
      %v1532 = vpop.permute.xlu0 %1531
      %1533 = vrot.lane.b32.xlu0 %v1468, 90
      %v1534 = vpop.permute.xlu0 %1533
      %1535 = vrot.lane.b32.xlu0 %v1469, 90
      %v1536 = vpop.permute.xlu0 %1535
      %1537 = vrot.lane.b32.xlu0 %v1470, 90
      %v1538 = vpop.permute.xlu0 %1537
      %1539 = vrot.lane.b32.xlu0 %v1471, 90
      %v1540 = vpop.permute.xlu0 %1539
      %1541 = vrot.lane.b32.xlu0 %v1472, 90
      %v1542 = vpop.permute.xlu0 %1541
      %1543 = vrot.lane.b32.xlu0 %v1473, 90
      %v1544 = vpop.permute.xlu0 %1543
      %1545 = vrot.lane.b32.xlu0 %v1474, 90
      %v1546 = vpop.permute.xlu0 %1545
      %vm1547 = vcmask 736256
      %v1548 = vsel %vm1547, %v1500, %v1502
      %v1549 = vsel %vm1547, %v1502, %v1504
      %v1550 = vsel %vm1547, %v1504, %v1506
      %v1551 = vsel %vm1547, %v1506, %v1508
      %v1552 = vsel %vm1547, %v1508, %v1510
      %v1553 = vsel %vm1547, %v1512, %v1514
      %v1554 = vsel %vm1547, %v1514, %v1516
      %v1555 = vsel %vm1547, %v1516, %v1518
      %v1556 = vsel %vm1547, %v1518, %v1520
      %v1557 = vsel %vm1547, %v1520, %v1522
      %v1558 = vsel %vm1547, %v1524, %v1526
      %v1559 = vsel %vm1547, %v1526, %v1528
      %v1560 = vsel %vm1547, %v1528, %v1530
      %v1561 = vsel %vm1547, %v1530, %v1532
      %v1562 = vsel %vm1547, %v1532, %v1534
      %v1563 = vsel %vm1547, %v1536, %v1538
      %v1564 = vsel %vm1547, %v1538, %v1540
      %v1565 = vsel %vm1547, %v1540, %v1542
      %v1566 = vsel %vm1547, %v1542, %v1544
      %v1567 = vsel %vm1547, %v1544, %v1546
      %1592 = vst [vmem:[#allocation3 + $0x600] sm:$0xff] %v1548
      %1593 = vst [vmem:[#allocation3 + $0x608] sm:$0xff] %v1549
      %1594 = vst [vmem:[#allocation3 + $0x610] sm:$0xff] %v1550
      %1595 = vst [vmem:[#allocation3 + $0x618] sm:$0xff] %v1551
      %1596 = vst [vmem:[#allocation3 + $0x620] sm:$0xff] %v1552
      %1597 = vst.msk [vmem:[#allocation3 + $0x628] sm:$0xff] %vm276, %v1510
      %1598 = vst [vmem:[#allocation3 + $0x630] sm:$0xff] %v1553
      %1599 = vst [vmem:[#allocation3 + $0x638] sm:$0xff] %v1554
      %1600 = vst [vmem:[#allocation3 + $0x640] sm:$0xff] %v1555
      %1601 = vst [vmem:[#allocation3 + $0x648] sm:$0xff] %v1556
      %1602 = vst [vmem:[#allocation3 + $0x650] sm:$0xff] %v1557
      %1603 = vst.msk [vmem:[#allocation3 + $0x658] sm:$0xff] %vm276, %v1522
      %1604 = vst [vmem:[#allocation3 + $0x660] sm:$0xff] %v1558
      %1605 = vst [vmem:[#allocation3 + $0x668] sm:$0xff] %v1559
      %1606 = vst [vmem:[#allocation3 + $0x670] sm:$0xff] %v1560
      %1607 = vst [vmem:[#allocation3 + $0x678] sm:$0xff] %v1561
      %1608 = vst [vmem:[#allocation3 + $0x680] sm:$0xff] %v1562
      %1609 = vst.msk [vmem:[#allocation3 + $0x688] sm:$0xff] %vm276, %v1534
      %1610 = vst [vmem:[#allocation3 + $0x690] sm:$0xff] %v1563
      %1611 = vst [vmem:[#allocation3 + $0x698] sm:$0xff] %v1564
      %1612 = vst [vmem:[#allocation3 + $0x6a0] sm:$0xff] %v1565
      %1613 = vst [vmem:[#allocation3 + $0x6a8] sm:$0xff] %v1566
      %1614 = vst [vmem:[#allocation3 + $0x6b0] sm:$0xff] %v1567
      %1615 = vst.msk [vmem:[#allocation3 + $0x6b8] sm:$0xff] %vm276, %v1546
      %s1616 = smul.u32 %s103, 12
      %s1617 = smul.addr %s1616, 8
      %s1618 = scalar_lea.vmem [#allocation4], %s1617
      %v1619 = vld [vmem:[%s1618] sm:$0xff]
      %v1620 = vld [vmem:[%s1618 + $0x8] sm:$0xff]
      %v1621 = vld [vmem:[%s1618 + $0x10] sm:$0xff]
      %v1622 = vld [vmem:[%s1618 + $0x18] sm:$0xff]
      %v1623 = vld [vmem:[%s1618 + $0x20] sm:$0xff]
      %v1624 = vld [vmem:[%s1618 + $0x28] sm:$0xff]
      %v1625 = vld [vmem:[%s1618 + $0x30] sm:$0xff]
      %v1626 = vld [vmem:[%s1618 + $0x38] sm:$0xff]
      %v1627 = vld [vmem:[%s1618 + $0x40] sm:$0xff]
      %v1628 = vld [vmem:[%s1618 + $0x48] sm:$0xff]
      %v1629 = vld [vmem:[%s1618 + $0x50] sm:$0xff]
      %v1630 = vld [vmem:[%s1618 + $0x58] sm:$0xff]
      %v1631 = vld [vmem:[#allocation3] sm:$0xff]
      %v1632 = vld [vmem:[#allocation3 + $0x8] sm:$0xff]
      %v1633 = vld [vmem:[#allocation3 + $0x10] sm:$0xff]
      %v1634 = vld [vmem:[#allocation3 + $0x18] sm:$0xff]
      %v1635 = vld [vmem:[#allocation3 + $0x20] sm:$0xff]
      %v1636 = vld [vmem:[#allocation3 + $0x28] sm:$0xff]
      %v1637 = vld [vmem:[#allocation3 + $0x30] sm:$0xff]
      %v1638 = vld [vmem:[#allocation3 + $0x38] sm:$0xff]
      %v1639 = vld [vmem:[#allocation3 + $0x40] sm:$0xff]
      %v1640 = vld [vmem:[#allocation3 + $0x48] sm:$0xff]
      %v1641 = vld [vmem:[#allocation3 + $0x50] sm:$0xff]
      %v1642 = vld [vmem:[#allocation3 + $0x58] sm:$0xff]
      %v1643 = vld [vmem:[#allocation3 + $0x60] sm:$0xff]
      %v1644 = vld [vmem:[#allocation3 + $0x68] sm:$0xff]
      %v1645 = vld [vmem:[#allocation3 + $0x70] sm:$0xff]
      %v1646 = vld [vmem:[#allocation3 + $0x78] sm:$0xff]
      %v1647 = vld [vmem:[#allocation3 + $0x80] sm:$0xff]
      %v1648 = vld [vmem:[#allocation3 + $0x88] sm:$0xff]
      %v1649 = vld [vmem:[#allocation3 + $0x90] sm:$0xff]
      %v1650 = vld [vmem:[#allocation3 + $0x98] sm:$0xff]
      %v1651 = vld [vmem:[#allocation3 + $0xa0] sm:$0xff]
      %v1652 = vld [vmem:[#allocation3 + $0xa8] sm:$0xff]
      %v1653 = vld [vmem:[#allocation3 + $0xb0] sm:$0xff]
      %v1654 = vld [vmem:[#allocation3 + $0xb8] sm:$0xff]
      %v1655 = vld [vmem:[#allocation3 + $0xc0] sm:$0xff]
      %v1656 = vld [vmem:[#allocation3 + $0xc8] sm:$0xff]
      %v1657 = vld [vmem:[#allocation3 + $0xd0] sm:$0xff]
      %v1658 = vld [vmem:[#allocation3 + $0xd8] sm:$0xff]
      %v1659 = vld [vmem:[#allocation3 + $0xe0] sm:$0xff]
      %v1660 = vld [vmem:[#allocation3 + $0xe8] sm:$0xff]
      %v1661 = vld [vmem:[#allocation3 + $0xf0] sm:$0xff]
      %v1662 = vld [vmem:[#allocation3 + $0xf8] sm:$0xff]
      %v1663 = vld [vmem:[#allocation3 + $0x100] sm:$0xff]
      %v1664 = vld [vmem:[#allocation3 + $0x108] sm:$0xff]
      %v1665 = vld [vmem:[#allocation3 + $0x110] sm:$0xff]
      %v1666 = vld [vmem:[#allocation3 + $0x118] sm:$0xff]
      %v1667 = vld [vmem:[#allocation3 + $0x120] sm:$0xff]
      %v1668 = vld [vmem:[#allocation3 + $0x128] sm:$0xff]
      %v1669 = vld [vmem:[#allocation3 + $0x130] sm:$0xff]
      %v1670 = vld [vmem:[#allocation3 + $0x138] sm:$0xff]
      %v1671 = vld [vmem:[#allocation3 + $0x140] sm:$0xff]
      %v1672 = vld [vmem:[#allocation3 + $0x148] sm:$0xff]
      %v1673 = vld [vmem:[#allocation3 + $0x150] sm:$0xff]
      %v1674 = vld [vmem:[#allocation3 + $0x158] sm:$0xff]
      %v1675 = vld [vmem:[#allocation3 + $0x160] sm:$0xff]
      %v1676 = vld [vmem:[#allocation3 + $0x168] sm:$0xff]
      %v1677 = vld [vmem:[#allocation3 + $0x170] sm:$0xff]
      %v1678 = vld [vmem:[#allocation3 + $0x178] sm:$0xff]
      %v1679 = vld [vmem:[#allocation3 + $0x180] sm:$0xff]
      %v1680 = vld [vmem:[#allocation3 + $0x188] sm:$0xff]
      %v1681 = vld [vmem:[#allocation3 + $0x190] sm:$0xff]
      %v1682 = vld [vmem:[#allocation3 + $0x198] sm:$0xff]
      %v1683 = vld [vmem:[#allocation3 + $0x1a0] sm:$0xff]
      %v1684 = vld [vmem:[#allocation3 + $0x1a8] sm:$0xff]
      %v1685 = vld [vmem:[#allocation3 + $0x1b0] sm:$0xff]
      %v1686 = vld [vmem:[#allocation3 + $0x1b8] sm:$0xff]
      %v1687 = vld [vmem:[#allocation3 + $0x1c0] sm:$0xff]
      %v1688 = vld [vmem:[#allocation3 + $0x1c8] sm:$0xff]
      %v1689 = vld [vmem:[#allocation3 + $0x1d0] sm:$0xff]
      %v1690 = vld [vmem:[#allocation3 + $0x1d8] sm:$0xff]
      %v1691 = vld [vmem:[#allocation3 + $0x1e0] sm:$0xff]
      %v1692 = vld [vmem:[#allocation3 + $0x1e8] sm:$0xff]
      %v1693 = vld [vmem:[#allocation3 + $0x1f0] sm:$0xff]
      %v1694 = vld [vmem:[#allocation3 + $0x1f8] sm:$0xff]
      %v1695 = vld [vmem:[#allocation3 + $0x200] sm:$0xff]
      %v1696 = vld [vmem:[#allocation3 + $0x208] sm:$0xff]
      %v1697 = vld [vmem:[#allocation3 + $0x210] sm:$0xff]
      %v1698 = vld [vmem:[#allocation3 + $0x218] sm:$0xff]
      %v1699 = vld [vmem:[#allocation3 + $0x220] sm:$0xff]
      %v1700 = vld [vmem:[#allocation3 + $0x228] sm:$0xff]
      %v1701 = vld [vmem:[#allocation3 + $0x230] sm:$0xff]
      %v1702 = vld [vmem:[#allocation3 + $0x238] sm:$0xff]
      %v1703 = vld [vmem:[#allocation3 + $0x240] sm:$0xff]
      %v1704 = vld [vmem:[#allocation3 + $0x248] sm:$0xff]
      %v1705 = vld [vmem:[#allocation3 + $0x250] sm:$0xff]
      %v1706 = vld [vmem:[#allocation3 + $0x258] sm:$0xff]
      %v1707 = vld [vmem:[#allocation3 + $0x260] sm:$0xff]
      %v1708 = vld [vmem:[#allocation3 + $0x268] sm:$0xff]
      %v1709 = vld [vmem:[#allocation3 + $0x270] sm:$0xff]
      %v1710 = vld [vmem:[#allocation3 + $0x278] sm:$0xff]
      %v1711 = vld [vmem:[#allocation3 + $0x280] sm:$0xff]
      %v1712 = vld [vmem:[#allocation3 + $0x288] sm:$0xff]
      %v1713 = vld [vmem:[#allocation3 + $0x290] sm:$0xff]
      %v1714 = vld [vmem:[#allocation3 + $0x298] sm:$0xff]
      %v1715 = vld [vmem:[#allocation3 + $0x2a0] sm:$0xff]
      %v1716 = vld [vmem:[#allocation3 + $0x2a8] sm:$0xff]
      %v1717 = vld [vmem:[#allocation3 + $0x2b0] sm:$0xff]
      %v1718 = vld [vmem:[#allocation3 + $0x2b8] sm:$0xff]
      %v1719 = vld [vmem:[#allocation3 + $0x2c0] sm:$0xff]
      %v1720 = vld [vmem:[#allocation3 + $0x2c8] sm:$0xff]
      %v1721 = vld [vmem:[#allocation3 + $0x2d0] sm:$0xff]
      %v1722 = vld [vmem:[#allocation3 + $0x2d8] sm:$0xff]
      %v1723 = vld [vmem:[#allocation3 + $0x2e0] sm:$0xff]
      %v1724 = vld [vmem:[#allocation3 + $0x2e8] sm:$0xff]
      %v1725 = vld [vmem:[#allocation3 + $0x2f0] sm:$0xff]
      %v1726 = vld [vmem:[#allocation3 + $0x2f8] sm:$0xff]
      %v1727 = vld [vmem:[#allocation3 + $0x300] sm:$0xff]
      %v1728 = vld [vmem:[#allocation3 + $0x308] sm:$0xff]
      %v1729 = vld [vmem:[#allocation3 + $0x310] sm:$0xff]
      %v1730 = vld [vmem:[#allocation3 + $0x318] sm:$0xff]
      %v1731 = vld [vmem:[#allocation3 + $0x320] sm:$0xff]
      %v1732 = vld [vmem:[#allocation3 + $0x328] sm:$0xff]
      %v1733 = vld [vmem:[#allocation3 + $0x330] sm:$0xff]
      %v1734 = vld [vmem:[#allocation3 + $0x338] sm:$0xff]
      %v1735 = vld [vmem:[#allocation3 + $0x340] sm:$0xff]
      %v1736 = vld [vmem:[#allocation3 + $0x348] sm:$0xff]
      %v1737 = vld [vmem:[#allocation3 + $0x350] sm:$0xff]
      %v1738 = vld [vmem:[#allocation3 + $0x358] sm:$0xff]
      %v1739 = vld [vmem:[#allocation3 + $0x360] sm:$0xff]
      %v1740 = vld [vmem:[#allocation3 + $0x368] sm:$0xff]
      %v1741 = vld [vmem:[#allocation3 + $0x370] sm:$0xff]
      %v1742 = vld [vmem:[#allocation3 + $0x378] sm:$0xff]
      %v1743 = vld [vmem:[#allocation3 + $0x380] sm:$0xff]
      %v1744 = vld [vmem:[#allocation3 + $0x388] sm:$0xff]
      %v1745 = vld [vmem:[#allocation3 + $0x390] sm:$0xff]
      %v1746 = vld [vmem:[#allocation3 + $0x398] sm:$0xff]
      %v1747 = vld [vmem:[#allocation3 + $0x3a0] sm:$0xff]
      %v1748 = vld [vmem:[#allocation3 + $0x3a8] sm:$0xff]
      %v1749 = vld [vmem:[#allocation3 + $0x3b0] sm:$0xff]
      %v1750 = vld [vmem:[#allocation3 + $0x3b8] sm:$0xff]
      %v1751 = vld [vmem:[#allocation3 + $0x3c0] sm:$0xff]
      %v1752 = vld [vmem:[#allocation3 + $0x3c8] sm:$0xff]
      %v1753 = vld [vmem:[#allocation3 + $0x3d0] sm:$0xff]
      %v1754 = vld [vmem:[#allocation3 + $0x3d8] sm:$0xff]
      %v1755 = vld [vmem:[#allocation3 + $0x3e0] sm:$0xff]
      %v1756 = vld [vmem:[#allocation3 + $0x3e8] sm:$0xff]
      %v1757 = vld [vmem:[#allocation3 + $0x3f0] sm:$0xff]
      %v1758 = vld [vmem:[#allocation3 + $0x3f8] sm:$0xff]
      %v1759 = vld [vmem:[#allocation3 + $0x400] sm:$0xff]
      %v1760 = vld [vmem:[#allocation3 + $0x408] sm:$0xff]
      %v1761 = vld [vmem:[#allocation3 + $0x410] sm:$0xff]
      %v1762 = vld [vmem:[#allocation3 + $0x418] sm:$0xff]
      %v1763 = vld [vmem:[#allocation3 + $0x420] sm:$0xff]
      %v1764 = vld [vmem:[#allocation3 + $0x428] sm:$0xff]
      %v1765 = vld [vmem:[#allocation3 + $0x430] sm:$0xff]
      %v1766 = vld [vmem:[#allocation3 + $0x438] sm:$0xff]
      %v1767 = vld [vmem:[#allocation3 + $0x440] sm:$0xff]
      %v1768 = vld [vmem:[#allocation3 + $0x448] sm:$0xff]
      %v1769 = vld [vmem:[#allocation3 + $0x450] sm:$0xff]
      %v1770 = vld [vmem:[#allocation3 + $0x458] sm:$0xff]
      %v1771 = vld [vmem:[#allocation3 + $0x460] sm:$0xff]
      %v1772 = vld [vmem:[#allocation3 + $0x468] sm:$0xff]
      %v1773 = vld [vmem:[#allocation3 + $0x470] sm:$0xff]
      %v1774 = vld [vmem:[#allocation3 + $0x478] sm:$0xff]
      %v1775 = vld [vmem:[#allocation3 + $0x480] sm:$0xff]
      %v1776 = vld [vmem:[#allocation3 + $0x488] sm:$0xff]
      %v1777 = vld [vmem:[#allocation3 + $0x490] sm:$0xff]
      %v1778 = vld [vmem:[#allocation3 + $0x498] sm:$0xff]
      %v1779 = vld [vmem:[#allocation3 + $0x4a0] sm:$0xff]
      %v1780 = vld [vmem:[#allocation3 + $0x4a8] sm:$0xff]
      %v1781 = vld [vmem:[#allocation3 + $0x4b0] sm:$0xff]
      %v1782 = vld [vmem:[#allocation3 + $0x4b8] sm:$0xff]
      %v1783 = vld [vmem:[#allocation3 + $0x4c0] sm:$0xff]
      %v1784 = vld [vmem:[#allocation3 + $0x4c8] sm:$0xff]
      %v1785 = vld [vmem:[#allocation3 + $0x4d0] sm:$0xff]
      %v1786 = vld [vmem:[#allocation3 + $0x4d8] sm:$0xff]
      %v1787 = vld [vmem:[#allocation3 + $0x4e0] sm:$0xff]
      %v1788 = vld [vmem:[#allocation3 + $0x4e8] sm:$0xff]
      %v1789 = vld [vmem:[#allocation3 + $0x4f0] sm:$0xff]
      %v1790 = vld [vmem:[#allocation3 + $0x4f8] sm:$0xff]
      %v1791 = vld [vmem:[#allocation3 + $0x500] sm:$0xff]
      %v1792 = vld [vmem:[#allocation3 + $0x508] sm:$0xff]
      %v1793 = vld [vmem:[#allocation3 + $0x510] sm:$0xff]
      %v1794 = vld [vmem:[#allocation3 + $0x518] sm:$0xff]
      %v1795 = vld [vmem:[#allocation3 + $0x520] sm:$0xff]
      %v1796 = vld [vmem:[#allocation3 + $0x528] sm:$0xff]
      %v1797 = vld [vmem:[#allocation3 + $0x530] sm:$0xff]
      %v1798 = vld [vmem:[#allocation3 + $0x538] sm:$0xff]
      %v1799 = vld [vmem:[#allocation3 + $0x540] sm:$0xff]
      %v1800 = vld [vmem:[#allocation3 + $0x548] sm:$0xff]
      %v1801 = vld [vmem:[#allocation3 + $0x550] sm:$0xff]
      %v1802 = vld [vmem:[#allocation3 + $0x558] sm:$0xff]
      %v1803 = vld [vmem:[#allocation3 + $0x560] sm:$0xff]
      %v1804 = vld [vmem:[#allocation3 + $0x568] sm:$0xff]
      %v1805 = vld [vmem:[#allocation3 + $0x570] sm:$0xff]
      %v1806 = vld [vmem:[#allocation3 + $0x578] sm:$0xff]
      %v1807 = vld [vmem:[#allocation3 + $0x580] sm:$0xff]
      %v1808 = vld [vmem:[#allocation3 + $0x588] sm:$0xff]
      %v1809 = vld [vmem:[#allocation3 + $0x590] sm:$0xff]
      %v1810 = vld [vmem:[#allocation3 + $0x598] sm:$0xff]
      %v1811 = vld [vmem:[#allocation3 + $0x5a0] sm:$0xff]
      %v1812 = vld [vmem:[#allocation3 + $0x5a8] sm:$0xff]
      %v1813 = vld [vmem:[#allocation3 + $0x5b0] sm:$0xff]
      %v1814 = vld [vmem:[#allocation3 + $0x5b8] sm:$0xff]
      %v1815 = vld [vmem:[#allocation3 + $0x5c0] sm:$0xff]
      %v1816 = vld [vmem:[#allocation3 + $0x5c8] sm:$0xff]
      %v1817 = vld [vmem:[#allocation3 + $0x5d0] sm:$0xff]
      %v1818 = vld [vmem:[#allocation3 + $0x5d8] sm:$0xff]
      %v1819 = vld [vmem:[#allocation3 + $0x5e0] sm:$0xff]
      %v1820 = vld [vmem:[#allocation3 + $0x5e8] sm:$0xff]
      %v1821 = vld [vmem:[#allocation3 + $0x5f0] sm:$0xff]
      %v1822 = vld [vmem:[#allocation3 + $0x5f8] sm:$0xff]
      %v1823 = vld [vmem:[#allocation3 + $0x600] sm:$0xff]
      %v1824 = vld [vmem:[#allocation3 + $0x608] sm:$0xff]
      %v1825 = vld [vmem:[#allocation3 + $0x610] sm:$0xff]
      %v1826 = vld [vmem:[#allocation3 + $0x618] sm:$0xff]
      %v1827 = vld [vmem:[#allocation3 + $0x620] sm:$0xff]
      %v1828 = vld [vmem:[#allocation3 + $0x628] sm:$0xff]
      %v1829 = vld [vmem:[#allocation3 + $0x630] sm:$0xff]
      %v1830 = vld [vmem:[#allocation3 + $0x638] sm:$0xff]
      %v1831 = vld [vmem:[#allocation3 + $0x640] sm:$0xff]
      %v1832 = vld [vmem:[#allocation3 + $0x648] sm:$0xff]
      %v1833 = vld [vmem:[#allocation3 + $0x650] sm:$0xff]
      %v1834 = vld [vmem:[#allocation3 + $0x658] sm:$0xff]
      %v1835 = vld [vmem:[#allocation3 + $0x660] sm:$0xff]
      %v1836 = vld [vmem:[#allocation3 + $0x668] sm:$0xff]
      %v1837 = vld [vmem:[#allocation3 + $0x670] sm:$0xff]
      %v1838 = vld [vmem:[#allocation3 + $0x678] sm:$0xff]
      %v1839 = vld [vmem:[#allocation3 + $0x680] sm:$0xff]
      %v1840 = vld [vmem:[#allocation3 + $0x688] sm:$0xff]
      %v1841 = vld [vmem:[#allocation3 + $0x690] sm:$0xff]
      %v1842 = vld [vmem:[#allocation3 + $0x698] sm:$0xff]
      %v1843 = vld [vmem:[#allocation3 + $0x6a0] sm:$0xff]
      %v1844 = vld [vmem:[#allocation3 + $0x6a8] sm:$0xff]
      %v1845 = vld [vmem:[#allocation3 + $0x6b0] sm:$0xff]
      %v1846 = vld [vmem:[#allocation3 + $0x6b8] sm:$0xff]
      %vm1847 = vcmask 261120
      %v1849 = vsel %vm1847, %v1621, 0
      %v1852 = vsel %vm1847, %v1624, 0
      %v1855 = vsel %vm1847, %v1627, 0
      %v1858 = vsel %vm1847, %v1630, 0
      %1860 = vmatprep.subr.mxu0 %v1632
      %1861 = vmatpush1.msra.mxu0 %v1631
      %1862 = vmatprep.subr.mxu0 %v1638
      %1863 = vmatpush1.msra.mxu0 %v1637
      %1864 = vmatprep.subr.mxu0 %v1644
      %1865 = vmatpush1.msra.mxu0 %v1643
      %1866 = vmatprep.subr.mxu0 %v1650
      %1867 = vmatpush1.msra.mxu0 %v1649
      %1868 = vmatprep.subr.mxu0 %v1656
      %1869 = vmatpush1.msra.mxu0 %v1655
      %1870 = vmatprep.subr.mxu0 %v1662
      %1871 = vmatpush1.msra.mxu0 %v1661
      %1872 = vmatprep.subr.mxu0 %v1668
      %1873 = vmatpush1.msra.mxu0 %v1667
      %1874 = vmatprep.subr.mxu0 %v1674
      %1875 = vmatpush1.msra.mxu0 %v1673
      %1876 = vmatprep.subr.mxu0 %v1680
      %1877 = vmatpush1.msra.mxu0 %v1679
      %1878 = vmatprep.subr.mxu0 %v1686
      %1879 = vmatpush1.msra.mxu0 %v1685
      %1880 = vmatprep.subr.mxu0 %v1692
      %1881 = vmatpush1.msra.mxu0 %v1691
      %1882 = vmatprep.subr.mxu0 %v1698
      %1883 = vmatpush1.msra.mxu0 %v1697
      %1884 = vmatprep.subr.mxu0 %v1704
      %1885 = vmatpush1.msra.mxu0 %v1703
      %1886 = vmatprep.subr.mxu0 %v1710
      %1887 = vmatpush1.msra.mxu0 %v1709
      %1888 = vmatprep.subr.mxu0 %v1716
      %1889 = vmatpush1.msra.mxu0 %v1715
      %1890 = vmatprep.subr.mxu0 %v1722
      %1891 = vmatpush1.msra.mxu0 %v1721
      %1892 = vmatprep.subr.mxu0 %v1728
      %1893 = vmatpush1.msra.mxu0 %v1727
      %1894 = vmatprep.subr.mxu0 %v1734
      %1895 = vmatpush1.msra.mxu0 %v1733
      %1896 = vmatprep.subr.mxu0 %v1740
      %1897 = vmatpush1.msra.mxu0 %v1739
      %1898 = vmatprep.subr.mxu0 %v1746
      %1899 = vmatpush1.msra.mxu0 %v1745
      %1900 = vmatprep.subr.mxu0 %v1752
      %1901 = vmatpush1.msra.mxu0 %v1751
      %1902 = vmatprep.subr.mxu0 %v1758
      %1903 = vmatpush1.msra.mxu0 %v1757
      %1904 = vmatprep.subr.mxu0 %v1764
      %1905 = vmatpush1.msra.mxu0 %v1763
      %1906 = vmatprep.subr.mxu0 %v1770
      %1907 = vmatpush1.msra.mxu0 %v1769
      %1908 = vmatprep.subr.mxu0 %v1776
      %1909 = vmatpush1.msra.mxu0 %v1775
      %1910 = vmatprep.subr.mxu0 %v1782
      %1911 = vmatpush1.msra.mxu0 %v1781
      %1912 = vmatprep.subr.mxu0 %v1788
      %1913 = vmatpush1.msra.mxu0 %v1787
      %1914 = vmatprep.subr.mxu0 %v1794
      %1915 = vmatpush1.msra.mxu0 %v1793
      %1916 = vmatprep.subr.mxu0 %v1800
      %1917 = vmatpush1.msra.mxu0 %v1799
      %1918 = vmatprep.subr.mxu0 %v1806
      %1919 = vmatpush1.msra.mxu0 %v1805
      %1920 = vmatprep.subr.mxu0 %v1812
      %1921 = vmatpush1.msra.mxu0 %v1811
      %1922 = vmatprep.subr.mxu0 %v1818
      %1923 = vmatpush1.msra.mxu0 %v1817
      %1924 = vmatprep.mubr.f32.mxu0 %v1620
      %1925 = vmatmul.mubr.f32.gmra.mrb[0].mxu0 %v1619
      %v1926 = vpop.f32.mrb[0].mxu0
      %v1927 = vadd.f32 0.0, %v1926
      %v1928 = vpop.f32.mrb[0].mxu0
      %v1929 = vadd.f32 0.0, %v1928
      %1930 = vmatprep.mubr.f32.mxu0 %v1623
      %1931 = vmatmul.mubr.f32.gmra.mrb[0].mxu0 %v1622
      %v1932 = vpop.f32.mrb[0].mxu0
      %v1933 = vadd.f32 0.0, %v1932
      %v1934 = vpop.f32.mrb[0].mxu0
      %v1935 = vadd.f32 0.0, %v1934
      %1936 = vmatprep.mubr.f32.mxu0 %v1626
      %1937 = vmatmul.mubr.f32.gmra.mrb[0].mxu0 %v1625
      %v1938 = vpop.f32.mrb[0].mxu0
      %v1939 = vadd.f32 0.0, %v1938
      %v1940 = vpop.f32.mrb[0].mxu0
      %v1941 = vadd.f32 0.0, %v1940
      %1942 = vmatprep.mubr.f32.mxu0 %v1629
      %1943 = vmatmul.mubr.f32.gmra.mrb[0].mxu0 %v1628
      %v1944 = vpop.f32.mrb[0].mxu0
      %v1945 = vadd.f32 0.0, %v1944
      %v1946 = vpop.f32.mrb[0].mxu0
      %v1947 = vadd.f32 0.0, %v1946
      %1948 = vdwg.mxu0
      %1949 = vmatprep.subr.mxu0 %v1824
      %1950 = vmatpush1.msra.mxu0 %v1823
      %1951 = vmatprep.subr.mxu0 %v1830
      %1952 = vmatpush1.msra.mxu0 %v1829
      %1953 = vmatprep.subr.mxu0 %v1836
      %1954 = vmatpush1.msra.mxu0 %v1835
      %1955 = vmatprep.subr.mxu0 %v1842
      %1956 = vmatpush1.msra.mxu0 %v1841
      %1957 = vmatprep.subr.mxu0 0.0
      %1958 = vmatpush1.msra.mxu0 0.0
      %1959 = vmatprep.subr.mxu0 0.0
      %1960 = vmatpush1.msra.mxu0 0.0
      %1961 = vmatprep.subr.mxu0 0.0
      %1962 = vmatpush1.msra.mxu0 0.0
      %1963 = vmatprep.subr.mxu0 0.0
      %1964 = vmatpush1.msra.mxu0 0.0
      %1965 = vmatprep.subr.mxu0 0.0
      %1966 = vmatpush1.msra.mxu0 0.0
      %1967 = vmatprep.subr.mxu0 0.0
      %1968 = vmatpush1.msra.mxu0 0.0
      %1969 = vmatprep.subr.mxu0 0.0
      %1970 = vmatpush1.msra.mxu0 0.0
      %1971 = vmatprep.subr.mxu0 0.0
      %1972 = vmatpush1.msra.mxu0 0.0
      %1973 = vmatprep.subr.mxu0 0.0
      %1974 = vmatpush1.msra.mxu0 0.0
      %1975 = vmatprep.subr.mxu0 0.0
      %1976 = vmatpush1.msra.mxu0 0.0
      %1977 = vmatprep.subr.mxu0 0.0
      %1978 = vmatpush1.msra.mxu0 0.0
      %1979 = vmatprep.subr.mxu0 0.0
      %1980 = vmatpush1.msra.mxu0 0.0
      %1981 = vmatprep.subr.mxu0 0.0
      %1982 = vmatpush1.msra.mxu0 0.0
      %1983 = vmatprep.subr.mxu0 0.0
      %1984 = vmatpush1.msra.mxu0 0.0
      %1985 = vmatprep.subr.mxu0 0.0
      %1986 = vmatpush1.msra.mxu0 0.0
      %1987 = vmatprep.subr.mxu0 0.0
      %1988 = vmatpush1.msra.mxu0 0.0
      %1989 = vmatprep.subr.mxu0 0.0
      %1990 = vmatpush1.msra.mxu0 0.0
      %1991 = vmatprep.subr.mxu0 0.0
      %1992 = vmatpush1.msra.mxu0 0.0
      %1993 = vmatprep.subr.mxu0 0.0
      %1994 = vmatpush1.msra.mxu0 0.0
      %1995 = vmatprep.subr.mxu0 0.0
      %1996 = vmatpush1.msra.mxu0 0.0
      %1997 = vmatprep.subr.mxu0 0.0
      %1998 = vmatpush1.msra.mxu0 0.0
      %1999 = vmatprep.subr.mxu0 0.0
      %2000 = vmatpush1.msra.mxu0 0.0
      %2001 = vmatprep.subr.mxu0 0.0
      %2002 = vmatpush1.msra.mxu0 0.0
      %2003 = vmatprep.subr.mxu0 0.0
      %2004 = vmatpush1.msra.mxu0 0.0
      %2005 = vmatprep.subr.mxu0 0.0
      %2006 = vmatpush1.msra.mxu0 0.0
      %2007 = vmatprep.subr.mxu0 0.0
      %2008 = vmatpush1.msra.mxu0 0.0
      %2009 = vmatprep.subr.mxu0 0.0
      %2010 = vmatpush1.msra.mxu0 0.0
      %2011 = vmatprep.subr.mxu0 0.0
      %2012 = vmatpush1.msra.mxu0 0.0
      %2013 = vmatprep.mubr.f32.mxu0 0.0
      %2014 = vmatmul.mubr.f32.gmra.mrb[0].mxu0 %v1849
      %v2015 = vpop.f32.mrb[0].mxu0
      %v2016 = vadd.f32 %v1927, %v2015
      %v2017 = vpop.f32.mrb[0].mxu0
      %v2018 = vadd.f32 %v1929, %v2017
      %2019 = vmatprep.mubr.f32.mxu0 0.0
      %2020 = vmatmul.mubr.f32.gmra.mrb[0].mxu0 %v1852
      %v2021 = vpop.f32.mrb[0].mxu0
      %v2022 = vadd.f32 %v1933, %v2021
      %v2023 = vpop.f32.mrb[0].mxu0
      %v2024 = vadd.f32 %v1935, %v2023
      %2025 = vmatprep.mubr.f32.mxu0 0.0
      %2026 = vmatmul.mubr.f32.gmra.mrb[0].mxu0 %v1855
      %v2027 = vpop.f32.mrb[0].mxu0
      %v2028 = vadd.f32 %v1939, %v2027
      %v2029 = vpop.f32.mrb[0].mxu0
      %v2030 = vadd.f32 %v1941, %v2029
      %2031 = vmatprep.mubr.f32.mxu0 0.0
      %2032 = vmatmul.mubr.f32.gmra.mrb[0].mxu0 %v1858
      %v2033 = vpop.f32.mrb[0].mxu0
      %v2034 = vadd.f32 %v1945, %v2033
      %v2035 = vpop.f32.mrb[0].mxu0
      %v2036 = vadd.f32 %v1947, %v2035
      %2037 = vdwg.mxu0
      %2038 = vmatprep.subr.mxu0 %v1634
      %2039 = vmatpush1.msra.mxu0 %v1633
      %2040 = vmatprep.subr.mxu0 %v1640
      %2041 = vmatpush1.msra.mxu0 %v1639
      %2042 = vmatprep.subr.mxu0 %v1646
      %2043 = vmatpush1.msra.mxu0 %v1645
      %2044 = vmatprep.subr.mxu0 %v1652
      %2045 = vmatpush1.msra.mxu0 %v1651
      %2046 = vmatprep.subr.mxu0 %v1658
      %2047 = vmatpush1.msra.mxu0 %v1657
      %2048 = vmatprep.subr.mxu0 %v1664
      %2049 = vmatpush1.msra.mxu0 %v1663
      %2050 = vmatprep.subr.mxu0 %v1670
      %2051 = vmatpush1.msra.mxu0 %v1669
      %2052 = vmatprep.subr.mxu0 %v1676
      %2053 = vmatpush1.msra.mxu0 %v1675
      %2054 = vmatprep.subr.mxu0 %v1682
      %2055 = vmatpush1.msra.mxu0 %v1681
      %2056 = vmatprep.subr.mxu0 %v1688
      %2057 = vmatpush1.msra.mxu0 %v1687
      %2058 = vmatprep.subr.mxu0 %v1694
      %2059 = vmatpush1.msra.mxu0 %v1693
      %2060 = vmatprep.subr.mxu0 %v1700
      %2061 = vmatpush1.msra.mxu0 %v1699
      %2062 = vmatprep.subr.mxu0 %v1706
      %2063 = vmatpush1.msra.mxu0 %v1705
      %2064 = vmatprep.subr.mxu0 %v1712
      %2065 = vmatpush1.msra.mxu0 %v1711
      %2066 = vmatprep.subr.mxu0 %v1718
      %2067 = vmatpush1.msra.mxu0 %v1717
      %2068 = vmatprep.subr.mxu0 %v1724
      %2069 = vmatpush1.msra.mxu0 %v1723
      %2070 = vmatprep.subr.mxu0 %v1730
      %2071 = vmatpush1.msra.mxu0 %v1729
      %2072 = vmatprep.subr.mxu0 %v1736
      %2073 = vmatpush1.msra.mxu0 %v1735
      %2074 = vmatprep.subr.mxu0 %v1742
      %2075 = vmatpush1.msra.mxu0 %v1741
      %2076 = vmatprep.subr.mxu0 %v1748
      %2077 = vmatpush1.msra.mxu0 %v1747
      %2078 = vmatprep.subr.mxu0 %v1754
      %2079 = vmatpush1.msra.mxu0 %v1753
      %2080 = vmatprep.subr.mxu0 %v1760
      %2081 = vmatpush1.msra.mxu0 %v1759
      %2082 = vmatprep.subr.mxu0 %v1766
      %2083 = vmatpush1.msra.mxu0 %v1765
      %2084 = vmatprep.subr.mxu0 %v1772
      %2085 = vmatpush1.msra.mxu0 %v1771
      %2086 = vmatprep.subr.mxu0 %v1778
      %2087 = vmatpush1.msra.mxu0 %v1777
      %2088 = vmatprep.subr.mxu0 %v1784
      %2089 = vmatpush1.msra.mxu0 %v1783
      %2090 = vmatprep.subr.mxu0 %v1790
      %2091 = vmatpush1.msra.mxu0 %v1789
      %2092 = vmatprep.subr.mxu0 %v1796
      %2093 = vmatpush1.msra.mxu0 %v1795
      %2094 = vmatprep.subr.mxu0 %v1802
      %2095 = vmatpush1.msra.mxu0 %v1801
      %2096 = vmatprep.subr.mxu0 %v1808
      %2097 = vmatpush1.msra.mxu0 %v1807
      %2098 = vmatprep.subr.mxu0 %v1814
      %2099 = vmatpush1.msra.mxu0 %v1813
      %2100 = vmatprep.subr.mxu0 %v1820
      %2101 = vmatpush1.msra.mxu0 %v1819
      %2102 = vmatprep.mubr.f32.mxu0 %v1620
      %2103 = vmatmul.mubr.f32.gmra.mrb[0].mxu0 %v1619
      %v2104 = vpop.f32.mrb[0].mxu0
      %v2105 = vadd.f32 0.0, %v2104
      %v2106 = vpop.f32.mrb[0].mxu0
      %v2107 = vadd.f32 0.0, %v2106
      %2108 = vmatprep.mubr.f32.mxu0 %v1623
      %2109 = vmatmul.mubr.f32.gmra.mrb[0].mxu0 %v1622
      %v2110 = vpop.f32.mrb[0].mxu0
      %v2111 = vadd.f32 0.0, %v2110
      %v2112 = vpop.f32.mrb[0].mxu0
      %v2113 = vadd.f32 0.0, %v2112
      %2114 = vmatprep.mubr.f32.mxu0 %v1626
      %2115 = vmatmul.mubr.f32.gmra.mrb[0].mxu0 %v1625
      %v2116 = vpop.f32.mrb[0].mxu0
      %v2117 = vadd.f32 0.0, %v2116
      %v2118 = vpop.f32.mrb[0].mxu0
      %v2119 = vadd.f32 0.0, %v2118
      %2120 = vmatprep.mubr.f32.mxu0 %v1629
      %2121 = vmatmul.mubr.f32.gmra.mrb[0].mxu0 %v1628
      %v2122 = vpop.f32.mrb[0].mxu0
      %v2123 = vadd.f32 0.0, %v2122
      %v2124 = vpop.f32.mrb[0].mxu0
      %v2125 = vadd.f32 0.0, %v2124
      %2126 = vdwg.mxu0
      %2127 = vmatprep.subr.mxu0 %v1826
      %2128 = vmatpush1.msra.mxu0 %v1825
      %2129 = vmatprep.subr.mxu0 %v1832
      %2130 = vmatpush1.msra.mxu0 %v1831
      %2131 = vmatprep.subr.mxu0 %v1838
      %2132 = vmatpush1.msra.mxu0 %v1837
      %2133 = vmatprep.subr.mxu0 %v1844
      %2134 = vmatpush1.msra.mxu0 %v1843
      %2135 = vmatprep.subr.mxu0 0.0
      %2136 = vmatpush1.msra.mxu0 0.0
      %2137 = vmatprep.subr.mxu0 0.0
      %2138 = vmatpush1.msra.mxu0 0.0
      %2139 = vmatprep.subr.mxu0 0.0
      %2140 = vmatpush1.msra.mxu0 0.0
      %2141 = vmatprep.subr.mxu0 0.0
      %2142 = vmatpush1.msra.mxu0 0.0
      %2143 = vmatprep.subr.mxu0 0.0
      %2144 = vmatpush1.msra.mxu0 0.0
      %2145 = vmatprep.subr.mxu0 0.0
      %2146 = vmatpush1.msra.mxu0 0.0
      %2147 = vmatprep.subr.mxu0 0.0
      %2148 = vmatpush1.msra.mxu0 0.0
      %2149 = vmatprep.subr.mxu0 0.0
      %2150 = vmatpush1.msra.mxu0 0.0
      %2151 = vmatprep.subr.mxu0 0.0
      %2152 = vmatpush1.msra.mxu0 0.0
      %2153 = vmatprep.subr.mxu0 0.0
      %2154 = vmatpush1.msra.mxu0 0.0
      %2155 = vmatprep.subr.mxu0 0.0
      %2156 = vmatpush1.msra.mxu0 0.0
      %2157 = vmatprep.subr.mxu0 0.0
      %2158 = vmatpush1.msra.mxu0 0.0
      %2159 = vmatprep.subr.mxu0 0.0
      %2160 = vmatpush1.msra.mxu0 0.0
      %2161 = vmatprep.subr.mxu0 0.0
      %2162 = vmatpush1.msra.mxu0 0.0
      %2163 = vmatprep.subr.mxu0 0.0
      %2164 = vmatpush1.msra.mxu0 0.0
      %2165 = vmatprep.subr.mxu0 0.0
      %2166 = vmatpush1.msra.mxu0 0.0
      %2167 = vmatprep.subr.mxu0 0.0
      %2168 = vmatpush1.msra.mxu0 0.0
      %2169 = vmatprep.subr.mxu0 0.0
      %2170 = vmatpush1.msra.mxu0 0.0
      %2171 = vmatprep.subr.mxu0 0.0
      %2172 = vmatpush1.msra.mxu0 0.0
      %2173 = vmatprep.subr.mxu0 0.0
      %2174 = vmatpush1.msra.mxu0 0.0
      %2175 = vmatprep.subr.mxu0 0.0
      %2176 = vmatpush1.msra.mxu0 0.0
      %2177 = vmatprep.subr.mxu0 0.0
      %2178 = vmatpush1.msra.mxu0 0.0
      %2179 = vmatprep.subr.mxu0 0.0
      %2180 = vmatpush1.msra.mxu0 0.0
      %2181 = vmatprep.subr.mxu0 0.0
      %2182 = vmatpush1.msra.mxu0 0.0
      %2183 = vmatprep.subr.mxu0 0.0
      %2184 = vmatpush1.msra.mxu0 0.0
      %2185 = vmatprep.subr.mxu0 0.0
      %2186 = vmatpush1.msra.mxu0 0.0
      %2187 = vmatprep.subr.mxu0 0.0
      %2188 = vmatpush1.msra.mxu0 0.0
      %2189 = vmatprep.subr.mxu0 0.0
      %2190 = vmatpush1.msra.mxu0 0.0
      %2191 = vmatprep.mubr.f32.mxu0 0.0
      %2192 = vmatmul.mubr.f32.gmra.mrb[0].mxu0 %v1849
      %v2193 = vpop.f32.mrb[0].mxu0
      %v2194 = vadd.f32 %v2105, %v2193
      %v2195 = vpop.f32.mrb[0].mxu0
      %v2196 = vadd.f32 %v2107, %v2195
      %2197 = vmatprep.mubr.f32.mxu0 0.0
      %2198 = vmatmul.mubr.f32.gmra.mrb[0].mxu0 %v1852
      %v2199 = vpop.f32.mrb[0].mxu0
      %v2200 = vadd.f32 %v2111, %v2199
      %v2201 = vpop.f32.mrb[0].mxu0
      %v2202 = vadd.f32 %v2113, %v2201
      %2203 = vmatprep.mubr.f32.mxu0 0.0
      %2204 = vmatmul.mubr.f32.gmra.mrb[0].mxu0 %v1855
      %v2205 = vpop.f32.mrb[0].mxu0
      %v2206 = vadd.f32 %v2117, %v2205
      %v2207 = vpop.f32.mrb[0].mxu0
      %v2208 = vadd.f32 %v2119, %v2207
      %2209 = vmatprep.mubr.f32.mxu0 0.0
      %2210 = vmatmul.mubr.f32.gmra.mrb[0].mxu0 %v1858
      %v2211 = vpop.f32.mrb[0].mxu0
      %v2212 = vadd.f32 %v2123, %v2211
      %v2213 = vpop.f32.mrb[0].mxu0
      %v2214 = vadd.f32 %v2125, %v2213
      %2215 = vdwg.mxu0
      %2216 = vmatprep.subr.mxu0 %v1636
      %2217 = vmatpush1.msra.mxu0 %v1635
      %2218 = vmatprep.subr.mxu0 %v1642
      %2219 = vmatpush1.msra.mxu0 %v1641
      %2220 = vmatprep.subr.mxu0 %v1648
      %2221 = vmatpush1.msra.mxu0 %v1647
      %2222 = vmatprep.subr.mxu0 %v1654
      %2223 = vmatpush1.msra.mxu0 %v1653
      %2224 = vmatprep.subr.mxu0 %v1660
      %2225 = vmatpush1.msra.mxu0 %v1659
      %2226 = vmatprep.subr.mxu0 %v1666
      %2227 = vmatpush1.msra.mxu0 %v1665
      %2228 = vmatprep.subr.mxu0 %v1672
      %2229 = vmatpush1.msra.mxu0 %v1671
      %2230 = vmatprep.subr.mxu0 %v1678
      %2231 = vmatpush1.msra.mxu0 %v1677
      %2232 = vmatprep.subr.mxu0 %v1684
      %2233 = vmatpush1.msra.mxu0 %v1683
      %2234 = vmatprep.subr.mxu0 %v1690
      %2235 = vmatpush1.msra.mxu0 %v1689
      %2236 = vmatprep.subr.mxu0 %v1696
      %2237 = vmatpush1.msra.mxu0 %v1695
      %2238 = vmatprep.subr.mxu0 %v1702
      %2239 = vmatpush1.msra.mxu0 %v1701
      %2240 = vmatprep.subr.mxu0 %v1708
      %2241 = vmatpush1.msra.mxu0 %v1707
      %2242 = vmatprep.subr.mxu0 %v1714
      %2243 = vmatpush1.msra.mxu0 %v1713
      %2244 = vmatprep.subr.mxu0 %v1720
      %2245 = vmatpush1.msra.mxu0 %v1719
      %2246 = vmatprep.subr.mxu0 %v1726
      %2247 = vmatpush1.msra.mxu0 %v1725
      %2248 = vmatprep.subr.mxu0 %v1732
      %2249 = vmatpush1.msra.mxu0 %v1731
      %2250 = vmatprep.subr.mxu0 %v1738
      %2251 = vmatpush1.msra.mxu0 %v1737
      %2252 = vmatprep.subr.mxu0 %v1744
      %2253 = vmatpush1.msra.mxu0 %v1743
      %2254 = vmatprep.subr.mxu0 %v1750
      %2255 = vmatpush1.msra.mxu0 %v1749
      %2256 = vmatprep.subr.mxu0 %v1756
      %2257 = vmatpush1.msra.mxu0 %v1755
      %2258 = vmatprep.subr.mxu0 %v1762
      %2259 = vmatpush1.msra.mxu0 %v1761
      %2260 = vmatprep.subr.mxu0 %v1768
      %2261 = vmatpush1.msra.mxu0 %v1767
      %2262 = vmatprep.subr.mxu0 %v1774
      %2263 = vmatpush1.msra.mxu0 %v1773
      %2264 = vmatprep.subr.mxu0 %v1780
      %2265 = vmatpush1.msra.mxu0 %v1779
      %2266 = vmatprep.subr.mxu0 %v1786
      %2267 = vmatpush1.msra.mxu0 %v1785
      %2268 = vmatprep.subr.mxu0 %v1792
      %2269 = vmatpush1.msra.mxu0 %v1791
      %2270 = vmatprep.subr.mxu0 %v1798
      %2271 = vmatpush1.msra.mxu0 %v1797
      %2272 = vmatprep.subr.mxu0 %v1804
      %2273 = vmatpush1.msra.mxu0 %v1803
      %2274 = vmatprep.subr.mxu0 %v1810
      %2275 = vmatpush1.msra.mxu0 %v1809
      %2276 = vmatprep.subr.mxu0 %v1816
      %2277 = vmatpush1.msra.mxu0 %v1815
      %2278 = vmatprep.subr.mxu0 %v1822
      %2279 = vmatpush1.msra.mxu0 %v1821
      %2280 = vmatprep.mubr.f32.mxu0 %v1620
      %2281 = vmatmul.mubr.f32.gmra.mrb[0].mxu0 %v1619
      %v2282 = vpop.f32.mrb[0].mxu0
      %v2283 = vadd.f32 0.0, %v2282
      %v2284 = vpop.f32.mrb[0].mxu0
      %v2285 = vadd.f32 0.0, %v2284
      %2286 = vmatprep.mubr.f32.mxu0 %v1623
      %2287 = vmatmul.mubr.f32.gmra.mrb[0].mxu0 %v1622
      %v2288 = vpop.f32.mrb[0].mxu0
      %v2289 = vadd.f32 0.0, %v2288
      %v2290 = vpop.f32.mrb[0].mxu0
      %v2291 = vadd.f32 0.0, %v2290
      %2292 = vmatprep.mubr.f32.mxu0 %v1626
      %2293 = vmatmul.mubr.f32.gmra.mrb[0].mxu0 %v1625
      %v2294 = vpop.f32.mrb[0].mxu0
      %v2295 = vadd.f32 0.0, %v2294
      %v2296 = vpop.f32.mrb[0].mxu0
      %v2297 = vadd.f32 0.0, %v2296
      %2298 = vmatprep.mubr.f32.mxu0 %v1629
      %2299 = vmatmul.mubr.f32.gmra.mrb[0].mxu0 %v1628
      %v2300 = vpop.f32.mrb[0].mxu0
      %v2301 = vadd.f32 0.0, %v2300
      %v2302 = vpop.f32.mrb[0].mxu0
      %v2303 = vadd.f32 0.0, %v2302
      %2304 = vdwg.mxu0
      %2305 = vmatprep.subr.mxu0 %v1828
      %2306 = vmatpush1.msra.mxu0 %v1827
      %2307 = vmatprep.subr.mxu0 %v1834
      %2308 = vmatpush1.msra.mxu0 %v1833
      %2309 = vmatprep.subr.mxu0 %v1840
      %2310 = vmatpush1.msra.mxu0 %v1839
      %2311 = vmatprep.subr.mxu0 %v1846
      %2312 = vmatpush1.msra.mxu0 %v1845
      %2313 = vmatprep.subr.mxu0 0.0
      %2314 = vmatpush1.msra.mxu0 0.0
      %2315 = vmatprep.subr.mxu0 0.0
      %2316 = vmatpush1.msra.mxu0 0.0
      %2317 = vmatprep.subr.mxu0 0.0
      %2318 = vmatpush1.msra.mxu0 0.0
      %2319 = vmatprep.subr.mxu0 0.0
      %2320 = vmatpush1.msra.mxu0 0.0
      %2321 = vmatprep.subr.mxu0 0.0
      %2322 = vmatpush1.msra.mxu0 0.0
      %2323 = vmatprep.subr.mxu0 0.0
      %2324 = vmatpush1.msra.mxu0 0.0
      %2325 = vmatprep.subr.mxu0 0.0
      %2326 = vmatpush1.msra.mxu0 0.0
      %2327 = vmatprep.subr.mxu0 0.0
      %2328 = vmatpush1.msra.mxu0 0.0
      %2329 = vmatprep.subr.mxu0 0.0
      %2330 = vmatpush1.msra.mxu0 0.0
      %2331 = vmatprep.subr.mxu0 0.0
      %2332 = vmatpush1.msra.mxu0 0.0
      %2333 = vmatprep.subr.mxu0 0.0
      %2334 = vmatpush1.msra.mxu0 0.0
      %2335 = vmatprep.subr.mxu0 0.0
      %2336 = vmatpush1.msra.mxu0 0.0
      %2337 = vmatprep.subr.mxu0 0.0
      %2338 = vmatpush1.msra.mxu0 0.0
      %2339 = vmatprep.subr.mxu0 0.0
      %2340 = vmatpush1.msra.mxu0 0.0
      %2341 = vmatprep.subr.mxu0 0.0
      %2342 = vmatpush1.msra.mxu0 0.0
      %2343 = vmatprep.subr.mxu0 0.0
      %2344 = vmatpush1.msra.mxu0 0.0
      %2345 = vmatprep.subr.mxu0 0.0
      %2346 = vmatpush1.msra.mxu0 0.0
      %2347 = vmatprep.subr.mxu0 0.0
      %2348 = vmatpush1.msra.mxu0 0.0
      %2349 = vmatprep.subr.mxu0 0.0
      %2350 = vmatpush1.msra.mxu0 0.0
      %2351 = vmatprep.subr.mxu0 0.0
      %2352 = vmatpush1.msra.mxu0 0.0
      %2353 = vmatprep.subr.mxu0 0.0
      %2354 = vmatpush1.msra.mxu0 0.0
      %2355 = vmatprep.subr.mxu0 0.0
      %2356 = vmatpush1.msra.mxu0 0.0
      %2357 = vmatprep.subr.mxu0 0.0
      %2358 = vmatpush1.msra.mxu0 0.0
      %2359 = vmatprep.subr.mxu0 0.0
      %2360 = vmatpush1.msra.mxu0 0.0
      %2361 = vmatprep.subr.mxu0 0.0
      %2362 = vmatpush1.msra.mxu0 0.0
      %2363 = vmatprep.subr.mxu0 0.0
      %2364 = vmatpush1.msra.mxu0 0.0
      %2365 = vmatprep.subr.mxu0 0.0
      %2366 = vmatpush1.msra.mxu0 0.0
      %2367 = vmatprep.subr.mxu0 0.0
      %2368 = vmatpush1.msra.mxu0 0.0
      %2369 = vmatprep.mubr.f32.mxu0 0.0
      %2370 = vmatmul.mubr.f32.gmra.mrb[0].mxu0 %v1849
      %v2371 = vpop.f32.mrb[0].mxu0
      %v2372 = vadd.f32 %v2283, %v2371
      %v2373 = vpop.f32.mrb[0].mxu0
      %v2374 = vadd.f32 %v2285, %v2373
      %2375 = vmatprep.mubr.f32.mxu0 0.0
      %2376 = vmatmul.mubr.f32.gmra.mrb[0].mxu0 %v1852
      %v2377 = vpop.f32.mrb[0].mxu0
      %v2378 = vadd.f32 %v2289, %v2377
      %v2379 = vpop.f32.mrb[0].mxu0
      %v2380 = vadd.f32 %v2291, %v2379
      %2381 = vmatprep.mubr.f32.mxu0 0.0
      %2382 = vmatmul.mubr.f32.gmra.mrb[0].mxu0 %v1855
      %v2383 = vpop.f32.mrb[0].mxu0
      %v2384 = vadd.f32 %v2295, %v2383
      %v2385 = vpop.f32.mrb[0].mxu0
      %v2386 = vadd.f32 %v2297, %v2385
      %2387 = vmatprep.mubr.f32.mxu0 0.0
      %2388 = vmatmul.mubr.f32.gmra.mrb[0].mxu0 %v1858
      %v2389 = vpop.f32.mrb[0].mxu0
      %v2390 = vadd.f32 %v2301, %v2389
      %v2391 = vpop.f32.mrb[0].mxu0
      %v2392 = vadd.f32 %v2303, %v2391
      %2393 = vdwg.mxu0
      %v2395 = vlaneseq
      %v2396 = vshrl.u32 %v2395, 7
      %v2397 = vsub.s32 0, %v2396
      %v2398 = vrot.slane %v28, %v2397
      %v2399 = vlaneseq
      %v2400 = vshrl.u32 %v2399, 7
      %v2401 = vsub.s32 1, %v2400
      %v2402 = vrot.slane %v28, %v2401
      %v2403 = vlaneseq
      %v2404 = vshrl.u32 %v2403, 7
      %v2405 = vsub.s32 2, %v2404
      %v2406 = vrot.slane %v28, %v2405
      %v2407 = vlaneseq
      %v2408 = vshrl.u32 %v2407, 7
      %v2409 = vsub.s32 3, %v2408
      %v2410 = vrot.slane %v28, %v2409
      %v2411 = vlaneseq
      %v2412 = vshrl.u32 %v2411, 7
      %v2413 = vsub.s32 4, %v2412
      %v2414 = vrot.slane %v28, %v2413
      %v2415 = vlaneseq
      %v2416 = vshrl.u32 %v2415, 7
      %v2417 = vsub.s32 5, %v2416
      %v2418 = vrot.slane %v28, %v2417
      %v2425 = vmul.f32 %v2016, %v2398
      %v2426 = vmul.f32 %v2018, %v2402
      %v2427 = vmul.f32 %v2194, %v2406
      %v2428 = vmul.f32 %v2196, %v2410
      %v2429 = vmul.f32 %v2372, %v2414
      %v2430 = vmul.f32 %v2374, %v2418
      %v2431 = vmul.f32 %v2022, %v2398
      %v2432 = vmul.f32 %v2024, %v2402
      %v2433 = vmul.f32 %v2200, %v2406
      %v2434 = vmul.f32 %v2202, %v2410
      %v2435 = vmul.f32 %v2378, %v2414
      %v2436 = vmul.f32 %v2380, %v2418
      %v2437 = vmul.f32 %v2028, %v2398
      %v2438 = vmul.f32 %v2030, %v2402
      %v2439 = vmul.f32 %v2206, %v2406
      %v2440 = vmul.f32 %v2208, %v2410
      %v2441 = vmul.f32 %v2384, %v2414
      %v2442 = vmul.f32 %v2386, %v2418
      %v2443 = vmul.f32 %v2034, %v2398
      %v2444 = vmul.f32 %v2036, %v2402
      %v2445 = vmul.f32 %v2212, %v2406
      %v2446 = vmul.f32 %v2214, %v2410
      %v2447 = vmul.f32 %v2390, %v2414
      %v2448 = vmul.f32 %v2392, %v2418
      %v2449 = vadd.f32 %v2425, %v2426
      %v2450 = vadd.f32 %v2449, %v2427
      %v2451 = vadd.f32 %v2450, %v2428
      %v2452 = vadd.f32 %v2451, %v2429
      %v2453 = vsel %vm276, %v2430, 0.0
      %v2454 = vadd.f32 %v2452, %v2453
      %2455 = vadd.xlane.f32.xlu0 %v2454
      %v2456 = vpop.xlane.xlu0 %2455
      %v2457 = vadd.f32 %v2431, %v2432
      %v2458 = vadd.f32 %v2457, %v2433
      %v2459 = vadd.f32 %v2458, %v2434
      %v2460 = vadd.f32 %v2459, %v2435
      %v2461 = vsel %vm276, %v2436, 0.0
      %v2462 = vadd.f32 %v2460, %v2461
      %2463 = vadd.xlane.f32.xlu0 %v2462
      %v2464 = vpop.xlane.xlu0 %2463
      %v2465 = vadd.f32 %v2437, %v2438
      %v2466 = vadd.f32 %v2465, %v2439
      %v2467 = vadd.f32 %v2466, %v2440
      %v2468 = vadd.f32 %v2467, %v2441
      %v2469 = vsel %vm276, %v2442, 0.0
      %v2470 = vadd.f32 %v2468, %v2469
      %2471 = vadd.xlane.f32.xlu0 %v2470
      %v2472 = vpop.xlane.xlu0 %2471
      %v2473 = vadd.f32 %v2443, %v2444
      %v2474 = vadd.f32 %v2473, %v2445
      %v2475 = vadd.f32 %v2474, %v2446
      %v2476 = vadd.f32 %v2475, %v2447
      %v2477 = vsel %vm276, %v2448, 0.0
      %v2478 = vadd.f32 %v2476, %v2477
      %2479 = vadd.xlane.f32.xlu0 %v2478
      %v2480 = vpop.xlane.xlu0 %2479
      %v2481 = vmul.f32 %v2425, %v2425
      %v2482 = vmul.f32 %v2426, %v2426
      %v2483 = vmul.f32 %v2427, %v2427
      %v2484 = vmul.f32 %v2428, %v2428
      %v2485 = vmul.f32 %v2429, %v2429
      %v2486 = vmul.f32 %v2430, %v2430
      %v2487 = vmul.f32 %v2431, %v2431
      %v2488 = vmul.f32 %v2432, %v2432
      %v2489 = vmul.f32 %v2433, %v2433
      %v2490 = vmul.f32 %v2434, %v2434
      %v2491 = vmul.f32 %v2435, %v2435
      %v2492 = vmul.f32 %v2436, %v2436
      %v2493 = vmul.f32 %v2437, %v2437
      %v2494 = vmul.f32 %v2438, %v2438
      %v2495 = vmul.f32 %v2439, %v2439
      %v2496 = vmul.f32 %v2440, %v2440
      %v2497 = vmul.f32 %v2441, %v2441
      %v2498 = vmul.f32 %v2442, %v2442
      %v2499 = vmul.f32 %v2443, %v2443
      %v2500 = vmul.f32 %v2444, %v2444
      %v2501 = vmul.f32 %v2445, %v2445
      %v2502 = vmul.f32 %v2446, %v2446
      %v2503 = vmul.f32 %v2447, %v2447
      %v2504 = vmul.f32 %v2448, %v2448
      %v2505 = vadd.f32 %v2481, %v2482
      %v2506 = vadd.f32 %v2505, %v2483
      %v2507 = vadd.f32 %v2506, %v2484
      %v2508 = vadd.f32 %v2507, %v2485
      %v2509 = vsel %vm276, %v2486, 0.0
      %v2510 = vadd.f32 %v2508, %v2509
      %2511 = vadd.xlane.f32.xlu0 %v2510
      %v2512 = vpop.xlane.xlu0 %2511
      %v2513 = vadd.f32 %v2487, %v2488
      %v2514 = vadd.f32 %v2513, %v2489
      %v2515 = vadd.f32 %v2514, %v2490
      %v2516 = vadd.f32 %v2515, %v2491
      %v2517 = vsel %vm276, %v2492, 0.0
      %v2518 = vadd.f32 %v2516, %v2517
      %2519 = vadd.xlane.f32.xlu0 %v2518
      %v2520 = vpop.xlane.xlu0 %2519
      %v2521 = vadd.f32 %v2493, %v2494
      %v2522 = vadd.f32 %v2521, %v2495
      %v2523 = vadd.f32 %v2522, %v2496
      %v2524 = vadd.f32 %v2523, %v2497
      %v2525 = vsel %vm276, %v2498, 0.0
      %v2526 = vadd.f32 %v2524, %v2525
      %2527 = vadd.xlane.f32.xlu0 %v2526
      %v2528 = vpop.xlane.xlu0 %2527
      %v2529 = vadd.f32 %v2499, %v2500
      %v2530 = vadd.f32 %v2529, %v2501
      %v2531 = vadd.f32 %v2530, %v2502
      %v2532 = vadd.f32 %v2531, %v2503
      %v2533 = vsel %vm276, %v2504, 0.0
      %v2534 = vadd.f32 %v2532, %v2533
      %2535 = vadd.xlane.f32.xlu0 %v2534
      %v2536 = vpop.xlane.xlu0 %2535
      %v2537 = vmul.f32 %v2456, 0.001953125
      %v2538 = vmul.f32 %v2464, 0.001953125
      %v2539 = vmul.f32 %v2472, 0.001953125
      %v2540 = vmul.f32 %v2480, 0.001953125
      %v2541 = vmul.f32 %v2512, 0.001953125
      %v2542 = vmul.f32 %v2520, 0.001953125
      %v2543 = vmul.f32 %v2528, 0.001953125
      %v2544 = vmul.f32 %v2536, 0.001953125
      %v2545 = vmul.f32 %v2537, %v2537
      %v2546 = vmul.f32 %v2538, %v2538
      %v2547 = vmul.f32 %v2539, %v2539
      %v2548 = vmul.f32 %v2540, %v2540
      %v2549 = vsub.f32 %v2541, %v2545
      %v2550 = vsub.f32 %v2542, %v2546
      %v2551 = vsub.f32 %v2543, %v2547
      %v2552 = vsub.f32 %v2544, %v2548
      %v2553 = vmax.f32 %v2549, 0.0
      %v2554 = vmax.f32 %v2550, 0.0
      %v2555 = vmax.f32 %v2551, 0.0
      %v2556 = vmax.f32 %v2552, 0.0
      %v2557 = vsub.f32 %v2016, %v2537
      %v2558 = vsub.f32 %v2018, %v2537
      %v2559 = vsub.f32 %v2194, %v2537
      %v2560 = vsub.f32 %v2196, %v2537
      %v2561 = vsub.f32 %v2372, %v2537
      %v2562 = vsub.f32 %v2374, %v2537
      %v2563 = vsub.f32 %v2022, %v2538
      %v2564 = vsub.f32 %v2024, %v2538
      %v2565 = vsub.f32 %v2200, %v2538
      %v2566 = vsub.f32 %v2202, %v2538
      %v2567 = vsub.f32 %v2378, %v2538
      %v2568 = vsub.f32 %v2380, %v2538
      %v2569 = vsub.f32 %v2028, %v2539
      %v2570 = vsub.f32 %v2030, %v2539
      %v2571 = vsub.f32 %v2206, %v2539
      %v2572 = vsub.f32 %v2208, %v2539
      %v2573 = vsub.f32 %v2384, %v2539
      %v2574 = vsub.f32 %v2386, %v2539
      %v2575 = vsub.f32 %v2034, %v2540
      %v2576 = vsub.f32 %v2036, %v2540
      %v2577 = vsub.f32 %v2212, %v2540
      %v2578 = vsub.f32 %v2214, %v2540
      %v2579 = vsub.f32 %v2390, %v2540
      %v2580 = vsub.f32 %v2392, %v2540
      %v2581 = vadd.f32 %v2553, 1e-05
      %v2582 = vadd.f32 %v2554, 1e-05
      %v2583 = vadd.f32 %v2555, 1e-05
      %v2584 = vadd.f32 %v2556, 1e-05
      %v2585 = vrsqrt.pop %v2581
      %v2586 = vrsqrt.pop %v2582
      %v2587 = vrsqrt.pop %v2583
      %v2588 = vrsqrt.pop %v2584
      %v2589 = vmul.f32 %v2557, %v2585
      %v2590 = vmul.f32 %v2558, %v2585
      %v2591 = vmul.f32 %v2559, %v2585
      %v2592 = vmul.f32 %v2560, %v2585
      %v2593 = vmul.f32 %v2561, %v2585
      %v2594 = vmul.f32 %v2562, %v2585
      %v2595 = vmul.f32 %v2563, %v2586
      %v2596 = vmul.f32 %v2564, %v2586
      %v2597 = vmul.f32 %v2565, %v2586
      %v2598 = vmul.f32 %v2566, %v2586
      %v2599 = vmul.f32 %v2567, %v2586
      %v2600 = vmul.f32 %v2568, %v2586
      %v2601 = vmul.f32 %v2569, %v2587
      %v2602 = vmul.f32 %v2570, %v2587
      %v2603 = vmul.f32 %v2571, %v2587
      %v2604 = vmul.f32 %v2572, %v2587
      %v2605 = vmul.f32 %v2573, %v2587
      %v2606 = vmul.f32 %v2574, %v2587
      %v2607 = vmul.f32 %v2575, %v2588
      %v2608 = vmul.f32 %v2576, %v2588
      %v2609 = vmul.f32 %v2577, %v2588
      %v2610 = vmul.f32 %v2578, %v2588
      %v2611 = vmul.f32 %v2579, %v2588
      %v2612 = vmul.f32 %v2580, %v2588
      %v2613 = vmax.f32 %v2589, 0.0
      %v2614 = vmax.f32 %v2590, 0.0
      %v2615 = vmax.f32 %v2591, 0.0
      %v2616 = vmax.f32 %v2592, 0.0
      %v2617 = vmax.f32 %v2593, 0.0
      %v2618 = vmax.f32 %v2594, 0.0
      %v2619 = vmax.f32 %v2595, 0.0
      %v2620 = vmax.f32 %v2596, 0.0
      %v2621 = vmax.f32 %v2597, 0.0
      %v2622 = vmax.f32 %v2598, 0.0
      %v2623 = vmax.f32 %v2599, 0.0
      %v2624 = vmax.f32 %v2600, 0.0
      %v2625 = vmax.f32 %v2601, 0.0
      %v2626 = vmax.f32 %v2602, 0.0
      %v2627 = vmax.f32 %v2603, 0.0
      %v2628 = vmax.f32 %v2604, 0.0
      %v2629 = vmax.f32 %v2605, 0.0
      %v2630 = vmax.f32 %v2606, 0.0
      %v2631 = vmax.f32 %v2607, 0.0
      %v2632 = vmax.f32 %v2608, 0.0
      %v2633 = vmax.f32 %v2609, 0.0
      %v2634 = vmax.f32 %v2610, 0.0
      %v2635 = vmax.f32 %v2611, 0.0
      %v2636 = vmax.f32 %v2612, 0.0
      %v2637 = vmul.f32 %v2613, %v2398
      %v2638 = vmul.f32 %v2614, %v2402
      %v2639 = vmul.f32 %v2615, %v2406
      %v2640 = vmul.f32 %v2616, %v2410
      %v2641 = vmul.f32 %v2617, %v2414
      %v2642 = vmul.f32 %v2618, %v2418
      %v2643 = vmul.f32 %v2619, %v2398
      %v2644 = vmul.f32 %v2620, %v2402
      %v2645 = vmul.f32 %v2621, %v2406
      %v2646 = vmul.f32 %v2622, %v2410
      %v2647 = vmul.f32 %v2623, %v2414
      %v2648 = vmul.f32 %v2624, %v2418
      %v2649 = vmul.f32 %v2625, %v2398
      %v2650 = vmul.f32 %v2626, %v2402
      %v2651 = vmul.f32 %v2627, %v2406
      %v2652 = vmul.f32 %v2628, %v2410
      %v2653 = vmul.f32 %v2629, %v2414
      %v2654 = vmul.f32 %v2630, %v2418
      %v2655 = vmul.f32 %v2631, %v2398
      %v2656 = vmul.f32 %v2632, %v2402
      %v2657 = vmul.f32 %v2633, %v2406
      %v2658 = vmul.f32 %v2634, %v2410
      %v2659 = vmul.f32 %v2635, %v2414
      %v2660 = vmul.f32 %v2636, %v2418
      %s2661 = sadd.s32 %s103, 1
      %2686 = vrot.lane.b32.xlu0 %v2637, 19
      %v2687 = vpop.permute.xlu0 %2686
      %2688 = vrot.lane.b32.xlu0 %v2638, 19
      %v2689 = vpop.permute.xlu0 %2688
      %2690 = vrot.lane.b32.xlu0 %v2639, 19
      %v2691 = vpop.permute.xlu0 %2690
      %2692 = vrot.lane.b32.xlu0 %v2640, 19
      %v2693 = vpop.permute.xlu0 %2692
      %2694 = vrot.lane.b32.xlu0 %v2641, 19
      %v2695 = vpop.permute.xlu0 %2694
      %2696 = vrot.lane.b32.xlu0 %v2642, 19
      %v2697 = vpop.permute.xlu0 %2696
      %2698 = vrot.lane.b32.xlu0 %v2643, 19
      %v2699 = vpop.permute.xlu0 %2698
      %2700 = vrot.lane.b32.xlu0 %v2644, 19
      %v2701 = vpop.permute.xlu0 %2700
      %2702 = vrot.lane.b32.xlu0 %v2645, 19
      %v2703 = vpop.permute.xlu0 %2702
      %2704 = vrot.lane.b32.xlu0 %v2646, 19
      %v2705 = vpop.permute.xlu0 %2704
      %2706 = vrot.lane.b32.xlu0 %v2647, 19
      %v2707 = vpop.permute.xlu0 %2706
      %2708 = vrot.lane.b32.xlu0 %v2648, 19
      %v2709 = vpop.permute.xlu0 %2708
      %2710 = vrot.lane.b32.xlu0 %v2649, 19
      %v2711 = vpop.permute.xlu0 %2710
      %2712 = vrot.lane.b32.xlu0 %v2650, 19
      %v2713 = vpop.permute.xlu0 %2712
      %2714 = vrot.lane.b32.xlu0 %v2651, 19
      %v2715 = vpop.permute.xlu0 %2714
      %2716 = vrot.lane.b32.xlu0 %v2652, 19
      %v2717 = vpop.permute.xlu0 %2716
      %2718 = vrot.lane.b32.xlu0 %v2653, 19
      %v2719 = vpop.permute.xlu0 %2718
      %2720 = vrot.lane.b32.xlu0 %v2654, 19
      %v2721 = vpop.permute.xlu0 %2720
      %2722 = vrot.lane.b32.xlu0 %v2655, 19
      %v2723 = vpop.permute.xlu0 %2722
      %2724 = vrot.lane.b32.xlu0 %v2656, 19
      %v2725 = vpop.permute.xlu0 %2724
      %2726 = vrot.lane.b32.xlu0 %v2657, 19
      %v2727 = vpop.permute.xlu0 %2726
      %2728 = vrot.lane.b32.xlu0 %v2658, 19
      %v2729 = vpop.permute.xlu0 %2728
      %2730 = vrot.lane.b32.xlu0 %v2659, 19
      %v2731 = vpop.permute.xlu0 %2730
      %2732 = vrot.lane.b32.xlu0 %v2660, 19
      %v2733 = vpop.permute.xlu0 %2732
      %v2734 = vsel %vm176, %v2687, %v2689
      %v2735 = vsel %vm176, %v2689, %v2691
      %v2736 = vsel %vm176, %v2691, %v2693
      %v2737 = vsel %vm176, %v2693, %v2695
      %v2738 = vsel %vm176, %v2695, %v2697
      %v2739 = vsel %vm176, %v2699, %v2701
      %v2740 = vsel %vm176, %v2701, %v2703
      %v2741 = vsel %vm176, %v2703, %v2705
      %v2742 = vsel %vm176, %v2705, %v2707
      %v2743 = vsel %vm176, %v2707, %v2709
      %v2744 = vsel %vm176, %v2711, %v2713
      %v2745 = vsel %vm176, %v2713, %v2715
      %v2746 = vsel %vm176, %v2715, %v2717
      %v2747 = vsel %vm176, %v2717, %v2719
      %v2748 = vsel %vm176, %v2719, %v2721
      %v2749 = vsel %vm176, %v2723, %v2725
      %v2750 = vsel %vm176, %v2725, %v2727
      %v2751 = vsel %vm176, %v2727, %v2729
      %v2752 = vsel %vm176, %v2729, %v2731
      %v2753 = vsel %vm176, %v2731, %v2733
      %2778 = vst.msk [vmem:[#allocation2] sm:$0xff] %vm221, %v2687
      %2779 = vst [vmem:[#allocation2 + $0x8] sm:$0xff] %v2734
      %2780 = vst [vmem:[#allocation2 + $0x10] sm:$0xff] %v2735
      %2781 = vst [vmem:[#allocation2 + $0x18] sm:$0xff] %v2736
      %2782 = vst [vmem:[#allocation2 + $0x20] sm:$0xff] %v2737
      %2783 = vst.msk [vmem:[#allocation2 + $0x28] sm:$0xff] %vm227, %v2738
      %2784 = vst.msk [vmem:[#allocation2 + $0x30] sm:$0xff] %vm221, %v2699
      %2785 = vst [vmem:[#allocation2 + $0x38] sm:$0xff] %v2739
      %2786 = vst [vmem:[#allocation2 + $0x40] sm:$0xff] %v2740
      %2787 = vst [vmem:[#allocation2 + $0x48] sm:$0xff] %v2741
      %2788 = vst [vmem:[#allocation2 + $0x50] sm:$0xff] %v2742
      %2789 = vst.msk [vmem:[#allocation2 + $0x58] sm:$0xff] %vm227, %v2743
      %2790 = vst.msk [vmem:[#allocation2 + $0x60] sm:$0xff] %vm221, %v2711
      %2791 = vst [vmem:[#allocation2 + $0x68] sm:$0xff] %v2744
      %2792 = vst [vmem:[#allocation2 + $0x70] sm:$0xff] %v2745
      %2793 = vst [vmem:[#allocation2 + $0x78] sm:$0xff] %v2746
      %2794 = vst [vmem:[#allocation2 + $0x80] sm:$0xff] %v2747
      %2795 = vst.msk [vmem:[#allocation2 + $0x88] sm:$0xff] %vm227, %v2748
      %2796 = vst.msk [vmem:[#allocation2 + $0x90] sm:$0xff] %vm221, %v2723
      %2797 = vst [vmem:[#allocation2 + $0x98] sm:$0xff] %v2749
      %2798 = vst [vmem:[#allocation2 + $0xa0] sm:$0xff] %v2750
      %2799 = vst [vmem:[#allocation2 + $0xa8] sm:$0xff] %v2751
      %2800 = vst [vmem:[#allocation2 + $0xb0] sm:$0xff] %v2752
      %2801 = vst.msk [vmem:[#allocation2 + $0xb8] sm:$0xff] %vm227, %v2753
      %v2802 = vld [vmem:[#allocation2] sm:$0xff]
      %v2803 = vld [vmem:[#allocation2 + $0x8] sm:$0xff]
      %v2804 = vld [vmem:[#allocation2 + $0x10] sm:$0xff]
      %v2805 = vld [vmem:[#allocation2 + $0x18] sm:$0xff]
      %v2806 = vld [vmem:[#allocation2 + $0x20] sm:$0xff]
      %v2807 = vld [vmem:[#allocation2 + $0x28] sm:$0xff]
      %v2808 = vld [vmem:[#allocation2 + $0x30] sm:$0xff]
      %v2809 = vld [vmem:[#allocation2 + $0x38] sm:$0xff]
      %v2810 = vld [vmem:[#allocation2 + $0x40] sm:$0xff]
      %v2811 = vld [vmem:[#allocation2 + $0x48] sm:$0xff]
      %v2812 = vld [vmem:[#allocation2 + $0x50] sm:$0xff]
      %v2813 = vld [vmem:[#allocation2 + $0x58] sm:$0xff]
      %v2814 = vld [vmem:[#allocation2 + $0x60] sm:$0xff]
      %v2815 = vld [vmem:[#allocation2 + $0x68] sm:$0xff]
      %v2816 = vld [vmem:[#allocation2 + $0x70] sm:$0xff]
      %v2817 = vld [vmem:[#allocation2 + $0x78] sm:$0xff]
      %v2818 = vld [vmem:[#allocation2 + $0x80] sm:$0xff]
      %v2819 = vld [vmem:[#allocation2 + $0x88] sm:$0xff]
      %v2820 = vld [vmem:[#allocation2 + $0x90] sm:$0xff]
      %v2821 = vld [vmem:[#allocation2 + $0x98] sm:$0xff]
      %v2822 = vld [vmem:[#allocation2 + $0xa0] sm:$0xff]
      %v2823 = vld [vmem:[#allocation2 + $0xa8] sm:$0xff]
      %v2824 = vld [vmem:[#allocation2 + $0xb0] sm:$0xff]
      %v2825 = vld [vmem:[#allocation2 + $0xb8] sm:$0xff]
      %2826 = vst [vmem:[#allocation3] sm:$0xff] %v2802
      %2827 = vst [vmem:[#allocation3 + $0x8] sm:$0xff] %v2803
      %2828 = vst [vmem:[#allocation3 + $0x10] sm:$0xff] %v2804
      %2829 = vst [vmem:[#allocation3 + $0x18] sm:$0xff] %v2805
      %2830 = vst [vmem:[#allocation3 + $0x20] sm:$0xff] %v2806
      %2831 = vst.msk [vmem:[#allocation3 + $0x28] sm:$0xff] %vm276, %v2807
      %2832 = vst [vmem:[#allocation3 + $0x30] sm:$0xff] %v2808
      %2833 = vst [vmem:[#allocation3 + $0x38] sm:$0xff] %v2809
      %2834 = vst [vmem:[#allocation3 + $0x40] sm:$0xff] %v2810
      %2835 = vst [vmem:[#allocation3 + $0x48] sm:$0xff] %v2811
      %2836 = vst [vmem:[#allocation3 + $0x50] sm:$0xff] %v2812
      %2837 = vst.msk [vmem:[#allocation3 + $0x58] sm:$0xff] %vm276, %v2813
      %2838 = vst [vmem:[#allocation3 + $0x60] sm:$0xff] %v2814
      %2839 = vst [vmem:[#allocation3 + $0x68] sm:$0xff] %v2815
      %2840 = vst [vmem:[#allocation3 + $0x70] sm:$0xff] %v2816
      %2841 = vst [vmem:[#allocation3 + $0x78] sm:$0xff] %v2817
      %2842 = vst [vmem:[#allocation3 + $0x80] sm:$0xff] %v2818
      %2843 = vst.msk [vmem:[#allocation3 + $0x88] sm:$0xff] %vm276, %v2819
      %2844 = vst [vmem:[#allocation3 + $0x90] sm:$0xff] %v2820
      %2845 = vst [vmem:[#allocation3 + $0x98] sm:$0xff] %v2821
      %2846 = vst [vmem:[#allocation3 + $0xa0] sm:$0xff] %v2822
      %2847 = vst [vmem:[#allocation3 + $0xa8] sm:$0xff] %v2823
      %2848 = vst [vmem:[#allocation3 + $0xb0] sm:$0xff] %v2824
      %2849 = vst.msk [vmem:[#allocation3 + $0xb8] sm:$0xff] %vm276, %v2825
      %v2850 = vld [vmem:[#allocation2] sm:$0xff]
      %v2851 = vld [vmem:[#allocation2 + $0x8] sm:$0xff]
      %v2852 = vld [vmem:[#allocation2 + $0x10] sm:$0xff]
      %v2853 = vld [vmem:[#allocation2 + $0x18] sm:$0xff]
      %v2854 = vld [vmem:[#allocation2 + $0x20] sm:$0xff]
      %v2855 = vld [vmem:[#allocation2 + $0x28] sm:$0xff]
      %v2856 = vld [vmem:[#allocation2 + $0x30] sm:$0xff]
      %v2857 = vld [vmem:[#allocation2 + $0x38] sm:$0xff]
      %v2858 = vld [vmem:[#allocation2 + $0x40] sm:$0xff]
      %v2859 = vld [vmem:[#allocation2 + $0x48] sm:$0xff]
      %v2860 = vld [vmem:[#allocation2 + $0x50] sm:$0xff]
      %v2861 = vld [vmem:[#allocation2 + $0x58] sm:$0xff]
      %v2862 = vld [vmem:[#allocation2 + $0x60] sm:$0xff]
      %v2863 = vld [vmem:[#allocation2 + $0x68] sm:$0xff]
      %v2864 = vld [vmem:[#allocation2 + $0x70] sm:$0xff]
      %v2865 = vld [vmem:[#allocation2 + $0x78] sm:$0xff]
      %v2866 = vld [vmem:[#allocation2 + $0x80] sm:$0xff]
      %v2867 = vld [vmem:[#allocation2 + $0x88] sm:$0xff]
      %v2868 = vld [vmem:[#allocation2 + $0x90] sm:$0xff]
      %v2869 = vld [vmem:[#allocation2 + $0x98] sm:$0xff]
      %v2870 = vld [vmem:[#allocation2 + $0xa0] sm:$0xff]
      %v2871 = vld [vmem:[#allocation2 + $0xa8] sm:$0xff]
      %v2872 = vld [vmem:[#allocation2 + $0xb0] sm:$0xff]
      %v2873 = vld [vmem:[#allocation2 + $0xb8] sm:$0xff]
      %2898 = vrot.lane.b32.xlu0 %v2850, 127
      %v2899 = vpop.permute.xlu0 %2898
      %2900 = vrot.lane.b32.xlu0 %v2851, 127
      %v2901 = vpop.permute.xlu0 %2900
      %2902 = vrot.lane.b32.xlu0 %v2852, 127
      %v2903 = vpop.permute.xlu0 %2902
      %2904 = vrot.lane.b32.xlu0 %v2853, 127
      %v2905 = vpop.permute.xlu0 %2904
      %2906 = vrot.lane.b32.xlu0 %v2854, 127
      %v2907 = vpop.permute.xlu0 %2906
      %2908 = vrot.lane.b32.xlu0 %v2855, 127
      %v2909 = vpop.permute.xlu0 %2908
      %2910 = vrot.lane.b32.xlu0 %v2856, 127
      %v2911 = vpop.permute.xlu0 %2910
      %2912 = vrot.lane.b32.xlu0 %v2857, 127
      %v2913 = vpop.permute.xlu0 %2912
      %2914 = vrot.lane.b32.xlu0 %v2858, 127
      %v2915 = vpop.permute.xlu0 %2914
      %2916 = vrot.lane.b32.xlu0 %v2859, 127
      %v2917 = vpop.permute.xlu0 %2916
      %2918 = vrot.lane.b32.xlu0 %v2860, 127
      %v2919 = vpop.permute.xlu0 %2918
      %2920 = vrot.lane.b32.xlu0 %v2861, 127
      %v2921 = vpop.permute.xlu0 %2920
      %2922 = vrot.lane.b32.xlu0 %v2862, 127
      %v2923 = vpop.permute.xlu0 %2922
      %2924 = vrot.lane.b32.xlu0 %v2863, 127
      %v2925 = vpop.permute.xlu0 %2924
      %2926 = vrot.lane.b32.xlu0 %v2864, 127
      %v2927 = vpop.permute.xlu0 %2926
      %2928 = vrot.lane.b32.xlu0 %v2865, 127
      %v2929 = vpop.permute.xlu0 %2928
      %2930 = vrot.lane.b32.xlu0 %v2866, 127
      %v2931 = vpop.permute.xlu0 %2930
      %2932 = vrot.lane.b32.xlu0 %v2867, 127
      %v2933 = vpop.permute.xlu0 %2932
      %2934 = vrot.lane.b32.xlu0 %v2868, 127
      %v2935 = vpop.permute.xlu0 %2934
      %2936 = vrot.lane.b32.xlu0 %v2869, 127
      %v2937 = vpop.permute.xlu0 %2936
      %2938 = vrot.lane.b32.xlu0 %v2870, 127
      %v2939 = vpop.permute.xlu0 %2938
      %2940 = vrot.lane.b32.xlu0 %v2871, 127
      %v2941 = vpop.permute.xlu0 %2940
      %2942 = vrot.lane.b32.xlu0 %v2872, 127
      %v2943 = vpop.permute.xlu0 %2942
      %2944 = vrot.lane.b32.xlu0 %v2873, 127
      %v2945 = vpop.permute.xlu0 %2944
      %v2946 = vsel %vm392, %v2899, %v2901
      %v2947 = vsel %vm392, %v2901, %v2903
      %v2948 = vsel %vm392, %v2903, %v2905
      %v2949 = vsel %vm392, %v2905, %v2907
      %v2950 = vsel %vm392, %v2907, %v2909
      %v2951 = vsel %vm392, %v2911, %v2913
      %v2952 = vsel %vm392, %v2913, %v2915
      %v2953 = vsel %vm392, %v2915, %v2917
      %v2954 = vsel %vm392, %v2917, %v2919
      %v2955 = vsel %vm392, %v2919, %v2921
      %v2956 = vsel %vm392, %v2923, %v2925
      %v2957 = vsel %vm392, %v2925, %v2927
      %v2958 = vsel %vm392, %v2927, %v2929
      %v2959 = vsel %vm392, %v2929, %v2931
      %v2960 = vsel %vm392, %v2931, %v2933
      %v2961 = vsel %vm392, %v2935, %v2937
      %v2962 = vsel %vm392, %v2937, %v2939
      %v2963 = vsel %vm392, %v2939, %v2941
      %v2964 = vsel %vm392, %v2941, %v2943
      %v2965 = vsel %vm392, %v2943, %v2945
      %2990 = vst [vmem:[#allocation3 + $0xc0] sm:$0xff] %v2946
      %2991 = vst [vmem:[#allocation3 + $0xc8] sm:$0xff] %v2947
      %2992 = vst [vmem:[#allocation3 + $0xd0] sm:$0xff] %v2948
      %2993 = vst [vmem:[#allocation3 + $0xd8] sm:$0xff] %v2949
      %2994 = vst [vmem:[#allocation3 + $0xe0] sm:$0xff] %v2950
      %2995 = vst.msk [vmem:[#allocation3 + $0xe8] sm:$0xff] %vm276, %v2909
      %2996 = vst [vmem:[#allocation3 + $0xf0] sm:$0xff] %v2951
      %2997 = vst [vmem:[#allocation3 + $0xf8] sm:$0xff] %v2952
      %2998 = vst [vmem:[#allocation3 + $0x100] sm:$0xff] %v2953
      %2999 = vst [vmem:[#allocation3 + $0x108] sm:$0xff] %v2954
      %3000 = vst [vmem:[#allocation3 + $0x110] sm:$0xff] %v2955
      %3001 = vst.msk [vmem:[#allocation3 + $0x118] sm:$0xff] %vm276, %v2921
      %3002 = vst [vmem:[#allocation3 + $0x120] sm:$0xff] %v2956
      %3003 = vst [vmem:[#allocation3 + $0x128] sm:$0xff] %v2957
      %3004 = vst [vmem:[#allocation3 + $0x130] sm:$0xff] %v2958
      %3005 = vst [vmem:[#allocation3 + $0x138] sm:$0xff] %v2959
      %3006 = vst [vmem:[#allocation3 + $0x140] sm:$0xff] %v2960
      %3007 = vst.msk [vmem:[#allocation3 + $0x148] sm:$0xff] %vm276, %v2933
      %3008 = vst [vmem:[#allocation3 + $0x150] sm:$0xff] %v2961
      %3009 = vst [vmem:[#allocation3 + $0x158] sm:$0xff] %v2962
      %3010 = vst [vmem:[#allocation3 + $0x160] sm:$0xff] %v2963
      %3011 = vst [vmem:[#allocation3 + $0x168] sm:$0xff] %v2964
      %3012 = vst [vmem:[#allocation3 + $0x170] sm:$0xff] %v2965
      %3013 = vst.msk [vmem:[#allocation3 + $0x178] sm:$0xff] %vm276, %v2945
      %v3014 = vld [vmem:[#allocation2] sm:$0xff]
      %v3015 = vld [vmem:[#allocation2 + $0x8] sm:$0xff]
      %v3016 = vld [vmem:[#allocation2 + $0x10] sm:$0xff]
      %v3017 = vld [vmem:[#allocation2 + $0x18] sm:$0xff]
      %v3018 = vld [vmem:[#allocation2 + $0x20] sm:$0xff]
      %v3019 = vld [vmem:[#allocation2 + $0x28] sm:$0xff]
      %v3020 = vld [vmem:[#allocation2 + $0x30] sm:$0xff]
      %v3021 = vld [vmem:[#allocation2 + $0x38] sm:$0xff]
      %v3022 = vld [vmem:[#allocation2 + $0x40] sm:$0xff]
      %v3023 = vld [vmem:[#allocation2 + $0x48] sm:$0xff]
      %v3024 = vld [vmem:[#allocation2 + $0x50] sm:$0xff]
      %v3025 = vld [vmem:[#allocation2 + $0x58] sm:$0xff]
      %v3026 = vld [vmem:[#allocation2 + $0x60] sm:$0xff]
      %v3027 = vld [vmem:[#allocation2 + $0x68] sm:$0xff]
      %v3028 = vld [vmem:[#allocation2 + $0x70] sm:$0xff]
      %v3029 = vld [vmem:[#allocation2 + $0x78] sm:$0xff]
      %v3030 = vld [vmem:[#allocation2 + $0x80] sm:$0xff]
      %v3031 = vld [vmem:[#allocation2 + $0x88] sm:$0xff]
      %v3032 = vld [vmem:[#allocation2 + $0x90] sm:$0xff]
      %v3033 = vld [vmem:[#allocation2 + $0x98] sm:$0xff]
      %v3034 = vld [vmem:[#allocation2 + $0xa0] sm:$0xff]
      %v3035 = vld [vmem:[#allocation2 + $0xa8] sm:$0xff]
      %v3036 = vld [vmem:[#allocation2 + $0xb0] sm:$0xff]
      %v3037 = vld [vmem:[#allocation2 + $0xb8] sm:$0xff]
      %3062 = vrot.lane.b32.xlu0 %v3014, 126
      %v3063 = vpop.permute.xlu0 %3062
      %3064 = vrot.lane.b32.xlu0 %v3015, 126
      %v3065 = vpop.permute.xlu0 %3064
      %3066 = vrot.lane.b32.xlu0 %v3016, 126
      %v3067 = vpop.permute.xlu0 %3066
      %3068 = vrot.lane.b32.xlu0 %v3017, 126
      %v3069 = vpop.permute.xlu0 %3068
      %3070 = vrot.lane.b32.xlu0 %v3018, 126
      %v3071 = vpop.permute.xlu0 %3070
      %3072 = vrot.lane.b32.xlu0 %v3019, 126
      %v3073 = vpop.permute.xlu0 %3072
      %3074 = vrot.lane.b32.xlu0 %v3020, 126
      %v3075 = vpop.permute.xlu0 %3074
      %3076 = vrot.lane.b32.xlu0 %v3021, 126
      %v3077 = vpop.permute.xlu0 %3076
      %3078 = vrot.lane.b32.xlu0 %v3022, 126
      %v3079 = vpop.permute.xlu0 %3078
      %3080 = vrot.lane.b32.xlu0 %v3023, 126
      %v3081 = vpop.permute.xlu0 %3080
      %3082 = vrot.lane.b32.xlu0 %v3024, 126
      %v3083 = vpop.permute.xlu0 %3082
      %3084 = vrot.lane.b32.xlu0 %v3025, 126
      %v3085 = vpop.permute.xlu0 %3084
      %3086 = vrot.lane.b32.xlu0 %v3026, 126
      %v3087 = vpop.permute.xlu0 %3086
      %3088 = vrot.lane.b32.xlu0 %v3027, 126
      %v3089 = vpop.permute.xlu0 %3088
      %3090 = vrot.lane.b32.xlu0 %v3028, 126
      %v3091 = vpop.permute.xlu0 %3090
      %3092 = vrot.lane.b32.xlu0 %v3029, 126
      %v3093 = vpop.permute.xlu0 %3092
      %3094 = vrot.lane.b32.xlu0 %v3030, 126
      %v3095 = vpop.permute.xlu0 %3094
      %3096 = vrot.lane.b32.xlu0 %v3031, 126
      %v3097 = vpop.permute.xlu0 %3096
      %3098 = vrot.lane.b32.xlu0 %v3032, 126
      %v3099 = vpop.permute.xlu0 %3098
      %3100 = vrot.lane.b32.xlu0 %v3033, 126
      %v3101 = vpop.permute.xlu0 %3100
      %3102 = vrot.lane.b32.xlu0 %v3034, 126
      %v3103 = vpop.permute.xlu0 %3102
      %3104 = vrot.lane.b32.xlu0 %v3035, 126
      %v3105 = vpop.permute.xlu0 %3104
      %3106 = vrot.lane.b32.xlu0 %v3036, 126
      %v3107 = vpop.permute.xlu0 %3106
      %3108 = vrot.lane.b32.xlu0 %v3037, 126
      %v3109 = vpop.permute.xlu0 %3108
      %v3110 = vsel %vm557, %v3063, %v3065
      %v3111 = vsel %vm557, %v3065, %v3067
      %v3112 = vsel %vm557, %v3067, %v3069
      %v3113 = vsel %vm557, %v3069, %v3071
      %v3114 = vsel %vm557, %v3071, %v3073
      %v3115 = vsel %vm557, %v3075, %v3077
      %v3116 = vsel %vm557, %v3077, %v3079
      %v3117 = vsel %vm557, %v3079, %v3081
      %v3118 = vsel %vm557, %v3081, %v3083
      %v3119 = vsel %vm557, %v3083, %v3085
      %v3120 = vsel %vm557, %v3087, %v3089
      %v3121 = vsel %vm557, %v3089, %v3091
      %v3122 = vsel %vm557, %v3091, %v3093
      %v3123 = vsel %vm557, %v3093, %v3095
      %v3124 = vsel %vm557, %v3095, %v3097
      %v3125 = vsel %vm557, %v3099, %v3101
      %v3126 = vsel %vm557, %v3101, %v3103
      %v3127 = vsel %vm557, %v3103, %v3105
      %v3128 = vsel %vm557, %v3105, %v3107
      %v3129 = vsel %vm557, %v3107, %v3109
      %3154 = vst [vmem:[#allocation3 + $0x180] sm:$0xff] %v3110
      %3155 = vst [vmem:[#allocation3 + $0x188] sm:$0xff] %v3111
      %3156 = vst [vmem:[#allocation3 + $0x190] sm:$0xff] %v3112
      %3157 = vst [vmem:[#allocation3 + $0x198] sm:$0xff] %v3113
      %3158 = vst [vmem:[#allocation3 + $0x1a0] sm:$0xff] %v3114
      %3159 = vst.msk [vmem:[#allocation3 + $0x1a8] sm:$0xff] %vm276, %v3073
      %3160 = vst [vmem:[#allocation3 + $0x1b0] sm:$0xff] %v3115
      %3161 = vst [vmem:[#allocation3 + $0x1b8] sm:$0xff] %v3116
      %3162 = vst [vmem:[#allocation3 + $0x1c0] sm:$0xff] %v3117
      %3163 = vst [vmem:[#allocation3 + $0x1c8] sm:$0xff] %v3118
      %3164 = vst [vmem:[#allocation3 + $0x1d0] sm:$0xff] %v3119
      %3165 = vst.msk [vmem:[#allocation3 + $0x1d8] sm:$0xff] %vm276, %v3085
      %3166 = vst [vmem:[#allocation3 + $0x1e0] sm:$0xff] %v3120
      %3167 = vst [vmem:[#allocation3 + $0x1e8] sm:$0xff] %v3121
      %3168 = vst [vmem:[#allocation3 + $0x1f0] sm:$0xff] %v3122
      %3169 = vst [vmem:[#allocation3 + $0x1f8] sm:$0xff] %v3123
      %3170 = vst [vmem:[#allocation3 + $0x200] sm:$0xff] %v3124
      %3171 = vst.msk [vmem:[#allocation3 + $0x208] sm:$0xff] %vm276, %v3097
      %3172 = vst [vmem:[#allocation3 + $0x210] sm:$0xff] %v3125
      %3173 = vst [vmem:[#allocation3 + $0x218] sm:$0xff] %v3126
      %3174 = vst [vmem:[#allocation3 + $0x220] sm:$0xff] %v3127
      %3175 = vst [vmem:[#allocation3 + $0x228] sm:$0xff] %v3128
      %3176 = vst [vmem:[#allocation3 + $0x230] sm:$0xff] %v3129
      %3177 = vst.msk [vmem:[#allocation3 + $0x238] sm:$0xff] %vm276, %v3109
      %v3178 = vld [vmem:[#allocation2] sm:$0xff]
      %v3179 = vld [vmem:[#allocation2 + $0x8] sm:$0xff]
      %v3180 = vld [vmem:[#allocation2 + $0x10] sm:$0xff]
      %v3181 = vld [vmem:[#allocation2 + $0x18] sm:$0xff]
      %v3182 = vld [vmem:[#allocation2 + $0x20] sm:$0xff]
      %v3183 = vld [vmem:[#allocation2 + $0x28] sm:$0xff]
      %v3184 = vld [vmem:[#allocation2 + $0x30] sm:$0xff]
      %v3185 = vld [vmem:[#allocation2 + $0x38] sm:$0xff]
      %v3186 = vld [vmem:[#allocation2 + $0x40] sm:$0xff]
      %v3187 = vld [vmem:[#allocation2 + $0x48] sm:$0xff]
      %v3188 = vld [vmem:[#allocation2 + $0x50] sm:$0xff]
      %v3189 = vld [vmem:[#allocation2 + $0x58] sm:$0xff]
      %v3190 = vld [vmem:[#allocation2 + $0x60] sm:$0xff]
      %v3191 = vld [vmem:[#allocation2 + $0x68] sm:$0xff]
      %v3192 = vld [vmem:[#allocation2 + $0x70] sm:$0xff]
      %v3193 = vld [vmem:[#allocation2 + $0x78] sm:$0xff]
      %v3194 = vld [vmem:[#allocation2 + $0x80] sm:$0xff]
      %v3195 = vld [vmem:[#allocation2 + $0x88] sm:$0xff]
      %v3196 = vld [vmem:[#allocation2 + $0x90] sm:$0xff]
      %v3197 = vld [vmem:[#allocation2 + $0x98] sm:$0xff]
      %v3198 = vld [vmem:[#allocation2 + $0xa0] sm:$0xff]
      %v3199 = vld [vmem:[#allocation2 + $0xa8] sm:$0xff]
      %v3200 = vld [vmem:[#allocation2 + $0xb0] sm:$0xff]
      %v3201 = vld [vmem:[#allocation2 + $0xb8] sm:$0xff]
      %3226 = vrot.lane.b32.xlu0 %v3178, 110
      %v3227 = vpop.permute.xlu0 %3226
      %3228 = vrot.lane.b32.xlu0 %v3179, 110
      %v3229 = vpop.permute.xlu0 %3228
      %3230 = vrot.lane.b32.xlu0 %v3180, 110
      %v3231 = vpop.permute.xlu0 %3230
      %3232 = vrot.lane.b32.xlu0 %v3181, 110
      %v3233 = vpop.permute.xlu0 %3232
      %3234 = vrot.lane.b32.xlu0 %v3182, 110
      %v3235 = vpop.permute.xlu0 %3234
      %3236 = vrot.lane.b32.xlu0 %v3183, 110
      %v3237 = vpop.permute.xlu0 %3236
      %3238 = vrot.lane.b32.xlu0 %v3184, 110
      %v3239 = vpop.permute.xlu0 %3238
      %3240 = vrot.lane.b32.xlu0 %v3185, 110
      %v3241 = vpop.permute.xlu0 %3240
      %3242 = vrot.lane.b32.xlu0 %v3186, 110
      %v3243 = vpop.permute.xlu0 %3242
      %3244 = vrot.lane.b32.xlu0 %v3187, 110
      %v3245 = vpop.permute.xlu0 %3244
      %3246 = vrot.lane.b32.xlu0 %v3188, 110
      %v3247 = vpop.permute.xlu0 %3246
      %3248 = vrot.lane.b32.xlu0 %v3189, 110
      %v3249 = vpop.permute.xlu0 %3248
      %3250 = vrot.lane.b32.xlu0 %v3190, 110
      %v3251 = vpop.permute.xlu0 %3250
      %3252 = vrot.lane.b32.xlu0 %v3191, 110
      %v3253 = vpop.permute.xlu0 %3252
      %3254 = vrot.lane.b32.xlu0 %v3192, 110
      %v3255 = vpop.permute.xlu0 %3254
      %3256 = vrot.lane.b32.xlu0 %v3193, 110
      %v3257 = vpop.permute.xlu0 %3256
      %3258 = vrot.lane.b32.xlu0 %v3194, 110
      %v3259 = vpop.permute.xlu0 %3258
      %3260 = vrot.lane.b32.xlu0 %v3195, 110
      %v3261 = vpop.permute.xlu0 %3260
      %3262 = vrot.lane.b32.xlu0 %v3196, 110
      %v3263 = vpop.permute.xlu0 %3262
      %3264 = vrot.lane.b32.xlu0 %v3197, 110
      %v3265 = vpop.permute.xlu0 %3264
      %3266 = vrot.lane.b32.xlu0 %v3198, 110
      %v3267 = vpop.permute.xlu0 %3266
      %3268 = vrot.lane.b32.xlu0 %v3199, 110
      %v3269 = vpop.permute.xlu0 %3268
      %3270 = vrot.lane.b32.xlu0 %v3200, 110
      %v3271 = vpop.permute.xlu0 %3270
      %3272 = vrot.lane.b32.xlu0 %v3201, 110
      %v3273 = vpop.permute.xlu0 %3272
      %v3274 = vsel %vm722, %v3227, %v3229
      %v3275 = vsel %vm722, %v3229, %v3231
      %v3276 = vsel %vm722, %v3231, %v3233
      %v3277 = vsel %vm722, %v3233, %v3235
      %v3278 = vsel %vm722, %v3235, %v3237
      %v3279 = vsel %vm722, %v3239, %v3241
      %v3280 = vsel %vm722, %v3241, %v3243
      %v3281 = vsel %vm722, %v3243, %v3245
      %v3282 = vsel %vm722, %v3245, %v3247
      %v3283 = vsel %vm722, %v3247, %v3249
      %v3284 = vsel %vm722, %v3251, %v3253
      %v3285 = vsel %vm722, %v3253, %v3255
      %v3286 = vsel %vm722, %v3255, %v3257
      %v3287 = vsel %vm722, %v3257, %v3259
      %v3288 = vsel %vm722, %v3259, %v3261
      %v3289 = vsel %vm722, %v3263, %v3265
      %v3290 = vsel %vm722, %v3265, %v3267
      %v3291 = vsel %vm722, %v3267, %v3269
      %v3292 = vsel %vm722, %v3269, %v3271
      %v3293 = vsel %vm722, %v3271, %v3273
      %3318 = vst [vmem:[#allocation3 + $0x240] sm:$0xff] %v3274
      %3319 = vst [vmem:[#allocation3 + $0x248] sm:$0xff] %v3275
      %3320 = vst [vmem:[#allocation3 + $0x250] sm:$0xff] %v3276
      %3321 = vst [vmem:[#allocation3 + $0x258] sm:$0xff] %v3277
      %3322 = vst [vmem:[#allocation3 + $0x260] sm:$0xff] %v3278
      %3323 = vst.msk [vmem:[#allocation3 + $0x268] sm:$0xff] %vm276, %v3237
      %3324 = vst [vmem:[#allocation3 + $0x270] sm:$0xff] %v3279
      %3325 = vst [vmem:[#allocation3 + $0x278] sm:$0xff] %v3280
      %3326 = vst [vmem:[#allocation3 + $0x280] sm:$0xff] %v3281
      %3327 = vst [vmem:[#allocation3 + $0x288] sm:$0xff] %v3282
      %3328 = vst [vmem:[#allocation3 + $0x290] sm:$0xff] %v3283
      %3329 = vst.msk [vmem:[#allocation3 + $0x298] sm:$0xff] %vm276, %v3249
      %3330 = vst [vmem:[#allocation3 + $0x2a0] sm:$0xff] %v3284
      %3331 = vst [vmem:[#allocation3 + $0x2a8] sm:$0xff] %v3285
      %3332 = vst [vmem:[#allocation3 + $0x2b0] sm:$0xff] %v3286
      %3333 = vst [vmem:[#allocation3 + $0x2b8] sm:$0xff] %v3287
      %3334 = vst [vmem:[#allocation3 + $0x2c0] sm:$0xff] %v3288
      %3335 = vst.msk [vmem:[#allocation3 + $0x2c8] sm:$0xff] %vm276, %v3261
      %3336 = vst [vmem:[#allocation3 + $0x2d0] sm:$0xff] %v3289
      %3337 = vst [vmem:[#allocation3 + $0x2d8] sm:$0xff] %v3290
      %3338 = vst [vmem:[#allocation3 + $0x2e0] sm:$0xff] %v3291
      %3339 = vst [vmem:[#allocation3 + $0x2e8] sm:$0xff] %v3292
      %3340 = vst [vmem:[#allocation3 + $0x2f0] sm:$0xff] %v3293
      %3341 = vst.msk [vmem:[#allocation3 + $0x2f8] sm:$0xff] %vm276, %v3273
      %v3342 = vld [vmem:[#allocation2] sm:$0xff]
      %v3343 = vld [vmem:[#allocation2 + $0x8] sm:$0xff]
      %v3344 = vld [vmem:[#allocation2 + $0x10] sm:$0xff]
      %v3345 = vld [vmem:[#allocation2 + $0x18] sm:$0xff]
      %v3346 = vld [vmem:[#allocation2 + $0x20] sm:$0xff]
      %v3347 = vld [vmem:[#allocation2 + $0x28] sm:$0xff]
      %v3348 = vld [vmem:[#allocation2 + $0x30] sm:$0xff]
      %v3349 = vld [vmem:[#allocation2 + $0x38] sm:$0xff]
      %v3350 = vld [vmem:[#allocation2 + $0x40] sm:$0xff]
      %v3351 = vld [vmem:[#allocation2 + $0x48] sm:$0xff]
      %v3352 = vld [vmem:[#allocation2 + $0x50] sm:$0xff]
      %v3353 = vld [vmem:[#allocation2 + $0x58] sm:$0xff]
      %v3354 = vld [vmem:[#allocation2 + $0x60] sm:$0xff]
      %v3355 = vld [vmem:[#allocation2 + $0x68] sm:$0xff]
      %v3356 = vld [vmem:[#allocation2 + $0x70] sm:$0xff]
      %v3357 = vld [vmem:[#allocation2 + $0x78] sm:$0xff]
      %v3358 = vld [vmem:[#allocation2 + $0x80] sm:$0xff]
      %v3359 = vld [vmem:[#allocation2 + $0x88] sm:$0xff]
      %v3360 = vld [vmem:[#allocation2 + $0x90] sm:$0xff]
      %v3361 = vld [vmem:[#allocation2 + $0x98] sm:$0xff]
      %v3362 = vld [vmem:[#allocation2 + $0xa0] sm:$0xff]
      %v3363 = vld [vmem:[#allocation2 + $0xa8] sm:$0xff]
      %v3364 = vld [vmem:[#allocation2 + $0xb0] sm:$0xff]
      %v3365 = vld [vmem:[#allocation2 + $0xb8] sm:$0xff]
      %3390 = vrot.lane.b32.xlu0 %v3342, 109
      %v3391 = vpop.permute.xlu0 %3390
      %3392 = vrot.lane.b32.xlu0 %v3343, 109
      %v3393 = vpop.permute.xlu0 %3392
      %3394 = vrot.lane.b32.xlu0 %v3344, 109
      %v3395 = vpop.permute.xlu0 %3394
      %3396 = vrot.lane.b32.xlu0 %v3345, 109
      %v3397 = vpop.permute.xlu0 %3396
      %3398 = vrot.lane.b32.xlu0 %v3346, 109
      %v3399 = vpop.permute.xlu0 %3398
      %3400 = vrot.lane.b32.xlu0 %v3347, 109
      %v3401 = vpop.permute.xlu0 %3400
      %3402 = vrot.lane.b32.xlu0 %v3348, 109
      %v3403 = vpop.permute.xlu0 %3402
      %3404 = vrot.lane.b32.xlu0 %v3349, 109
      %v3405 = vpop.permute.xlu0 %3404
      %3406 = vrot.lane.b32.xlu0 %v3350, 109
      %v3407 = vpop.permute.xlu0 %3406
      %3408 = vrot.lane.b32.xlu0 %v3351, 109
      %v3409 = vpop.permute.xlu0 %3408
      %3410 = vrot.lane.b32.xlu0 %v3352, 109
      %v3411 = vpop.permute.xlu0 %3410
      %3412 = vrot.lane.b32.xlu0 %v3353, 109
      %v3413 = vpop.permute.xlu0 %3412
      %3414 = vrot.lane.b32.xlu0 %v3354, 109
      %v3415 = vpop.permute.xlu0 %3414
      %3416 = vrot.lane.b32.xlu0 %v3355, 109
      %v3417 = vpop.permute.xlu0 %3416
      %3418 = vrot.lane.b32.xlu0 %v3356, 109
      %v3419 = vpop.permute.xlu0 %3418
      %3420 = vrot.lane.b32.xlu0 %v3357, 109
      %v3421 = vpop.permute.xlu0 %3420
      %3422 = vrot.lane.b32.xlu0 %v3358, 109
      %v3423 = vpop.permute.xlu0 %3422
      %3424 = vrot.lane.b32.xlu0 %v3359, 109
      %v3425 = vpop.permute.xlu0 %3424
      %3426 = vrot.lane.b32.xlu0 %v3360, 109
      %v3427 = vpop.permute.xlu0 %3426
      %3428 = vrot.lane.b32.xlu0 %v3361, 109
      %v3429 = vpop.permute.xlu0 %3428
      %3430 = vrot.lane.b32.xlu0 %v3362, 109
      %v3431 = vpop.permute.xlu0 %3430
      %3432 = vrot.lane.b32.xlu0 %v3363, 109
      %v3433 = vpop.permute.xlu0 %3432
      %3434 = vrot.lane.b32.xlu0 %v3364, 109
      %v3435 = vpop.permute.xlu0 %3434
      %3436 = vrot.lane.b32.xlu0 %v3365, 109
      %v3437 = vpop.permute.xlu0 %3436
      %v3438 = vsel %vm887, %v3391, %v3393
      %v3439 = vsel %vm887, %v3393, %v3395
      %v3440 = vsel %vm887, %v3395, %v3397
      %v3441 = vsel %vm887, %v3397, %v3399
      %v3442 = vsel %vm887, %v3399, %v3401
      %v3443 = vsel %vm887, %v3403, %v3405
      %v3444 = vsel %vm887, %v3405, %v3407
      %v3445 = vsel %vm887, %v3407, %v3409
      %v3446 = vsel %vm887, %v3409, %v3411
      %v3447 = vsel %vm887, %v3411, %v3413
      %v3448 = vsel %vm887, %v3415, %v3417
      %v3449 = vsel %vm887, %v3417, %v3419
      %v3450 = vsel %vm887, %v3419, %v3421
      %v3451 = vsel %vm887, %v3421, %v3423
      %v3452 = vsel %vm887, %v3423, %v3425
      %v3453 = vsel %vm887, %v3427, %v3429
      %v3454 = vsel %vm887, %v3429, %v3431
      %v3455 = vsel %vm887, %v3431, %v3433
      %v3456 = vsel %vm887, %v3433, %v3435
      %v3457 = vsel %vm887, %v3435, %v3437
      %3482 = vst [vmem:[#allocation3 + $0x300] sm:$0xff] %v3438
      %3483 = vst [vmem:[#allocation3 + $0x308] sm:$0xff] %v3439
      %3484 = vst [vmem:[#allocation3 + $0x310] sm:$0xff] %v3440
      %3485 = vst [vmem:[#allocation3 + $0x318] sm:$0xff] %v3441
      %3486 = vst [vmem:[#allocation3 + $0x320] sm:$0xff] %v3442
      %3487 = vst.msk [vmem:[#allocation3 + $0x328] sm:$0xff] %vm276, %v3401
      %3488 = vst [vmem:[#allocation3 + $0x330] sm:$0xff] %v3443
      %3489 = vst [vmem:[#allocation3 + $0x338] sm:$0xff] %v3444
      %3490 = vst [vmem:[#allocation3 + $0x340] sm:$0xff] %v3445
      %3491 = vst [vmem:[#allocation3 + $0x348] sm:$0xff] %v3446
      %3492 = vst [vmem:[#allocation3 + $0x350] sm:$0xff] %v3447
      %3493 = vst.msk [vmem:[#allocation3 + $0x358] sm:$0xff] %vm276, %v3413
      %3494 = vst [vmem:[#allocation3 + $0x360] sm:$0xff] %v3448
      %3495 = vst [vmem:[#allocation3 + $0x368] sm:$0xff] %v3449
      %3496 = vst [vmem:[#allocation3 + $0x370] sm:$0xff] %v3450
      %3497 = vst [vmem:[#allocation3 + $0x378] sm:$0xff] %v3451
      %3498 = vst [vmem:[#allocation3 + $0x380] sm:$0xff] %v3452
      %3499 = vst.msk [vmem:[#allocation3 + $0x388] sm:$0xff] %vm276, %v3425
      %3500 = vst [vmem:[#allocation3 + $0x390] sm:$0xff] %v3453
      %3501 = vst [vmem:[#allocation3 + $0x398] sm:$0xff] %v3454
      %3502 = vst [vmem:[#allocation3 + $0x3a0] sm:$0xff] %v3455
      %3503 = vst [vmem:[#allocation3 + $0x3a8] sm:$0xff] %v3456
      %3504 = vst [vmem:[#allocation3 + $0x3b0] sm:$0xff] %v3457
      %3505 = vst.msk [vmem:[#allocation3 + $0x3b8] sm:$0xff] %vm276, %v3437
      %v3506 = vld [vmem:[#allocation2] sm:$0xff]
      %v3507 = vld [vmem:[#allocation2 + $0x8] sm:$0xff]
      %v3508 = vld [vmem:[#allocation2 + $0x10] sm:$0xff]
      %v3509 = vld [vmem:[#allocation2 + $0x18] sm:$0xff]
      %v3510 = vld [vmem:[#allocation2 + $0x20] sm:$0xff]
      %v3511 = vld [vmem:[#allocation2 + $0x28] sm:$0xff]
      %v3512 = vld [vmem:[#allocation2 + $0x30] sm:$0xff]
      %v3513 = vld [vmem:[#allocation2 + $0x38] sm:$0xff]
      %v3514 = vld [vmem:[#allocation2 + $0x40] sm:$0xff]
      %v3515 = vld [vmem:[#allocation2 + $0x48] sm:$0xff]
      %v3516 = vld [vmem:[#allocation2 + $0x50] sm:$0xff]
      %v3517 = vld [vmem:[#allocation2 + $0x58] sm:$0xff]
      %v3518 = vld [vmem:[#allocation2 + $0x60] sm:$0xff]
      %v3519 = vld [vmem:[#allocation2 + $0x68] sm:$0xff]
      %v3520 = vld [vmem:[#allocation2 + $0x70] sm:$0xff]
      %v3521 = vld [vmem:[#allocation2 + $0x78] sm:$0xff]
      %v3522 = vld [vmem:[#allocation2 + $0x80] sm:$0xff]
      %v3523 = vld [vmem:[#allocation2 + $0x88] sm:$0xff]
      %v3524 = vld [vmem:[#allocation2 + $0x90] sm:$0xff]
      %v3525 = vld [vmem:[#allocation2 + $0x98] sm:$0xff]
      %v3526 = vld [vmem:[#allocation2 + $0xa0] sm:$0xff]
      %v3527 = vld [vmem:[#allocation2 + $0xa8] sm:$0xff]
      %v3528 = vld [vmem:[#allocation2 + $0xb0] sm:$0xff]
      %v3529 = vld [vmem:[#allocation2 + $0xb8] sm:$0xff]
      %3554 = vrot.lane.b32.xlu0 %v3506, 108
      %v3555 = vpop.permute.xlu0 %3554
      %3556 = vrot.lane.b32.xlu0 %v3507, 108
      %v3557 = vpop.permute.xlu0 %3556
      %3558 = vrot.lane.b32.xlu0 %v3508, 108
      %v3559 = vpop.permute.xlu0 %3558
      %3560 = vrot.lane.b32.xlu0 %v3509, 108
      %v3561 = vpop.permute.xlu0 %3560
      %3562 = vrot.lane.b32.xlu0 %v3510, 108
      %v3563 = vpop.permute.xlu0 %3562
      %3564 = vrot.lane.b32.xlu0 %v3511, 108
      %v3565 = vpop.permute.xlu0 %3564
      %3566 = vrot.lane.b32.xlu0 %v3512, 108
      %v3567 = vpop.permute.xlu0 %3566
      %3568 = vrot.lane.b32.xlu0 %v3513, 108
      %v3569 = vpop.permute.xlu0 %3568
      %3570 = vrot.lane.b32.xlu0 %v3514, 108
      %v3571 = vpop.permute.xlu0 %3570
      %3572 = vrot.lane.b32.xlu0 %v3515, 108
      %v3573 = vpop.permute.xlu0 %3572
      %3574 = vrot.lane.b32.xlu0 %v3516, 108
      %v3575 = vpop.permute.xlu0 %3574
      %3576 = vrot.lane.b32.xlu0 %v3517, 108
      %v3577 = vpop.permute.xlu0 %3576
      %3578 = vrot.lane.b32.xlu0 %v3518, 108
      %v3579 = vpop.permute.xlu0 %3578
      %3580 = vrot.lane.b32.xlu0 %v3519, 108
      %v3581 = vpop.permute.xlu0 %3580
      %3582 = vrot.lane.b32.xlu0 %v3520, 108
      %v3583 = vpop.permute.xlu0 %3582
      %3584 = vrot.lane.b32.xlu0 %v3521, 108
      %v3585 = vpop.permute.xlu0 %3584
      %3586 = vrot.lane.b32.xlu0 %v3522, 108
      %v3587 = vpop.permute.xlu0 %3586
      %3588 = vrot.lane.b32.xlu0 %v3523, 108
      %v3589 = vpop.permute.xlu0 %3588
      %3590 = vrot.lane.b32.xlu0 %v3524, 108
      %v3591 = vpop.permute.xlu0 %3590
      %3592 = vrot.lane.b32.xlu0 %v3525, 108
      %v3593 = vpop.permute.xlu0 %3592
      %3594 = vrot.lane.b32.xlu0 %v3526, 108
      %v3595 = vpop.permute.xlu0 %3594
      %3596 = vrot.lane.b32.xlu0 %v3527, 108
      %v3597 = vpop.permute.xlu0 %3596
      %3598 = vrot.lane.b32.xlu0 %v3528, 108
      %v3599 = vpop.permute.xlu0 %3598
      %3600 = vrot.lane.b32.xlu0 %v3529, 108
      %v3601 = vpop.permute.xlu0 %3600
      %v3602 = vsel %vm1052, %v3555, %v3557
      %v3603 = vsel %vm1052, %v3557, %v3559
      %v3604 = vsel %vm1052, %v3559, %v3561
      %v3605 = vsel %vm1052, %v3561, %v3563
      %v3606 = vsel %vm1052, %v3563, %v3565
      %v3607 = vsel %vm1052, %v3567, %v3569
      %v3608 = vsel %vm1052, %v3569, %v3571
      %v3609 = vsel %vm1052, %v3571, %v3573
      %v3610 = vsel %vm1052, %v3573, %v3575
      %v3611 = vsel %vm1052, %v3575, %v3577
      %v3612 = vsel %vm1052, %v3579, %v3581
      %v3613 = vsel %vm1052, %v3581, %v3583
      %v3614 = vsel %vm1052, %v3583, %v3585
      %v3615 = vsel %vm1052, %v3585, %v3587
      %v3616 = vsel %vm1052, %v3587, %v3589
      %v3617 = vsel %vm1052, %v3591, %v3593
      %v3618 = vsel %vm1052, %v3593, %v3595
      %v3619 = vsel %vm1052, %v3595, %v3597
      %v3620 = vsel %vm1052, %v3597, %v3599
      %v3621 = vsel %vm1052, %v3599, %v3601
      %3646 = vst [vmem:[#allocation3 + $0x3c0] sm:$0xff] %v3602
      %3647 = vst [vmem:[#allocation3 + $0x3c8] sm:$0xff] %v3603
      %3648 = vst [vmem:[#allocation3 + $0x3d0] sm:$0xff] %v3604
      %3649 = vst [vmem:[#allocation3 + $0x3d8] sm:$0xff] %v3605
      %3650 = vst [vmem:[#allocation3 + $0x3e0] sm:$0xff] %v3606
      %3651 = vst.msk [vmem:[#allocation3 + $0x3e8] sm:$0xff] %vm276, %v3565
      %3652 = vst [vmem:[#allocation3 + $0x3f0] sm:$0xff] %v3607
      %3653 = vst [vmem:[#allocation3 + $0x3f8] sm:$0xff] %v3608
      %3654 = vst [vmem:[#allocation3 + $0x400] sm:$0xff] %v3609
      %3655 = vst [vmem:[#allocation3 + $0x408] sm:$0xff] %v3610
      %3656 = vst [vmem:[#allocation3 + $0x410] sm:$0xff] %v3611
      %3657 = vst.msk [vmem:[#allocation3 + $0x418] sm:$0xff] %vm276, %v3577
      %3658 = vst [vmem:[#allocation3 + $0x420] sm:$0xff] %v3612
      %3659 = vst [vmem:[#allocation3 + $0x428] sm:$0xff] %v3613
      %3660 = vst [vmem:[#allocation3 + $0x430] sm:$0xff] %v3614
      %3661 = vst [vmem:[#allocation3 + $0x438] sm:$0xff] %v3615
      %3662 = vst [vmem:[#allocation3 + $0x440] sm:$0xff] %v3616
      %3663 = vst.msk [vmem:[#allocation3 + $0x448] sm:$0xff] %vm276, %v3589
      %3664 = vst [vmem:[#allocation3 + $0x450] sm:$0xff] %v3617
      %3665 = vst [vmem:[#allocation3 + $0x458] sm:$0xff] %v3618
      %3666 = vst [vmem:[#allocation3 + $0x460] sm:$0xff] %v3619
      %3667 = vst [vmem:[#allocation3 + $0x468] sm:$0xff] %v3620
      %3668 = vst [vmem:[#allocation3 + $0x470] sm:$0xff] %v3621
      %3669 = vst.msk [vmem:[#allocation3 + $0x478] sm:$0xff] %vm276, %v3601
      %v3670 = vld [vmem:[#allocation2] sm:$0xff]
      %v3671 = vld [vmem:[#allocation2 + $0x8] sm:$0xff]
      %v3672 = vld [vmem:[#allocation2 + $0x10] sm:$0xff]
      %v3673 = vld [vmem:[#allocation2 + $0x18] sm:$0xff]
      %v3674 = vld [vmem:[#allocation2 + $0x20] sm:$0xff]
      %v3675 = vld [vmem:[#allocation2 + $0x28] sm:$0xff]
      %v3676 = vld [vmem:[#allocation2 + $0x30] sm:$0xff]
      %v3677 = vld [vmem:[#allocation2 + $0x38] sm:$0xff]
      %v3678 = vld [vmem:[#allocation2 + $0x40] sm:$0xff]
      %v3679 = vld [vmem:[#allocation2 + $0x48] sm:$0xff]
      %v3680 = vld [vmem:[#allocation2 + $0x50] sm:$0xff]
      %v3681 = vld [vmem:[#allocation2 + $0x58] sm:$0xff]
      %v3682 = vld [vmem:[#allocation2 + $0x60] sm:$0xff]
      %v3683 = vld [vmem:[#allocation2 + $0x68] sm:$0xff]
      %v3684 = vld [vmem:[#allocation2 + $0x70] sm:$0xff]
      %v3685 = vld [vmem:[#allocation2 + $0x78] sm:$0xff]
      %v3686 = vld [vmem:[#allocation2 + $0x80] sm:$0xff]
      %v3687 = vld [vmem:[#allocation2 + $0x88] sm:$0xff]
      %v3688 = vld [vmem:[#allocation2 + $0x90] sm:$0xff]
      %v3689 = vld [vmem:[#allocation2 + $0x98] sm:$0xff]
      %v3690 = vld [vmem:[#allocation2 + $0xa0] sm:$0xff]
      %v3691 = vld [vmem:[#allocation2 + $0xa8] sm:$0xff]
      %v3692 = vld [vmem:[#allocation2 + $0xb0] sm:$0xff]
      %v3693 = vld [vmem:[#allocation2 + $0xb8] sm:$0xff]
      %3718 = vrot.lane.b32.xlu0 %v3670, 92
      %v3719 = vpop.permute.xlu0 %3718
      %3720 = vrot.lane.b32.xlu0 %v3671, 92
      %v3721 = vpop.permute.xlu0 %3720
      %3722 = vrot.lane.b32.xlu0 %v3672, 92
      %v3723 = vpop.permute.xlu0 %3722
      %3724 = vrot.lane.b32.xlu0 %v3673, 92
      %v3725 = vpop.permute.xlu0 %3724
      %3726 = vrot.lane.b32.xlu0 %v3674, 92
      %v3727 = vpop.permute.xlu0 %3726
      %3728 = vrot.lane.b32.xlu0 %v3675, 92
      %v3729 = vpop.permute.xlu0 %3728
      %3730 = vrot.lane.b32.xlu0 %v3676, 92
      %v3731 = vpop.permute.xlu0 %3730
      %3732 = vrot.lane.b32.xlu0 %v3677, 92
      %v3733 = vpop.permute.xlu0 %3732
      %3734 = vrot.lane.b32.xlu0 %v3678, 92
      %v3735 = vpop.permute.xlu0 %3734
      %3736 = vrot.lane.b32.xlu0 %v3679, 92
      %v3737 = vpop.permute.xlu0 %3736
      %3738 = vrot.lane.b32.xlu0 %v3680, 92
      %v3739 = vpop.permute.xlu0 %3738
      %3740 = vrot.lane.b32.xlu0 %v3681, 92
      %v3741 = vpop.permute.xlu0 %3740
      %3742 = vrot.lane.b32.xlu0 %v3682, 92
      %v3743 = vpop.permute.xlu0 %3742
      %3744 = vrot.lane.b32.xlu0 %v3683, 92
      %v3745 = vpop.permute.xlu0 %3744
      %3746 = vrot.lane.b32.xlu0 %v3684, 92
      %v3747 = vpop.permute.xlu0 %3746
      %3748 = vrot.lane.b32.xlu0 %v3685, 92
      %v3749 = vpop.permute.xlu0 %3748
      %3750 = vrot.lane.b32.xlu0 %v3686, 92
      %v3751 = vpop.permute.xlu0 %3750
      %3752 = vrot.lane.b32.xlu0 %v3687, 92
      %v3753 = vpop.permute.xlu0 %3752
      %3754 = vrot.lane.b32.xlu0 %v3688, 92
      %v3755 = vpop.permute.xlu0 %3754
      %3756 = vrot.lane.b32.xlu0 %v3689, 92
      %v3757 = vpop.permute.xlu0 %3756
      %3758 = vrot.lane.b32.xlu0 %v3690, 92
      %v3759 = vpop.permute.xlu0 %3758
      %3760 = vrot.lane.b32.xlu0 %v3691, 92
      %v3761 = vpop.permute.xlu0 %3760
      %3762 = vrot.lane.b32.xlu0 %v3692, 92
      %v3763 = vpop.permute.xlu0 %3762
      %3764 = vrot.lane.b32.xlu0 %v3693, 92
      %v3765 = vpop.permute.xlu0 %3764
      %v3766 = vsel %vm1217, %v3719, %v3721
      %v3767 = vsel %vm1217, %v3721, %v3723
      %v3768 = vsel %vm1217, %v3723, %v3725
      %v3769 = vsel %vm1217, %v3725, %v3727
      %v3770 = vsel %vm1217, %v3727, %v3729
      %v3771 = vsel %vm1217, %v3731, %v3733
      %v3772 = vsel %vm1217, %v3733, %v3735
      %v3773 = vsel %vm1217, %v3735, %v3737
      %v3774 = vsel %vm1217, %v3737, %v3739
      %v3775 = vsel %vm1217, %v3739, %v3741
      %v3776 = vsel %vm1217, %v3743, %v3745
      %v3777 = vsel %vm1217, %v3745, %v3747
      %v3778 = vsel %vm1217, %v3747, %v3749
      %v3779 = vsel %vm1217, %v3749, %v3751
      %v3780 = vsel %vm1217, %v3751, %v3753
      %v3781 = vsel %vm1217, %v3755, %v3757
      %v3782 = vsel %vm1217, %v3757, %v3759
      %v3783 = vsel %vm1217, %v3759, %v3761
      %v3784 = vsel %vm1217, %v3761, %v3763
      %v3785 = vsel %vm1217, %v3763, %v3765
      %3810 = vst [vmem:[#allocation3 + $0x480] sm:$0xff] %v3766
      %3811 = vst [vmem:[#allocation3 + $0x488] sm:$0xff] %v3767
      %3812 = vst [vmem:[#allocation3 + $0x490] sm:$0xff] %v3768
      %3813 = vst [vmem:[#allocation3 + $0x498] sm:$0xff] %v3769
      %3814 = vst [vmem:[#allocation3 + $0x4a0] sm:$0xff] %v3770
      %3815 = vst.msk [vmem:[#allocation3 + $0x4a8] sm:$0xff] %vm276, %v3729
      %3816 = vst [vmem:[#allocation3 + $0x4b0] sm:$0xff] %v3771
      %3817 = vst [vmem:[#allocation3 + $0x4b8] sm:$0xff] %v3772
      %3818 = vst [vmem:[#allocation3 + $0x4c0] sm:$0xff] %v3773
      %3819 = vst [vmem:[#allocation3 + $0x4c8] sm:$0xff] %v3774
      %3820 = vst [vmem:[#allocation3 + $0x4d0] sm:$0xff] %v3775
      %3821 = vst.msk [vmem:[#allocation3 + $0x4d8] sm:$0xff] %vm276, %v3741
      %3822 = vst [vmem:[#allocation3 + $0x4e0] sm:$0xff] %v3776
      %3823 = vst [vmem:[#allocation3 + $0x4e8] sm:$0xff] %v3777
      %3824 = vst [vmem:[#allocation3 + $0x4f0] sm:$0xff] %v3778
      %3825 = vst [vmem:[#allocation3 + $0x4f8] sm:$0xff] %v3779
      %3826 = vst [vmem:[#allocation3 + $0x500] sm:$0xff] %v3780
      %3827 = vst.msk [vmem:[#allocation3 + $0x508] sm:$0xff] %vm276, %v3753
      %3828 = vst [vmem:[#allocation3 + $0x510] sm:$0xff] %v3781
      %3829 = vst [vmem:[#allocation3 + $0x518] sm:$0xff] %v3782
      %3830 = vst [vmem:[#allocation3 + $0x520] sm:$0xff] %v3783
      %3831 = vst [vmem:[#allocation3 + $0x528] sm:$0xff] %v3784
      %3832 = vst [vmem:[#allocation3 + $0x530] sm:$0xff] %v3785
      %3833 = vst.msk [vmem:[#allocation3 + $0x538] sm:$0xff] %vm276, %v3765
      %v3834 = vld [vmem:[#allocation2] sm:$0xff]
      %v3835 = vld [vmem:[#allocation2 + $0x8] sm:$0xff]
      %v3836 = vld [vmem:[#allocation2 + $0x10] sm:$0xff]
      %v3837 = vld [vmem:[#allocation2 + $0x18] sm:$0xff]
      %v3838 = vld [vmem:[#allocation2 + $0x20] sm:$0xff]
      %v3839 = vld [vmem:[#allocation2 + $0x28] sm:$0xff]
      %v3840 = vld [vmem:[#allocation2 + $0x30] sm:$0xff]
      %v3841 = vld [vmem:[#allocation2 + $0x38] sm:$0xff]
      %v3842 = vld [vmem:[#allocation2 + $0x40] sm:$0xff]
      %v3843 = vld [vmem:[#allocation2 + $0x48] sm:$0xff]
      %v3844 = vld [vmem:[#allocation2 + $0x50] sm:$0xff]
      %v3845 = vld [vmem:[#allocation2 + $0x58] sm:$0xff]
      %v3846 = vld [vmem:[#allocation2 + $0x60] sm:$0xff]
      %v3847 = vld [vmem:[#allocation2 + $0x68] sm:$0xff]
      %v3848 = vld [vmem:[#allocation2 + $0x70] sm:$0xff]
      %v3849 = vld [vmem:[#allocation2 + $0x78] sm:$0xff]
      %v3850 = vld [vmem:[#allocation2 + $0x80] sm:$0xff]
      %v3851 = vld [vmem:[#allocation2 + $0x88] sm:$0xff]
      %v3852 = vld [vmem:[#allocation2 + $0x90] sm:$0xff]
      %v3853 = vld [vmem:[#allocation2 + $0x98] sm:$0xff]
      %v3854 = vld [vmem:[#allocation2 + $0xa0] sm:$0xff]
      %v3855 = vld [vmem:[#allocation2 + $0xa8] sm:$0xff]
      %v3856 = vld [vmem:[#allocation2 + $0xb0] sm:$0xff]
      %v3857 = vld [vmem:[#allocation2 + $0xb8] sm:$0xff]
      %3882 = vrot.lane.b32.xlu0 %v3834, 91
      %v3883 = vpop.permute.xlu0 %3882
      %3884 = vrot.lane.b32.xlu0 %v3835, 91
      %v3885 = vpop.permute.xlu0 %3884
      %3886 = vrot.lane.b32.xlu0 %v3836, 91
      %v3887 = vpop.permute.xlu0 %3886
      %3888 = vrot.lane.b32.xlu0 %v3837, 91
      %v3889 = vpop.permute.xlu0 %3888
      %3890 = vrot.lane.b32.xlu0 %v3838, 91
      %v3891 = vpop.permute.xlu0 %3890
      %3892 = vrot.lane.b32.xlu0 %v3839, 91
      %v3893 = vpop.permute.xlu0 %3892
      %3894 = vrot.lane.b32.xlu0 %v3840, 91
      %v3895 = vpop.permute.xlu0 %3894
      %3896 = vrot.lane.b32.xlu0 %v3841, 91
      %v3897 = vpop.permute.xlu0 %3896
      %3898 = vrot.lane.b32.xlu0 %v3842, 91
      %v3899 = vpop.permute.xlu0 %3898
      %3900 = vrot.lane.b32.xlu0 %v3843, 91
      %v3901 = vpop.permute.xlu0 %3900
      %3902 = vrot.lane.b32.xlu0 %v3844, 91
      %v3903 = vpop.permute.xlu0 %3902
      %3904 = vrot.lane.b32.xlu0 %v3845, 91
      %v3905 = vpop.permute.xlu0 %3904
      %3906 = vrot.lane.b32.xlu0 %v3846, 91
      %v3907 = vpop.permute.xlu0 %3906
      %3908 = vrot.lane.b32.xlu0 %v3847, 91
      %v3909 = vpop.permute.xlu0 %3908
      %3910 = vrot.lane.b32.xlu0 %v3848, 91
      %v3911 = vpop.permute.xlu0 %3910
      %3912 = vrot.lane.b32.xlu0 %v3849, 91
      %v3913 = vpop.permute.xlu0 %3912
      %3914 = vrot.lane.b32.xlu0 %v3850, 91
      %v3915 = vpop.permute.xlu0 %3914
      %3916 = vrot.lane.b32.xlu0 %v3851, 91
      %v3917 = vpop.permute.xlu0 %3916
      %3918 = vrot.lane.b32.xlu0 %v3852, 91
      %v3919 = vpop.permute.xlu0 %3918
      %3920 = vrot.lane.b32.xlu0 %v3853, 91
      %v3921 = vpop.permute.xlu0 %3920
      %3922 = vrot.lane.b32.xlu0 %v3854, 91
      %v3923 = vpop.permute.xlu0 %3922
      %3924 = vrot.lane.b32.xlu0 %v3855, 91
      %v3925 = vpop.permute.xlu0 %3924
      %3926 = vrot.lane.b32.xlu0 %v3856, 91
      %v3927 = vpop.permute.xlu0 %3926
      %3928 = vrot.lane.b32.xlu0 %v3857, 91
      %v3929 = vpop.permute.xlu0 %3928
      %v3930 = vsel %vm1382, %v3883, %v3885
      %v3931 = vsel %vm1382, %v3885, %v3887
      %v3932 = vsel %vm1382, %v3887, %v3889
      %v3933 = vsel %vm1382, %v3889, %v3891
      %v3934 = vsel %vm1382, %v3891, %v3893
      %v3935 = vsel %vm1382, %v3895, %v3897
      %v3936 = vsel %vm1382, %v3897, %v3899
      %v3937 = vsel %vm1382, %v3899, %v3901
      %v3938 = vsel %vm1382, %v3901, %v3903
      %v3939 = vsel %vm1382, %v3903, %v3905
      %v3940 = vsel %vm1382, %v3907, %v3909
      %v3941 = vsel %vm1382, %v3909, %v3911
      %v3942 = vsel %vm1382, %v3911, %v3913
      %v3943 = vsel %vm1382, %v3913, %v3915
      %v3944 = vsel %vm1382, %v3915, %v3917
      %v3945 = vsel %vm1382, %v3919, %v3921
      %v3946 = vsel %vm1382, %v3921, %v3923
      %v3947 = vsel %vm1382, %v3923, %v3925
      %v3948 = vsel %vm1382, %v3925, %v3927
      %v3949 = vsel %vm1382, %v3927, %v3929
      %3974 = vst [vmem:[#allocation3 + $0x540] sm:$0xff] %v3930
      %3975 = vst [vmem:[#allocation3 + $0x548] sm:$0xff] %v3931
      %3976 = vst [vmem:[#allocation3 + $0x550] sm:$0xff] %v3932
      %3977 = vst [vmem:[#allocation3 + $0x558] sm:$0xff] %v3933
      %3978 = vst [vmem:[#allocation3 + $0x560] sm:$0xff] %v3934
      %3979 = vst.msk [vmem:[#allocation3 + $0x568] sm:$0xff] %vm276, %v3893
      %3980 = vst [vmem:[#allocation3 + $0x570] sm:$0xff] %v3935
      %3981 = vst [vmem:[#allocation3 + $0x578] sm:$0xff] %v3936
      %3982 = vst [vmem:[#allocation3 + $0x580] sm:$0xff] %v3937
      %3983 = vst [vmem:[#allocation3 + $0x588] sm:$0xff] %v3938
      %3984 = vst [vmem:[#allocation3 + $0x590] sm:$0xff] %v3939
      %3985 = vst.msk [vmem:[#allocation3 + $0x598] sm:$0xff] %vm276, %v3905
      %3986 = vst [vmem:[#allocation3 + $0x5a0] sm:$0xff] %v3940
      %3987 = vst [vmem:[#allocation3 + $0x5a8] sm:$0xff] %v3941
      %3988 = vst [vmem:[#allocation3 + $0x5b0] sm:$0xff] %v3942
      %3989 = vst [vmem:[#allocation3 + $0x5b8] sm:$0xff] %v3943
      %3990 = vst [vmem:[#allocation3 + $0x5c0] sm:$0xff] %v3944
      %3991 = vst.msk [vmem:[#allocation3 + $0x5c8] sm:$0xff] %vm276, %v3917
      %3992 = vst [vmem:[#allocation3 + $0x5d0] sm:$0xff] %v3945
      %3993 = vst [vmem:[#allocation3 + $0x5d8] sm:$0xff] %v3946
      %3994 = vst [vmem:[#allocation3 + $0x5e0] sm:$0xff] %v3947
      %3995 = vst [vmem:[#allocation3 + $0x5e8] sm:$0xff] %v3948
      %3996 = vst [vmem:[#allocation3 + $0x5f0] sm:$0xff] %v3949
      %3997 = vst.msk [vmem:[#allocation3 + $0x5f8] sm:$0xff] %vm276, %v3929
      %v3998 = vld [vmem:[#allocation2] sm:$0xff]
      %v3999 = vld [vmem:[#allocation2 + $0x8] sm:$0xff]
      %v4000 = vld [vmem:[#allocation2 + $0x10] sm:$0xff]
      %v4001 = vld [vmem:[#allocation2 + $0x18] sm:$0xff]
      %v4002 = vld [vmem:[#allocation2 + $0x20] sm:$0xff]
      %v4003 = vld [vmem:[#allocation2 + $0x28] sm:$0xff]
      %v4004 = vld [vmem:[#allocation2 + $0x30] sm:$0xff]
      %v4005 = vld [vmem:[#allocation2 + $0x38] sm:$0xff]
      %v4006 = vld [vmem:[#allocation2 + $0x40] sm:$0xff]
      %v4007 = vld [vmem:[#allocation2 + $0x48] sm:$0xff]
      %v4008 = vld [vmem:[#allocation2 + $0x50] sm:$0xff]
      %v4009 = vld [vmem:[#allocation2 + $0x58] sm:$0xff]
      %v4010 = vld [vmem:[#allocation2 + $0x60] sm:$0xff]
      %v4011 = vld [vmem:[#allocation2 + $0x68] sm:$0xff]
      %v4012 = vld [vmem:[#allocation2 + $0x70] sm:$0xff]
      %v4013 = vld [vmem:[#allocation2 + $0x78] sm:$0xff]
      %v4014 = vld [vmem:[#allocation2 + $0x80] sm:$0xff]
      %v4015 = vld [vmem:[#allocation2 + $0x88] sm:$0xff]
      %v4016 = vld [vmem:[#allocation2 + $0x90] sm:$0xff]
      %v4017 = vld [vmem:[#allocation2 + $0x98] sm:$0xff]
      %v4018 = vld [vmem:[#allocation2 + $0xa0] sm:$0xff]
      %v4019 = vld [vmem:[#allocation2 + $0xa8] sm:$0xff]
      %v4020 = vld [vmem:[#allocation2 + $0xb0] sm:$0xff]
      %v4021 = vld [vmem:[#allocation2 + $0xb8] sm:$0xff]
      %4046 = vrot.lane.b32.xlu0 %v3998, 90
      %v4047 = vpop.permute.xlu0 %4046
      %4048 = vrot.lane.b32.xlu0 %v3999, 90
      %v4049 = vpop.permute.xlu0 %4048
      %4050 = vrot.lane.b32.xlu0 %v4000, 90
      %v4051 = vpop.permute.xlu0 %4050
      %4052 = vrot.lane.b32.xlu0 %v4001, 90
      %v4053 = vpop.permute.xlu0 %4052
      %4054 = vrot.lane.b32.xlu0 %v4002, 90
      %v4055 = vpop.permute.xlu0 %4054
      %4056 = vrot.lane.b32.xlu0 %v4003, 90
      %v4057 = vpop.permute.xlu0 %4056
      %4058 = vrot.lane.b32.xlu0 %v4004, 90
      %v4059 = vpop.permute.xlu0 %4058
      %4060 = vrot.lane.b32.xlu0 %v4005, 90
      %v4061 = vpop.permute.xlu0 %4060
      %4062 = vrot.lane.b32.xlu0 %v4006, 90
      %v4063 = vpop.permute.xlu0 %4062
      %4064 = vrot.lane.b32.xlu0 %v4007, 90
      %v4065 = vpop.permute.xlu0 %4064
      %4066 = vrot.lane.b32.xlu0 %v4008, 90
      %v4067 = vpop.permute.xlu0 %4066
      %4068 = vrot.lane.b32.xlu0 %v4009, 90
      %v4069 = vpop.permute.xlu0 %4068
      %4070 = vrot.lane.b32.xlu0 %v4010, 90
      %v4071 = vpop.permute.xlu0 %4070
      %4072 = vrot.lane.b32.xlu0 %v4011, 90
      %v4073 = vpop.permute.xlu0 %4072
      %4074 = vrot.lane.b32.xlu0 %v4012, 90
      %v4075 = vpop.permute.xlu0 %4074
      %4076 = vrot.lane.b32.xlu0 %v4013, 90
      %v4077 = vpop.permute.xlu0 %4076
      %4078 = vrot.lane.b32.xlu0 %v4014, 90
      %v4079 = vpop.permute.xlu0 %4078
      %4080 = vrot.lane.b32.xlu0 %v4015, 90
      %v4081 = vpop.permute.xlu0 %4080
      %4082 = vrot.lane.b32.xlu0 %v4016, 90
      %v4083 = vpop.permute.xlu0 %4082
      %4084 = vrot.lane.b32.xlu0 %v4017, 90
      %v4085 = vpop.permute.xlu0 %4084
      %4086 = vrot.lane.b32.xlu0 %v4018, 90
      %v4087 = vpop.permute.xlu0 %4086
      %4088 = vrot.lane.b32.xlu0 %v4019, 90
      %v4089 = vpop.permute.xlu0 %4088
      %4090 = vrot.lane.b32.xlu0 %v4020, 90
      %v4091 = vpop.permute.xlu0 %4090
      %4092 = vrot.lane.b32.xlu0 %v4021, 90
      %v4093 = vpop.permute.xlu0 %4092
      %v4094 = vsel %vm1547, %v4047, %v4049
      %v4095 = vsel %vm1547, %v4049, %v4051
      %v4096 = vsel %vm1547, %v4051, %v4053
      %v4097 = vsel %vm1547, %v4053, %v4055
      %v4098 = vsel %vm1547, %v4055, %v4057
      %v4099 = vsel %vm1547, %v4059, %v4061
      %v4100 = vsel %vm1547, %v4061, %v4063
      %v4101 = vsel %vm1547, %v4063, %v4065
      %v4102 = vsel %vm1547, %v4065, %v4067
      %v4103 = vsel %vm1547, %v4067, %v4069
      %v4104 = vsel %vm1547, %v4071, %v4073
      %v4105 = vsel %vm1547, %v4073, %v4075
      %v4106 = vsel %vm1547, %v4075, %v4077
      %v4107 = vsel %vm1547, %v4077, %v4079
      %v4108 = vsel %vm1547, %v4079, %v4081
      %v4109 = vsel %vm1547, %v4083, %v4085
      %v4110 = vsel %vm1547, %v4085, %v4087
      %v4111 = vsel %vm1547, %v4087, %v4089
      %v4112 = vsel %vm1547, %v4089, %v4091
      %v4113 = vsel %vm1547, %v4091, %v4093
      %4138 = vst [vmem:[#allocation3 + $0x600] sm:$0xff] %v4094
      %4139 = vst [vmem:[#allocation3 + $0x608] sm:$0xff] %v4095
      %4140 = vst [vmem:[#allocation3 + $0x610] sm:$0xff] %v4096
      %4141 = vst [vmem:[#allocation3 + $0x618] sm:$0xff] %v4097
      %4142 = vst [vmem:[#allocation3 + $0x620] sm:$0xff] %v4098
      %4143 = vst.msk [vmem:[#allocation3 + $0x628] sm:$0xff] %vm276, %v4057
      %4144 = vst [vmem:[#allocation3 + $0x630] sm:$0xff] %v4099
      %4145 = vst [vmem:[#allocation3 + $0x638] sm:$0xff] %v4100
      %4146 = vst [vmem:[#allocation3 + $0x640] sm:$0xff] %v4101
      %4147 = vst [vmem:[#allocation3 + $0x648] sm:$0xff] %v4102
      %4148 = vst [vmem:[#allocation3 + $0x650] sm:$0xff] %v4103
      %4149 = vst.msk [vmem:[#allocation3 + $0x658] sm:$0xff] %vm276, %v4069
      %4150 = vst [vmem:[#allocation3 + $0x660] sm:$0xff] %v4104
      %4151 = vst [vmem:[#allocation3 + $0x668] sm:$0xff] %v4105
      %4152 = vst [vmem:[#allocation3 + $0x670] sm:$0xff] %v4106
      %4153 = vst [vmem:[#allocation3 + $0x678] sm:$0xff] %v4107
      %4154 = vst [vmem:[#allocation3 + $0x680] sm:$0xff] %v4108
      %4155 = vst.msk [vmem:[#allocation3 + $0x688] sm:$0xff] %vm276, %v4081
      %4156 = vst [vmem:[#allocation3 + $0x690] sm:$0xff] %v4109
      %4157 = vst [vmem:[#allocation3 + $0x698] sm:$0xff] %v4110
      %4158 = vst [vmem:[#allocation3 + $0x6a0] sm:$0xff] %v4111
      %4159 = vst [vmem:[#allocation3 + $0x6a8] sm:$0xff] %v4112
      %4160 = vst [vmem:[#allocation3 + $0x6b0] sm:$0xff] %v4113
      %4161 = vst.msk [vmem:[#allocation3 + $0x6b8] sm:$0xff] %vm276, %v4093
      %s4162 = smul.u32 %s2661, 12
      %s4163 = smul.addr %s4162, 8
      %s4164 = scalar_lea.vmem [#allocation4], %s4163
      %v4165 = vld [vmem:[%s4164] sm:$0xff]
      %v4166 = vld [vmem:[%s4164 + $0x8] sm:$0xff]
      %v4167 = vld [vmem:[%s4164 + $0x10] sm:$0xff]
      %v4168 = vld [vmem:[%s4164 + $0x18] sm:$0xff]
      %v4169 = vld [vmem:[%s4164 + $0x20] sm:$0xff]
      %v4170 = vld [vmem:[%s4164 + $0x28] sm:$0xff]
      %v4171 = vld [vmem:[%s4164 + $0x30] sm:$0xff]
      %v4172 = vld [vmem:[%s4164 + $0x38] sm:$0xff]
      %v4173 = vld [vmem:[%s4164 + $0x40] sm:$0xff]
      %v4174 = vld [vmem:[%s4164 + $0x48] sm:$0xff]
      %v4175 = vld [vmem:[%s4164 + $0x50] sm:$0xff]
      %v4176 = vld [vmem:[%s4164 + $0x58] sm:$0xff]
      %v4177 = vld [vmem:[#allocation3] sm:$0xff]
      %v4178 = vld [vmem:[#allocation3 + $0x8] sm:$0xff]
      %v4179 = vld [vmem:[#allocation3 + $0x10] sm:$0xff]
      %v4180 = vld [vmem:[#allocation3 + $0x18] sm:$0xff]
      %v4181 = vld [vmem:[#allocation3 + $0x20] sm:$0xff]
      %v4182 = vld [vmem:[#allocation3 + $0x28] sm:$0xff]
      %v4183 = vld [vmem:[#allocation3 + $0x30] sm:$0xff]
      %v4184 = vld [vmem:[#allocation3 + $0x38] sm:$0xff]
      %v4185 = vld [vmem:[#allocation3 + $0x40] sm:$0xff]
      %v4186 = vld [vmem:[#allocation3 + $0x48] sm:$0xff]
      %v4187 = vld [vmem:[#allocation3 + $0x50] sm:$0xff]
      %v4188 = vld [vmem:[#allocation3 + $0x58] sm:$0xff]
      %v4189 = vld [vmem:[#allocation3 + $0x60] sm:$0xff]
      %v4190 = vld [vmem:[#allocation3 + $0x68] sm:$0xff]
      %v4191 = vld [vmem:[#allocation3 + $0x70] sm:$0xff]
      %v4192 = vld [vmem:[#allocation3 + $0x78] sm:$0xff]
      %v4193 = vld [vmem:[#allocation3 + $0x80] sm:$0xff]
      %v4194 = vld [vmem:[#allocation3 + $0x88] sm:$0xff]
      %v4195 = vld [vmem:[#allocation3 + $0x90] sm:$0xff]
      %v4196 = vld [vmem:[#allocation3 + $0x98] sm:$0xff]
      %v4197 = vld [vmem:[#allocation3 + $0xa0] sm:$0xff]
      %v4198 = vld [vmem:[#allocation3 + $0xa8] sm:$0xff]
      %v4199 = vld [vmem:[#allocation3 + $0xb0] sm:$0xff]
      %v4200 = vld [vmem:[#allocation3 + $0xb8] sm:$0xff]
      %v4201 = vld [vmem:[#allocation3 + $0xc0] sm:$0xff]
      %v4202 = vld [vmem:[#allocation3 + $0xc8] sm:$0xff]
      %v4203 = vld [vmem:[#allocation3 + $0xd0] sm:$0xff]
      %v4204 = vld [vmem:[#allocation3 + $0xd8] sm:$0xff]
      %v4205 = vld [vmem:[#allocation3 + $0xe0] sm:$0xff]
      %v4206 = vld [vmem:[#allocation3 + $0xe8] sm:$0xff]
      %v4207 = vld [vmem:[#allocation3 + $0xf0] sm:$0xff]
      %v4208 = vld [vmem:[#allocation3 + $0xf8] sm:$0xff]
      %v4209 = vld [vmem:[#allocation3 + $0x100] sm:$0xff]
      %v4210 = vld [vmem:[#allocation3 + $0x108] sm:$0xff]
      %v4211 = vld [vmem:[#allocation3 + $0x110] sm:$0xff]
      %v4212 = vld [vmem:[#allocation3 + $0x118] sm:$0xff]
      %v4213 = vld [vmem:[#allocation3 + $0x120] sm:$0xff]
      %v4214 = vld [vmem:[#allocation3 + $0x128] sm:$0xff]
      %v4215 = vld [vmem:[#allocation3 + $0x130] sm:$0xff]
      %v4216 = vld [vmem:[#allocation3 + $0x138] sm:$0xff]
      %v4217 = vld [vmem:[#allocation3 + $0x140] sm:$0xff]
      %v4218 = vld [vmem:[#allocation3 + $0x148] sm:$0xff]
      %v4219 = vld [vmem:[#allocation3 + $0x150] sm:$0xff]
      %v4220 = vld [vmem:[#allocation3 + $0x158] sm:$0xff]
      %v4221 = vld [vmem:[#allocation3 + $0x160] sm:$0xff]
      %v4222 = vld [vmem:[#allocation3 + $0x168] sm:$0xff]
      %v4223 = vld [vmem:[#allocation3 + $0x170] sm:$0xff]
      %v4224 = vld [vmem:[#allocation3 + $0x178] sm:$0xff]
      %v4225 = vld [vmem:[#allocation3 + $0x180] sm:$0xff]
      %v4226 = vld [vmem:[#allocation3 + $0x188] sm:$0xff]
      %v4227 = vld [vmem:[#allocation3 + $0x190] sm:$0xff]
      %v4228 = vld [vmem:[#allocation3 + $0x198] sm:$0xff]
      %v4229 = vld [vmem:[#allocation3 + $0x1a0] sm:$0xff]
      %v4230 = vld [vmem:[#allocation3 + $0x1a8] sm:$0xff]
      %v4231 = vld [vmem:[#allocation3 + $0x1b0] sm:$0xff]
      %v4232 = vld [vmem:[#allocation3 + $0x1b8] sm:$0xff]
      %v4233 = vld [vmem:[#allocation3 + $0x1c0] sm:$0xff]
      %v4234 = vld [vmem:[#allocation3 + $0x1c8] sm:$0xff]
      %v4235 = vld [vmem:[#allocation3 + $0x1d0] sm:$0xff]
      %v4236 = vld [vmem:[#allocation3 + $0x1d8] sm:$0xff]
      %v4237 = vld [vmem:[#allocation3 + $0x1e0] sm:$0xff]
      %v4238 = vld [vmem:[#allocation3 + $0x1e8] sm:$0xff]
      %v4239 = vld [vmem:[#allocation3 + $0x1f0] sm:$0xff]
      %v4240 = vld [vmem:[#allocation3 + $0x1f8] sm:$0xff]
      %v4241 = vld [vmem:[#allocation3 + $0x200] sm:$0xff]
      %v4242 = vld [vmem:[#allocation3 + $0x208] sm:$0xff]
      %v4243 = vld [vmem:[#allocation3 + $0x210] sm:$0xff]
      %v4244 = vld [vmem:[#allocation3 + $0x218] sm:$0xff]
      %v4245 = vld [vmem:[#allocation3 + $0x220] sm:$0xff]
      %v4246 = vld [vmem:[#allocation3 + $0x228] sm:$0xff]
      %v4247 = vld [vmem:[#allocation3 + $0x230] sm:$0xff]
      %v4248 = vld [vmem:[#allocation3 + $0x238] sm:$0xff]
      %v4249 = vld [vmem:[#allocation3 + $0x240] sm:$0xff]
      %v4250 = vld [vmem:[#allocation3 + $0x248] sm:$0xff]
      %v4251 = vld [vmem:[#allocation3 + $0x250] sm:$0xff]
      %v4252 = vld [vmem:[#allocation3 + $0x258] sm:$0xff]
      %v4253 = vld [vmem:[#allocation3 + $0x260] sm:$0xff]
      %v4254 = vld [vmem:[#allocation3 + $0x268] sm:$0xff]
      %v4255 = vld [vmem:[#allocation3 + $0x270] sm:$0xff]
      %v4256 = vld [vmem:[#allocation3 + $0x278] sm:$0xff]
      %v4257 = vld [vmem:[#allocation3 + $0x280] sm:$0xff]
      %v4258 = vld [vmem:[#allocation3 + $0x288] sm:$0xff]
      %v4259 = vld [vmem:[#allocation3 + $0x290] sm:$0xff]
      %v4260 = vld [vmem:[#allocation3 + $0x298] sm:$0xff]
      %v4261 = vld [vmem:[#allocation3 + $0x2a0] sm:$0xff]
      %v4262 = vld [vmem:[#allocation3 + $0x2a8] sm:$0xff]
      %v4263 = vld [vmem:[#allocation3 + $0x2b0] sm:$0xff]
      %v4264 = vld [vmem:[#allocation3 + $0x2b8] sm:$0xff]
      %v4265 = vld [vmem:[#allocation3 + $0x2c0] sm:$0xff]
      %v4266 = vld [vmem:[#allocation3 + $0x2c8] sm:$0xff]
      %v4267 = vld [vmem:[#allocation3 + $0x2d0] sm:$0xff]
      %v4268 = vld [vmem:[#allocation3 + $0x2d8] sm:$0xff]
      %v4269 = vld [vmem:[#allocation3 + $0x2e0] sm:$0xff]
      %v4270 = vld [vmem:[#allocation3 + $0x2e8] sm:$0xff]
      %v4271 = vld [vmem:[#allocation3 + $0x2f0] sm:$0xff]
      %v4272 = vld [vmem:[#allocation3 + $0x2f8] sm:$0xff]
      %v4273 = vld [vmem:[#allocation3 + $0x300] sm:$0xff]
      %v4274 = vld [vmem:[#allocation3 + $0x308] sm:$0xff]
      %v4275 = vld [vmem:[#allocation3 + $0x310] sm:$0xff]
      %v4276 = vld [vmem:[#allocation3 + $0x318] sm:$0xff]
      %v4277 = vld [vmem:[#allocation3 + $0x320] sm:$0xff]
      %v4278 = vld [vmem:[#allocation3 + $0x328] sm:$0xff]
      %v4279 = vld [vmem:[#allocation3 + $0x330] sm:$0xff]
      %v4280 = vld [vmem:[#allocation3 + $0x338] sm:$0xff]
      %v4281 = vld [vmem:[#allocation3 + $0x340] sm:$0xff]
      %v4282 = vld [vmem:[#allocation3 + $0x348] sm:$0xff]
      %v4283 = vld [vmem:[#allocation3 + $0x350] sm:$0xff]
      %v4284 = vld [vmem:[#allocation3 + $0x358] sm:$0xff]
      %v4285 = vld [vmem:[#allocation3 + $0x360] sm:$0xff]
      %v4286 = vld [vmem:[#allocation3 + $0x368] sm:$0xff]
      %v4287 = vld [vmem:[#allocation3 + $0x370] sm:$0xff]
      %v4288 = vld [vmem:[#allocation3 + $0x378] sm:$0xff]
      %v4289 = vld [vmem:[#allocation3 + $0x380] sm:$0xff]
      %v4290 = vld [vmem:[#allocation3 + $0x388] sm:$0xff]
      %v4291 = vld [vmem:[#allocation3 + $0x390] sm:$0xff]
      %v4292 = vld [vmem:[#allocation3 + $0x398] sm:$0xff]
      %v4293 = vld [vmem:[#allocation3 + $0x3a0] sm:$0xff]
      %v4294 = vld [vmem:[#allocation3 + $0x3a8] sm:$0xff]
      %v4295 = vld [vmem:[#allocation3 + $0x3b0] sm:$0xff]
      %v4296 = vld [vmem:[#allocation3 + $0x3b8] sm:$0xff]
      %v4297 = vld [vmem:[#allocation3 + $0x3c0] sm:$0xff]
      %v4298 = vld [vmem:[#allocation3 + $0x3c8] sm:$0xff]
      %v4299 = vld [vmem:[#allocation3 + $0x3d0] sm:$0xff]
      %v4300 = vld [vmem:[#allocation3 + $0x3d8] sm:$0xff]
      %v4301 = vld [vmem:[#allocation3 + $0x3e0] sm:$0xff]
      %v4302 = vld [vmem:[#allocation3 + $0x3e8] sm:$0xff]
      %v4303 = vld [vmem:[#allocation3 + $0x3f0] sm:$0xff]
      %v4304 = vld [vmem:[#allocation3 + $0x3f8] sm:$0xff]
      %v4305 = vld [vmem:[#allocation3 + $0x400] sm:$0xff]
      %v4306 = vld [vmem:[#allocation3 + $0x408] sm:$0xff]
      %v4307 = vld [vmem:[#allocation3 + $0x410] sm:$0xff]
      %v4308 = vld [vmem:[#allocation3 + $0x418] sm:$0xff]
      %v4309 = vld [vmem:[#allocation3 + $0x420] sm:$0xff]
      %v4310 = vld [vmem:[#allocation3 + $0x428] sm:$0xff]
      %v4311 = vld [vmem:[#allocation3 + $0x430] sm:$0xff]
      %v4312 = vld [vmem:[#allocation3 + $0x438] sm:$0xff]
      %v4313 = vld [vmem:[#allocation3 + $0x440] sm:$0xff]
      %v4314 = vld [vmem:[#allocation3 + $0x448] sm:$0xff]
      %v4315 = vld [vmem:[#allocation3 + $0x450] sm:$0xff]
      %v4316 = vld [vmem:[#allocation3 + $0x458] sm:$0xff]
      %v4317 = vld [vmem:[#allocation3 + $0x460] sm:$0xff]
      %v4318 = vld [vmem:[#allocation3 + $0x468] sm:$0xff]
      %v4319 = vld [vmem:[#allocation3 + $0x470] sm:$0xff]
      %v4320 = vld [vmem:[#allocation3 + $0x478] sm:$0xff]
      %v4321 = vld [vmem:[#allocation3 + $0x480] sm:$0xff]
      %v4322 = vld [vmem:[#allocation3 + $0x488] sm:$0xff]
      %v4323 = vld [vmem:[#allocation3 + $0x490] sm:$0xff]
      %v4324 = vld [vmem:[#allocation3 + $0x498] sm:$0xff]
      %v4325 = vld [vmem:[#allocation3 + $0x4a0] sm:$0xff]
      %v4326 = vld [vmem:[#allocation3 + $0x4a8] sm:$0xff]
      %v4327 = vld [vmem:[#allocation3 + $0x4b0] sm:$0xff]
      %v4328 = vld [vmem:[#allocation3 + $0x4b8] sm:$0xff]
      %v4329 = vld [vmem:[#allocation3 + $0x4c0] sm:$0xff]
      %v4330 = vld [vmem:[#allocation3 + $0x4c8] sm:$0xff]
      %v4331 = vld [vmem:[#allocation3 + $0x4d0] sm:$0xff]
      %v4332 = vld [vmem:[#allocation3 + $0x4d8] sm:$0xff]
      %v4333 = vld [vmem:[#allocation3 + $0x4e0] sm:$0xff]
      %v4334 = vld [vmem:[#allocation3 + $0x4e8] sm:$0xff]
      %v4335 = vld [vmem:[#allocation3 + $0x4f0] sm:$0xff]
      %v4336 = vld [vmem:[#allocation3 + $0x4f8] sm:$0xff]
      %v4337 = vld [vmem:[#allocation3 + $0x500] sm:$0xff]
      %v4338 = vld [vmem:[#allocation3 + $0x508] sm:$0xff]
      %v4339 = vld [vmem:[#allocation3 + $0x510] sm:$0xff]
      %v4340 = vld [vmem:[#allocation3 + $0x518] sm:$0xff]
      %v4341 = vld [vmem:[#allocation3 + $0x520] sm:$0xff]
      %v4342 = vld [vmem:[#allocation3 + $0x528] sm:$0xff]
      %v4343 = vld [vmem:[#allocation3 + $0x530] sm:$0xff]
      %v4344 = vld [vmem:[#allocation3 + $0x538] sm:$0xff]
      %v4345 = vld [vmem:[#allocation3 + $0x540] sm:$0xff]
      %v4346 = vld [vmem:[#allocation3 + $0x548] sm:$0xff]
      %v4347 = vld [vmem:[#allocation3 + $0x550] sm:$0xff]
      %v4348 = vld [vmem:[#allocation3 + $0x558] sm:$0xff]
      %v4349 = vld [vmem:[#allocation3 + $0x560] sm:$0xff]
      %v4350 = vld [vmem:[#allocation3 + $0x568] sm:$0xff]
      %v4351 = vld [vmem:[#allocation3 + $0x570] sm:$0xff]
      %v4352 = vld [vmem:[#allocation3 + $0x578] sm:$0xff]
      %v4353 = vld [vmem:[#allocation3 + $0x580] sm:$0xff]
      %v4354 = vld [vmem:[#allocation3 + $0x588] sm:$0xff]
      %v4355 = vld [vmem:[#allocation3 + $0x590] sm:$0xff]
      %v4356 = vld [vmem:[#allocation3 + $0x598] sm:$0xff]
      %v4357 = vld [vmem:[#allocation3 + $0x5a0] sm:$0xff]
      %v4358 = vld [vmem:[#allocation3 + $0x5a8] sm:$0xff]
      %v4359 = vld [vmem:[#allocation3 + $0x5b0] sm:$0xff]
      %v4360 = vld [vmem:[#allocation3 + $0x5b8] sm:$0xff]
      %v4361 = vld [vmem:[#allocation3 + $0x5c0] sm:$0xff]
      %v4362 = vld [vmem:[#allocation3 + $0x5c8] sm:$0xff]
      %v4363 = vld [vmem:[#allocation3 + $0x5d0] sm:$0xff]
      %v4364 = vld [vmem:[#allocation3 + $0x5d8] sm:$0xff]
      %v4365 = vld [vmem:[#allocation3 + $0x5e0] sm:$0xff]
      %v4366 = vld [vmem:[#allocation3 + $0x5e8] sm:$0xff]
      %v4367 = vld [vmem:[#allocation3 + $0x5f0] sm:$0xff]
      %v4368 = vld [vmem:[#allocation3 + $0x5f8] sm:$0xff]
      %v4369 = vld [vmem:[#allocation3 + $0x600] sm:$0xff]
      %v4370 = vld [vmem:[#allocation3 + $0x608] sm:$0xff]
      %v4371 = vld [vmem:[#allocation3 + $0x610] sm:$0xff]
      %v4372 = vld [vmem:[#allocation3 + $0x618] sm:$0xff]
      %v4373 = vld [vmem:[#allocation3 + $0x620] sm:$0xff]
      %v4374 = vld [vmem:[#allocation3 + $0x628] sm:$0xff]
      %v4375 = vld [vmem:[#allocation3 + $0x630] sm:$0xff]
      %v4376 = vld [vmem:[#allocation3 + $0x638] sm:$0xff]
      %v4377 = vld [vmem:[#allocation3 + $0x640] sm:$0xff]
      %v4378 = vld [vmem:[#allocation3 + $0x648] sm:$0xff]
      %v4379 = vld [vmem:[#allocation3 + $0x650] sm:$0xff]
      %v4380 = vld [vmem:[#allocation3 + $0x658] sm:$0xff]
      %v4381 = vld [vmem:[#allocation3 + $0x660] sm:$0xff]
      %v4382 = vld [vmem:[#allocation3 + $0x668] sm:$0xff]
      %v4383 = vld [vmem:[#allocation3 + $0x670] sm:$0xff]
      %v4384 = vld [vmem:[#allocation3 + $0x678] sm:$0xff]
      %v4385 = vld [vmem:[#allocation3 + $0x680] sm:$0xff]
      %v4386 = vld [vmem:[#allocation3 + $0x688] sm:$0xff]
      %v4387 = vld [vmem:[#allocation3 + $0x690] sm:$0xff]
      %v4388 = vld [vmem:[#allocation3 + $0x698] sm:$0xff]
      %v4389 = vld [vmem:[#allocation3 + $0x6a0] sm:$0xff]
      %v4390 = vld [vmem:[#allocation3 + $0x6a8] sm:$0xff]
      %v4391 = vld [vmem:[#allocation3 + $0x6b0] sm:$0xff]
      %v4392 = vld [vmem:[#allocation3 + $0x6b8] sm:$0xff]
      %v4394 = vsel %vm1847, %v4167, 0
      %v4397 = vsel %vm1847, %v4170, 0
      %v4400 = vsel %vm1847, %v4173, 0
      %v4403 = vsel %vm1847, %v4176, 0
      %4405 = vmatprep.subr.mxu0 %v4178
      %4406 = vmatpush1.msra.mxu0 %v4177
      %4407 = vmatprep.subr.mxu0 %v4184
      %4408 = vmatpush1.msra.mxu0 %v4183
      %4409 = vmatprep.subr.mxu0 %v4190
      %4410 = vmatpush1.msra.mxu0 %v4189
      %4411 = vmatprep.subr.mxu0 %v4196
      %4412 = vmatpush1.msra.mxu0 %v4195
      %4413 = vmatprep.subr.mxu0 %v4202
      %4414 = vmatpush1.msra.mxu0 %v4201
      %4415 = vmatprep.subr.mxu0 %v4208
      %4416 = vmatpush1.msra.mxu0 %v4207
      %4417 = vmatprep.subr.mxu0 %v4214
      %4418 = vmatpush1.msra.mxu0 %v4213
      %4419 = vmatprep.subr.mxu0 %v4220
      %4420 = vmatpush1.msra.mxu0 %v4219
      %4421 = vmatprep.subr.mxu0 %v4226
      %4422 = vmatpush1.msra.mxu0 %v4225
      %4423 = vmatprep.subr.mxu0 %v4232
      %4424 = vmatpush1.msra.mxu0 %v4231
      %4425 = vmatprep.subr.mxu0 %v4238
      %4426 = vmatpush1.msra.mxu0 %v4237
      %4427 = vmatprep.subr.mxu0 %v4244
      %4428 = vmatpush1.msra.mxu0 %v4243
      %4429 = vmatprep.subr.mxu0 %v4250
      %4430 = vmatpush1.msra.mxu0 %v4249
      %4431 = vmatprep.subr.mxu0 %v4256
      %4432 = vmatpush1.msra.mxu0 %v4255
      %4433 = vmatprep.subr.mxu0 %v4262
      %4434 = vmatpush1.msra.mxu0 %v4261
      %4435 = vmatprep.subr.mxu0 %v4268
      %4436 = vmatpush1.msra.mxu0 %v4267
      %4437 = vmatprep.subr.mxu0 %v4274
      %4438 = vmatpush1.msra.mxu0 %v4273
      %4439 = vmatprep.subr.mxu0 %v4280
      %4440 = vmatpush1.msra.mxu0 %v4279
      %4441 = vmatprep.subr.mxu0 %v4286
      %4442 = vmatpush1.msra.mxu0 %v4285
      %4443 = vmatprep.subr.mxu0 %v4292
      %4444 = vmatpush1.msra.mxu0 %v4291
      %4445 = vmatprep.subr.mxu0 %v4298
      %4446 = vmatpush1.msra.mxu0 %v4297
      %4447 = vmatprep.subr.mxu0 %v4304
      %4448 = vmatpush1.msra.mxu0 %v4303
      %4449 = vmatprep.subr.mxu0 %v4310
      %4450 = vmatpush1.msra.mxu0 %v4309
      %4451 = vmatprep.subr.mxu0 %v4316
      %4452 = vmatpush1.msra.mxu0 %v4315
      %4453 = vmatprep.subr.mxu0 %v4322
      %4454 = vmatpush1.msra.mxu0 %v4321
      %4455 = vmatprep.subr.mxu0 %v4328
      %4456 = vmatpush1.msra.mxu0 %v4327
      %4457 = vmatprep.subr.mxu0 %v4334
      %4458 = vmatpush1.msra.mxu0 %v4333
      %4459 = vmatprep.subr.mxu0 %v4340
      %4460 = vmatpush1.msra.mxu0 %v4339
      %4461 = vmatprep.subr.mxu0 %v4346
      %4462 = vmatpush1.msra.mxu0 %v4345
      %4463 = vmatprep.subr.mxu0 %v4352
      %4464 = vmatpush1.msra.mxu0 %v4351
      %4465 = vmatprep.subr.mxu0 %v4358
      %4466 = vmatpush1.msra.mxu0 %v4357
      %4467 = vmatprep.subr.mxu0 %v4364
      %4468 = vmatpush1.msra.mxu0 %v4363
      %4469 = vmatprep.mubr.f32.mxu0 %v4166
      %4470 = vmatmul.mubr.f32.gmra.mrb[0].mxu0 %v4165
      %v4471 = vpop.f32.mrb[0].mxu0
      %v4472 = vadd.f32 0.0, %v4471
      %v4473 = vpop.f32.mrb[0].mxu0
      %v4474 = vadd.f32 0.0, %v4473
      %4475 = vmatprep.mubr.f32.mxu0 %v4169
      %4476 = vmatmul.mubr.f32.gmra.mrb[0].mxu0 %v4168
      %v4477 = vpop.f32.mrb[0].mxu0
      %v4478 = vadd.f32 0.0, %v4477
      %v4479 = vpop.f32.mrb[0].mxu0
      %v4480 = vadd.f32 0.0, %v4479
      %4481 = vmatprep.mubr.f32.mxu0 %v4172
      %4482 = vmatmul.mubr.f32.gmra.mrb[0].mxu0 %v4171
      %v4483 = vpop.f32.mrb[0].mxu0
      %v4484 = vadd.f32 0.0, %v4483
      %v4485 = vpop.f32.mrb[0].mxu0
      %v4486 = vadd.f32 0.0, %v4485
      %4487 = vmatprep.mubr.f32.mxu0 %v4175
      %4488 = vmatmul.mubr.f32.gmra.mrb[0].mxu0 %v4174
      %v4489 = vpop.f32.mrb[0].mxu0
      %v4490 = vadd.f32 0.0, %v4489
      %v4491 = vpop.f32.mrb[0].mxu0
      %v4492 = vadd.f32 0.0, %v4491
      %4493 = vdwg.mxu0
      %4494 = vmatprep.subr.mxu0 %v4370
      %4495 = vmatpush1.msra.mxu0 %v4369
      %4496 = vmatprep.subr.mxu0 %v4376
      %4497 = vmatpush1.msra.mxu0 %v4375
      %4498 = vmatprep.subr.mxu0 %v4382
      %4499 = vmatpush1.msra.mxu0 %v4381
      %4500 = vmatprep.subr.mxu0 %v4388
      %4501 = vmatpush1.msra.mxu0 %v4387
      %4502 = vmatprep.subr.mxu0 0.0
      %4503 = vmatpush1.msra.mxu0 0.0
      %4504 = vmatprep.subr.mxu0 0.0
      %4505 = vmatpush1.msra.mxu0 0.0
      %4506 = vmatprep.subr.mxu0 0.0
      %4507 = vmatpush1.msra.mxu0 0.0
      %4508 = vmatprep.subr.mxu0 0.0
      %4509 = vmatpush1.msra.mxu0 0.0
      %4510 = vmatprep.subr.mxu0 0.0
      %4511 = vmatpush1.msra.mxu0 0.0
      %4512 = vmatprep.subr.mxu0 0.0
      %4513 = vmatpush1.msra.mxu0 0.0
      %4514 = vmatprep.subr.mxu0 0.0
      %4515 = vmatpush1.msra.mxu0 0.0
      %4516 = vmatprep.subr.mxu0 0.0
      %4517 = vmatpush1.msra.mxu0 0.0
      %4518 = vmatprep.subr.mxu0 0.0
      %4519 = vmatpush1.msra.mxu0 0.0
      %4520 = vmatprep.subr.mxu0 0.0
      %4521 = vmatpush1.msra.mxu0 0.0
      %4522 = vmatprep.subr.mxu0 0.0
      %4523 = vmatpush1.msra.mxu0 0.0
      %4524 = vmatprep.subr.mxu0 0.0
      %4525 = vmatpush1.msra.mxu0 0.0
      %4526 = vmatprep.subr.mxu0 0.0
      %4527 = vmatpush1.msra.mxu0 0.0
      %4528 = vmatprep.subr.mxu0 0.0
      %4529 = vmatpush1.msra.mxu0 0.0
      %4530 = vmatprep.subr.mxu0 0.0
      %4531 = vmatpush1.msra.mxu0 0.0
      %4532 = vmatprep.subr.mxu0 0.0
      %4533 = vmatpush1.msra.mxu0 0.0
      %4534 = vmatprep.subr.mxu0 0.0
      %4535 = vmatpush1.msra.mxu0 0.0
      %4536 = vmatprep.subr.mxu0 0.0
      %4537 = vmatpush1.msra.mxu0 0.0
      %4538 = vmatprep.subr.mxu0 0.0
      %4539 = vmatpush1.msra.mxu0 0.0
      %4540 = vmatprep.subr.mxu0 0.0
      %4541 = vmatpush1.msra.mxu0 0.0
      %4542 = vmatprep.subr.mxu0 0.0
      %4543 = vmatpush1.msra.mxu0 0.0
      %4544 = vmatprep.subr.mxu0 0.0
      %4545 = vmatpush1.msra.mxu0 0.0
      %4546 = vmatprep.subr.mxu0 0.0
      %4547 = vmatpush1.msra.mxu0 0.0
      %4548 = vmatprep.subr.mxu0 0.0
      %4549 = vmatpush1.msra.mxu0 0.0
      %4550 = vmatprep.subr.mxu0 0.0
      %4551 = vmatpush1.msra.mxu0 0.0
      %4552 = vmatprep.subr.mxu0 0.0
      %4553 = vmatpush1.msra.mxu0 0.0
      %4554 = vmatprep.subr.mxu0 0.0
      %4555 = vmatpush1.msra.mxu0 0.0
      %4556 = vmatprep.subr.mxu0 0.0
      %4557 = vmatpush1.msra.mxu0 0.0
      %4558 = vmatprep.mubr.f32.mxu0 0.0
      %4559 = vmatmul.mubr.f32.gmra.mrb[0].mxu0 %v4394
      %v4560 = vpop.f32.mrb[0].mxu0
      %v4561 = vadd.f32 %v4472, %v4560
      %v4562 = vpop.f32.mrb[0].mxu0
      %v4563 = vadd.f32 %v4474, %v4562
      %4564 = vmatprep.mubr.f32.mxu0 0.0
      %4565 = vmatmul.mubr.f32.gmra.mrb[0].mxu0 %v4397
      %v4566 = vpop.f32.mrb[0].mxu0
      %v4567 = vadd.f32 %v4478, %v4566
      %v4568 = vpop.f32.mrb[0].mxu0
      %v4569 = vadd.f32 %v4480, %v4568
      %4570 = vmatprep.mubr.f32.mxu0 0.0
      %4571 = vmatmul.mubr.f32.gmra.mrb[0].mxu0 %v4400
      %v4572 = vpop.f32.mrb[0].mxu0
      %v4573 = vadd.f32 %v4484, %v4572
      %v4574 = vpop.f32.mrb[0].mxu0
      %v4575 = vadd.f32 %v4486, %v4574
      %4576 = vmatprep.mubr.f32.mxu0 0.0
      %4577 = vmatmul.mubr.f32.gmra.mrb[0].mxu0 %v4403
      %v4578 = vpop.f32.mrb[0].mxu0
      %v4579 = vadd.f32 %v4490, %v4578
      %v4580 = vpop.f32.mrb[0].mxu0
      %v4581 = vadd.f32 %v4492, %v4580
      %4582 = vdwg.mxu0
      %4583 = vmatprep.subr.mxu0 %v4180
      %4584 = vmatpush1.msra.mxu0 %v4179
      %4585 = vmatprep.subr.mxu0 %v4186
      %4586 = vmatpush1.msra.mxu0 %v4185
      %4587 = vmatprep.subr.mxu0 %v4192
      %4588 = vmatpush1.msra.mxu0 %v4191
      %4589 = vmatprep.subr.mxu0 %v4198
      %4590 = vmatpush1.msra.mxu0 %v4197
      %4591 = vmatprep.subr.mxu0 %v4204
      %4592 = vmatpush1.msra.mxu0 %v4203
      %4593 = vmatprep.subr.mxu0 %v4210
      %4594 = vmatpush1.msra.mxu0 %v4209
      %4595 = vmatprep.subr.mxu0 %v4216
      %4596 = vmatpush1.msra.mxu0 %v4215
      %4597 = vmatprep.subr.mxu0 %v4222
      %4598 = vmatpush1.msra.mxu0 %v4221
      %4599 = vmatprep.subr.mxu0 %v4228
      %4600 = vmatpush1.msra.mxu0 %v4227
      %4601 = vmatprep.subr.mxu0 %v4234
      %4602 = vmatpush1.msra.mxu0 %v4233
      %4603 = vmatprep.subr.mxu0 %v4240
      %4604 = vmatpush1.msra.mxu0 %v4239
      %4605 = vmatprep.subr.mxu0 %v4246
      %4606 = vmatpush1.msra.mxu0 %v4245
      %4607 = vmatprep.subr.mxu0 %v4252
      %4608 = vmatpush1.msra.mxu0 %v4251
      %4609 = vmatprep.subr.mxu0 %v4258
      %4610 = vmatpush1.msra.mxu0 %v4257
      %4611 = vmatprep.subr.mxu0 %v4264
      %4612 = vmatpush1.msra.mxu0 %v4263
      %4613 = vmatprep.subr.mxu0 %v4270
      %4614 = vmatpush1.msra.mxu0 %v4269
      %4615 = vmatprep.subr.mxu0 %v4276
      %4616 = vmatpush1.msra.mxu0 %v4275
      %4617 = vmatprep.subr.mxu0 %v4282
      %4618 = vmatpush1.msra.mxu0 %v4281
      %4619 = vmatprep.subr.mxu0 %v4288
      %4620 = vmatpush1.msra.mxu0 %v4287
      %4621 = vmatprep.subr.mxu0 %v4294
      %4622 = vmatpush1.msra.mxu0 %v4293
      %4623 = vmatprep.subr.mxu0 %v4300
      %4624 = vmatpush1.msra.mxu0 %v4299
      %4625 = vmatprep.subr.mxu0 %v4306
      %4626 = vmatpush1.msra.mxu0 %v4305
      %4627 = vmatprep.subr.mxu0 %v4312
      %4628 = vmatpush1.msra.mxu0 %v4311
      %4629 = vmatprep.subr.mxu0 %v4318
      %4630 = vmatpush1.msra.mxu0 %v4317
      %4631 = vmatprep.subr.mxu0 %v4324
      %4632 = vmatpush1.msra.mxu0 %v4323
      %4633 = vmatprep.subr.mxu0 %v4330
      %4634 = vmatpush1.msra.mxu0 %v4329
      %4635 = vmatprep.subr.mxu0 %v4336
      %4636 = vmatpush1.msra.mxu0 %v4335
      %4637 = vmatprep.subr.mxu0 %v4342
      %4638 = vmatpush1.msra.mxu0 %v4341
      %4639 = vmatprep.subr.mxu0 %v4348
      %4640 = vmatpush1.msra.mxu0 %v4347
      %4641 = vmatprep.subr.mxu0 %v4354
      %4642 = vmatpush1.msra.mxu0 %v4353
      %4643 = vmatprep.subr.mxu0 %v4360
      %4644 = vmatpush1.msra.mxu0 %v4359
      %4645 = vmatprep.subr.mxu0 %v4366
      %4646 = vmatpush1.msra.mxu0 %v4365
      %4647 = vmatprep.mubr.f32.mxu0 %v4166
      %4648 = vmatmul.mubr.f32.gmra.mrb[0].mxu0 %v4165
      %v4649 = vpop.f32.mrb[0].mxu0
      %v4650 = vadd.f32 0.0, %v4649
      %v4651 = vpop.f32.mrb[0].mxu0
      %v4652 = vadd.f32 0.0, %v4651
      %4653 = vmatprep.mubr.f32.mxu0 %v4169
      %4654 = vmatmul.mubr.f32.gmra.mrb[0].mxu0 %v4168
      %v4655 = vpop.f32.mrb[0].mxu0
      %v4656 = vadd.f32 0.0, %v4655
      %v4657 = vpop.f32.mrb[0].mxu0
      %v4658 = vadd.f32 0.0, %v4657
      %4659 = vmatprep.mubr.f32.mxu0 %v4172
      %4660 = vmatmul.mubr.f32.gmra.mrb[0].mxu0 %v4171
      %v4661 = vpop.f32.mrb[0].mxu0
      %v4662 = vadd.f32 0.0, %v4661
      %v4663 = vpop.f32.mrb[0].mxu0
      %v4664 = vadd.f32 0.0, %v4663
      %4665 = vmatprep.mubr.f32.mxu0 %v4175
      %4666 = vmatmul.mubr.f32.gmra.mrb[0].mxu0 %v4174
      %v4667 = vpop.f32.mrb[0].mxu0
      %v4668 = vadd.f32 0.0, %v4667
      %v4669 = vpop.f32.mrb[0].mxu0
      %v4670 = vadd.f32 0.0, %v4669
      %4671 = vdwg.mxu0
      %4672 = vmatprep.subr.mxu0 %v4372
      %4673 = vmatpush1.msra.mxu0 %v4371
      %4674 = vmatprep.subr.mxu0 %v4378
      %4675 = vmatpush1.msra.mxu0 %v4377
      %4676 = vmatprep.subr.mxu0 %v4384
      %4677 = vmatpush1.msra.mxu0 %v4383
      %4678 = vmatprep.subr.mxu0 %v4390
      %4679 = vmatpush1.msra.mxu0 %v4389
      %4680 = vmatprep.subr.mxu0 0.0
      %4681 = vmatpush1.msra.mxu0 0.0
      %4682 = vmatprep.subr.mxu0 0.0
      %4683 = vmatpush1.msra.mxu0 0.0
      %4684 = vmatprep.subr.mxu0 0.0
      %4685 = vmatpush1.msra.mxu0 0.0
      %4686 = vmatprep.subr.mxu0 0.0
      %4687 = vmatpush1.msra.mxu0 0.0
      %4688 = vmatprep.subr.mxu0 0.0
      %4689 = vmatpush1.msra.mxu0 0.0
      %4690 = vmatprep.subr.mxu0 0.0
      %4691 = vmatpush1.msra.mxu0 0.0
      %4692 = vmatprep.subr.mxu0 0.0
      %4693 = vmatpush1.msra.mxu0 0.0
      %4694 = vmatprep.subr.mxu0 0.0
      %4695 = vmatpush1.msra.mxu0 0.0
      %4696 = vmatprep.subr.mxu0 0.0
      %4697 = vmatpush1.msra.mxu0 0.0
      %4698 = vmatprep.subr.mxu0 0.0
      %4699 = vmatpush1.msra.mxu0 0.0
      %4700 = vmatprep.subr.mxu0 0.0
      %4701 = vmatpush1.msra.mxu0 0.0
      %4702 = vmatprep.subr.mxu0 0.0
      %4703 = vmatpush1.msra.mxu0 0.0
      %4704 = vmatprep.subr.mxu0 0.0
      %4705 = vmatpush1.msra.mxu0 0.0
      %4706 = vmatprep.subr.mxu0 0.0
      %4707 = vmatpush1.msra.mxu0 0.0
      %4708 = vmatprep.subr.mxu0 0.0
      %4709 = vmatpush1.msra.mxu0 0.0
      %4710 = vmatprep.subr.mxu0 0.0
      %4711 = vmatpush1.msra.mxu0 0.0
      %4712 = vmatprep.subr.mxu0 0.0
      %4713 = vmatpush1.msra.mxu0 0.0
      %4714 = vmatprep.subr.mxu0 0.0
      %4715 = vmatpush1.msra.mxu0 0.0
      %4716 = vmatprep.subr.mxu0 0.0
      %4717 = vmatpush1.msra.mxu0 0.0
      %4718 = vmatprep.subr.mxu0 0.0
      %4719 = vmatpush1.msra.mxu0 0.0
      %4720 = vmatprep.subr.mxu0 0.0
      %4721 = vmatpush1.msra.mxu0 0.0
      %4722 = vmatprep.subr.mxu0 0.0
      %4723 = vmatpush1.msra.mxu0 0.0
      %4724 = vmatprep.subr.mxu0 0.0
      %4725 = vmatpush1.msra.mxu0 0.0
      %4726 = vmatprep.subr.mxu0 0.0
      %4727 = vmatpush1.msra.mxu0 0.0
      %4728 = vmatprep.subr.mxu0 0.0
      %4729 = vmatpush1.msra.mxu0 0.0
      %4730 = vmatprep.subr.mxu0 0.0
      %4731 = vmatpush1.msra.mxu0 0.0
      %4732 = vmatprep.subr.mxu0 0.0
      %4733 = vmatpush1.msra.mxu0 0.0
      %4734 = vmatprep.subr.mxu0 0.0
      %4735 = vmatpush1.msra.mxu0 0.0
      %4736 = vmatprep.mubr.f32.mxu0 0.0
      %4737 = vmatmul.mubr.f32.gmra.mrb[0].mxu0 %v4394
      %v4738 = vpop.f32.mrb[0].mxu0
      %v4739 = vadd.f32 %v4650, %v4738
      %v4740 = vpop.f32.mrb[0].mxu0
      %v4741 = vadd.f32 %v4652, %v4740
      %4742 = vmatprep.mubr.f32.mxu0 0.0
      %4743 = vmatmul.mubr.f32.gmra.mrb[0].mxu0 %v4397
      %v4744 = vpop.f32.mrb[0].mxu0
      %v4745 = vadd.f32 %v4656, %v4744
      %v4746 = vpop.f32.mrb[0].mxu0
      %v4747 = vadd.f32 %v4658, %v4746
      %4748 = vmatprep.mubr.f32.mxu0 0.0
      %4749 = vmatmul.mubr.f32.gmra.mrb[0].mxu0 %v4400
      %v4750 = vpop.f32.mrb[0].mxu0
      %v4751 = vadd.f32 %v4662, %v4750
      %v4752 = vpop.f32.mrb[0].mxu0
      %v4753 = vadd.f32 %v4664, %v4752
      %4754 = vmatprep.mubr.f32.mxu0 0.0
      %4755 = vmatmul.mubr.f32.gmra.mrb[0].mxu0 %v4403
      %v4756 = vpop.f32.mrb[0].mxu0
      %v4757 = vadd.f32 %v4668, %v4756
      %v4758 = vpop.f32.mrb[0].mxu0
      %v4759 = vadd.f32 %v4670, %v4758
      %4760 = vdwg.mxu0
      %4761 = vmatprep.subr.mxu0 %v4182
      %4762 = vmatpush1.msra.mxu0 %v4181
      %4763 = vmatprep.subr.mxu0 %v4188
      %4764 = vmatpush1.msra.mxu0 %v4187
      %4765 = vmatprep.subr.mxu0 %v4194
      %4766 = vmatpush1.msra.mxu0 %v4193
      %4767 = vmatprep.subr.mxu0 %v4200
      %4768 = vmatpush1.msra.mxu0 %v4199
      %4769 = vmatprep.subr.mxu0 %v4206
      %4770 = vmatpush1.msra.mxu0 %v4205
      %4771 = vmatprep.subr.mxu0 %v4212
      %4772 = vmatpush1.msra.mxu0 %v4211
      %4773 = vmatprep.subr.mxu0 %v4218
      %4774 = vmatpush1.msra.mxu0 %v4217
      %4775 = vmatprep.subr.mxu0 %v4224
      %4776 = vmatpush1.msra.mxu0 %v4223
      %4777 = vmatprep.subr.mxu0 %v4230
      %4778 = vmatpush1.msra.mxu0 %v4229
      %4779 = vmatprep.subr.mxu0 %v4236
      %4780 = vmatpush1.msra.mxu0 %v4235
      %4781 = vmatprep.subr.mxu0 %v4242
      %4782 = vmatpush1.msra.mxu0 %v4241
      %4783 = vmatprep.subr.mxu0 %v4248
      %4784 = vmatpush1.msra.mxu0 %v4247
      %4785 = vmatprep.subr.mxu0 %v4254
      %4786 = vmatpush1.msra.mxu0 %v4253
      %4787 = vmatprep.subr.mxu0 %v4260
      %4788 = vmatpush1.msra.mxu0 %v4259
      %4789 = vmatprep.subr.mxu0 %v4266
      %4790 = vmatpush1.msra.mxu0 %v4265
      %4791 = vmatprep.subr.mxu0 %v4272
      %4792 = vmatpush1.msra.mxu0 %v4271
      %4793 = vmatprep.subr.mxu0 %v4278
      %4794 = vmatpush1.msra.mxu0 %v4277
      %4795 = vmatprep.subr.mxu0 %v4284
      %4796 = vmatpush1.msra.mxu0 %v4283
      %4797 = vmatprep.subr.mxu0 %v4290
      %4798 = vmatpush1.msra.mxu0 %v4289
      %4799 = vmatprep.subr.mxu0 %v4296
      %4800 = vmatpush1.msra.mxu0 %v4295
      %4801 = vmatprep.subr.mxu0 %v4302
      %4802 = vmatpush1.msra.mxu0 %v4301
      %4803 = vmatprep.subr.mxu0 %v4308
      %4804 = vmatpush1.msra.mxu0 %v4307
      %4805 = vmatprep.subr.mxu0 %v4314
      %4806 = vmatpush1.msra.mxu0 %v4313
      %4807 = vmatprep.subr.mxu0 %v4320
      %4808 = vmatpush1.msra.mxu0 %v4319
      %4809 = vmatprep.subr.mxu0 %v4326
      %4810 = vmatpush1.msra.mxu0 %v4325
      %4811 = vmatprep.subr.mxu0 %v4332
      %4812 = vmatpush1.msra.mxu0 %v4331
      %4813 = vmatprep.subr.mxu0 %v4338
      %4814 = vmatpush1.msra.mxu0 %v4337
      %4815 = vmatprep.subr.mxu0 %v4344
      %4816 = vmatpush1.msra.mxu0 %v4343
      %4817 = vmatprep.subr.mxu0 %v4350
      %4818 = vmatpush1.msra.mxu0 %v4349
      %4819 = vmatprep.subr.mxu0 %v4356
      %4820 = vmatpush1.msra.mxu0 %v4355
      %4821 = vmatprep.subr.mxu0 %v4362
      %4822 = vmatpush1.msra.mxu0 %v4361
      %4823 = vmatprep.subr.mxu0 %v4368
      %4824 = vmatpush1.msra.mxu0 %v4367
      %4825 = vmatprep.mubr.f32.mxu0 %v4166
      %4826 = vmatmul.mubr.f32.gmra.mrb[0].mxu0 %v4165
      %v4827 = vpop.f32.mrb[0].mxu0
      %v4828 = vadd.f32 0.0, %v4827
      %v4829 = vpop.f32.mrb[0].mxu0
      %v4830 = vadd.f32 0.0, %v4829
      %4831 = vmatprep.mubr.f32.mxu0 %v4169
      %4832 = vmatmul.mubr.f32.gmra.mrb[0].mxu0 %v4168
      %v4833 = vpop.f32.mrb[0].mxu0
      %v4834 = vadd.f32 0.0, %v4833
      %v4835 = vpop.f32.mrb[0].mxu0
      %v4836 = vadd.f32 0.0, %v4835
      %4837 = vmatprep.mubr.f32.mxu0 %v4172
      %4838 = vmatmul.mubr.f32.gmra.mrb[0].mxu0 %v4171
      %v4839 = vpop.f32.mrb[0].mxu0
      %v4840 = vadd.f32 0.0, %v4839
      %v4841 = vpop.f32.mrb[0].mxu0
      %v4842 = vadd.f32 0.0, %v4841
      %4843 = vmatprep.mubr.f32.mxu0 %v4175
      %4844 = vmatmul.mubr.f32.gmra.mrb[0].mxu0 %v4174
      %v4845 = vpop.f32.mrb[0].mxu0
      %v4846 = vadd.f32 0.0, %v4845
      %v4847 = vpop.f32.mrb[0].mxu0
      %v4848 = vadd.f32 0.0, %v4847
      %4849 = vdwg.mxu0
      %4850 = vmatprep.subr.mxu0 %v4374
      %4851 = vmatpush1.msra.mxu0 %v4373
      %4852 = vmatprep.subr.mxu0 %v4380
      %4853 = vmatpush1.msra.mxu0 %v4379
      %4854 = vmatprep.subr.mxu0 %v4386
      %4855 = vmatpush1.msra.mxu0 %v4385
      %4856 = vmatprep.subr.mxu0 %v4392
      %4857 = vmatpush1.msra.mxu0 %v4391
      %4858 = vmatprep.subr.mxu0 0.0
      %4859 = vmatpush1.msra.mxu0 0.0
      %4860 = vmatprep.subr.mxu0 0.0
      %4861 = vmatpush1.msra.mxu0 0.0
      %4862 = vmatprep.subr.mxu0 0.0
      %4863 = vmatpush1.msra.mxu0 0.0
      %4864 = vmatprep.subr.mxu0 0.0
      %4865 = vmatpush1.msra.mxu0 0.0
      %4866 = vmatprep.subr.mxu0 0.0
      %4867 = vmatpush1.msra.mxu0 0.0
      %4868 = vmatprep.subr.mxu0 0.0
      %4869 = vmatpush1.msra.mxu0 0.0
      %4870 = vmatprep.subr.mxu0 0.0
      %4871 = vmatpush1.msra.mxu0 0.0
      %4872 = vmatprep.subr.mxu0 0.0
      %4873 = vmatpush1.msra.mxu0 0.0
      %4874 = vmatprep.subr.mxu0 0.0
      %4875 = vmatpush1.msra.mxu0 0.0
      %4876 = vmatprep.subr.mxu0 0.0
      %4877 = vmatpush1.msra.mxu0 0.0
      %4878 = vmatprep.subr.mxu0 0.0
      %4879 = vmatpush1.msra.mxu0 0.0
      %4880 = vmatprep.subr.mxu0 0.0
      %4881 = vmatpush1.msra.mxu0 0.0
      %4882 = vmatprep.subr.mxu0 0.0
      %4883 = vmatpush1.msra.mxu0 0.0
      %4884 = vmatprep.subr.mxu0 0.0
      %4885 = vmatpush1.msra.mxu0 0.0
      %4886 = vmatprep.subr.mxu0 0.0
      %4887 = vmatpush1.msra.mxu0 0.0
      %4888 = vmatprep.subr.mxu0 0.0
      %4889 = vmatpush1.msra.mxu0 0.0
      %4890 = vmatprep.subr.mxu0 0.0
      %4891 = vmatpush1.msra.mxu0 0.0
      %4892 = vmatprep.subr.mxu0 0.0
      %4893 = vmatpush1.msra.mxu0 0.0
      %4894 = vmatprep.subr.mxu0 0.0
      %4895 = vmatpush1.msra.mxu0 0.0
      %4896 = vmatprep.subr.mxu0 0.0
      %4897 = vmatpush1.msra.mxu0 0.0
      %4898 = vmatprep.subr.mxu0 0.0
      %4899 = vmatpush1.msra.mxu0 0.0
      %4900 = vmatprep.subr.mxu0 0.0
      %4901 = vmatpush1.msra.mxu0 0.0
      %4902 = vmatprep.subr.mxu0 0.0
      %4903 = vmatpush1.msra.mxu0 0.0
      %4904 = vmatprep.subr.mxu0 0.0
      %4905 = vmatpush1.msra.mxu0 0.0
      %4906 = vmatprep.subr.mxu0 0.0
      %4907 = vmatpush1.msra.mxu0 0.0
      %4908 = vmatprep.subr.mxu0 0.0
      %4909 = vmatpush1.msra.mxu0 0.0
      %4910 = vmatprep.subr.mxu0 0.0
      %4911 = vmatpush1.msra.mxu0 0.0
      %4912 = vmatprep.subr.mxu0 0.0
      %4913 = vmatpush1.msra.mxu0 0.0
      %4914 = vmatprep.mubr.f32.mxu0 0.0
      %4915 = vmatmul.mubr.f32.gmra.mrb[0].mxu0 %v4394
      %v4916 = vpop.f32.mrb[0].mxu0
      %v4917 = vadd.f32 %v4828, %v4916
      %v4918 = vpop.f32.mrb[0].mxu0
      %v4919 = vadd.f32 %v4830, %v4918
      %4920 = vmatprep.mubr.f32.mxu0 0.0
      %4921 = vmatmul.mubr.f32.gmra.mrb[0].mxu0 %v4397
      %v4922 = vpop.f32.mrb[0].mxu0
      %v4923 = vadd.f32 %v4834, %v4922
      %v4924 = vpop.f32.mrb[0].mxu0
      %v4925 = vadd.f32 %v4836, %v4924
      %4926 = vmatprep.mubr.f32.mxu0 0.0
      %4927 = vmatmul.mubr.f32.gmra.mrb[0].mxu0 %v4400
      %v4928 = vpop.f32.mrb[0].mxu0
      %v4929 = vadd.f32 %v4840, %v4928
      %v4930 = vpop.f32.mrb[0].mxu0
      %v4931 = vadd.f32 %v4842, %v4930
      %4932 = vmatprep.mubr.f32.mxu0 0.0
      %4933 = vmatmul.mubr.f32.gmra.mrb[0].mxu0 %v4403
      %v4934 = vpop.f32.mrb[0].mxu0
      %v4935 = vadd.f32 %v4846, %v4934
      %v4936 = vpop.f32.mrb[0].mxu0
      %v4937 = vadd.f32 %v4848, %v4936
      %4938 = vdwg.mxu0
      %v4939 = vmul.f32 %v4561, %v2398
      %v4940 = vmul.f32 %v4563, %v2402
      %v4941 = vmul.f32 %v4739, %v2406
      %v4942 = vmul.f32 %v4741, %v2410
      %v4943 = vmul.f32 %v4917, %v2414
      %v4944 = vmul.f32 %v4919, %v2418
      %v4945 = vmul.f32 %v4567, %v2398
      %v4946 = vmul.f32 %v4569, %v2402
      %v4947 = vmul.f32 %v4745, %v2406
      %v4948 = vmul.f32 %v4747, %v2410
      %v4949 = vmul.f32 %v4923, %v2414
      %v4950 = vmul.f32 %v4925, %v2418
      %v4951 = vmul.f32 %v4573, %v2398
      %v4952 = vmul.f32 %v4575, %v2402
      %v4953 = vmul.f32 %v4751, %v2406
      %v4954 = vmul.f32 %v4753, %v2410
      %v4955 = vmul.f32 %v4929, %v2414
      %v4956 = vmul.f32 %v4931, %v2418
      %v4957 = vmul.f32 %v4579, %v2398
      %v4958 = vmul.f32 %v4581, %v2402
      %v4959 = vmul.f32 %v4757, %v2406
      %v4960 = vmul.f32 %v4759, %v2410
      %v4961 = vmul.f32 %v4935, %v2414
      %v4962 = vmul.f32 %v4937, %v2418
      %v4963 = vadd.f32 %v4939, %v4940
      %v4964 = vadd.f32 %v4963, %v4941
      %v4965 = vadd.f32 %v4964, %v4942
      %v4966 = vadd.f32 %v4965, %v4943
      %v4967 = vsel %vm276, %v4944, 0.0
      %v4968 = vadd.f32 %v4966, %v4967
      %4969 = vadd.xlane.f32.xlu0 %v4968
      %v4970 = vpop.xlane.xlu0 %4969
      %v4971 = vadd.f32 %v4945, %v4946
      %v4972 = vadd.f32 %v4971, %v4947
      %v4973 = vadd.f32 %v4972, %v4948
      %v4974 = vadd.f32 %v4973, %v4949
      %v4975 = vsel %vm276, %v4950, 0.0
      %v4976 = vadd.f32 %v4974, %v4975
      %4977 = vadd.xlane.f32.xlu0 %v4976
      %v4978 = vpop.xlane.xlu0 %4977
      %v4979 = vadd.f32 %v4951, %v4952
      %v4980 = vadd.f32 %v4979, %v4953
      %v4981 = vadd.f32 %v4980, %v4954
      %v4982 = vadd.f32 %v4981, %v4955
      %v4983 = vsel %vm276, %v4956, 0.0
      %v4984 = vadd.f32 %v4982, %v4983
      %4985 = vadd.xlane.f32.xlu0 %v4984
      %v4986 = vpop.xlane.xlu0 %4985
      %v4987 = vadd.f32 %v4957, %v4958
      %v4988 = vadd.f32 %v4987, %v4959
      %v4989 = vadd.f32 %v4988, %v4960
      %v4990 = vadd.f32 %v4989, %v4961
      %v4991 = vsel %vm276, %v4962, 0.0
      %v4992 = vadd.f32 %v4990, %v4991
      %4993 = vadd.xlane.f32.xlu0 %v4992
      %v4994 = vpop.xlane.xlu0 %4993
      %v4995 = vmul.f32 %v4939, %v4939
      %v4996 = vmul.f32 %v4940, %v4940
      %v4997 = vmul.f32 %v4941, %v4941
      %v4998 = vmul.f32 %v4942, %v4942
      %v4999 = vmul.f32 %v4943, %v4943
      %v5000 = vmul.f32 %v4944, %v4944
      %v5001 = vmul.f32 %v4945, %v4945
      %v5002 = vmul.f32 %v4946, %v4946
      %v5003 = vmul.f32 %v4947, %v4947
      %v5004 = vmul.f32 %v4948, %v4948
      %v5005 = vmul.f32 %v4949, %v4949
      %v5006 = vmul.f32 %v4950, %v4950
      %v5007 = vmul.f32 %v4951, %v4951
      %v5008 = vmul.f32 %v4952, %v4952
      %v5009 = vmul.f32 %v4953, %v4953
      %v5010 = vmul.f32 %v4954, %v4954
      %v5011 = vmul.f32 %v4955, %v4955
      %v5012 = vmul.f32 %v4956, %v4956
      %v5013 = vmul.f32 %v4957, %v4957
      %v5014 = vmul.f32 %v4958, %v4958
      %v5015 = vmul.f32 %v4959, %v4959
      %v5016 = vmul.f32 %v4960, %v4960
      %v5017 = vmul.f32 %v4961, %v4961
      %v5018 = vmul.f32 %v4962, %v4962
      %v5019 = vadd.f32 %v4995, %v4996
      %v5020 = vadd.f32 %v5019, %v4997
      %v5021 = vadd.f32 %v5020, %v4998
      %v5022 = vadd.f32 %v5021, %v4999
      %v5023 = vsel %vm276, %v5000, 0.0
      %v5024 = vadd.f32 %v5022, %v5023
      %5025 = vadd.xlane.f32.xlu0 %v5024
      %v5026 = vpop.xlane.xlu0 %5025
      %v5027 = vadd.f32 %v5001, %v5002
      %v5028 = vadd.f32 %v5027, %v5003
      %v5029 = vadd.f32 %v5028, %v5004
      %v5030 = vadd.f32 %v5029, %v5005
      %v5031 = vsel %vm276, %v5006, 0.0
      %v5032 = vadd.f32 %v5030, %v5031
      %5033 = vadd.xlane.f32.xlu0 %v5032
      %v5034 = vpop.xlane.xlu0 %5033
      %v5035 = vadd.f32 %v5007, %v5008
      %v5036 = vadd.f32 %v5035, %v5009
      %v5037 = vadd.f32 %v5036, %v5010
      %v5038 = vadd.f32 %v5037, %v5011
      %v5039 = vsel %vm276, %v5012, 0.0
      %v5040 = vadd.f32 %v5038, %v5039
      %5041 = vadd.xlane.f32.xlu0 %v5040
      %v5042 = vpop.xlane.xlu0 %5041
      %v5043 = vadd.f32 %v5013, %v5014
      %v5044 = vadd.f32 %v5043, %v5015
      %v5045 = vadd.f32 %v5044, %v5016
      %v5046 = vadd.f32 %v5045, %v5017
      %v5047 = vsel %vm276, %v5018, 0.0
      %v5048 = vadd.f32 %v5046, %v5047
      %5049 = vadd.xlane.f32.xlu0 %v5048
      %v5050 = vpop.xlane.xlu0 %5049
      %v5051 = vmul.f32 %v4970, 0.001953125
      %v5052 = vmul.f32 %v4978, 0.001953125
      %v5053 = vmul.f32 %v4986, 0.001953125
      %v5054 = vmul.f32 %v4994, 0.001953125
      %v5055 = vmul.f32 %v5026, 0.001953125
      %v5056 = vmul.f32 %v5034, 0.001953125
      %v5057 = vmul.f32 %v5042, 0.001953125
      %v5058 = vmul.f32 %v5050, 0.001953125
      %v5059 = vmul.f32 %v5051, %v5051
      %v5060 = vmul.f32 %v5052, %v5052
      %v5061 = vmul.f32 %v5053, %v5053
      %v5062 = vmul.f32 %v5054, %v5054
      %v5063 = vsub.f32 %v5055, %v5059
      %v5064 = vsub.f32 %v5056, %v5060
      %v5065 = vsub.f32 %v5057, %v5061
      %v5066 = vsub.f32 %v5058, %v5062
      %v5067 = vmax.f32 %v5063, 0.0
      %v5068 = vmax.f32 %v5064, 0.0
      %v5069 = vmax.f32 %v5065, 0.0
      %v5070 = vmax.f32 %v5066, 0.0
      %v5071 = vsub.f32 %v4561, %v5051
      %v5072 = vsub.f32 %v4563, %v5051
      %v5073 = vsub.f32 %v4739, %v5051
      %v5074 = vsub.f32 %v4741, %v5051
      %v5075 = vsub.f32 %v4917, %v5051
      %v5076 = vsub.f32 %v4919, %v5051
      %v5077 = vsub.f32 %v4567, %v5052
      %v5078 = vsub.f32 %v4569, %v5052
      %v5079 = vsub.f32 %v4745, %v5052
      %v5080 = vsub.f32 %v4747, %v5052
      %v5081 = vsub.f32 %v4923, %v5052
      %v5082 = vsub.f32 %v4925, %v5052
      %v5083 = vsub.f32 %v4573, %v5053
      %v5084 = vsub.f32 %v4575, %v5053
      %v5085 = vsub.f32 %v4751, %v5053
      %v5086 = vsub.f32 %v4753, %v5053
      %v5087 = vsub.f32 %v4929, %v5053
      %v5088 = vsub.f32 %v4931, %v5053
      %v5089 = vsub.f32 %v4579, %v5054
      %v5090 = vsub.f32 %v4581, %v5054
      %v5091 = vsub.f32 %v4757, %v5054
      %v5092 = vsub.f32 %v4759, %v5054
      %v5093 = vsub.f32 %v4935, %v5054
      %v5094 = vsub.f32 %v4937, %v5054
      %v5095 = vadd.f32 %v5067, 1e-05
      %v5096 = vadd.f32 %v5068, 1e-05
      %v5097 = vadd.f32 %v5069, 1e-05
      %v5098 = vadd.f32 %v5070, 1e-05
      %v5099 = vrsqrt.pop %v5095
      %v5100 = vrsqrt.pop %v5096
      %v5101 = vrsqrt.pop %v5097
      %v5102 = vrsqrt.pop %v5098
      %v5103 = vmul.f32 %v5071, %v5099
      %v5104 = vmul.f32 %v5072, %v5099
      %v5105 = vmul.f32 %v5073, %v5099
      %v5106 = vmul.f32 %v5074, %v5099
      %v5107 = vmul.f32 %v5075, %v5099
      %v5108 = vmul.f32 %v5076, %v5099
      %v5109 = vmul.f32 %v5077, %v5100
      %v5110 = vmul.f32 %v5078, %v5100
      %v5111 = vmul.f32 %v5079, %v5100
      %v5112 = vmul.f32 %v5080, %v5100
      %v5113 = vmul.f32 %v5081, %v5100
      %v5114 = vmul.f32 %v5082, %v5100
      %v5115 = vmul.f32 %v5083, %v5101
      %v5116 = vmul.f32 %v5084, %v5101
      %v5117 = vmul.f32 %v5085, %v5101
      %v5118 = vmul.f32 %v5086, %v5101
      %v5119 = vmul.f32 %v5087, %v5101
      %v5120 = vmul.f32 %v5088, %v5101
      %v5121 = vmul.f32 %v5089, %v5102
      %v5122 = vmul.f32 %v5090, %v5102
      %v5123 = vmul.f32 %v5091, %v5102
      %v5124 = vmul.f32 %v5092, %v5102
      %v5125 = vmul.f32 %v5093, %v5102
      %v5126 = vmul.f32 %v5094, %v5102
      %v5127 = vmax.f32 %v5103, 0.0
      %v5128 = vmax.f32 %v5104, 0.0
      %v5129 = vmax.f32 %v5105, 0.0
      %v5130 = vmax.f32 %v5106, 0.0
      %v5131 = vmax.f32 %v5107, 0.0
      %v5132 = vmax.f32 %v5108, 0.0
      %v5133 = vmax.f32 %v5109, 0.0
      %v5134 = vmax.f32 %v5110, 0.0
      %v5135 = vmax.f32 %v5111, 0.0
      %v5136 = vmax.f32 %v5112, 0.0
      %v5137 = vmax.f32 %v5113, 0.0
      %v5138 = vmax.f32 %v5114, 0.0
      %v5139 = vmax.f32 %v5115, 0.0
      %v5140 = vmax.f32 %v5116, 0.0
      %v5141 = vmax.f32 %v5117, 0.0
      %v5142 = vmax.f32 %v5118, 0.0
      %v5143 = vmax.f32 %v5119, 0.0
      %v5144 = vmax.f32 %v5120, 0.0
      %v5145 = vmax.f32 %v5121, 0.0
      %v5146 = vmax.f32 %v5122, 0.0
      %v5147 = vmax.f32 %v5123, 0.0
      %v5148 = vmax.f32 %v5124, 0.0
      %v5149 = vmax.f32 %v5125, 0.0
      %v5150 = vmax.f32 %v5126, 0.0
      %v5151 = vmul.f32 %v5127, %v2398
      %v5152 = vmul.f32 %v5128, %v2402
      %v5153 = vmul.f32 %v5129, %v2406
      %v5154 = vmul.f32 %v5130, %v2410
      %v5155 = vmul.f32 %v5131, %v2414
      %v5156 = vmul.f32 %v5132, %v2418
      %v5157 = vmul.f32 %v5133, %v2398
      %v5158 = vmul.f32 %v5134, %v2402
      %v5159 = vmul.f32 %v5135, %v2406
      %v5160 = vmul.f32 %v5136, %v2410
      %v5161 = vmul.f32 %v5137, %v2414
      %v5162 = vmul.f32 %v5138, %v2418
      %v5163 = vmul.f32 %v5139, %v2398
      %v5164 = vmul.f32 %v5140, %v2402
      %v5165 = vmul.f32 %v5141, %v2406
      %v5166 = vmul.f32 %v5142, %v2410
      %v5167 = vmul.f32 %v5143, %v2414
      %v5168 = vmul.f32 %v5144, %v2418
      %v5169 = vmul.f32 %v5145, %v2398
      %v5170 = vmul.f32 %v5146, %v2402
      %v5171 = vmul.f32 %v5147, %v2406
      %v5172 = vmul.f32 %v5148, %v2410
      %v5173 = vmul.f32 %v5149, %v2414
      %v5174 = vmul.f32 %v5150, %v2418
      %v5175 = vadd.f32 %v5151, %v5151
      %v5176 = vadd.f32 %v5152, %v5152
      %v5177 = vadd.f32 %v5153, %v5153
      %v5178 = vadd.f32 %v5154, %v5154
      %v5179 = vadd.f32 %v5155, %v5155
      %v5180 = vadd.f32 %v5156, %v5156
      %v5181 = vadd.f32 %v5157, %v5157
      %v5182 = vadd.f32 %v5158, %v5158
      %v5183 = vadd.f32 %v5159, %v5159
      %v5184 = vadd.f32 %v5160, %v5160
      %v5185 = vadd.f32 %v5161, %v5161
      %v5186 = vadd.f32 %v5162, %v5162
      %v5187 = vadd.f32 %v5163, %v5163
      %v5188 = vadd.f32 %v5164, %v5164
      %v5189 = vadd.f32 %v5165, %v5165
      %v5190 = vadd.f32 %v5166, %v5166
      %v5191 = vadd.f32 %v5167, %v5167
      %v5192 = vadd.f32 %v5168, %v5168
      %v5193 = vadd.f32 %v5169, %v5169
      %v5194 = vadd.f32 %v5170, %v5170
      %v5195 = vadd.f32 %v5171, %v5171
      %v5196 = vadd.f32 %v5172, %v5172
      %v5197 = vadd.f32 %v5173, %v5173
      %v5198 = vadd.f32 %v5174, %v5174
      %v5199 = vadd.f32 %v5175, %v2398
      %v5200 = vadd.f32 %v5176, %v2402
      %v5201 = vadd.f32 %v5177, %v2406
      %v5202 = vadd.f32 %v5178, %v2410
      %v5203 = vadd.f32 %v5179, %v2414
      %v5204 = vadd.f32 %v5180, %v2418
      %v5205 = vadd.f32 %v5181, %v2398
      %v5206 = vadd.f32 %v5182, %v2402
      %v5207 = vadd.f32 %v5183, %v2406
      %v5208 = vadd.f32 %v5184, %v2410
      %v5209 = vadd.f32 %v5185, %v2414
      %v5210 = vadd.f32 %v5186, %v2418
      %v5211 = vadd.f32 %v5187, %v2398
      %v5212 = vadd.f32 %v5188, %v2402
      %v5213 = vadd.f32 %v5189, %v2406
      %v5214 = vadd.f32 %v5190, %v2410
      %v5215 = vadd.f32 %v5191, %v2414
      %v5216 = vadd.f32 %v5192, %v2418
      %v5217 = vadd.f32 %v5193, %v2398
      %v5218 = vadd.f32 %v5194, %v2402
      %v5219 = vadd.f32 %v5195, %v2406
      %v5220 = vadd.f32 %v5196, %v2410
      %v5221 = vadd.f32 %v5197, %v2414
      %v5222 = vadd.f32 %v5198, %v2418
      %s5223 = sadd.s32 %s103, 2
      %5248 = vrot.lane.b32.xlu0 %v5199, 19
      %v5249 = vpop.permute.xlu0 %5248
      %5250 = vrot.lane.b32.xlu0 %v5200, 19
      %v5251 = vpop.permute.xlu0 %5250
      %5252 = vrot.lane.b32.xlu0 %v5201, 19
      %v5253 = vpop.permute.xlu0 %5252
      %5254 = vrot.lane.b32.xlu0 %v5202, 19
      %v5255 = vpop.permute.xlu0 %5254
      %5256 = vrot.lane.b32.xlu0 %v5203, 19
      %v5257 = vpop.permute.xlu0 %5256
      %5258 = vrot.lane.b32.xlu0 %v5204, 19
      %v5259 = vpop.permute.xlu0 %5258
      %5260 = vrot.lane.b32.xlu0 %v5205, 19
      %v5261 = vpop.permute.xlu0 %5260
      %5262 = vrot.lane.b32.xlu0 %v5206, 19
      %v5263 = vpop.permute.xlu0 %5262
      %5264 = vrot.lane.b32.xlu0 %v5207, 19
      %v5265 = vpop.permute.xlu0 %5264
      %5266 = vrot.lane.b32.xlu0 %v5208, 19
      %v5267 = vpop.permute.xlu0 %5266
      %5268 = vrot.lane.b32.xlu0 %v5209, 19
      %v5269 = vpop.permute.xlu0 %5268
      %5270 = vrot.lane.b32.xlu0 %v5210, 19
      %v5271 = vpop.permute.xlu0 %5270
      %5272 = vrot.lane.b32.xlu0 %v5211, 19
      %v5273 = vpop.permute.xlu0 %5272
      %5274 = vrot.lane.b32.xlu0 %v5212, 19
      %v5275 = vpop.permute.xlu0 %5274
      %5276 = vrot.lane.b32.xlu0 %v5213, 19
      %v5277 = vpop.permute.xlu0 %5276
      %5278 = vrot.lane.b32.xlu0 %v5214, 19
      %v5279 = vpop.permute.xlu0 %5278
      %5280 = vrot.lane.b32.xlu0 %v5215, 19
      %v5281 = vpop.permute.xlu0 %5280
      %5282 = vrot.lane.b32.xlu0 %v5216, 19
      %v5283 = vpop.permute.xlu0 %5282
      %5284 = vrot.lane.b32.xlu0 %v5217, 19
      %v5285 = vpop.permute.xlu0 %5284
      %5286 = vrot.lane.b32.xlu0 %v5218, 19
      %v5287 = vpop.permute.xlu0 %5286
      %5288 = vrot.lane.b32.xlu0 %v5219, 19
      %v5289 = vpop.permute.xlu0 %5288
      %5290 = vrot.lane.b32.xlu0 %v5220, 19
      %v5291 = vpop.permute.xlu0 %5290
      %5292 = vrot.lane.b32.xlu0 %v5221, 19
      %v5293 = vpop.permute.xlu0 %5292
      %5294 = vrot.lane.b32.xlu0 %v5222, 19
      %v5295 = vpop.permute.xlu0 %5294
      %v5296 = vsel %vm176, %v5249, %v5251
      %v5297 = vsel %vm176, %v5251, %v5253
      %v5298 = vsel %vm176, %v5253, %v5255
      %v5299 = vsel %vm176, %v5255, %v5257
      %v5300 = vsel %vm176, %v5257, %v5259
      %v5301 = vsel %vm176, %v5261, %v5263
      %v5302 = vsel %vm176, %v5263, %v5265
      %v5303 = vsel %vm176, %v5265, %v5267
      %v5304 = vsel %vm176, %v5267, %v5269
      %v5305 = vsel %vm176, %v5269, %v5271
      %v5306 = vsel %vm176, %v5273, %v5275
      %v5307 = vsel %vm176, %v5275, %v5277
      %v5308 = vsel %vm176, %v5277, %v5279
      %v5309 = vsel %vm176, %v5279, %v5281
      %v5310 = vsel %vm176, %v5281, %v5283
      %v5311 = vsel %vm176, %v5285, %v5287
      %v5312 = vsel %vm176, %v5287, %v5289
      %v5313 = vsel %vm176, %v5289, %v5291
      %v5314 = vsel %vm176, %v5291, %v5293
      %v5315 = vsel %vm176, %v5293, %v5295
      %5340 = vst.msk [vmem:[#allocation2] sm:$0xff] %vm221, %v5249
      %5341 = vst [vmem:[#allocation2 + $0x8] sm:$0xff] %v5296
      %5342 = vst [vmem:[#allocation2 + $0x10] sm:$0xff] %v5297
      %5343 = vst [vmem:[#allocation2 + $0x18] sm:$0xff] %v5298
      %5344 = vst [vmem:[#allocation2 + $0x20] sm:$0xff] %v5299
      %5345 = vst.msk [vmem:[#allocation2 + $0x28] sm:$0xff] %vm227, %v5300
      %5346 = vst.msk [vmem:[#allocation2 + $0x30] sm:$0xff] %vm221, %v5261
      %5347 = vst [vmem:[#allocation2 + $0x38] sm:$0xff] %v5301
      %5348 = vst [vmem:[#allocation2 + $0x40] sm:$0xff] %v5302
      %5349 = vst [vmem:[#allocation2 + $0x48] sm:$0xff] %v5303
      %5350 = vst [vmem:[#allocation2 + $0x50] sm:$0xff] %v5304
      %5351 = vst.msk [vmem:[#allocation2 + $0x58] sm:$0xff] %vm227, %v5305
      %5352 = vst.msk [vmem:[#allocation2 + $0x60] sm:$0xff] %vm221, %v5273
      %5353 = vst [vmem:[#allocation2 + $0x68] sm:$0xff] %v5306
      %5354 = vst [vmem:[#allocation2 + $0x70] sm:$0xff] %v5307
      %5355 = vst [vmem:[#allocation2 + $0x78] sm:$0xff] %v5308
      %5356 = vst [vmem:[#allocation2 + $0x80] sm:$0xff] %v5309
      %5357 = vst.msk [vmem:[#allocation2 + $0x88] sm:$0xff] %vm227, %v5310
      %5358 = vst.msk [vmem:[#allocation2 + $0x90] sm:$0xff] %vm221, %v5285
      %5359 = vst [vmem:[#allocation2 + $0x98] sm:$0xff] %v5311
      %5360 = vst [vmem:[#allocation2 + $0xa0] sm:$0xff] %v5312
      %5361 = vst [vmem:[#allocation2 + $0xa8] sm:$0xff] %v5313
      %5362 = vst [vmem:[#allocation2 + $0xb0] sm:$0xff] %v5314
      %5363 = vst.msk [vmem:[#allocation2 + $0xb8] sm:$0xff] %vm227, %v5315
      %v5364 = vld [vmem:[#allocation2] sm:$0xff]
      %v5365 = vld [vmem:[#allocation2 + $0x8] sm:$0xff]
      %v5366 = vld [vmem:[#allocation2 + $0x10] sm:$0xff]
      %v5367 = vld [vmem:[#allocation2 + $0x18] sm:$0xff]
      %v5368 = vld [vmem:[#allocation2 + $0x20] sm:$0xff]
      %v5369 = vld [vmem:[#allocation2 + $0x28] sm:$0xff]
      %v5370 = vld [vmem:[#allocation2 + $0x30] sm:$0xff]
      %v5371 = vld [vmem:[#allocation2 + $0x38] sm:$0xff]
      %v5372 = vld [vmem:[#allocation2 + $0x40] sm:$0xff]
      %v5373 = vld [vmem:[#allocation2 + $0x48] sm:$0xff]
      %v5374 = vld [vmem:[#allocation2 + $0x50] sm:$0xff]
      %v5375 = vld [vmem:[#allocation2 + $0x58] sm:$0xff]
      %v5376 = vld [vmem:[#allocation2 + $0x60] sm:$0xff]
      %v5377 = vld [vmem:[#allocation2 + $0x68] sm:$0xff]
      %v5378 = vld [vmem:[#allocation2 + $0x70] sm:$0xff]
      %v5379 = vld [vmem:[#allocation2 + $0x78] sm:$0xff]
      %v5380 = vld [vmem:[#allocation2 + $0x80] sm:$0xff]
      %v5381 = vld [vmem:[#allocation2 + $0x88] sm:$0xff]
      %v5382 = vld [vmem:[#allocation2 + $0x90] sm:$0xff]
      %v5383 = vld [vmem:[#allocation2 + $0x98] sm:$0xff]
      %v5384 = vld [vmem:[#allocation2 + $0xa0] sm:$0xff]
      %v5385 = vld [vmem:[#allocation2 + $0xa8] sm:$0xff]
      %v5386 = vld [vmem:[#allocation2 + $0xb0] sm:$0xff]
      %v5387 = vld [vmem:[#allocation2 + $0xb8] sm:$0xff]
      %5388 = vst [vmem:[#allocation3] sm:$0xff] %v5364
      %5389 = vst [vmem:[#allocation3 + $0x8] sm:$0xff] %v5365
      %5390 = vst [vmem:[#allocation3 + $0x10] sm:$0xff] %v5366
      %5391 = vst [vmem:[#allocation3 + $0x18] sm:$0xff] %v5367
      %5392 = vst [vmem:[#allocation3 + $0x20] sm:$0xff] %v5368
      %5393 = vst.msk [vmem:[#allocation3 + $0x28] sm:$0xff] %vm276, %v5369
      %5394 = vst [vmem:[#allocation3 + $0x30] sm:$0xff] %v5370
      %5395 = vst [vmem:[#allocation3 + $0x38] sm:$0xff] %v5371
      %5396 = vst [vmem:[#allocation3 + $0x40] sm:$0xff] %v5372
      %5397 = vst [vmem:[#allocation3 + $0x48] sm:$0xff] %v5373
      %5398 = vst [vmem:[#allocation3 + $0x50] sm:$0xff] %v5374
      %5399 = vst.msk [vmem:[#allocation3 + $0x58] sm:$0xff] %vm276, %v5375
      %5400 = vst [vmem:[#allocation3 + $0x60] sm:$0xff] %v5376
      %5401 = vst [vmem:[#allocation3 + $0x68] sm:$0xff] %v5377
      %5402 = vst [vmem:[#allocation3 + $0x70] sm:$0xff] %v5378
      %5403 = vst [vmem:[#allocation3 + $0x78] sm:$0xff] %v5379
      %5404 = vst [vmem:[#allocation3 + $0x80] sm:$0xff] %v5380
      %5405 = vst.msk [vmem:[#allocation3 + $0x88] sm:$0xff] %vm276, %v5381
      %5406 = vst [vmem:[#allocation3 + $0x90] sm:$0xff] %v5382
      %5407 = vst [vmem:[#allocation3 + $0x98] sm:$0xff] %v5383
      %5408 = vst [vmem:[#allocation3 + $0xa0] sm:$0xff] %v5384
      %5409 = vst [vmem:[#allocation3 + $0xa8] sm:$0xff] %v5385
      %5410 = vst [vmem:[#allocation3 + $0xb0] sm:$0xff] %v5386
      %5411 = vst.msk [vmem:[#allocation3 + $0xb8] sm:$0xff] %vm276, %v5387
      %v5412 = vld [vmem:[#allocation2] sm:$0xff]
      %v5413 = vld [vmem:[#allocation2 + $0x8] sm:$0xff]
      %v5414 = vld [vmem:[#allocation2 + $0x10] sm:$0xff]
      %v5415 = vld [vmem:[#allocation2 + $0x18] sm:$0xff]
      %v5416 = vld [vmem:[#allocation2 + $0x20] sm:$0xff]
      %v5417 = vld [vmem:[#allocation2 + $0x28] sm:$0xff]
      %v5418 = vld [vmem:[#allocation2 + $0x30] sm:$0xff]
      %v5419 = vld [vmem:[#allocation2 + $0x38] sm:$0xff]
      %v5420 = vld [vmem:[#allocation2 + $0x40] sm:$0xff]
      %v5421 = vld [vmem:[#allocation2 + $0x48] sm:$0xff]
      %v5422 = vld [vmem:[#allocation2 + $0x50] sm:$0xff]
      %v5423 = vld [vmem:[#allocation2 + $0x58] sm:$0xff]
      %v5424 = vld [vmem:[#allocation2 + $0x60] sm:$0xff]
      %v5425 = vld [vmem:[#allocation2 + $0x68] sm:$0xff]
      %v5426 = vld [vmem:[#allocation2 + $0x70] sm:$0xff]
      %v5427 = vld [vmem:[#allocation2 + $0x78] sm:$0xff]
      %v5428 = vld [vmem:[#allocation2 + $0x80] sm:$0xff]
      %v5429 = vld [vmem:[#allocation2 + $0x88] sm:$0xff]
      %v5430 = vld [vmem:[#allocation2 + $0x90] sm:$0xff]
      %v5431 = vld [vmem:[#allocation2 + $0x98] sm:$0xff]
      %v5432 = vld [vmem:[#allocation2 + $0xa0] sm:$0xff]
      %v5433 = vld [vmem:[#allocation2 + $0xa8] sm:$0xff]
      %v5434 = vld [vmem:[#allocation2 + $0xb0] sm:$0xff]
      %v5435 = vld [vmem:[#allocation2 + $0xb8] sm:$0xff]
      %5460 = vrot.lane.b32.xlu0 %v5412, 127
      %v5461 = vpop.permute.xlu0 %5460
      %5462 = vrot.lane.b32.xlu0 %v5413, 127
      %v5463 = vpop.permute.xlu0 %5462
      %5464 = vrot.lane.b32.xlu0 %v5414, 127
      %v5465 = vpop.permute.xlu0 %5464
      %5466 = vrot.lane.b32.xlu0 %v5415, 127
      %v5467 = vpop.permute.xlu0 %5466
      %5468 = vrot.lane.b32.xlu0 %v5416, 127
      %v5469 = vpop.permute.xlu0 %5468
      %5470 = vrot.lane.b32.xlu0 %v5417, 127
      %v5471 = vpop.permute.xlu0 %5470
      %5472 = vrot.lane.b32.xlu0 %v5418, 127
      %v5473 = vpop.permute.xlu0 %5472
      %5474 = vrot.lane.b32.xlu0 %v5419, 127
      %v5475 = vpop.permute.xlu0 %5474
      %5476 = vrot.lane.b32.xlu0 %v5420, 127
      %v5477 = vpop.permute.xlu0 %5476
      %5478 = vrot.lane.b32.xlu0 %v5421, 127
      %v5479 = vpop.permute.xlu0 %5478
      %5480 = vrot.lane.b32.xlu0 %v5422, 127
      %v5481 = vpop.permute.xlu0 %5480
      %5482 = vrot.lane.b32.xlu0 %v5423, 127
      %v5483 = vpop.permute.xlu0 %5482
      %5484 = vrot.lane.b32.xlu0 %v5424, 127
      %v5485 = vpop.permute.xlu0 %5484
      %5486 = vrot.lane.b32.xlu0 %v5425, 127
      %v5487 = vpop.permute.xlu0 %5486
      %5488 = vrot.lane.b32.xlu0 %v5426, 127
      %v5489 = vpop.permute.xlu0 %5488
      %5490 = vrot.lane.b32.xlu0 %v5427, 127
      %v5491 = vpop.permute.xlu0 %5490
      %5492 = vrot.lane.b32.xlu0 %v5428, 127
      %v5493 = vpop.permute.xlu0 %5492
      %5494 = vrot.lane.b32.xlu0 %v5429, 127
      %v5495 = vpop.permute.xlu0 %5494
      %5496 = vrot.lane.b32.xlu0 %v5430, 127
      %v5497 = vpop.permute.xlu0 %5496
      %5498 = vrot.lane.b32.xlu0 %v5431, 127
      %v5499 = vpop.permute.xlu0 %5498
      %5500 = vrot.lane.b32.xlu0 %v5432, 127
      %v5501 = vpop.permute.xlu0 %5500
      %5502 = vrot.lane.b32.xlu0 %v5433, 127
      %v5503 = vpop.permute.xlu0 %5502
      %5504 = vrot.lane.b32.xlu0 %v5434, 127
      %v5505 = vpop.permute.xlu0 %5504
      %5506 = vrot.lane.b32.xlu0 %v5435, 127
      %v5507 = vpop.permute.xlu0 %5506
      %v5508 = vsel %vm392, %v5461, %v5463
      %v5509 = vsel %vm392, %v5463, %v5465
      %v5510 = vsel %vm392, %v5465, %v5467
      %v5511 = vsel %vm392, %v5467, %v5469
      %v5512 = vsel %vm392, %v5469, %v5471
      %v5513 = vsel %vm392, %v5473, %v5475
      %v5514 = vsel %vm392, %v5475, %v5477
      %v5515 = vsel %vm392, %v5477, %v5479
      %v5516 = vsel %vm392, %v5479, %v5481
      %v5517 = vsel %vm392, %v5481, %v5483
      %v5518 = vsel %vm392, %v5485, %v5487
      %v5519 = vsel %vm392, %v5487, %v5489
      %v5520 = vsel %vm392, %v5489, %v5491
      %v5521 = vsel %vm392, %v5491, %v5493
      %v5522 = vsel %vm392, %v5493, %v5495
      %v5523 = vsel %vm392, %v5497, %v5499
      %v5524 = vsel %vm392, %v5499, %v5501
      %v5525 = vsel %vm392, %v5501, %v5503
      %v5526 = vsel %vm392, %v5503, %v5505
      %v5527 = vsel %vm392, %v5505, %v5507
      %5552 = vst [vmem:[#allocation3 + $0xc0] sm:$0xff] %v5508
      %5553 = vst [vmem:[#allocation3 + $0xc8] sm:$0xff] %v5509
      %5554 = vst [vmem:[#allocation3 + $0xd0] sm:$0xff] %v5510
      %5555 = vst [vmem:[#allocation3 + $0xd8] sm:$0xff] %v5511
      %5556 = vst [vmem:[#allocation3 + $0xe0] sm:$0xff] %v5512
      %5557 = vst.msk [vmem:[#allocation3 + $0xe8] sm:$0xff] %vm276, %v5471
      %5558 = vst [vmem:[#allocation3 + $0xf0] sm:$0xff] %v5513
      %5559 = vst [vmem:[#allocation3 + $0xf8] sm:$0xff] %v5514
      %5560 = vst [vmem:[#allocation3 + $0x100] sm:$0xff] %v5515
      %5561 = vst [vmem:[#allocation3 + $0x108] sm:$0xff] %v5516
      %5562 = vst [vmem:[#allocation3 + $0x110] sm:$0xff] %v5517
      %5563 = vst.msk [vmem:[#allocation3 + $0x118] sm:$0xff] %vm276, %v5483
      %5564 = vst [vmem:[#allocation3 + $0x120] sm:$0xff] %v5518
      %5565 = vst [vmem:[#allocation3 + $0x128] sm:$0xff] %v5519
      %5566 = vst [vmem:[#allocation3 + $0x130] sm:$0xff] %v5520
      %5567 = vst [vmem:[#allocation3 + $0x138] sm:$0xff] %v5521
      %5568 = vst [vmem:[#allocation3 + $0x140] sm:$0xff] %v5522
      %5569 = vst.msk [vmem:[#allocation3 + $0x148] sm:$0xff] %vm276, %v5495
      %5570 = vst [vmem:[#allocation3 + $0x150] sm:$0xff] %v5523
      %5571 = vst [vmem:[#allocation3 + $0x158] sm:$0xff] %v5524
      %5572 = vst [vmem:[#allocation3 + $0x160] sm:$0xff] %v5525
      %5573 = vst [vmem:[#allocation3 + $0x168] sm:$0xff] %v5526
      %5574 = vst [vmem:[#allocation3 + $0x170] sm:$0xff] %v5527
      %5575 = vst.msk [vmem:[#allocation3 + $0x178] sm:$0xff] %vm276, %v5507
      %v5576 = vld [vmem:[#allocation2] sm:$0xff]
      %v5577 = vld [vmem:[#allocation2 + $0x8] sm:$0xff]
      %v5578 = vld [vmem:[#allocation2 + $0x10] sm:$0xff]
      %v5579 = vld [vmem:[#allocation2 + $0x18] sm:$0xff]
      %v5580 = vld [vmem:[#allocation2 + $0x20] sm:$0xff]
      %v5581 = vld [vmem:[#allocation2 + $0x28] sm:$0xff]
      %v5582 = vld [vmem:[#allocation2 + $0x30] sm:$0xff]
      %v5583 = vld [vmem:[#allocation2 + $0x38] sm:$0xff]
      %v5584 = vld [vmem:[#allocation2 + $0x40] sm:$0xff]
      %v5585 = vld [vmem:[#allocation2 + $0x48] sm:$0xff]
      %v5586 = vld [vmem:[#allocation2 + $0x50] sm:$0xff]
      %v5587 = vld [vmem:[#allocation2 + $0x58] sm:$0xff]
      %v5588 = vld [vmem:[#allocation2 + $0x60] sm:$0xff]
      %v5589 = vld [vmem:[#allocation2 + $0x68] sm:$0xff]
      %v5590 = vld [vmem:[#allocation2 + $0x70] sm:$0xff]
      %v5591 = vld [vmem:[#allocation2 + $0x78] sm:$0xff]
      %v5592 = vld [vmem:[#allocation2 + $0x80] sm:$0xff]
      %v5593 = vld [vmem:[#allocation2 + $0x88] sm:$0xff]
      %v5594 = vld [vmem:[#allocation2 + $0x90] sm:$0xff]
      %v5595 = vld [vmem:[#allocation2 + $0x98] sm:$0xff]
      %v5596 = vld [vmem:[#allocation2 + $0xa0] sm:$0xff]
      %v5597 = vld [vmem:[#allocation2 + $0xa8] sm:$0xff]
      %v5598 = vld [vmem:[#allocation2 + $0xb0] sm:$0xff]
      %v5599 = vld [vmem:[#allocation2 + $0xb8] sm:$0xff]
      %5624 = vrot.lane.b32.xlu0 %v5576, 126
      %v5625 = vpop.permute.xlu0 %5624
      %5626 = vrot.lane.b32.xlu0 %v5577, 126
      %v5627 = vpop.permute.xlu0 %5626
      %5628 = vrot.lane.b32.xlu0 %v5578, 126
      %v5629 = vpop.permute.xlu0 %5628
      %5630 = vrot.lane.b32.xlu0 %v5579, 126
      %v5631 = vpop.permute.xlu0 %5630
      %5632 = vrot.lane.b32.xlu0 %v5580, 126
      %v5633 = vpop.permute.xlu0 %5632
      %5634 = vrot.lane.b32.xlu0 %v5581, 126
      %v5635 = vpop.permute.xlu0 %5634
      %5636 = vrot.lane.b32.xlu0 %v5582, 126
      %v5637 = vpop.permute.xlu0 %5636
      %5638 = vrot.lane.b32.xlu0 %v5583, 126
      %v5639 = vpop.permute.xlu0 %5638
      %5640 = vrot.lane.b32.xlu0 %v5584, 126
      %v5641 = vpop.permute.xlu0 %5640
      %5642 = vrot.lane.b32.xlu0 %v5585, 126
      %v5643 = vpop.permute.xlu0 %5642
      %5644 = vrot.lane.b32.xlu0 %v5586, 126
      %v5645 = vpop.permute.xlu0 %5644
      %5646 = vrot.lane.b32.xlu0 %v5587, 126
      %v5647 = vpop.permute.xlu0 %5646
      %5648 = vrot.lane.b32.xlu0 %v5588, 126
      %v5649 = vpop.permute.xlu0 %5648
      %5650 = vrot.lane.b32.xlu0 %v5589, 126
      %v5651 = vpop.permute.xlu0 %5650
      %5652 = vrot.lane.b32.xlu0 %v5590, 126
      %v5653 = vpop.permute.xlu0 %5652
      %5654 = vrot.lane.b32.xlu0 %v5591, 126
      %v5655 = vpop.permute.xlu0 %5654
      %5656 = vrot.lane.b32.xlu0 %v5592, 126
      %v5657 = vpop.permute.xlu0 %5656
      %5658 = vrot.lane.b32.xlu0 %v5593, 126
      %v5659 = vpop.permute.xlu0 %5658
      %5660 = vrot.lane.b32.xlu0 %v5594, 126
      %v5661 = vpop.permute.xlu0 %5660
      %5662 = vrot.lane.b32.xlu0 %v5595, 126
      %v5663 = vpop.permute.xlu0 %5662
      %5664 = vrot.lane.b32.xlu0 %v5596, 126
      %v5665 = vpop.permute.xlu0 %5664
      %5666 = vrot.lane.b32.xlu0 %v5597, 126
      %v5667 = vpop.permute.xlu0 %5666
      %5668 = vrot.lane.b32.xlu0 %v5598, 126
      %v5669 = vpop.permute.xlu0 %5668
      %5670 = vrot.lane.b32.xlu0 %v5599, 126
      %v5671 = vpop.permute.xlu0 %5670
      %v5672 = vsel %vm557, %v5625, %v5627
      %v5673 = vsel %vm557, %v5627, %v5629
      %v5674 = vsel %vm557, %v5629, %v5631
      %v5675 = vsel %vm557, %v5631, %v5633
      %v5676 = vsel %vm557, %v5633, %v5635
      %v5677 = vsel %vm557, %v5637, %v5639
      %v5678 = vsel %vm557, %v5639, %v5641
      %v5679 = vsel %vm557, %v5641, %v5643
      %v5680 = vsel %vm557, %v5643, %v5645
      %v5681 = vsel %vm557, %v5645, %v5647
      %v5682 = vsel %vm557, %v5649, %v5651
      %v5683 = vsel %vm557, %v5651, %v5653
      %v5684 = vsel %vm557, %v5653, %v5655
      %v5685 = vsel %vm557, %v5655, %v5657
      %v5686 = vsel %vm557, %v5657, %v5659
      %v5687 = vsel %vm557, %v5661, %v5663
      %v5688 = vsel %vm557, %v5663, %v5665
      %v5689 = vsel %vm557, %v5665, %v5667
      %v5690 = vsel %vm557, %v5667, %v5669
      %v5691 = vsel %vm557, %v5669, %v5671
      %5716 = vst [vmem:[#allocation3 + $0x180] sm:$0xff] %v5672
      %5717 = vst [vmem:[#allocation3 + $0x188] sm:$0xff] %v5673
      %5718 = vst [vmem:[#allocation3 + $0x190] sm:$0xff] %v5674
      %5719 = vst [vmem:[#allocation3 + $0x198] sm:$0xff] %v5675
      %5720 = vst [vmem:[#allocation3 + $0x1a0] sm:$0xff] %v5676
      %5721 = vst.msk [vmem:[#allocation3 + $0x1a8] sm:$0xff] %vm276, %v5635
      %5722 = vst [vmem:[#allocation3 + $0x1b0] sm:$0xff] %v5677
      %5723 = vst [vmem:[#allocation3 + $0x1b8] sm:$0xff] %v5678
      %5724 = vst [vmem:[#allocation3 + $0x1c0] sm:$0xff] %v5679
      %5725 = vst [vmem:[#allocation3 + $0x1c8] sm:$0xff] %v5680
      %5726 = vst [vmem:[#allocation3 + $0x1d0] sm:$0xff] %v5681
      %5727 = vst.msk [vmem:[#allocation3 + $0x1d8] sm:$0xff] %vm276, %v5647
      %5728 = vst [vmem:[#allocation3 + $0x1e0] sm:$0xff] %v5682
      %5729 = vst [vmem:[#allocation3 + $0x1e8] sm:$0xff] %v5683
      %5730 = vst [vmem:[#allocation3 + $0x1f0] sm:$0xff] %v5684
      %5731 = vst [vmem:[#allocation3 + $0x1f8] sm:$0xff] %v5685
      %5732 = vst [vmem:[#allocation3 + $0x200] sm:$0xff] %v5686
      %5733 = vst.msk [vmem:[#allocation3 + $0x208] sm:$0xff] %vm276, %v5659
      %5734 = vst [vmem:[#allocation3 + $0x210] sm:$0xff] %v5687
      %5735 = vst [vmem:[#allocation3 + $0x218] sm:$0xff] %v5688
      %5736 = vst [vmem:[#allocation3 + $0x220] sm:$0xff] %v5689
      %5737 = vst [vmem:[#allocation3 + $0x228] sm:$0xff] %v5690
      %5738 = vst [vmem:[#allocation3 + $0x230] sm:$0xff] %v5691
      %5739 = vst.msk [vmem:[#allocation3 + $0x238] sm:$0xff] %vm276, %v5671
      %v5740 = vld [vmem:[#allocation2] sm:$0xff]
      %v5741 = vld [vmem:[#allocation2 + $0x8] sm:$0xff]
      %v5742 = vld [vmem:[#allocation2 + $0x10] sm:$0xff]
      %v5743 = vld [vmem:[#allocation2 + $0x18] sm:$0xff]
      %v5744 = vld [vmem:[#allocation2 + $0x20] sm:$0xff]
      %v5745 = vld [vmem:[#allocation2 + $0x28] sm:$0xff]
      %v5746 = vld [vmem:[#allocation2 + $0x30] sm:$0xff]
      %v5747 = vld [vmem:[#allocation2 + $0x38] sm:$0xff]
      %v5748 = vld [vmem:[#allocation2 + $0x40] sm:$0xff]
      %v5749 = vld [vmem:[#allocation2 + $0x48] sm:$0xff]
      %v5750 = vld [vmem:[#allocation2 + $0x50] sm:$0xff]
      %v5751 = vld [vmem:[#allocation2 + $0x58] sm:$0xff]
      %v5752 = vld [vmem:[#allocation2 + $0x60] sm:$0xff]
      %v5753 = vld [vmem:[#allocation2 + $0x68] sm:$0xff]
      %v5754 = vld [vmem:[#allocation2 + $0x70] sm:$0xff]
      %v5755 = vld [vmem:[#allocation2 + $0x78] sm:$0xff]
      %v5756 = vld [vmem:[#allocation2 + $0x80] sm:$0xff]
      %v5757 = vld [vmem:[#allocation2 + $0x88] sm:$0xff]
      %v5758 = vld [vmem:[#allocation2 + $0x90] sm:$0xff]
      %v5759 = vld [vmem:[#allocation2 + $0x98] sm:$0xff]
      %v5760 = vld [vmem:[#allocation2 + $0xa0] sm:$0xff]
      %v5761 = vld [vmem:[#allocation2 + $0xa8] sm:$0xff]
      %v5762 = vld [vmem:[#allocation2 + $0xb0] sm:$0xff]
      %v5763 = vld [vmem:[#allocation2 + $0xb8] sm:$0xff]
      %5788 = vrot.lane.b32.xlu0 %v5740, 110
      %v5789 = vpop.permute.xlu0 %5788
      %5790 = vrot.lane.b32.xlu0 %v5741, 110
      %v5791 = vpop.permute.xlu0 %5790
      %5792 = vrot.lane.b32.xlu0 %v5742, 110
      %v5793 = vpop.permute.xlu0 %5792
      %5794 = vrot.lane.b32.xlu0 %v5743, 110
      %v5795 = vpop.permute.xlu0 %5794
      %5796 = vrot.lane.b32.xlu0 %v5744, 110
      %v5797 = vpop.permute.xlu0 %5796
      %5798 = vrot.lane.b32.xlu0 %v5745, 110
      %v5799 = vpop.permute.xlu0 %5798
      %5800 = vrot.lane.b32.xlu0 %v5746, 110
      %v5801 = vpop.permute.xlu0 %5800
      %5802 = vrot.lane.b32.xlu0 %v5747, 110
      %v5803 = vpop.permute.xlu0 %5802
      %5804 = vrot.lane.b32.xlu0 %v5748, 110
      %v5805 = vpop.permute.xlu0 %5804
      %5806 = vrot.lane.b32.xlu0 %v5749, 110
      %v5807 = vpop.permute.xlu0 %5806
      %5808 = vrot.lane.b32.xlu0 %v5750, 110
      %v5809 = vpop.permute.xlu0 %5808
      %5810 = vrot.lane.b32.xlu0 %v5751, 110
      %v5811 = vpop.permute.xlu0 %5810
      %5812 = vrot.lane.b32.xlu0 %v5752, 110
      %v5813 = vpop.permute.xlu0 %5812
      %5814 = vrot.lane.b32.xlu0 %v5753, 110
      %v5815 = vpop.permute.xlu0 %5814
      %5816 = vrot.lane.b32.xlu0 %v5754, 110
      %v5817 = vpop.permute.xlu0 %5816
      %5818 = vrot.lane.b32.xlu0 %v5755, 110
      %v5819 = vpop.permute.xlu0 %5818
      %5820 = vrot.lane.b32.xlu0 %v5756, 110
      %v5821 = vpop.permute.xlu0 %5820
      %5822 = vrot.lane.b32.xlu0 %v5757, 110
      %v5823 = vpop.permute.xlu0 %5822
      %5824 = vrot.lane.b32.xlu0 %v5758, 110
      %v5825 = vpop.permute.xlu0 %5824
      %5826 = vrot.lane.b32.xlu0 %v5759, 110
      %v5827 = vpop.permute.xlu0 %5826
      %5828 = vrot.lane.b32.xlu0 %v5760, 110
      %v5829 = vpop.permute.xlu0 %5828
      %5830 = vrot.lane.b32.xlu0 %v5761, 110
      %v5831 = vpop.permute.xlu0 %5830
      %5832 = vrot.lane.b32.xlu0 %v5762, 110
      %v5833 = vpop.permute.xlu0 %5832
      %5834 = vrot.lane.b32.xlu0 %v5763, 110
      %v5835 = vpop.permute.xlu0 %5834
      %v5836 = vsel %vm722, %v5789, %v5791
      %v5837 = vsel %vm722, %v5791, %v5793
      %v5838 = vsel %vm722, %v5793, %v5795
      %v5839 = vsel %vm722, %v5795, %v5797
      %v5840 = vsel %vm722, %v5797, %v5799
      %v5841 = vsel %vm722, %v5801, %v5803
      %v5842 = vsel %vm722, %v5803, %v5805
      %v5843 = vsel %vm722, %v5805, %v5807
      %v5844 = vsel %vm722, %v5807, %v5809
      %v5845 = vsel %vm722, %v5809, %v5811
      %v5846 = vsel %vm722, %v5813, %v5815
      %v5847 = vsel %vm722, %v5815, %v5817
      %v5848 = vsel %vm722, %v5817, %v5819
      %v5849 = vsel %vm722, %v5819, %v5821
      %v5850 = vsel %vm722, %v5821, %v5823
      %v5851 = vsel %vm722, %v5825, %v5827
      %v5852 = vsel %vm722, %v5827, %v5829
      %v5853 = vsel %vm722, %v5829, %v5831
      %v5854 = vsel %vm722, %v5831, %v5833
      %v5855 = vsel %vm722, %v5833, %v5835
      %5880 = vst [vmem:[#allocation3 + $0x240] sm:$0xff] %v5836
      %5881 = vst [vmem:[#allocation3 + $0x248] sm:$0xff] %v5837
      %5882 = vst [vmem:[#allocation3 + $0x250] sm:$0xff] %v5838
      %5883 = vst [vmem:[#allocation3 + $0x258] sm:$0xff] %v5839
      %5884 = vst [vmem:[#allocation3 + $0x260] sm:$0xff] %v5840
      %5885 = vst.msk [vmem:[#allocation3 + $0x268] sm:$0xff] %vm276, %v5799
      %5886 = vst [vmem:[#allocation3 + $0x270] sm:$0xff] %v5841
      %5887 = vst [vmem:[#allocation3 + $0x278] sm:$0xff] %v5842
      %5888 = vst [vmem:[#allocation3 + $0x280] sm:$0xff] %v5843
      %5889 = vst [vmem:[#allocation3 + $0x288] sm:$0xff] %v5844
      %5890 = vst [vmem:[#allocation3 + $0x290] sm:$0xff] %v5845
      %5891 = vst.msk [vmem:[#allocation3 + $0x298] sm:$0xff] %vm276, %v5811
      %5892 = vst [vmem:[#allocation3 + $0x2a0] sm:$0xff] %v5846
      %5893 = vst [vmem:[#allocation3 + $0x2a8] sm:$0xff] %v5847
      %5894 = vst [vmem:[#allocation3 + $0x2b0] sm:$0xff] %v5848
      %5895 = vst [vmem:[#allocation3 + $0x2b8] sm:$0xff] %v5849
      %5896 = vst [vmem:[#allocation3 + $0x2c0] sm:$0xff] %v5850
      %5897 = vst.msk [vmem:[#allocation3 + $0x2c8] sm:$0xff] %vm276, %v5823
      %5898 = vst [vmem:[#allocation3 + $0x2d0] sm:$0xff] %v5851
      %5899 = vst [vmem:[#allocation3 + $0x2d8] sm:$0xff] %v5852
      %5900 = vst [vmem:[#allocation3 + $0x2e0] sm:$0xff] %v5853
      %5901 = vst [vmem:[#allocation3 + $0x2e8] sm:$0xff] %v5854
      %5902 = vst [vmem:[#allocation3 + $0x2f0] sm:$0xff] %v5855
      %5903 = vst.msk [vmem:[#allocation3 + $0x2f8] sm:$0xff] %vm276, %v5835
      %v5904 = vld [vmem:[#allocation2] sm:$0xff]
      %v5905 = vld [vmem:[#allocation2 + $0x8] sm:$0xff]
      %v5906 = vld [vmem:[#allocation2 + $0x10] sm:$0xff]
      %v5907 = vld [vmem:[#allocation2 + $0x18] sm:$0xff]
      %v5908 = vld [vmem:[#allocation2 + $0x20] sm:$0xff]
      %v5909 = vld [vmem:[#allocation2 + $0x28] sm:$0xff]
      %v5910 = vld [vmem:[#allocation2 + $0x30] sm:$0xff]
      %v5911 = vld [vmem:[#allocation2 + $0x38] sm:$0xff]
      %v5912 = vld [vmem:[#allocation2 + $0x40] sm:$0xff]
      %v5913 = vld [vmem:[#allocation2 + $0x48] sm:$0xff]
      %v5914 = vld [vmem:[#allocation2 + $0x50] sm:$0xff]
      %v5915 = vld [vmem:[#allocation2 + $0x58] sm:$0xff]
      %v5916 = vld [vmem:[#allocation2 + $0x60] sm:$0xff]
      %v5917 = vld [vmem:[#allocation2 + $0x68] sm:$0xff]
      %v5918 = vld [vmem:[#allocation2 + $0x70] sm:$0xff]
      %v5919 = vld [vmem:[#allocation2 + $0x78] sm:$0xff]
      %v5920 = vld [vmem:[#allocation2 + $0x80] sm:$0xff]
      %v5921 = vld [vmem:[#allocation2 + $0x88] sm:$0xff]
      %v5922 = vld [vmem:[#allocation2 + $0x90] sm:$0xff]
      %v5923 = vld [vmem:[#allocation2 + $0x98] sm:$0xff]
      %v5924 = vld [vmem:[#allocation2 + $0xa0] sm:$0xff]
      %v5925 = vld [vmem:[#allocation2 + $0xa8] sm:$0xff]
      %v5926 = vld [vmem:[#allocation2 + $0xb0] sm:$0xff]
      %v5927 = vld [vmem:[#allocation2 + $0xb8] sm:$0xff]
      %5952 = vrot.lane.b32.xlu0 %v5904, 109
      %v5953 = vpop.permute.xlu0 %5952
      %5954 = vrot.lane.b32.xlu0 %v5905, 109
      %v5955 = vpop.permute.xlu0 %5954
      %5956 = vrot.lane.b32.xlu0 %v5906, 109
      %v5957 = vpop.permute.xlu0 %5956
      %5958 = vrot.lane.b32.xlu0 %v5907, 109
      %v5959 = vpop.permute.xlu0 %5958
      %5960 = vrot.lane.b32.xlu0 %v5908, 109
      %v5961 = vpop.permute.xlu0 %5960
      %5962 = vrot.lane.b32.xlu0 %v5909, 109
      %v5963 = vpop.permute.xlu0 %5962
      %5964 = vrot.lane.b32.xlu0 %v5910, 109
      %v5965 = vpop.permute.xlu0 %5964
      %5966 = vrot.lane.b32.xlu0 %v5911, 109
      %v5967 = vpop.permute.xlu0 %5966
      %5968 = vrot.lane.b32.xlu0 %v5912, 109
      %v5969 = vpop.permute.xlu0 %5968
      %5970 = vrot.lane.b32.xlu0 %v5913, 109
      %v5971 = vpop.permute.xlu0 %5970
      %5972 = vrot.lane.b32.xlu0 %v5914, 109
      %v5973 = vpop.permute.xlu0 %5972
      %5974 = vrot.lane.b32.xlu0 %v5915, 109
      %v5975 = vpop.permute.xlu0 %5974
      %5976 = vrot.lane.b32.xlu0 %v5916, 109
      %v5977 = vpop.permute.xlu0 %5976
      %5978 = vrot.lane.b32.xlu0 %v5917, 109
      %v5979 = vpop.permute.xlu0 %5978
      %5980 = vrot.lane.b32.xlu0 %v5918, 109
      %v5981 = vpop.permute.xlu0 %5980
      %5982 = vrot.lane.b32.xlu0 %v5919, 109
      %v5983 = vpop.permute.xlu0 %5982
      %5984 = vrot.lane.b32.xlu0 %v5920, 109
      %v5985 = vpop.permute.xlu0 %5984
      %5986 = vrot.lane.b32.xlu0 %v5921, 109
      %v5987 = vpop.permute.xlu0 %5986
      %5988 = vrot.lane.b32.xlu0 %v5922, 109
      %v5989 = vpop.permute.xlu0 %5988
      %5990 = vrot.lane.b32.xlu0 %v5923, 109
      %v5991 = vpop.permute.xlu0 %5990
      %5992 = vrot.lane.b32.xlu0 %v5924, 109
      %v5993 = vpop.permute.xlu0 %5992
      %5994 = vrot.lane.b32.xlu0 %v5925, 109
      %v5995 = vpop.permute.xlu0 %5994
      %5996 = vrot.lane.b32.xlu0 %v5926, 109
      %v5997 = vpop.permute.xlu0 %5996
      %5998 = vrot.lane.b32.xlu0 %v5927, 109
      %v5999 = vpop.permute.xlu0 %5998
      %v6000 = vsel %vm887, %v5953, %v5955
      %v6001 = vsel %vm887, %v5955, %v5957
      %v6002 = vsel %vm887, %v5957, %v5959
      %v6003 = vsel %vm887, %v5959, %v5961
      %v6004 = vsel %vm887, %v5961, %v5963
      %v6005 = vsel %vm887, %v5965, %v5967
      %v6006 = vsel %vm887, %v5967, %v5969
      %v6007 = vsel %vm887, %v5969, %v5971
      %v6008 = vsel %vm887, %v5971, %v5973
      %v6009 = vsel %vm887, %v5973, %v5975
      %v6010 = vsel %vm887, %v5977, %v5979
      %v6011 = vsel %vm887, %v5979, %v5981
      %v6012 = vsel %vm887, %v5981, %v5983
      %v6013 = vsel %vm887, %v5983, %v5985
      %v6014 = vsel %vm887, %v5985, %v5987
      %v6015 = vsel %vm887, %v5989, %v5991
      %v6016 = vsel %vm887, %v5991, %v5993
      %v6017 = vsel %vm887, %v5993, %v5995
      %v6018 = vsel %vm887, %v5995, %v5997
      %v6019 = vsel %vm887, %v5997, %v5999
      %6044 = vst [vmem:[#allocation3 + $0x300] sm:$0xff] %v6000
      %6045 = vst [vmem:[#allocation3 + $0x308] sm:$0xff] %v6001
      %6046 = vst [vmem:[#allocation3 + $0x310] sm:$0xff] %v6002
      %6047 = vst [vmem:[#allocation3 + $0x318] sm:$0xff] %v6003
      %6048 = vst [vmem:[#allocation3 + $0x320] sm:$0xff] %v6004
      %6049 = vst.msk [vmem:[#allocation3 + $0x328] sm:$0xff] %vm276, %v5963
      %6050 = vst [vmem:[#allocation3 + $0x330] sm:$0xff] %v6005
      %6051 = vst [vmem:[#allocation3 + $0x338] sm:$0xff] %v6006
      %6052 = vst [vmem:[#allocation3 + $0x340] sm:$0xff] %v6007
      %6053 = vst [vmem:[#allocation3 + $0x348] sm:$0xff] %v6008
      %6054 = vst [vmem:[#allocation3 + $0x350] sm:$0xff] %v6009
      %6055 = vst.msk [vmem:[#allocation3 + $0x358] sm:$0xff] %vm276, %v5975
      %6056 = vst [vmem:[#allocation3 + $0x360] sm:$0xff] %v6010
      %6057 = vst [vmem:[#allocation3 + $0x368] sm:$0xff] %v6011
      %6058 = vst [vmem:[#allocation3 + $0x370] sm:$0xff] %v6012
      %6059 = vst [vmem:[#allocation3 + $0x378] sm:$0xff] %v6013
      %6060 = vst [vmem:[#allocation3 + $0x380] sm:$0xff] %v6014
      %6061 = vst.msk [vmem:[#allocation3 + $0x388] sm:$0xff] %vm276, %v5987
      %6062 = vst [vmem:[#allocation3 + $0x390] sm:$0xff] %v6015
      %6063 = vst [vmem:[#allocation3 + $0x398] sm:$0xff] %v6016
      %6064 = vst [vmem:[#allocation3 + $0x3a0] sm:$0xff] %v6017
      %6065 = vst [vmem:[#allocation3 + $0x3a8] sm:$0xff] %v6018
      %6066 = vst [vmem:[#allocation3 + $0x3b0] sm:$0xff] %v6019
      %6067 = vst.msk [vmem:[#allocation3 + $0x3b8] sm:$0xff] %vm276, %v5999
      %v6068 = vld [vmem:[#allocation2] sm:$0xff]
      %v6069 = vld [vmem:[#allocation2 + $0x8] sm:$0xff]
      %v6070 = vld [vmem:[#allocation2 + $0x10] sm:$0xff]
      %v6071 = vld [vmem:[#allocation2 + $0x18] sm:$0xff]
      %v6072 = vld [vmem:[#allocation2 + $0x20] sm:$0xff]
      %v6073 = vld [vmem:[#allocation2 + $0x28] sm:$0xff]
      %v6074 = vld [vmem:[#allocation2 + $0x30] sm:$0xff]
      %v6075 = vld [vmem:[#allocation2 + $0x38] sm:$0xff]
      %v6076 = vld [vmem:[#allocation2 + $0x40] sm:$0xff]
      %v6077 = vld [vmem:[#allocation2 + $0x48] sm:$0xff]
      %v6078 = vld [vmem:[#allocation2 + $0x50] sm:$0xff]
      %v6079 = vld [vmem:[#allocation2 + $0x58] sm:$0xff]
      %v6080 = vld [vmem:[#allocation2 + $0x60] sm:$0xff]
      %v6081 = vld [vmem:[#allocation2 + $0x68] sm:$0xff]
      %v6082 = vld [vmem:[#allocation2 + $0x70] sm:$0xff]
      %v6083 = vld [vmem:[#allocation2 + $0x78] sm:$0xff]
      %v6084 = vld [vmem:[#allocation2 + $0x80] sm:$0xff]
      %v6085 = vld [vmem:[#allocation2 + $0x88] sm:$0xff]
      %v6086 = vld [vmem:[#allocation2 + $0x90] sm:$0xff]
      %v6087 = vld [vmem:[#allocation2 + $0x98] sm:$0xff]
      %v6088 = vld [vmem:[#allocation2 + $0xa0] sm:$0xff]
      %v6089 = vld [vmem:[#allocation2 + $0xa8] sm:$0xff]
      %v6090 = vld [vmem:[#allocation2 + $0xb0] sm:$0xff]
      %v6091 = vld [vmem:[#allocation2 + $0xb8] sm:$0xff]
      %6116 = vrot.lane.b32.xlu0 %v6068, 108
      %v6117 = vpop.permute.xlu0 %6116
      %6118 = vrot.lane.b32.xlu0 %v6069, 108
      %v6119 = vpop.permute.xlu0 %6118
      %6120 = vrot.lane.b32.xlu0 %v6070, 108
      %v6121 = vpop.permute.xlu0 %6120
      %6122 = vrot.lane.b32.xlu0 %v6071, 108
      %v6123 = vpop.permute.xlu0 %6122
      %6124 = vrot.lane.b32.xlu0 %v6072, 108
      %v6125 = vpop.permute.xlu0 %6124
      %6126 = vrot.lane.b32.xlu0 %v6073, 108
      %v6127 = vpop.permute.xlu0 %6126
      %6128 = vrot.lane.b32.xlu0 %v6074, 108
      %v6129 = vpop.permute.xlu0 %6128
      %6130 = vrot.lane.b32.xlu0 %v6075, 108
      %v6131 = vpop.permute.xlu0 %6130
      %6132 = vrot.lane.b32.xlu0 %v6076, 108
      %v6133 = vpop.permute.xlu0 %6132
      %6134 = vrot.lane.b32.xlu0 %v6077, 108
      %v6135 = vpop.permute.xlu0 %6134
      %6136 = vrot.lane.b32.xlu0 %v6078, 108
      %v6137 = vpop.permute.xlu0 %6136
      %6138 = vrot.lane.b32.xlu0 %v6079, 108
      %v6139 = vpop.permute.xlu0 %6138
      %6140 = vrot.lane.b32.xlu0 %v6080, 108
      %v6141 = vpop.permute.xlu0 %6140
      %6142 = vrot.lane.b32.xlu0 %v6081, 108
      %v6143 = vpop.permute.xlu0 %6142
      %6144 = vrot.lane.b32.xlu0 %v6082, 108
      %v6145 = vpop.permute.xlu0 %6144
      %6146 = vrot.lane.b32.xlu0 %v6083, 108
      %v6147 = vpop.permute.xlu0 %6146
      %6148 = vrot.lane.b32.xlu0 %v6084, 108
      %v6149 = vpop.permute.xlu0 %6148
      %6150 = vrot.lane.b32.xlu0 %v6085, 108
      %v6151 = vpop.permute.xlu0 %6150
      %6152 = vrot.lane.b32.xlu0 %v6086, 108
      %v6153 = vpop.permute.xlu0 %6152
      %6154 = vrot.lane.b32.xlu0 %v6087, 108
      %v6155 = vpop.permute.xlu0 %6154
      %6156 = vrot.lane.b32.xlu0 %v6088, 108
      %v6157 = vpop.permute.xlu0 %6156
      %6158 = vrot.lane.b32.xlu0 %v6089, 108
      %v6159 = vpop.permute.xlu0 %6158
      %6160 = vrot.lane.b32.xlu0 %v6090, 108
      %v6161 = vpop.permute.xlu0 %6160
      %6162 = vrot.lane.b32.xlu0 %v6091, 108
      %v6163 = vpop.permute.xlu0 %6162
      %v6164 = vsel %vm1052, %v6117, %v6119
      %v6165 = vsel %vm1052, %v6119, %v6121
      %v6166 = vsel %vm1052, %v6121, %v6123
      %v6167 = vsel %vm1052, %v6123, %v6125
      %v6168 = vsel %vm1052, %v6125, %v6127
      %v6169 = vsel %vm1052, %v6129, %v6131
      %v6170 = vsel %vm1052, %v6131, %v6133
      %v6171 = vsel %vm1052, %v6133, %v6135
      %v6172 = vsel %vm1052, %v6135, %v6137
      %v6173 = vsel %vm1052, %v6137, %v6139
      %v6174 = vsel %vm1052, %v6141, %v6143
      %v6175 = vsel %vm1052, %v6143, %v6145
      %v6176 = vsel %vm1052, %v6145, %v6147
      %v6177 = vsel %vm1052, %v6147, %v6149
      %v6178 = vsel %vm1052, %v6149, %v6151
      %v6179 = vsel %vm1052, %v6153, %v6155
      %v6180 = vsel %vm1052, %v6155, %v6157
      %v6181 = vsel %vm1052, %v6157, %v6159
      %v6182 = vsel %vm1052, %v6159, %v6161
      %v6183 = vsel %vm1052, %v6161, %v6163
      %6208 = vst [vmem:[#allocation3 + $0x3c0] sm:$0xff] %v6164
      %6209 = vst [vmem:[#allocation3 + $0x3c8] sm:$0xff] %v6165
      %6210 = vst [vmem:[#allocation3 + $0x3d0] sm:$0xff] %v6166
      %6211 = vst [vmem:[#allocation3 + $0x3d8] sm:$0xff] %v6167
      %6212 = vst [vmem:[#allocation3 + $0x3e0] sm:$0xff] %v6168
      %6213 = vst.msk [vmem:[#allocation3 + $0x3e8] sm:$0xff] %vm276, %v6127
      %6214 = vst [vmem:[#allocation3 + $0x3f0] sm:$0xff] %v6169
      %6215 = vst [vmem:[#allocation3 + $0x3f8] sm:$0xff] %v6170
      %6216 = vst [vmem:[#allocation3 + $0x400] sm:$0xff] %v6171
      %6217 = vst [vmem:[#allocation3 + $0x408] sm:$0xff] %v6172
      %6218 = vst [vmem:[#allocation3 + $0x410] sm:$0xff] %v6173
      %6219 = vst.msk [vmem:[#allocation3 + $0x418] sm:$0xff] %vm276, %v6139
      %6220 = vst [vmem:[#allocation3 + $0x420] sm:$0xff] %v6174
      %6221 = vst [vmem:[#allocation3 + $0x428] sm:$0xff] %v6175
      %6222 = vst [vmem:[#allocation3 + $0x430] sm:$0xff] %v6176
      %6223 = vst [vmem:[#allocation3 + $0x438] sm:$0xff] %v6177
      %6224 = vst [vmem:[#allocation3 + $0x440] sm:$0xff] %v6178
      %6225 = vst.msk [vmem:[#allocation3 + $0x448] sm:$0xff] %vm276, %v6151
      %6226 = vst [vmem:[#allocation3 + $0x450] sm:$0xff] %v6179
      %6227 = vst [vmem:[#allocation3 + $0x458] sm:$0xff] %v6180
      %6228 = vst [vmem:[#allocation3 + $0x460] sm:$0xff] %v6181
      %6229 = vst [vmem:[#allocation3 + $0x468] sm:$0xff] %v6182
      %6230 = vst [vmem:[#allocation3 + $0x470] sm:$0xff] %v6183
      %6231 = vst.msk [vmem:[#allocation3 + $0x478] sm:$0xff] %vm276, %v6163
      %v6232 = vld [vmem:[#allocation2] sm:$0xff]
      %v6233 = vld [vmem:[#allocation2 + $0x8] sm:$0xff]
      %v6234 = vld [vmem:[#allocation2 + $0x10] sm:$0xff]
      %v6235 = vld [vmem:[#allocation2 + $0x18] sm:$0xff]
      %v6236 = vld [vmem:[#allocation2 + $0x20] sm:$0xff]
      %v6237 = vld [vmem:[#allocation2 + $0x28] sm:$0xff]
      %v6238 = vld [vmem:[#allocation2 + $0x30] sm:$0xff]
      %v6239 = vld [vmem:[#allocation2 + $0x38] sm:$0xff]
      %v6240 = vld [vmem:[#allocation2 + $0x40] sm:$0xff]
      %v6241 = vld [vmem:[#allocation2 + $0x48] sm:$0xff]
      %v6242 = vld [vmem:[#allocation2 + $0x50] sm:$0xff]
      %v6243 = vld [vmem:[#allocation2 + $0x58] sm:$0xff]
      %v6244 = vld [vmem:[#allocation2 + $0x60] sm:$0xff]
      %v6245 = vld [vmem:[#allocation2 + $0x68] sm:$0xff]
      %v6246 = vld [vmem:[#allocation2 + $0x70] sm:$0xff]
      %v6247 = vld [vmem:[#allocation2 + $0x78] sm:$0xff]
      %v6248 = vld [vmem:[#allocation2 + $0x80] sm:$0xff]
      %v6249 = vld [vmem:[#allocation2 + $0x88] sm:$0xff]
      %v6250 = vld [vmem:[#allocation2 + $0x90] sm:$0xff]
      %v6251 = vld [vmem:[#allocation2 + $0x98] sm:$0xff]
      %v6252 = vld [vmem:[#allocation2 + $0xa0] sm:$0xff]
      %v6253 = vld [vmem:[#allocation2 + $0xa8] sm:$0xff]
      %v6254 = vld [vmem:[#allocation2 + $0xb0] sm:$0xff]
      %v6255 = vld [vmem:[#allocation2 + $0xb8] sm:$0xff]
      %6280 = vrot.lane.b32.xlu0 %v6232, 92
      %v6281 = vpop.permute.xlu0 %6280
      %6282 = vrot.lane.b32.xlu0 %v6233, 92
      %v6283 = vpop.permute.xlu0 %6282
      %6284 = vrot.lane.b32.xlu0 %v6234, 92
      %v6285 = vpop.permute.xlu0 %6284
      %6286 = vrot.lane.b32.xlu0 %v6235, 92
      %v6287 = vpop.permute.xlu0 %6286
      %6288 = vrot.lane.b32.xlu0 %v6236, 92
      %v6289 = vpop.permute.xlu0 %6288
      %6290 = vrot.lane.b32.xlu0 %v6237, 92
      %v6291 = vpop.permute.xlu0 %6290
      %6292 = vrot.lane.b32.xlu0 %v6238, 92
      %v6293 = vpop.permute.xlu0 %6292
      %6294 = vrot.lane.b32.xlu0 %v6239, 92
      %v6295 = vpop.permute.xlu0 %6294
      %6296 = vrot.lane.b32.xlu0 %v6240, 92
      %v6297 = vpop.permute.xlu0 %6296
      %6298 = vrot.lane.b32.xlu0 %v6241, 92
      %v6299 = vpop.permute.xlu0 %6298
      %6300 = vrot.lane.b32.xlu0 %v6242, 92
      %v6301 = vpop.permute.xlu0 %6300
      %6302 = vrot.lane.b32.xlu0 %v6243, 92
      %v6303 = vpop.permute.xlu0 %6302
      %6304 = vrot.lane.b32.xlu0 %v6244, 92
      %v6305 = vpop.permute.xlu0 %6304
      %6306 = vrot.lane.b32.xlu0 %v6245, 92
      %v6307 = vpop.permute.xlu0 %6306
      %6308 = vrot.lane.b32.xlu0 %v6246, 92
      %v6309 = vpop.permute.xlu0 %6308
      %6310 = vrot.lane.b32.xlu0 %v6247, 92
      %v6311 = vpop.permute.xlu0 %6310
      %6312 = vrot.lane.b32.xlu0 %v6248, 92
      %v6313 = vpop.permute.xlu0 %6312
      %6314 = vrot.lane.b32.xlu0 %v6249, 92
      %v6315 = vpop.permute.xlu0 %6314
      %6316 = vrot.lane.b32.xlu0 %v6250, 92
      %v6317 = vpop.permute.xlu0 %6316
      %6318 = vrot.lane.b32.xlu0 %v6251, 92
      %v6319 = vpop.permute.xlu0 %6318
      %6320 = vrot.lane.b32.xlu0 %v6252, 92
      %v6321 = vpop.permute.xlu0 %6320
      %6322 = vrot.lane.b32.xlu0 %v6253, 92
      %v6323 = vpop.permute.xlu0 %6322
      %6324 = vrot.lane.b32.xlu0 %v6254, 92
      %v6325 = vpop.permute.xlu0 %6324
      %6326 = vrot.lane.b32.xlu0 %v6255, 92
      %v6327 = vpop.permute.xlu0 %6326
      %v6328 = vsel %vm1217, %v6281, %v6283
      %v6329 = vsel %vm1217, %v6283, %v6285
      %v6330 = vsel %vm1217, %v6285, %v6287
      %v6331 = vsel %vm1217, %v6287, %v6289
      %v6332 = vsel %vm1217, %v6289, %v6291
      %v6333 = vsel %vm1217, %v6293, %v6295
      %v6334 = vsel %vm1217, %v6295, %v6297
      %v6335 = vsel %vm1217, %v6297, %v6299
      %v6336 = vsel %vm1217, %v6299, %v6301
      %v6337 = vsel %vm1217, %v6301, %v6303
      %v6338 = vsel %vm1217, %v6305, %v6307
      %v6339 = vsel %vm1217, %v6307, %v6309
      %v6340 = vsel %vm1217, %v6309, %v6311
      %v6341 = vsel %vm1217, %v6311, %v6313
      %v6342 = vsel %vm1217, %v6313, %v6315
      %v6343 = vsel %vm1217, %v6317, %v6319
      %v6344 = vsel %vm1217, %v6319, %v6321
      %v6345 = vsel %vm1217, %v6321, %v6323
      %v6346 = vsel %vm1217, %v6323, %v6325
      %v6347 = vsel %vm1217, %v6325, %v6327
      %6372 = vst [vmem:[#allocation3 + $0x480] sm:$0xff] %v6328
      %6373 = vst [vmem:[#allocation3 + $0x488] sm:$0xff] %v6329
      %6374 = vst [vmem:[#allocation3 + $0x490] sm:$0xff] %v6330
      %6375 = vst [vmem:[#allocation3 + $0x498] sm:$0xff] %v6331
      %6376 = vst [vmem:[#allocation3 + $0x4a0] sm:$0xff] %v6332
      %6377 = vst.msk [vmem:[#allocation3 + $0x4a8] sm:$0xff] %vm276, %v6291
      %6378 = vst [vmem:[#allocation3 + $0x4b0] sm:$0xff] %v6333
      %6379 = vst [vmem:[#allocation3 + $0x4b8] sm:$0xff] %v6334
      %6380 = vst [vmem:[#allocation3 + $0x4c0] sm:$0xff] %v6335
      %6381 = vst [vmem:[#allocation3 + $0x4c8] sm:$0xff] %v6336
      %6382 = vst [vmem:[#allocation3 + $0x4d0] sm:$0xff] %v6337
      %6383 = vst.msk [vmem:[#allocation3 + $0x4d8] sm:$0xff] %vm276, %v6303
      %6384 = vst [vmem:[#allocation3 + $0x4e0] sm:$0xff] %v6338
      %6385 = vst [vmem:[#allocation3 + $0x4e8] sm:$0xff] %v6339
      %6386 = vst [vmem:[#allocation3 + $0x4f0] sm:$0xff] %v6340
      %6387 = vst [vmem:[#allocation3 + $0x4f8] sm:$0xff] %v6341
      %6388 = vst [vmem:[#allocation3 + $0x500] sm:$0xff] %v6342
      %6389 = vst.msk [vmem:[#allocation3 + $0x508] sm:$0xff] %vm276, %v6315
      %6390 = vst [vmem:[#allocation3 + $0x510] sm:$0xff] %v6343
      %6391 = vst [vmem:[#allocation3 + $0x518] sm:$0xff] %v6344
      %6392 = vst [vmem:[#allocation3 + $0x520] sm:$0xff] %v6345
      %6393 = vst [vmem:[#allocation3 + $0x528] sm:$0xff] %v6346
      %6394 = vst [vmem:[#allocation3 + $0x530] sm:$0xff] %v6347
      %6395 = vst.msk [vmem:[#allocation3 + $0x538] sm:$0xff] %vm276, %v6327
      %v6396 = vld [vmem:[#allocation2] sm:$0xff]
      %v6397 = vld [vmem:[#allocation2 + $0x8] sm:$0xff]
      %v6398 = vld [vmem:[#allocation2 + $0x10] sm:$0xff]
      %v6399 = vld [vmem:[#allocation2 + $0x18] sm:$0xff]
      %v6400 = vld [vmem:[#allocation2 + $0x20] sm:$0xff]
      %v6401 = vld [vmem:[#allocation2 + $0x28] sm:$0xff]
      %v6402 = vld [vmem:[#allocation2 + $0x30] sm:$0xff]
      %v6403 = vld [vmem:[#allocation2 + $0x38] sm:$0xff]
      %v6404 = vld [vmem:[#allocation2 + $0x40] sm:$0xff]
      %v6405 = vld [vmem:[#allocation2 + $0x48] sm:$0xff]
      %v6406 = vld [vmem:[#allocation2 + $0x50] sm:$0xff]
      %v6407 = vld [vmem:[#allocation2 + $0x58] sm:$0xff]
      %v6408 = vld [vmem:[#allocation2 + $0x60] sm:$0xff]
      %v6409 = vld [vmem:[#allocation2 + $0x68] sm:$0xff]
      %v6410 = vld [vmem:[#allocation2 + $0x70] sm:$0xff]
      %v6411 = vld [vmem:[#allocation2 + $0x78] sm:$0xff]
      %v6412 = vld [vmem:[#allocation2 + $0x80] sm:$0xff]
      %v6413 = vld [vmem:[#allocation2 + $0x88] sm:$0xff]
      %v6414 = vld [vmem:[#allocation2 + $0x90] sm:$0xff]
      %v6415 = vld [vmem:[#allocation2 + $0x98] sm:$0xff]
      %v6416 = vld [vmem:[#allocation2 + $0xa0] sm:$0xff]
      %v6417 = vld [vmem:[#allocation2 + $0xa8] sm:$0xff]
      %v6418 = vld [vmem:[#allocation2 + $0xb0] sm:$0xff]
      %v6419 = vld [vmem:[#allocation2 + $0xb8] sm:$0xff]
      %6444 = vrot.lane.b32.xlu0 %v6396, 91
      %v6445 = vpop.permute.xlu0 %6444
      %6446 = vrot.lane.b32.xlu0 %v6397, 91
      %v6447 = vpop.permute.xlu0 %6446
      %6448 = vrot.lane.b32.xlu0 %v6398, 91
      %v6449 = vpop.permute.xlu0 %6448
      %6450 = vrot.lane.b32.xlu0 %v6399, 91
      %v6451 = vpop.permute.xlu0 %6450
      %6452 = vrot.lane.b32.xlu0 %v6400, 91
      %v6453 = vpop.permute.xlu0 %6452
      %6454 = vrot.lane.b32.xlu0 %v6401, 91
      %v6455 = vpop.permute.xlu0 %6454
      %6456 = vrot.lane.b32.xlu0 %v6402, 91
      %v6457 = vpop.permute.xlu0 %6456
      %6458 = vrot.lane.b32.xlu0 %v6403, 91
      %v6459 = vpop.permute.xlu0 %6458
      %6460 = vrot.lane.b32.xlu0 %v6404, 91
      %v6461 = vpop.permute.xlu0 %6460
      %6462 = vrot.lane.b32.xlu0 %v6405, 91
      %v6463 = vpop.permute.xlu0 %6462
      %6464 = vrot.lane.b32.xlu0 %v6406, 91
      %v6465 = vpop.permute.xlu0 %6464
      %6466 = vrot.lane.b32.xlu0 %v6407, 91
      %v6467 = vpop.permute.xlu0 %6466
      %6468 = vrot.lane.b32.xlu0 %v6408, 91
      %v6469 = vpop.permute.xlu0 %6468
      %6470 = vrot.lane.b32.xlu0 %v6409, 91
      %v6471 = vpop.permute.xlu0 %6470
      %6472 = vrot.lane.b32.xlu0 %v6410, 91
      %v6473 = vpop.permute.xlu0 %6472
      %6474 = vrot.lane.b32.xlu0 %v6411, 91
      %v6475 = vpop.permute.xlu0 %6474
      %6476 = vrot.lane.b32.xlu0 %v6412, 91
      %v6477 = vpop.permute.xlu0 %6476
      %6478 = vrot.lane.b32.xlu0 %v6413, 91
      %v6479 = vpop.permute.xlu0 %6478
      %6480 = vrot.lane.b32.xlu0 %v6414, 91
      %v6481 = vpop.permute.xlu0 %6480
      %6482 = vrot.lane.b32.xlu0 %v6415, 91
      %v6483 = vpop.permute.xlu0 %6482
      %6484 = vrot.lane.b32.xlu0 %v6416, 91
      %v6485 = vpop.permute.xlu0 %6484
      %6486 = vrot.lane.b32.xlu0 %v6417, 91
      %v6487 = vpop.permute.xlu0 %6486
      %6488 = vrot.lane.b32.xlu0 %v6418, 91
      %v6489 = vpop.permute.xlu0 %6488
      %6490 = vrot.lane.b32.xlu0 %v6419, 91
      %v6491 = vpop.permute.xlu0 %6490
      %v6492 = vsel %vm1382, %v6445, %v6447
      %v6493 = vsel %vm1382, %v6447, %v6449
      %v6494 = vsel %vm1382, %v6449, %v6451
      %v6495 = vsel %vm1382, %v6451, %v6453
      %v6496 = vsel %vm1382, %v6453, %v6455
      %v6497 = vsel %vm1382, %v6457, %v6459
      %v6498 = vsel %vm1382, %v6459, %v6461
      %v6499 = vsel %vm1382, %v6461, %v6463
      %v6500 = vsel %vm1382, %v6463, %v6465
      %v6501 = vsel %vm1382, %v6465, %v6467
      %v6502 = vsel %vm1382, %v6469, %v6471
      %v6503 = vsel %vm1382, %v6471, %v6473
      %v6504 = vsel %vm1382, %v6473, %v6475
      %v6505 = vsel %vm1382, %v6475, %v6477
      %v6506 = vsel %vm1382, %v6477, %v6479
      %v6507 = vsel %vm1382, %v6481, %v6483
      %v6508 = vsel %vm1382, %v6483, %v6485
      %v6509 = vsel %vm1382, %v6485, %v6487
      %v6510 = vsel %vm1382, %v6487, %v6489
      %v6511 = vsel %vm1382, %v6489, %v6491
      %6536 = vst [vmem:[#allocation3 + $0x540] sm:$0xff] %v6492
      %6537 = vst [vmem:[#allocation3 + $0x548] sm:$0xff] %v6493
      %6538 = vst [vmem:[#allocation3 + $0x550] sm:$0xff] %v6494
      %6539 = vst [vmem:[#allocation3 + $0x558] sm:$0xff] %v6495
      %6540 = vst [vmem:[#allocation3 + $0x560] sm:$0xff] %v6496
      %6541 = vst.msk [vmem:[#allocation3 + $0x568] sm:$0xff] %vm276, %v6455
      %6542 = vst [vmem:[#allocation3 + $0x570] sm:$0xff] %v6497
      %6543 = vst [vmem:[#allocation3 + $0x578] sm:$0xff] %v6498
      %6544 = vst [vmem:[#allocation3 + $0x580] sm:$0xff] %v6499
      %6545 = vst [vmem:[#allocation3 + $0x588] sm:$0xff] %v6500
      %6546 = vst [vmem:[#allocation3 + $0x590] sm:$0xff] %v6501
      %6547 = vst.msk [vmem:[#allocation3 + $0x598] sm:$0xff] %vm276, %v6467
      %6548 = vst [vmem:[#allocation3 + $0x5a0] sm:$0xff] %v6502
      %6549 = vst [vmem:[#allocation3 + $0x5a8] sm:$0xff] %v6503
      %6550 = vst [vmem:[#allocation3 + $0x5b0] sm:$0xff] %v6504
      %6551 = vst [vmem:[#allocation3 + $0x5b8] sm:$0xff] %v6505
      %6552 = vst [vmem:[#allocation3 + $0x5c0] sm:$0xff] %v6506
      %6553 = vst.msk [vmem:[#allocation3 + $0x5c8] sm:$0xff] %vm276, %v6479
      %6554 = vst [vmem:[#allocation3 + $0x5d0] sm:$0xff] %v6507
      %6555 = vst [vmem:[#allocation3 + $0x5d8] sm:$0xff] %v6508
      %6556 = vst [vmem:[#allocation3 + $0x5e0] sm:$0xff] %v6509
      %6557 = vst [vmem:[#allocation3 + $0x5e8] sm:$0xff] %v6510
      %6558 = vst [vmem:[#allocation3 + $0x5f0] sm:$0xff] %v6511
      %6559 = vst.msk [vmem:[#allocation3 + $0x5f8] sm:$0xff] %vm276, %v6491
      %v6560 = vld [vmem:[#allocation2] sm:$0xff]
      %v6561 = vld [vmem:[#allocation2 + $0x8] sm:$0xff]
      %v6562 = vld [vmem:[#allocation2 + $0x10] sm:$0xff]
      %v6563 = vld [vmem:[#allocation2 + $0x18] sm:$0xff]
      %v6564 = vld [vmem:[#allocation2 + $0x20] sm:$0xff]
      %v6565 = vld [vmem:[#allocation2 + $0x28] sm:$0xff]
      %v6566 = vld [vmem:[#allocation2 + $0x30] sm:$0xff]
      %v6567 = vld [vmem:[#allocation2 + $0x38] sm:$0xff]
      %v6568 = vld [vmem:[#allocation2 + $0x40] sm:$0xff]
      %v6569 = vld [vmem:[#allocation2 + $0x48] sm:$0xff]
      %v6570 = vld [vmem:[#allocation2 + $0x50] sm:$0xff]
      %v6571 = vld [vmem:[#allocation2 + $0x58] sm:$0xff]
      %v6572 = vld [vmem:[#allocation2 + $0x60] sm:$0xff]
      %v6573 = vld [vmem:[#allocation2 + $0x68] sm:$0xff]
      %v6574 = vld [vmem:[#allocation2 + $0x70] sm:$0xff]
      %v6575 = vld [vmem:[#allocation2 + $0x78] sm:$0xff]
      %v6576 = vld [vmem:[#allocation2 + $0x80] sm:$0xff]
      %v6577 = vld [vmem:[#allocation2 + $0x88] sm:$0xff]
      %v6578 = vld [vmem:[#allocation2 + $0x90] sm:$0xff]
      %v6579 = vld [vmem:[#allocation2 + $0x98] sm:$0xff]
      %v6580 = vld [vmem:[#allocation2 + $0xa0] sm:$0xff]
      %v6581 = vld [vmem:[#allocation2 + $0xa8] sm:$0xff]
      %v6582 = vld [vmem:[#allocation2 + $0xb0] sm:$0xff]
      %v6583 = vld [vmem:[#allocation2 + $0xb8] sm:$0xff]
      %6608 = vrot.lane.b32.xlu0 %v6560, 90
      %v6609 = vpop.permute.xlu0 %6608
      %6610 = vrot.lane.b32.xlu0 %v6561, 90
      %v6611 = vpop.permute.xlu0 %6610
      %6612 = vrot.lane.b32.xlu0 %v6562, 90
      %v6613 = vpop.permute.xlu0 %6612
      %6614 = vrot.lane.b32.xlu0 %v6563, 90
      %v6615 = vpop.permute.xlu0 %6614
      %6616 = vrot.lane.b32.xlu0 %v6564, 90
      %v6617 = vpop.permute.xlu0 %6616
      %6618 = vrot.lane.b32.xlu0 %v6565, 90
      %v6619 = vpop.permute.xlu0 %6618
      %6620 = vrot.lane.b32.xlu0 %v6566, 90
      %v6621 = vpop.permute.xlu0 %6620
      %6622 = vrot.lane.b32.xlu0 %v6567, 90
      %v6623 = vpop.permute.xlu0 %6622
      %6624 = vrot.lane.b32.xlu0 %v6568, 90
      %v6625 = vpop.permute.xlu0 %6624
      %6626 = vrot.lane.b32.xlu0 %v6569, 90
      %v6627 = vpop.permute.xlu0 %6626
      %6628 = vrot.lane.b32.xlu0 %v6570, 90
      %v6629 = vpop.permute.xlu0 %6628
      %6630 = vrot.lane.b32.xlu0 %v6571, 90
      %v6631 = vpop.permute.xlu0 %6630
      %6632 = vrot.lane.b32.xlu0 %v6572, 90
      %v6633 = vpop.permute.xlu0 %6632
      %6634 = vrot.lane.b32.xlu0 %v6573, 90
      %v6635 = vpop.permute.xlu0 %6634
      %6636 = vrot.lane.b32.xlu0 %v6574, 90
      %v6637 = vpop.permute.xlu0 %6636
      %6638 = vrot.lane.b32.xlu0 %v6575, 90
      %v6639 = vpop.permute.xlu0 %6638
      %6640 = vrot.lane.b32.xlu0 %v6576, 90
      %v6641 = vpop.permute.xlu0 %6640
      %6642 = vrot.lane.b32.xlu0 %v6577, 90
      %v6643 = vpop.permute.xlu0 %6642
      %6644 = vrot.lane.b32.xlu0 %v6578, 90
      %v6645 = vpop.permute.xlu0 %6644
      %6646 = vrot.lane.b32.xlu0 %v6579, 90
      %v6647 = vpop.permute.xlu0 %6646
      %6648 = vrot.lane.b32.xlu0 %v6580, 90
      %v6649 = vpop.permute.xlu0 %6648
      %6650 = vrot.lane.b32.xlu0 %v6581, 90
      %v6651 = vpop.permute.xlu0 %6650
      %6652 = vrot.lane.b32.xlu0 %v6582, 90
      %v6653 = vpop.permute.xlu0 %6652
      %6654 = vrot.lane.b32.xlu0 %v6583, 90
      %v6655 = vpop.permute.xlu0 %6654
      %v6656 = vsel %vm1547, %v6609, %v6611
      %v6657 = vsel %vm1547, %v6611, %v6613
      %v6658 = vsel %vm1547, %v6613, %v6615
      %v6659 = vsel %vm1547, %v6615, %v6617
      %v6660 = vsel %vm1547, %v6617, %v6619
      %v6661 = vsel %vm1547, %v6621, %v6623
      %v6662 = vsel %vm1547, %v6623, %v6625
      %v6663 = vsel %vm1547, %v6625, %v6627
      %v6664 = vsel %vm1547, %v6627, %v6629
      %v6665 = vsel %vm1547, %v6629, %v6631
      %v6666 = vsel %vm1547, %v6633, %v6635
      %v6667 = vsel %vm1547, %v6635, %v6637
      %v6668 = vsel %vm1547, %v6637, %v6639
      %v6669 = vsel %vm1547, %v6639, %v6641
      %v6670 = vsel %vm1547, %v6641, %v6643
      %v6671 = vsel %vm1547, %v6645, %v6647
      %v6672 = vsel %vm1547, %v6647, %v6649
      %v6673 = vsel %vm1547, %v6649, %v6651
      %v6674 = vsel %vm1547, %v6651, %v6653
      %v6675 = vsel %vm1547, %v6653, %v6655
      %6700 = vst [vmem:[#allocation3 + $0x600] sm:$0xff] %v6656
      %6701 = vst [vmem:[#allocation3 + $0x608] sm:$0xff] %v6657
      %6702 = vst [vmem:[#allocation3 + $0x610] sm:$0xff] %v6658
      %6703 = vst [vmem:[#allocation3 + $0x618] sm:$0xff] %v6659
      %6704 = vst [vmem:[#allocation3 + $0x620] sm:$0xff] %v6660
      %6705 = vst.msk [vmem:[#allocation3 + $0x628] sm:$0xff] %vm276, %v6619
      %6706 = vst [vmem:[#allocation3 + $0x630] sm:$0xff] %v6661
      %6707 = vst [vmem:[#allocation3 + $0x638] sm:$0xff] %v6662
      %6708 = vst [vmem:[#allocation3 + $0x640] sm:$0xff] %v6663
      %6709 = vst [vmem:[#allocation3 + $0x648] sm:$0xff] %v6664
      %6710 = vst [vmem:[#allocation3 + $0x650] sm:$0xff] %v6665
      %6711 = vst.msk [vmem:[#allocation3 + $0x658] sm:$0xff] %vm276, %v6631
      %6712 = vst [vmem:[#allocation3 + $0x660] sm:$0xff] %v6666
      %6713 = vst [vmem:[#allocation3 + $0x668] sm:$0xff] %v6667
      %6714 = vst [vmem:[#allocation3 + $0x670] sm:$0xff] %v6668
      %6715 = vst [vmem:[#allocation3 + $0x678] sm:$0xff] %v6669
      %6716 = vst [vmem:[#allocation3 + $0x680] sm:$0xff] %v6670
      %6717 = vst.msk [vmem:[#allocation3 + $0x688] sm:$0xff] %vm276, %v6643
      %6718 = vst [vmem:[#allocation3 + $0x690] sm:$0xff] %v6671
      %6719 = vst [vmem:[#allocation3 + $0x698] sm:$0xff] %v6672
      %6720 = vst [vmem:[#allocation3 + $0x6a0] sm:$0xff] %v6673
      %6721 = vst [vmem:[#allocation3 + $0x6a8] sm:$0xff] %v6674
      %6722 = vst [vmem:[#allocation3 + $0x6b0] sm:$0xff] %v6675
      %6723 = vst.msk [vmem:[#allocation3 + $0x6b8] sm:$0xff] %vm276, %v6655
      %s6724 = smul.u32 %s5223, 12
      %s6725 = smul.addr %s6724, 8
      %s6726 = scalar_lea.vmem [#allocation4], %s6725
      %v6727 = vld [vmem:[%s6726] sm:$0xff]
      %v6728 = vld [vmem:[%s6726 + $0x8] sm:$0xff]
      %v6729 = vld [vmem:[%s6726 + $0x10] sm:$0xff]
      %v6730 = vld [vmem:[%s6726 + $0x18] sm:$0xff]
      %v6731 = vld [vmem:[%s6726 + $0x20] sm:$0xff]
      %v6732 = vld [vmem:[%s6726 + $0x28] sm:$0xff]
      %v6733 = vld [vmem:[%s6726 + $0x30] sm:$0xff]
      %v6734 = vld [vmem:[%s6726 + $0x38] sm:$0xff]
      %v6735 = vld [vmem:[%s6726 + $0x40] sm:$0xff]
      %v6736 = vld [vmem:[%s6726 + $0x48] sm:$0xff]
      %v6737 = vld [vmem:[%s6726 + $0x50] sm:$0xff]
      %v6738 = vld [vmem:[%s6726 + $0x58] sm:$0xff]
      %v6739 = vld [vmem:[#allocation3] sm:$0xff]
      %v6740 = vld [vmem:[#allocation3 + $0x8] sm:$0xff]
      %v6741 = vld [vmem:[#allocation3 + $0x10] sm:$0xff]
      %v6742 = vld [vmem:[#allocation3 + $0x18] sm:$0xff]
      %v6743 = vld [vmem:[#allocation3 + $0x20] sm:$0xff]
      %v6744 = vld [vmem:[#allocation3 + $0x28] sm:$0xff]
      %v6745 = vld [vmem:[#allocation3 + $0x30] sm:$0xff]
      %v6746 = vld [vmem:[#allocation3 + $0x38] sm:$0xff]
      %v6747 = vld [vmem:[#allocation3 + $0x40] sm:$0xff]
      %v6748 = vld [vmem:[#allocation3 + $0x48] sm:$0xff]
      %v6749 = vld [vmem:[#allocation3 + $0x50] sm:$0xff]
      %v6750 = vld [vmem:[#allocation3 + $0x58] sm:$0xff]
      %v6751 = vld [vmem:[#allocation3 + $0x60] sm:$0xff]
      %v6752 = vld [vmem:[#allocation3 + $0x68] sm:$0xff]
      %v6753 = vld [vmem:[#allocation3 + $0x70] sm:$0xff]
      %v6754 = vld [vmem:[#allocation3 + $0x78] sm:$0xff]
      %v6755 = vld [vmem:[#allocation3 + $0x80] sm:$0xff]
      %v6756 = vld [vmem:[#allocation3 + $0x88] sm:$0xff]
      %v6757 = vld [vmem:[#allocation3 + $0x90] sm:$0xff]
      %v6758 = vld [vmem:[#allocation3 + $0x98] sm:$0xff]
      %v6759 = vld [vmem:[#allocation3 + $0xa0] sm:$0xff]
      %v6760 = vld [vmem:[#allocation3 + $0xa8] sm:$0xff]
      %v6761 = vld [vmem:[#allocation3 + $0xb0] sm:$0xff]
      %v6762 = vld [vmem:[#allocation3 + $0xb8] sm:$0xff]
      %v6763 = vld [vmem:[#allocation3 + $0xc0] sm:$0xff]
      %v6764 = vld [vmem:[#allocation3 + $0xc8] sm:$0xff]
      %v6765 = vld [vmem:[#allocation3 + $0xd0] sm:$0xff]
      %v6766 = vld [vmem:[#allocation3 + $0xd8] sm:$0xff]
      %v6767 = vld [vmem:[#allocation3 + $0xe0] sm:$0xff]
      %v6768 = vld [vmem:[#allocation3 + $0xe8] sm:$0xff]
      %v6769 = vld [vmem:[#allocation3 + $0xf0] sm:$0xff]
      %v6770 = vld [vmem:[#allocation3 + $0xf8] sm:$0xff]
      %v6771 = vld [vmem:[#allocation3 + $0x100] sm:$0xff]
      %v6772 = vld [vmem:[#allocation3 + $0x108] sm:$0xff]
      %v6773 = vld [vmem:[#allocation3 + $0x110] sm:$0xff]
      %v6774 = vld [vmem:[#allocation3 + $0x118] sm:$0xff]
      %v6775 = vld [vmem:[#allocation3 + $0x120] sm:$0xff]
      %v6776 = vld [vmem:[#allocation3 + $0x128] sm:$0xff]
      %v6777 = vld [vmem:[#allocation3 + $0x130] sm:$0xff]
      %v6778 = vld [vmem:[#allocation3 + $0x138] sm:$0xff]
      %v6779 = vld [vmem:[#allocation3 + $0x140] sm:$0xff]
      %v6780 = vld [vmem:[#allocation3 + $0x148] sm:$0xff]
      %v6781 = vld [vmem:[#allocation3 + $0x150] sm:$0xff]
      %v6782 = vld [vmem:[#allocation3 + $0x158] sm:$0xff]
      %v6783 = vld [vmem:[#allocation3 + $0x160] sm:$0xff]
      %v6784 = vld [vmem:[#allocation3 + $0x168] sm:$0xff]
      %v6785 = vld [vmem:[#allocation3 + $0x170] sm:$0xff]
      %v6786 = vld [vmem:[#allocation3 + $0x178] sm:$0xff]
      %v6787 = vld [vmem:[#allocation3 + $0x180] sm:$0xff]
      %v6788 = vld [vmem:[#allocation3 + $0x188] sm:$0xff]
      %v6789 = vld [vmem:[#allocation3 + $0x190] sm:$0xff]
      %v6790 = vld [vmem:[#allocation3 + $0x198] sm:$0xff]
      %v6791 = vld [vmem:[#allocation3 + $0x1a0] sm:$0xff]
      %v6792 = vld [vmem:[#allocation3 + $0x1a8] sm:$0xff]
      %v6793 = vld [vmem:[#allocation3 + $0x1b0] sm:$0xff]
      %v6794 = vld [vmem:[#allocation3 + $0x1b8] sm:$0xff]
      %v6795 = vld [vmem:[#allocation3 + $0x1c0] sm:$0xff]
      %v6796 = vld [vmem:[#allocation3 + $0x1c8] sm:$0xff]
      %v6797 = vld [vmem:[#allocation3 + $0x1d0] sm:$0xff]
      %v6798 = vld [vmem:[#allocation3 + $0x1d8] sm:$0xff]
      %v6799 = vld [vmem:[#allocation3 + $0x1e0] sm:$0xff]
      %v6800 = vld [vmem:[#allocation3 + $0x1e8] sm:$0xff]
      %v6801 = vld [vmem:[#allocation3 + $0x1f0] sm:$0xff]
      %v6802 = vld [vmem:[#allocation3 + $0x1f8] sm:$0xff]
      %v6803 = vld [vmem:[#allocation3 + $0x200] sm:$0xff]
      %v6804 = vld [vmem:[#allocation3 + $0x208] sm:$0xff]
      %v6805 = vld [vmem:[#allocation3 + $0x210] sm:$0xff]
      %v6806 = vld [vmem:[#allocation3 + $0x218] sm:$0xff]
      %v6807 = vld [vmem:[#allocation3 + $0x220] sm:$0xff]
      %v6808 = vld [vmem:[#allocation3 + $0x228] sm:$0xff]
      %v6809 = vld [vmem:[#allocation3 + $0x230] sm:$0xff]
      %v6810 = vld [vmem:[#allocation3 + $0x238] sm:$0xff]
      %v6811 = vld [vmem:[#allocation3 + $0x240] sm:$0xff]
      %v6812 = vld [vmem:[#allocation3 + $0x248] sm:$0xff]
      %v6813 = vld [vmem:[#allocation3 + $0x250] sm:$0xff]
      %v6814 = vld [vmem:[#allocation3 + $0x258] sm:$0xff]
      %v6815 = vld [vmem:[#allocation3 + $0x260] sm:$0xff]
      %v6816 = vld [vmem:[#allocation3 + $0x268] sm:$0xff]
      %v6817 = vld [vmem:[#allocation3 + $0x270] sm:$0xff]
      %v6818 = vld [vmem:[#allocation3 + $0x278] sm:$0xff]
      %v6819 = vld [vmem:[#allocation3 + $0x280] sm:$0xff]
      %v6820 = vld [vmem:[#allocation3 + $0x288] sm:$0xff]
      %v6821 = vld [vmem:[#allocation3 + $0x290] sm:$0xff]
      %v6822 = vld [vmem:[#allocation3 + $0x298] sm:$0xff]
      %v6823 = vld [vmem:[#allocation3 + $0x2a0] sm:$0xff]
      %v6824 = vld [vmem:[#allocation3 + $0x2a8] sm:$0xff]
      %v6825 = vld [vmem:[#allocation3 + $0x2b0] sm:$0xff]
      %v6826 = vld [vmem:[#allocation3 + $0x2b8] sm:$0xff]
      %v6827 = vld [vmem:[#allocation3 + $0x2c0] sm:$0xff]
      %v6828 = vld [vmem:[#allocation3 + $0x2c8] sm:$0xff]
      %v6829 = vld [vmem:[#allocation3 + $0x2d0] sm:$0xff]
      %v6830 = vld [vmem:[#allocation3 + $0x2d8] sm:$0xff]
      %v6831 = vld [vmem:[#allocation3 + $0x2e0] sm:$0xff]
      %v6832 = vld [vmem:[#allocation3 + $0x2e8] sm:$0xff]
      %v6833 = vld [vmem:[#allocation3 + $0x2f0] sm:$0xff]
      %v6834 = vld [vmem:[#allocation3 + $0x2f8] sm:$0xff]
      %v6835 = vld [vmem:[#allocation3 + $0x300] sm:$0xff]
      %v6836 = vld [vmem:[#allocation3 + $0x308] sm:$0xff]
      %v6837 = vld [vmem:[#allocation3 + $0x310] sm:$0xff]
      %v6838 = vld [vmem:[#allocation3 + $0x318] sm:$0xff]
      %v6839 = vld [vmem:[#allocation3 + $0x320] sm:$0xff]
      %v6840 = vld [vmem:[#allocation3 + $0x328] sm:$0xff]
      %v6841 = vld [vmem:[#allocation3 + $0x330] sm:$0xff]
      %v6842 = vld [vmem:[#allocation3 + $0x338] sm:$0xff]
      %v6843 = vld [vmem:[#allocation3 + $0x340] sm:$0xff]
      %v6844 = vld [vmem:[#allocation3 + $0x348] sm:$0xff]
      %v6845 = vld [vmem:[#allocation3 + $0x350] sm:$0xff]
      %v6846 = vld [vmem:[#allocation3 + $0x358] sm:$0xff]
      %v6847 = vld [vmem:[#allocation3 + $0x360] sm:$0xff]
      %v6848 = vld [vmem:[#allocation3 + $0x368] sm:$0xff]
      %v6849 = vld [vmem:[#allocation3 + $0x370] sm:$0xff]
      %v6850 = vld [vmem:[#allocation3 + $0x378] sm:$0xff]
      %v6851 = vld [vmem:[#allocation3 + $0x380] sm:$0xff]
      %v6852 = vld [vmem:[#allocation3 + $0x388] sm:$0xff]
      %v6853 = vld [vmem:[#allocation3 + $0x390] sm:$0xff]
      %v6854 = vld [vmem:[#allocation3 + $0x398] sm:$0xff]
      %v6855 = vld [vmem:[#allocation3 + $0x3a0] sm:$0xff]
      %v6856 = vld [vmem:[#allocation3 + $0x3a8] sm:$0xff]
      %v6857 = vld [vmem:[#allocation3 + $0x3b0] sm:$0xff]
      %v6858 = vld [vmem:[#allocation3 + $0x3b8] sm:$0xff]
      %v6859 = vld [vmem:[#allocation3 + $0x3c0] sm:$0xff]
      %v6860 = vld [vmem:[#allocation3 + $0x3c8] sm:$0xff]
      %v6861 = vld [vmem:[#allocation3 + $0x3d0] sm:$0xff]
      %v6862 = vld [vmem:[#allocation3 + $0x3d8] sm:$0xff]
      %v6863 = vld [vmem:[#allocation3 + $0x3e0] sm:$0xff]
      %v6864 = vld [vmem:[#allocation3 + $0x3e8] sm:$0xff]
      %v6865 = vld [vmem:[#allocation3 + $0x3f0] sm:$0xff]
      %v6866 = vld [vmem:[#allocation3 + $0x3f8] sm:$0xff]
      %v6867 = vld [vmem:[#allocation3 + $0x400] sm:$0xff]
      %v6868 = vld [vmem:[#allocation3 + $0x408] sm:$0xff]
      %v6869 = vld [vmem:[#allocation3 + $0x410] sm:$0xff]
      %v6870 = vld [vmem:[#allocation3 + $0x418] sm:$0xff]
      %v6871 = vld [vmem:[#allocation3 + $0x420] sm:$0xff]
      %v6872 = vld [vmem:[#allocation3 + $0x428] sm:$0xff]
      %v6873 = vld [vmem:[#allocation3 + $0x430] sm:$0xff]
      %v6874 = vld [vmem:[#allocation3 + $0x438] sm:$0xff]
      %v6875 = vld [vmem:[#allocation3 + $0x440] sm:$0xff]
      %v6876 = vld [vmem:[#allocation3 + $0x448] sm:$0xff]
      %v6877 = vld [vmem:[#allocation3 + $0x450] sm:$0xff]
      %v6878 = vld [vmem:[#allocation3 + $0x458] sm:$0xff]
      %v6879 = vld [vmem:[#allocation3 + $0x460] sm:$0xff]
      %v6880 = vld [vmem:[#allocation3 + $0x468] sm:$0xff]
      %v6881 = vld [vmem:[#allocation3 + $0x470] sm:$0xff]
      %v6882 = vld [vmem:[#allocation3 + $0x478] sm:$0xff]
      %v6883 = vld [vmem:[#allocation3 + $0x480] sm:$0xff]
      %v6884 = vld [vmem:[#allocation3 + $0x488] sm:$0xff]
      %v6885 = vld [vmem:[#allocation3 + $0x490] sm:$0xff]
      %v6886 = vld [vmem:[#allocation3 + $0x498] sm:$0xff]
      %v6887 = vld [vmem:[#allocation3 + $0x4a0] sm:$0xff]
      %v6888 = vld [vmem:[#allocation3 + $0x4a8] sm:$0xff]
      %v6889 = vld [vmem:[#allocation3 + $0x4b0] sm:$0xff]
      %v6890 = vld [vmem:[#allocation3 + $0x4b8] sm:$0xff]
      %v6891 = vld [vmem:[#allocation3 + $0x4c0] sm:$0xff]
      %v6892 = vld [vmem:[#allocation3 + $0x4c8] sm:$0xff]
      %v6893 = vld [vmem:[#allocation3 + $0x4d0] sm:$0xff]
      %v6894 = vld [vmem:[#allocation3 + $0x4d8] sm:$0xff]
      %v6895 = vld [vmem:[#allocation3 + $0x4e0] sm:$0xff]
      %v6896 = vld [vmem:[#allocation3 + $0x4e8] sm:$0xff]
      %v6897 = vld [vmem:[#allocation3 + $0x4f0] sm:$0xff]
      %v6898 = vld [vmem:[#allocation3 + $0x4f8] sm:$0xff]
      %v6899 = vld [vmem:[#allocation3 + $0x500] sm:$0xff]
      %v6900 = vld [vmem:[#allocation3 + $0x508] sm:$0xff]
      %v6901 = vld [vmem:[#allocation3 + $0x510] sm:$0xff]
      %v6902 = vld [vmem:[#allocation3 + $0x518] sm:$0xff]
      %v6903 = vld [vmem:[#allocation3 + $0x520] sm:$0xff]
      %v6904 = vld [vmem:[#allocation3 + $0x528] sm:$0xff]
      %v6905 = vld [vmem:[#allocation3 + $0x530] sm:$0xff]
      %v6906 = vld [vmem:[#allocation3 + $0x538] sm:$0xff]
      %v6907 = vld [vmem:[#allocation3 + $0x540] sm:$0xff]
      %v6908 = vld [vmem:[#allocation3 + $0x548] sm:$0xff]
      %v6909 = vld [vmem:[#allocation3 + $0x550] sm:$0xff]
      %v6910 = vld [vmem:[#allocation3 + $0x558] sm:$0xff]
      %v6911 = vld [vmem:[#allocation3 + $0x560] sm:$0xff]
      %v6912 = vld [vmem:[#allocation3 + $0x568] sm:$0xff]
      %v6913 = vld [vmem:[#allocation3 + $0x570] sm:$0xff]
      %v6914 = vld [vmem:[#allocation3 + $0x578] sm:$0xff]
      %v6915 = vld [vmem:[#allocation3 + $0x580] sm:$0xff]
      %v6916 = vld [vmem:[#allocation3 + $0x588] sm:$0xff]
      %v6917 = vld [vmem:[#allocation3 + $0x590] sm:$0xff]
      %v6918 = vld [vmem:[#allocation3 + $0x598] sm:$0xff]
      %v6919 = vld [vmem:[#allocation3 + $0x5a0] sm:$0xff]
      %v6920 = vld [vmem:[#allocation3 + $0x5a8] sm:$0xff]
      %v6921 = vld [vmem:[#allocation3 + $0x5b0] sm:$0xff]
      %v6922 = vld [vmem:[#allocation3 + $0x5b8] sm:$0xff]
      %v6923 = vld [vmem:[#allocation3 + $0x5c0] sm:$0xff]
      %v6924 = vld [vmem:[#allocation3 + $0x5c8] sm:$0xff]
      %v6925 = vld [vmem:[#allocation3 + $0x5d0] sm:$0xff]
      %v6926 = vld [vmem:[#allocation3 + $0x5d8] sm:$0xff]
      %v6927 = vld [vmem:[#allocation3 + $0x5e0] sm:$0xff]
      %v6928 = vld [vmem:[#allocation3 + $0x5e8] sm:$0xff]
      %v6929 = vld [vmem:[#allocation3 + $0x5f0] sm:$0xff]
      %v6930 = vld [vmem:[#allocation3 + $0x5f8] sm:$0xff]
      %v6931 = vld [vmem:[#allocation3 + $0x600] sm:$0xff]
      %v6932 = vld [vmem:[#allocation3 + $0x608] sm:$0xff]
      %v6933 = vld [vmem:[#allocation3 + $0x610] sm:$0xff]
      %v6934 = vld [vmem:[#allocation3 + $0x618] sm:$0xff]
      %v6935 = vld [vmem:[#allocation3 + $0x620] sm:$0xff]
      %v6936 = vld [vmem:[#allocation3 + $0x628] sm:$0xff]
      %v6937 = vld [vmem:[#allocation3 + $0x630] sm:$0xff]
      %v6938 = vld [vmem:[#allocation3 + $0x638] sm:$0xff]
      %v6939 = vld [vmem:[#allocation3 + $0x640] sm:$0xff]
      %v6940 = vld [vmem:[#allocation3 + $0x648] sm:$0xff]
      %v6941 = vld [vmem:[#allocation3 + $0x650] sm:$0xff]
      %v6942 = vld [vmem:[#allocation3 + $0x658] sm:$0xff]
      %v6943 = vld [vmem:[#allocation3 + $0x660] sm:$0xff]
      %v6944 = vld [vmem:[#allocation3 + $0x668] sm:$0xff]
      %v6945 = vld [vmem:[#allocation3 + $0x670] sm:$0xff]
      %v6946 = vld [vmem:[#allocation3 + $0x678] sm:$0xff]
      %v6947 = vld [vmem:[#allocation3 + $0x680] sm:$0xff]
      %v6948 = vld [vmem:[#allocation3 + $0x688] sm:$0xff]
      %v6949 = vld [vmem:[#allocation3 + $0x690] sm:$0xff]
      %v6950 = vld [vmem:[#allocation3 + $0x698] sm:$0xff]
      %v6951 = vld [vmem:[#allocation3 + $0x6a0] sm:$0xff]
      %v6952 = vld [vmem:[#allocation3 + $0x6a8] sm:$0xff]
      %v6953 = vld [vmem:[#allocation3 + $0x6b0] sm:$0xff]
      %v6954 = vld [vmem:[#allocation3 + $0x6b8] sm:$0xff]
      %v6956 = vsel %vm1847, %v6729, 0
      %v6959 = vsel %vm1847, %v6732, 0
      %v6962 = vsel %vm1847, %v6735, 0
      %v6965 = vsel %vm1847, %v6738, 0
      %6967 = vmatprep.subr.mxu0 %v6740
      %6968 = vmatpush1.msra.mxu0 %v6739
      %6969 = vmatprep.subr.mxu0 %v6746
      %6970 = vmatpush1.msra.mxu0 %v6745
      %6971 = vmatprep.subr.mxu0 %v6752
      %6972 = vmatpush1.msra.mxu0 %v6751
      %6973 = vmatprep.subr.mxu0 %v6758
      %6974 = vmatpush1.msra.mxu0 %v6757
      %6975 = vmatprep.subr.mxu0 %v6764
      %6976 = vmatpush1.msra.mxu0 %v6763
      %6977 = vmatprep.subr.mxu0 %v6770
      %6978 = vmatpush1.msra.mxu0 %v6769
      %6979 = vmatprep.subr.mxu0 %v6776
      %6980 = vmatpush1.msra.mxu0 %v6775
      %6981 = vmatprep.subr.mxu0 %v6782
      %6982 = vmatpush1.msra.mxu0 %v6781
      %6983 = vmatprep.subr.mxu0 %v6788
      %6984 = vmatpush1.msra.mxu0 %v6787
      %6985 = vmatprep.subr.mxu0 %v6794
      %6986 = vmatpush1.msra.mxu0 %v6793
      %6987 = vmatprep.subr.mxu0 %v6800
      %6988 = vmatpush1.msra.mxu0 %v6799
      %6989 = vmatprep.subr.mxu0 %v6806
      %6990 = vmatpush1.msra.mxu0 %v6805
      %6991 = vmatprep.subr.mxu0 %v6812
      %6992 = vmatpush1.msra.mxu0 %v6811
      %6993 = vmatprep.subr.mxu0 %v6818
      %6994 = vmatpush1.msra.mxu0 %v6817
      %6995 = vmatprep.subr.mxu0 %v6824
      %6996 = vmatpush1.msra.mxu0 %v6823
      %6997 = vmatprep.subr.mxu0 %v6830
      %6998 = vmatpush1.msra.mxu0 %v6829
      %6999 = vmatprep.subr.mxu0 %v6836
      %7000 = vmatpush1.msra.mxu0 %v6835
      %7001 = vmatprep.subr.mxu0 %v6842
      %7002 = vmatpush1.msra.mxu0 %v6841
      %7003 = vmatprep.subr.mxu0 %v6848
      %7004 = vmatpush1.msra.mxu0 %v6847
      %7005 = vmatprep.subr.mxu0 %v6854
      %7006 = vmatpush1.msra.mxu0 %v6853
      %7007 = vmatprep.subr.mxu0 %v6860
      %7008 = vmatpush1.msra.mxu0 %v6859
      %7009 = vmatprep.subr.mxu0 %v6866
      %7010 = vmatpush1.msra.mxu0 %v6865
      %7011 = vmatprep.subr.mxu0 %v6872
      %7012 = vmatpush1.msra.mxu0 %v6871
      %7013 = vmatprep.subr.mxu0 %v6878
      %7014 = vmatpush1.msra.mxu0 %v6877
      %7015 = vmatprep.subr.mxu0 %v6884
      %7016 = vmatpush1.msra.mxu0 %v6883
      %7017 = vmatprep.subr.mxu0 %v6890
      %7018 = vmatpush1.msra.mxu0 %v6889
      %7019 = vmatprep.subr.mxu0 %v6896
      %7020 = vmatpush1.msra.mxu0 %v6895
      %7021 = vmatprep.subr.mxu0 %v6902
      %7022 = vmatpush1.msra.mxu0 %v6901
      %7023 = vmatprep.subr.mxu0 %v6908
      %7024 = vmatpush1.msra.mxu0 %v6907
      %7025 = vmatprep.subr.mxu0 %v6914
      %7026 = vmatpush1.msra.mxu0 %v6913
      %7027 = vmatprep.subr.mxu0 %v6920
      %7028 = vmatpush1.msra.mxu0 %v6919
      %7029 = vmatprep.subr.mxu0 %v6926
      %7030 = vmatpush1.msra.mxu0 %v6925
      %7031 = vmatprep.mubr.f32.mxu0 %v6728
      %7032 = vmatmul.mubr.f32.gmra.mrb[0].mxu0 %v6727
      %v7033 = vpop.f32.mrb[0].mxu0
      %v7034 = vadd.f32 0.0, %v7033
      %v7035 = vpop.f32.mrb[0].mxu0
      %v7036 = vadd.f32 0.0, %v7035
      %7037 = vmatprep.mubr.f32.mxu0 %v6731
      %7038 = vmatmul.mubr.f32.gmra.mrb[0].mxu0 %v6730
      %v7039 = vpop.f32.mrb[0].mxu0
      %v7040 = vadd.f32 0.0, %v7039
      %v7041 = vpop.f32.mrb[0].mxu0
      %v7042 = vadd.f32 0.0, %v7041
      %7043 = vmatprep.mubr.f32.mxu0 %v6734
      %7044 = vmatmul.mubr.f32.gmra.mrb[0].mxu0 %v6733
      %v7045 = vpop.f32.mrb[0].mxu0
      %v7046 = vadd.f32 0.0, %v7045
      %v7047 = vpop.f32.mrb[0].mxu0
      %v7048 = vadd.f32 0.0, %v7047
      %7049 = vmatprep.mubr.f32.mxu0 %v6737
      %7050 = vmatmul.mubr.f32.gmra.mrb[0].mxu0 %v6736
      %v7051 = vpop.f32.mrb[0].mxu0
      %v7052 = vadd.f32 0.0, %v7051
      %v7053 = vpop.f32.mrb[0].mxu0
      %v7054 = vadd.f32 0.0, %v7053
      %7055 = vdwg.mxu0
      %7056 = vmatprep.subr.mxu0 %v6932
      %7057 = vmatpush1.msra.mxu0 %v6931
      %7058 = vmatprep.subr.mxu0 %v6938
      %7059 = vmatpush1.msra.mxu0 %v6937
      %7060 = vmatprep.subr.mxu0 %v6944
      %7061 = vmatpush1.msra.mxu0 %v6943
      %7062 = vmatprep.subr.mxu0 %v6950
      %7063 = vmatpush1.msra.mxu0 %v6949
      %7064 = vmatprep.subr.mxu0 0.0
      %7065 = vmatpush1.msra.mxu0 0.0
      %7066 = vmatprep.subr.mxu0 0.0
      %7067 = vmatpush1.msra.mxu0 0.0
      %7068 = vmatprep.subr.mxu0 0.0
      %7069 = vmatpush1.msra.mxu0 0.0
      %7070 = vmatprep.subr.mxu0 0.0
      %7071 = vmatpush1.msra.mxu0 0.0
      %7072 = vmatprep.subr.mxu0 0.0
      %7073 = vmatpush1.msra.mxu0 0.0
      %7074 = vmatprep.subr.mxu0 0.0
      %7075 = vmatpush1.msra.mxu0 0.0
      %7076 = vmatprep.subr.mxu0 0.0
      %7077 = vmatpush1.msra.mxu0 0.0
      %7078 = vmatprep.subr.mxu0 0.0
      %7079 = vmatpush1.msra.mxu0 0.0
      %7080 = vmatprep.subr.mxu0 0.0
      %7081 = vmatpush1.msra.mxu0 0.0
      %7082 = vmatprep.subr.mxu0 0.0
      %7083 = vmatpush1.msra.mxu0 0.0
      %7084 = vmatprep.subr.mxu0 0.0
      %7085 = vmatpush1.msra.mxu0 0.0
      %7086 = vmatprep.subr.mxu0 0.0
      %7087 = vmatpush1.msra.mxu0 0.0
      %7088 = vmatprep.subr.mxu0 0.0
      %7089 = vmatpush1.msra.mxu0 0.0
      %7090 = vmatprep.subr.mxu0 0.0
      %7091 = vmatpush1.msra.mxu0 0.0
      %7092 = vmatprep.subr.mxu0 0.0
      %7093 = vmatpush1.msra.mxu0 0.0
      %7094 = vmatprep.subr.mxu0 0.0
      %7095 = vmatpush1.msra.mxu0 0.0
      %7096 = vmatprep.subr.mxu0 0.0
      %7097 = vmatpush1.msra.mxu0 0.0
      %7098 = vmatprep.subr.mxu0 0.0
      %7099 = vmatpush1.msra.mxu0 0.0
      %7100 = vmatprep.subr.mxu0 0.0
      %7101 = vmatpush1.msra.mxu0 0.0
      %7102 = vmatprep.subr.mxu0 0.0
      %7103 = vmatpush1.msra.mxu0 0.0
      %7104 = vmatprep.subr.mxu0 0.0
      %7105 = vmatpush1.msra.mxu0 0.0
      %7106 = vmatprep.subr.mxu0 0.0
      %7107 = vmatpush1.msra.mxu0 0.0
      %7108 = vmatprep.subr.mxu0 0.0
      %7109 = vmatpush1.msra.mxu0 0.0
      %7110 = vmatprep.subr.mxu0 0.0
      %7111 = vmatpush1.msra.mxu0 0.0
      %7112 = vmatprep.subr.mxu0 0.0
      %7113 = vmatpush1.msra.mxu0 0.0
      %7114 = vmatprep.subr.mxu0 0.0
      %7115 = vmatpush1.msra.mxu0 0.0
      %7116 = vmatprep.subr.mxu0 0.0
      %7117 = vmatpush1.msra.mxu0 0.0
      %7118 = vmatprep.subr.mxu0 0.0
      %7119 = vmatpush1.msra.mxu0 0.0
      %7120 = vmatprep.mubr.f32.mxu0 0.0
      %7121 = vmatmul.mubr.f32.gmra.mrb[0].mxu0 %v6956
      %v7122 = vpop.f32.mrb[0].mxu0
      %v7123 = vadd.f32 %v7034, %v7122
      %v7124 = vpop.f32.mrb[0].mxu0
      %v7125 = vadd.f32 %v7036, %v7124
      %7126 = vmatprep.mubr.f32.mxu0 0.0
      %7127 = vmatmul.mubr.f32.gmra.mrb[0].mxu0 %v6959
      %v7128 = vpop.f32.mrb[0].mxu0
      %v7129 = vadd.f32 %v7040, %v7128
      %v7130 = vpop.f32.mrb[0].mxu0
      %v7131 = vadd.f32 %v7042, %v7130
      %7132 = vmatprep.mubr.f32.mxu0 0.0
      %7133 = vmatmul.mubr.f32.gmra.mrb[0].mxu0 %v6962
      %v7134 = vpop.f32.mrb[0].mxu0
      %v7135 = vadd.f32 %v7046, %v7134
      %v7136 = vpop.f32.mrb[0].mxu0
      %v7137 = vadd.f32 %v7048, %v7136
      %7138 = vmatprep.mubr.f32.mxu0 0.0
      %7139 = vmatmul.mubr.f32.gmra.mrb[0].mxu0 %v6965
      %v7140 = vpop.f32.mrb[0].mxu0
      %v7141 = vadd.f32 %v7052, %v7140
      %v7142 = vpop.f32.mrb[0].mxu0
      %v7143 = vadd.f32 %v7054, %v7142
      %7144 = vdwg.mxu0
      %7145 = vmatprep.subr.mxu0 %v6742
      %7146 = vmatpush1.msra.mxu0 %v6741
      %7147 = vmatprep.subr.mxu0 %v6748
      %7148 = vmatpush1.msra.mxu0 %v6747
      %7149 = vmatprep.subr.mxu0 %v6754
      %7150 = vmatpush1.msra.mxu0 %v6753
      %7151 = vmatprep.subr.mxu0 %v6760
      %7152 = vmatpush1.msra.mxu0 %v6759
      %7153 = vmatprep.subr.mxu0 %v6766
      %7154 = vmatpush1.msra.mxu0 %v6765
      %7155 = vmatprep.subr.mxu0 %v6772
      %7156 = vmatpush1.msra.mxu0 %v6771
      %7157 = vmatprep.subr.mxu0 %v6778
      %7158 = vmatpush1.msra.mxu0 %v6777
      %7159 = vmatprep.subr.mxu0 %v6784
      %7160 = vmatpush1.msra.mxu0 %v6783
      %7161 = vmatprep.subr.mxu0 %v6790
      %7162 = vmatpush1.msra.mxu0 %v6789
      %7163 = vmatprep.subr.mxu0 %v6796
      %7164 = vmatpush1.msra.mxu0 %v6795
      %7165 = vmatprep.subr.mxu0 %v6802
      %7166 = vmatpush1.msra.mxu0 %v6801
      %7167 = vmatprep.subr.mxu0 %v6808
      %7168 = vmatpush1.msra.mxu0 %v6807
      %7169 = vmatprep.subr.mxu0 %v6814
      %7170 = vmatpush1.msra.mxu0 %v6813
      %7171 = vmatprep.subr.mxu0 %v6820
      %7172 = vmatpush1.msra.mxu0 %v6819
      %7173 = vmatprep.subr.mxu0 %v6826
      %7174 = vmatpush1.msra.mxu0 %v6825
      %7175 = vmatprep.subr.mxu0 %v6832
      %7176 = vmatpush1.msra.mxu0 %v6831
      %7177 = vmatprep.subr.mxu0 %v6838
      %7178 = vmatpush1.msra.mxu0 %v6837
      %7179 = vmatprep.subr.mxu0 %v6844
      %7180 = vmatpush1.msra.mxu0 %v6843
      %7181 = vmatprep.subr.mxu0 %v6850
      %7182 = vmatpush1.msra.mxu0 %v6849
      %7183 = vmatprep.subr.mxu0 %v6856
      %7184 = vmatpush1.msra.mxu0 %v6855
      %7185 = vmatprep.subr.mxu0 %v6862
      %7186 = vmatpush1.msra.mxu0 %v6861
      %7187 = vmatprep.subr.mxu0 %v6868
      %7188 = vmatpush1.msra.mxu0 %v6867
      %7189 = vmatprep.subr.mxu0 %v6874
      %7190 = vmatpush1.msra.mxu0 %v6873
      %7191 = vmatprep.subr.mxu0 %v6880
      %7192 = vmatpush1.msra.mxu0 %v6879
      %7193 = vmatprep.subr.mxu0 %v6886
      %7194 = vmatpush1.msra.mxu0 %v6885
      %7195 = vmatprep.subr.mxu0 %v6892
      %7196 = vmatpush1.msra.mxu0 %v6891
      %7197 = vmatprep.subr.mxu0 %v6898
      %7198 = vmatpush1.msra.mxu0 %v6897
      %7199 = vmatprep.subr.mxu0 %v6904
      %7200 = vmatpush1.msra.mxu0 %v6903
      %7201 = vmatprep.subr.mxu0 %v6910
      %7202 = vmatpush1.msra.mxu0 %v6909
      %7203 = vmatprep.subr.mxu0 %v6916
      %7204 = vmatpush1.msra.mxu0 %v6915
      %7205 = vmatprep.subr.mxu0 %v6922
      %7206 = vmatpush1.msra.mxu0 %v6921
      %7207 = vmatprep.subr.mxu0 %v6928
      %7208 = vmatpush1.msra.mxu0 %v6927
      %7209 = vmatprep.mubr.f32.mxu0 %v6728
      %7210 = vmatmul.mubr.f32.gmra.mrb[0].mxu0 %v6727
      %v7211 = vpop.f32.mrb[0].mxu0
      %v7212 = vadd.f32 0.0, %v7211
      %v7213 = vpop.f32.mrb[0].mxu0
      %v7214 = vadd.f32 0.0, %v7213
      %7215 = vmatprep.mubr.f32.mxu0 %v6731
      %7216 = vmatmul.mubr.f32.gmra.mrb[0].mxu0 %v6730
      %v7217 = vpop.f32.mrb[0].mxu0
      %v7218 = vadd.f32 0.0, %v7217
      %v7219 = vpop.f32.mrb[0].mxu0
      %v7220 = vadd.f32 0.0, %v7219
      %7221 = vmatprep.mubr.f32.mxu0 %v6734
      %7222 = vmatmul.mubr.f32.gmra.mrb[0].mxu0 %v6733
      %v7223 = vpop.f32.mrb[0].mxu0
      %v7224 = vadd.f32 0.0, %v7223
      %v7225 = vpop.f32.mrb[0].mxu0
      %v7226 = vadd.f32 0.0, %v7225
      %7227 = vmatprep.mubr.f32.mxu0 %v6737
      %7228 = vmatmul.mubr.f32.gmra.mrb[0].mxu0 %v6736
      %v7229 = vpop.f32.mrb[0].mxu0
      %v7230 = vadd.f32 0.0, %v7229
      %v7231 = vpop.f32.mrb[0].mxu0
      %v7232 = vadd.f32 0.0, %v7231
      %7233 = vdwg.mxu0
      %7234 = vmatprep.subr.mxu0 %v6934
      %7235 = vmatpush1.msra.mxu0 %v6933
      %7236 = vmatprep.subr.mxu0 %v6940
      %7237 = vmatpush1.msra.mxu0 %v6939
      %7238 = vmatprep.subr.mxu0 %v6946
      %7239 = vmatpush1.msra.mxu0 %v6945
      %7240 = vmatprep.subr.mxu0 %v6952
      %7241 = vmatpush1.msra.mxu0 %v6951
      %7242 = vmatprep.subr.mxu0 0.0
      %7243 = vmatpush1.msra.mxu0 0.0
      %7244 = vmatprep.subr.mxu0 0.0
      %7245 = vmatpush1.msra.mxu0 0.0
      %7246 = vmatprep.subr.mxu0 0.0
      %7247 = vmatpush1.msra.mxu0 0.0
      %7248 = vmatprep.subr.mxu0 0.0
      %7249 = vmatpush1.msra.mxu0 0.0
      %7250 = vmatprep.subr.mxu0 0.0
      %7251 = vmatpush1.msra.mxu0 0.0
      %7252 = vmatprep.subr.mxu0 0.0
      %7253 = vmatpush1.msra.mxu0 0.0
      %7254 = vmatprep.subr.mxu0 0.0
      %7255 = vmatpush1.msra.mxu0 0.0
      %7256 = vmatprep.subr.mxu0 0.0
      %7257 = vmatpush1.msra.mxu0 0.0
      %7258 = vmatprep.subr.mxu0 0.0
      %7259 = vmatpush1.msra.mxu0 0.0
      %7260 = vmatprep.subr.mxu0 0.0
      %7261 = vmatpush1.msra.mxu0 0.0
      %7262 = vmatprep.subr.mxu0 0.0
      %7263 = vmatpush1.msra.mxu0 0.0
      %7264 = vmatprep.subr.mxu0 0.0
      %7265 = vmatpush1.msra.mxu0 0.0
      %7266 = vmatprep.subr.mxu0 0.0
      %7267 = vmatpush1.msra.mxu0 0.0
      %7268 = vmatprep.subr.mxu0 0.0
      %7269 = vmatpush1.msra.mxu0 0.0
      %7270 = vmatprep.subr.mxu0 0.0
      %7271 = vmatpush1.msra.mxu0 0.0
      %7272 = vmatprep.subr.mxu0 0.0
      %7273 = vmatpush1.msra.mxu0 0.0
      %7274 = vmatprep.subr.mxu0 0.0
      %7275 = vmatpush1.msra.mxu0 0.0
      %7276 = vmatprep.subr.mxu0 0.0
      %7277 = vmatpush1.msra.mxu0 0.0
      %7278 = vmatprep.subr.mxu0 0.0
      %7279 = vmatpush1.msra.mxu0 0.0
      %7280 = vmatprep.subr.mxu0 0.0
      %7281 = vmatpush1.msra.mxu0 0.0
      %7282 = vmatprep.subr.mxu0 0.0
      %7283 = vmatpush1.msra.mxu0 0.0
      %7284 = vmatprep.subr.mxu0 0.0
      %7285 = vmatpush1.msra.mxu0 0.0
      %7286 = vmatprep.subr.mxu0 0.0
      %7287 = vmatpush1.msra.mxu0 0.0
      %7288 = vmatprep.subr.mxu0 0.0
      %7289 = vmatpush1.msra.mxu0 0.0
      %7290 = vmatprep.subr.mxu0 0.0
      %7291 = vmatpush1.msra.mxu0 0.0
      %7292 = vmatprep.subr.mxu0 0.0
      %7293 = vmatpush1.msra.mxu0 0.0
      %7294 = vmatprep.subr.mxu0 0.0
      %7295 = vmatpush1.msra.mxu0 0.0
      %7296 = vmatprep.subr.mxu0 0.0
      %7297 = vmatpush1.msra.mxu0 0.0
      %7298 = vmatprep.mubr.f32.mxu0 0.0
      %7299 = vmatmul.mubr.f32.gmra.mrb[0].mxu0 %v6956
      %v7300 = vpop.f32.mrb[0].mxu0
      %v7301 = vadd.f32 %v7212, %v7300
      %v7302 = vpop.f32.mrb[0].mxu0
      %v7303 = vadd.f32 %v7214, %v7302
      %7304 = vmatprep.mubr.f32.mxu0 0.0
      %7305 = vmatmul.mubr.f32.gmra.mrb[0].mxu0 %v6959
      %v7306 = vpop.f32.mrb[0].mxu0
      %v7307 = vadd.f32 %v7218, %v7306
      %v7308 = vpop.f32.mrb[0].mxu0
      %v7309 = vadd.f32 %v7220, %v7308
      %7310 = vmatprep.mubr.f32.mxu0 0.0
      %7311 = vmatmul.mubr.f32.gmra.mrb[0].mxu0 %v6962
      %v7312 = vpop.f32.mrb[0].mxu0
      %v7313 = vadd.f32 %v7224, %v7312
      %v7314 = vpop.f32.mrb[0].mxu0
      %v7315 = vadd.f32 %v7226, %v7314
      %7316 = vmatprep.mubr.f32.mxu0 0.0
      %7317 = vmatmul.mubr.f32.gmra.mrb[0].mxu0 %v6965
      %v7318 = vpop.f32.mrb[0].mxu0
      %v7319 = vadd.f32 %v7230, %v7318
      %v7320 = vpop.f32.mrb[0].mxu0
      %v7321 = vadd.f32 %v7232, %v7320
      %7322 = vdwg.mxu0
      %7323 = vmatprep.subr.mxu0 %v6744
      %7324 = vmatpush1.msra.mxu0 %v6743
      %7325 = vmatprep.subr.mxu0 %v6750
      %7326 = vmatpush1.msra.mxu0 %v6749
      %7327 = vmatprep.subr.mxu0 %v6756
      %7328 = vmatpush1.msra.mxu0 %v6755
      %7329 = vmatprep.subr.mxu0 %v6762
      %7330 = vmatpush1.msra.mxu0 %v6761
      %7331 = vmatprep.subr.mxu0 %v6768
      %7332 = vmatpush1.msra.mxu0 %v6767
      %7333 = vmatprep.subr.mxu0 %v6774
      %7334 = vmatpush1.msra.mxu0 %v6773
      %7335 = vmatprep.subr.mxu0 %v6780
      %7336 = vmatpush1.msra.mxu0 %v6779
      %7337 = vmatprep.subr.mxu0 %v6786
      %7338 = vmatpush1.msra.mxu0 %v6785
      %7339 = vmatprep.subr.mxu0 %v6792
      %7340 = vmatpush1.msra.mxu0 %v6791
      %7341 = vmatprep.subr.mxu0 %v6798
      %7342 = vmatpush1.msra.mxu0 %v6797
      %7343 = vmatprep.subr.mxu0 %v6804
      %7344 = vmatpush1.msra.mxu0 %v6803
      %7345 = vmatprep.subr.mxu0 %v6810
      %7346 = vmatpush1.msra.mxu0 %v6809
      %7347 = vmatprep.subr.mxu0 %v6816
      %7348 = vmatpush1.msra.mxu0 %v6815
      %7349 = vmatprep.subr.mxu0 %v6822
      %7350 = vmatpush1.msra.mxu0 %v6821
      %7351 = vmatprep.subr.mxu0 %v6828
      %7352 = vmatpush1.msra.mxu0 %v6827
      %7353 = vmatprep.subr.mxu0 %v6834
      %7354 = vmatpush1.msra.mxu0 %v6833
      %7355 = vmatprep.subr.mxu0 %v6840
      %7356 = vmatpush1.msra.mxu0 %v6839
      %7357 = vmatprep.subr.mxu0 %v6846
      %7358 = vmatpush1.msra.mxu0 %v6845
      %7359 = vmatprep.subr.mxu0 %v6852
      %7360 = vmatpush1.msra.mxu0 %v6851
      %7361 = vmatprep.subr.mxu0 %v6858
      %7362 = vmatpush1.msra.mxu0 %v6857
      %7363 = vmatprep.subr.mxu0 %v6864
      %7364 = vmatpush1.msra.mxu0 %v6863
      %7365 = vmatprep.subr.mxu0 %v6870
      %7366 = vmatpush1.msra.mxu0 %v6869
      %7367 = vmatprep.subr.mxu0 %v6876
      %7368 = vmatpush1.msra.mxu0 %v6875
      %7369 = vmatprep.subr.mxu0 %v6882
      %7370 = vmatpush1.msra.mxu0 %v6881
      %7371 = vmatprep.subr.mxu0 %v6888
      %7372 = vmatpush1.msra.mxu0 %v6887
      %7373 = vmatprep.subr.mxu0 %v6894
      %7374 = vmatpush1.msra.mxu0 %v6893
      %7375 = vmatprep.subr.mxu0 %v6900
      %7376 = vmatpush1.msra.mxu0 %v6899
      %7377 = vmatprep.subr.mxu0 %v6906
      %7378 = vmatpush1.msra.mxu0 %v6905
      %7379 = vmatprep.subr.mxu0 %v6912
      %7380 = vmatpush1.msra.mxu0 %v6911
      %7381 = vmatprep.subr.mxu0 %v6918
      %7382 = vmatpush1.msra.mxu0 %v6917
      %7383 = vmatprep.subr.mxu0 %v6924
      %7384 = vmatpush1.msra.mxu0 %v6923
      %7385 = vmatprep.subr.mxu0 %v6930
      %7386 = vmatpush1.msra.mxu0 %v6929
      %7387 = vmatprep.mubr.f32.mxu0 %v6728
      %7388 = vmatmul.mubr.f32.gmra.mrb[0].mxu0 %v6727
      %v7389 = vpop.f32.mrb[0].mxu0
      %v7390 = vadd.f32 0.0, %v7389
      %v7391 = vpop.f32.mrb[0].mxu0
      %v7392 = vadd.f32 0.0, %v7391
      %7393 = vmatprep.mubr.f32.mxu0 %v6731
      %7394 = vmatmul.mubr.f32.gmra.mrb[0].mxu0 %v6730
      %v7395 = vpop.f32.mrb[0].mxu0
      %v7396 = vadd.f32 0.0, %v7395
      %v7397 = vpop.f32.mrb[0].mxu0
      %v7398 = vadd.f32 0.0, %v7397
      %7399 = vmatprep.mubr.f32.mxu0 %v6734
      %7400 = vmatmul.mubr.f32.gmra.mrb[0].mxu0 %v6733
      %v7401 = vpop.f32.mrb[0].mxu0
      %v7402 = vadd.f32 0.0, %v7401
      %v7403 = vpop.f32.mrb[0].mxu0
      %v7404 = vadd.f32 0.0, %v7403
      %7405 = vmatprep.mubr.f32.mxu0 %v6737
      %7406 = vmatmul.mubr.f32.gmra.mrb[0].mxu0 %v6736
      %v7407 = vpop.f32.mrb[0].mxu0
      %v7408 = vadd.f32 0.0, %v7407
      %v7409 = vpop.f32.mrb[0].mxu0
      %v7410 = vadd.f32 0.0, %v7409
      %7411 = vdwg.mxu0
      %7412 = vmatprep.subr.mxu0 %v6936
      %7413 = vmatpush1.msra.mxu0 %v6935
      %7414 = vmatprep.subr.mxu0 %v6942
      %7415 = vmatpush1.msra.mxu0 %v6941
      %7416 = vmatprep.subr.mxu0 %v6948
      %7417 = vmatpush1.msra.mxu0 %v6947
      %7418 = vmatprep.subr.mxu0 %v6954
      %7419 = vmatpush1.msra.mxu0 %v6953
      %7420 = vmatprep.subr.mxu0 0.0
      %7421 = vmatpush1.msra.mxu0 0.0
      %7422 = vmatprep.subr.mxu0 0.0
      %7423 = vmatpush1.msra.mxu0 0.0
      %7424 = vmatprep.subr.mxu0 0.0
      %7425 = vmatpush1.msra.mxu0 0.0
      %7426 = vmatprep.subr.mxu0 0.0
      %7427 = vmatpush1.msra.mxu0 0.0
      %7428 = vmatprep.subr.mxu0 0.0
      %7429 = vmatpush1.msra.mxu0 0.0
      %7430 = vmatprep.subr.mxu0 0.0
      %7431 = vmatpush1.msra.mxu0 0.0
      %7432 = vmatprep.subr.mxu0 0.0
      %7433 = vmatpush1.msra.mxu0 0.0
      %7434 = vmatprep.subr.mxu0 0.0
      %7435 = vmatpush1.msra.mxu0 0.0
      %7436 = vmatprep.subr.mxu0 0.0
      %7437 = vmatpush1.msra.mxu0 0.0
      %7438 = vmatprep.subr.mxu0 0.0
      %7439 = vmatpush1.msra.mxu0 0.0
      %7440 = vmatprep.subr.mxu0 0.0
      %7441 = vmatpush1.msra.mxu0 0.0
      %7442 = vmatprep.subr.mxu0 0.0
      %7443 = vmatpush1.msra.mxu0 0.0
      %7444 = vmatprep.subr.mxu0 0.0
      %7445 = vmatpush1.msra.mxu0 0.0
      %7446 = vmatprep.subr.mxu0 0.0
      %7447 = vmatpush1.msra.mxu0 0.0
      %7448 = vmatprep.subr.mxu0 0.0
      %7449 = vmatpush1.msra.mxu0 0.0
      %7450 = vmatprep.subr.mxu0 0.0
      %7451 = vmatpush1.msra.mxu0 0.0
      %7452 = vmatprep.subr.mxu0 0.0
      %7453 = vmatpush1.msra.mxu0 0.0
      %7454 = vmatprep.subr.mxu0 0.0
      %7455 = vmatpush1.msra.mxu0 0.0
      %7456 = vmatprep.subr.mxu0 0.0
      %7457 = vmatpush1.msra.mxu0 0.0
      %7458 = vmatprep.subr.mxu0 0.0
      %7459 = vmatpush1.msra.mxu0 0.0
      %7460 = vmatprep.subr.mxu0 0.0
      %7461 = vmatpush1.msra.mxu0 0.0
      %7462 = vmatprep.subr.mxu0 0.0
      %7463 = vmatpush1.msra.mxu0 0.0
      %7464 = vmatprep.subr.mxu0 0.0
      %7465 = vmatpush1.msra.mxu0 0.0
      %7466 = vmatprep.subr.mxu0 0.0
      %7467 = vmatpush1.msra.mxu0 0.0
      %7468 = vmatprep.subr.mxu0 0.0
      %7469 = vmatpush1.msra.mxu0 0.0
      %7470 = vmatprep.subr.mxu0 0.0
      %7471 = vmatpush1.msra.mxu0 0.0
      %7472 = vmatprep.subr.mxu0 0.0
      %7473 = vmatpush1.msra.mxu0 0.0
      %7474 = vmatprep.subr.mxu0 0.0
      %7475 = vmatpush1.msra.mxu0 0.0
      %7476 = vmatprep.mubr.f32.mxu0 0.0
      %7477 = vmatmul.mubr.f32.gmra.mrb[0].mxu0 %v6956
      %v7478 = vpop.f32.mrb[0].mxu0
      %v7479 = vadd.f32 %v7390, %v7478
      %v7480 = vpop.f32.mrb[0].mxu0
      %v7481 = vadd.f32 %v7392, %v7480
      %7482 = vmatprep.mubr.f32.mxu0 0.0
      %7483 = vmatmul.mubr.f32.gmra.mrb[0].mxu0 %v6959
      %v7484 = vpop.f32.mrb[0].mxu0
      %v7485 = vadd.f32 %v7396, %v7484
      %v7486 = vpop.f32.mrb[0].mxu0
      %v7487 = vadd.f32 %v7398, %v7486
      %7488 = vmatprep.mubr.f32.mxu0 0.0
      %7489 = vmatmul.mubr.f32.gmra.mrb[0].mxu0 %v6962
      %v7490 = vpop.f32.mrb[0].mxu0
      %v7491 = vadd.f32 %v7402, %v7490
      %v7492 = vpop.f32.mrb[0].mxu0
      %v7493 = vadd.f32 %v7404, %v7492
      %7494 = vmatprep.mubr.f32.mxu0 0.0
      %7495 = vmatmul.mubr.f32.gmra.mrb[0].mxu0 %v6965
      %v7496 = vpop.f32.mrb[0].mxu0
      %v7497 = vadd.f32 %v7408, %v7496
      %v7498 = vpop.f32.mrb[0].mxu0
      %v7499 = vadd.f32 %v7410, %v7498
      %7500 = vdwg.mxu0
      %v7501 = vmul.f32 %v7123, %v2398
      %v7502 = vmul.f32 %v7125, %v2402
      %v7503 = vmul.f32 %v7301, %v2406
      %v7504 = vmul.f32 %v7303, %v2410
      %v7505 = vmul.f32 %v7479, %v2414
      %v7506 = vmul.f32 %v7481, %v2418
      %v7507 = vmul.f32 %v7129, %v2398
      %v7508 = vmul.f32 %v7131, %v2402
      %v7509 = vmul.f32 %v7307, %v2406
      %v7510 = vmul.f32 %v7309, %v2410
      %v7511 = vmul.f32 %v7485, %v2414
      %v7512 = vmul.f32 %v7487, %v2418
      %v7513 = vmul.f32 %v7135, %v2398
      %v7514 = vmul.f32 %v7137, %v2402
      %v7515 = vmul.f32 %v7313, %v2406
      %v7516 = vmul.f32 %v7315, %v2410
      %v7517 = vmul.f32 %v7491, %v2414
      %v7518 = vmul.f32 %v7493, %v2418
      %v7519 = vmul.f32 %v7141, %v2398
      %v7520 = vmul.f32 %v7143, %v2402
      %v7521 = vmul.f32 %v7319, %v2406
      %v7522 = vmul.f32 %v7321, %v2410
      %v7523 = vmul.f32 %v7497, %v2414
      %v7524 = vmul.f32 %v7499, %v2418
      %v7525 = vadd.f32 %v7501, %v7502
      %v7526 = vadd.f32 %v7525, %v7503
      %v7527 = vadd.f32 %v7526, %v7504
      %v7528 = vadd.f32 %v7527, %v7505
      %v7529 = vsel %vm276, %v7506, 0.0
      %v7530 = vadd.f32 %v7528, %v7529
      %7531 = vadd.xlane.f32.xlu0 %v7530
      %v7532 = vpop.xlane.xlu0 %7531
      %v7533 = vadd.f32 %v7507, %v7508
      %v7534 = vadd.f32 %v7533, %v7509
      %v7535 = vadd.f32 %v7534, %v7510
      %v7536 = vadd.f32 %v7535, %v7511
      %v7537 = vsel %vm276, %v7512, 0.0
      %v7538 = vadd.f32 %v7536, %v7537
      %7539 = vadd.xlane.f32.xlu0 %v7538
      %v7540 = vpop.xlane.xlu0 %7539
      %v7541 = vadd.f32 %v7513, %v7514
      %v7542 = vadd.f32 %v7541, %v7515
      %v7543 = vadd.f32 %v7542, %v7516
      %v7544 = vadd.f32 %v7543, %v7517
      %v7545 = vsel %vm276, %v7518, 0.0
      %v7546 = vadd.f32 %v7544, %v7545
      %7547 = vadd.xlane.f32.xlu0 %v7546
      %v7548 = vpop.xlane.xlu0 %7547
      %v7549 = vadd.f32 %v7519, %v7520
      %v7550 = vadd.f32 %v7549, %v7521
      %v7551 = vadd.f32 %v7550, %v7522
      %v7552 = vadd.f32 %v7551, %v7523
      %v7553 = vsel %vm276, %v7524, 0.0
      %v7554 = vadd.f32 %v7552, %v7553
      %7555 = vadd.xlane.f32.xlu0 %v7554
      %v7556 = vpop.xlane.xlu0 %7555
      %v7557 = vmul.f32 %v7501, %v7501
      %v7558 = vmul.f32 %v7502, %v7502
      %v7559 = vmul.f32 %v7503, %v7503
      %v7560 = vmul.f32 %v7504, %v7504
      %v7561 = vmul.f32 %v7505, %v7505
      %v7562 = vmul.f32 %v7506, %v7506
      %v7563 = vmul.f32 %v7507, %v7507
      %v7564 = vmul.f32 %v7508, %v7508
      %v7565 = vmul.f32 %v7509, %v7509
      %v7566 = vmul.f32 %v7510, %v7510
      %v7567 = vmul.f32 %v7511, %v7511
      %v7568 = vmul.f32 %v7512, %v7512
      %v7569 = vmul.f32 %v7513, %v7513
      %v7570 = vmul.f32 %v7514, %v7514
      %v7571 = vmul.f32 %v7515, %v7515
      %v7572 = vmul.f32 %v7516, %v7516
      %v7573 = vmul.f32 %v7517, %v7517
      %v7574 = vmul.f32 %v7518, %v7518
      %v7575 = vmul.f32 %v7519, %v7519
      %v7576 = vmul.f32 %v7520, %v7520
      %v7577 = vmul.f32 %v7521, %v7521
      %v7578 = vmul.f32 %v7522, %v7522
      %v7579 = vmul.f32 %v7523, %v7523
      %v7580 = vmul.f32 %v7524, %v7524
      %v7581 = vadd.f32 %v7557, %v7558
      %v7582 = vadd.f32 %v7581, %v7559
      %v7583 = vadd.f32 %v7582, %v7560
      %v7584 = vadd.f32 %v7583, %v7561
      %v7585 = vsel %vm276, %v7562, 0.0
      %v7586 = vadd.f32 %v7584, %v7585
      %7587 = vadd.xlane.f32.xlu0 %v7586
      %v7588 = vpop.xlane.xlu0 %7587
      %v7589 = vadd.f32 %v7563, %v7564
      %v7590 = vadd.f32 %v7589, %v7565
      %v7591 = vadd.f32 %v7590, %v7566
      %v7592 = vadd.f32 %v7591, %v7567
      %v7593 = vsel %vm276, %v7568, 0.0
      %v7594 = vadd.f32 %v7592, %v7593
      %7595 = vadd.xlane.f32.xlu0 %v7594
      %v7596 = vpop.xlane.xlu0 %7595
      %v7597 = vadd.f32 %v7569, %v7570
      %v7598 = vadd.f32 %v7597, %v7571
      %v7599 = vadd.f32 %v7598, %v7572
      %v7600 = vadd.f32 %v7599, %v7573
      %v7601 = vsel %vm276, %v7574, 0.0
      %v7602 = vadd.f32 %v7600, %v7601
      %7603 = vadd.xlane.f32.xlu0 %v7602
      %v7604 = vpop.xlane.xlu0 %7603
      %v7605 = vadd.f32 %v7575, %v7576
      %v7606 = vadd.f32 %v7605, %v7577
      %v7607 = vadd.f32 %v7606, %v7578
      %v7608 = vadd.f32 %v7607, %v7579
      %v7609 = vsel %vm276, %v7580, 0.0
      %v7610 = vadd.f32 %v7608, %v7609
      %7611 = vadd.xlane.f32.xlu0 %v7610
      %v7612 = vpop.xlane.xlu0 %7611
      %v7613 = vmul.f32 %v7532, 0.001953125
      %v7614 = vmul.f32 %v7540, 0.001953125
      %v7615 = vmul.f32 %v7548, 0.001953125
      %v7616 = vmul.f32 %v7556, 0.001953125
      %v7617 = vmul.f32 %v7588, 0.001953125
      %v7618 = vmul.f32 %v7596, 0.001953125
      %v7619 = vmul.f32 %v7604, 0.001953125
      %v7620 = vmul.f32 %v7612, 0.001953125
      %v7621 = vmul.f32 %v7613, %v7613
      %v7622 = vmul.f32 %v7614, %v7614
      %v7623 = vmul.f32 %v7615, %v7615
      %v7624 = vmul.f32 %v7616, %v7616
      %v7625 = vsub.f32 %v7617, %v7621
      %v7626 = vsub.f32 %v7618, %v7622
      %v7627 = vsub.f32 %v7619, %v7623
      %v7628 = vsub.f32 %v7620, %v7624
      %v7629 = vmax.f32 %v7625, 0.0
      %v7630 = vmax.f32 %v7626, 0.0
      %v7631 = vmax.f32 %v7627, 0.0
      %v7632 = vmax.f32 %v7628, 0.0
      %v7633 = vsub.f32 %v7123, %v7613
      %v7634 = vsub.f32 %v7125, %v7613
      %v7635 = vsub.f32 %v7301, %v7613
      %v7636 = vsub.f32 %v7303, %v7613
      %v7637 = vsub.f32 %v7479, %v7613
      %v7638 = vsub.f32 %v7481, %v7613
      %v7639 = vsub.f32 %v7129, %v7614
      %v7640 = vsub.f32 %v7131, %v7614
      %v7641 = vsub.f32 %v7307, %v7614
      %v7642 = vsub.f32 %v7309, %v7614
      %v7643 = vsub.f32 %v7485, %v7614
      %v7644 = vsub.f32 %v7487, %v7614
      %v7645 = vsub.f32 %v7135, %v7615
      %v7646 = vsub.f32 %v7137, %v7615
      %v7647 = vsub.f32 %v7313, %v7615
      %v7648 = vsub.f32 %v7315, %v7615
      %v7649 = vsub.f32 %v7491, %v7615
      %v7650 = vsub.f32 %v7493, %v7615
      %v7651 = vsub.f32 %v7141, %v7616
      %v7652 = vsub.f32 %v7143, %v7616
      %v7653 = vsub.f32 %v7319, %v7616
      %v7654 = vsub.f32 %v7321, %v7616
      %v7655 = vsub.f32 %v7497, %v7616
      %v7656 = vsub.f32 %v7499, %v7616
      %v7657 = vadd.f32 %v7629, 1e-05
      %v7658 = vadd.f32 %v7630, 1e-05
      %v7659 = vadd.f32 %v7631, 1e-05
      %v7660 = vadd.f32 %v7632, 1e-05
      %v7661 = vrsqrt.pop %v7657
      %v7662 = vrsqrt.pop %v7658
      %v7663 = vrsqrt.pop %v7659
      %v7664 = vrsqrt.pop %v7660
      %v7665 = vmul.f32 %v7633, %v7661
      %v7666 = vmul.f32 %v7634, %v7661
      %v7667 = vmul.f32 %v7635, %v7661
      %v7668 = vmul.f32 %v7636, %v7661
      %v7669 = vmul.f32 %v7637, %v7661
      %v7670 = vmul.f32 %v7638, %v7661
      %v7671 = vmul.f32 %v7639, %v7662
      %v7672 = vmul.f32 %v7640, %v7662
      %v7673 = vmul.f32 %v7641, %v7662
      %v7674 = vmul.f32 %v7642, %v7662
      %v7675 = vmul.f32 %v7643, %v7662
      %v7676 = vmul.f32 %v7644, %v7662
      %v7677 = vmul.f32 %v7645, %v7663
      %v7678 = vmul.f32 %v7646, %v7663
      %v7679 = vmul.f32 %v7647, %v7663
      %v7680 = vmul.f32 %v7648, %v7663
      %v7681 = vmul.f32 %v7649, %v7663
      %v7682 = vmul.f32 %v7650, %v7663
      %v7683 = vmul.f32 %v7651, %v7664
      %v7684 = vmul.f32 %v7652, %v7664
      %v7685 = vmul.f32 %v7653, %v7664
      %v7686 = vmul.f32 %v7654, %v7664
      %v7687 = vmul.f32 %v7655, %v7664
      %v7688 = vmul.f32 %v7656, %v7664
      %v7689 = vmax.f32 %v7665, 0.0
      %v7690 = vmax.f32 %v7666, 0.0
      %v7691 = vmax.f32 %v7667, 0.0
      %v7692 = vmax.f32 %v7668, 0.0
      %v7693 = vmax.f32 %v7669, 0.0
      %v7694 = vmax.f32 %v7670, 0.0
      %v7695 = vmax.f32 %v7671, 0.0
      %v7696 = vmax.f32 %v7672, 0.0
      %v7697 = vmax.f32 %v7673, 0.0
      %v7698 = vmax.f32 %v7674, 0.0
      %v7699 = vmax.f32 %v7675, 0.0
      %v7700 = vmax.f32 %v7676, 0.0
      %v7701 = vmax.f32 %v7677, 0.0
      %v7702 = vmax.f32 %v7678, 0.0
      %v7703 = vmax.f32 %v7679, 0.0
      %v7704 = vmax.f32 %v7680, 0.0
      %v7705 = vmax.f32 %v7681, 0.0
      %v7706 = vmax.f32 %v7682, 0.0
      %v7707 = vmax.f32 %v7683, 0.0
      %v7708 = vmax.f32 %v7684, 0.0
      %v7709 = vmax.f32 %v7685, 0.0
      %v7710 = vmax.f32 %v7686, 0.0
      %v7711 = vmax.f32 %v7687, 0.0
      %v7712 = vmax.f32 %v7688, 0.0
      %v7713 = vmul.f32 %v7689, %v2398
      %v7714 = vmul.f32 %v7690, %v2402
      %v7715 = vmul.f32 %v7691, %v2406
      %v7716 = vmul.f32 %v7692, %v2410
      %v7717 = vmul.f32 %v7693, %v2414
      %v7718 = vmul.f32 %v7694, %v2418
      %v7719 = vmul.f32 %v7695, %v2398
      %v7720 = vmul.f32 %v7696, %v2402
      %v7721 = vmul.f32 %v7697, %v2406
      %v7722 = vmul.f32 %v7698, %v2410
      %v7723 = vmul.f32 %v7699, %v2414
      %v7724 = vmul.f32 %v7700, %v2418
      %v7725 = vmul.f32 %v7701, %v2398
      %v7726 = vmul.f32 %v7702, %v2402
      %v7727 = vmul.f32 %v7703, %v2406
      %v7728 = vmul.f32 %v7704, %v2410
      %v7729 = vmul.f32 %v7705, %v2414
      %v7730 = vmul.f32 %v7706, %v2418
      %v7731 = vmul.f32 %v7707, %v2398
      %v7732 = vmul.f32 %v7708, %v2402
      %v7733 = vmul.f32 %v7709, %v2406
      %v7734 = vmul.f32 %v7710, %v2410
      %v7735 = vmul.f32 %v7711, %v2414
      %v7736 = vmul.f32 %v7712, %v2418
      %s7737 = sadd.s32 %s103, 3
      %7762 = vrot.lane.b32.xlu0 %v7713, 19
      %v7763 = vpop.permute.xlu0 %7762
      %7764 = vrot.lane.b32.xlu0 %v7714, 19
      %v7765 = vpop.permute.xlu0 %7764
      %7766 = vrot.lane.b32.xlu0 %v7715, 19
      %v7767 = vpop.permute.xlu0 %7766
      %7768 = vrot.lane.b32.xlu0 %v7716, 19
      %v7769 = vpop.permute.xlu0 %7768
      %7770 = vrot.lane.b32.xlu0 %v7717, 19
      %v7771 = vpop.permute.xlu0 %7770
      %7772 = vrot.lane.b32.xlu0 %v7718, 19
      %v7773 = vpop.permute.xlu0 %7772
      %7774 = vrot.lane.b32.xlu0 %v7719, 19
      %v7775 = vpop.permute.xlu0 %7774
      %7776 = vrot.lane.b32.xlu0 %v7720, 19
      %v7777 = vpop.permute.xlu0 %7776
      %7778 = vrot.lane.b32.xlu0 %v7721, 19
      %v7779 = vpop.permute.xlu0 %7778
      %7780 = vrot.lane.b32.xlu0 %v7722, 19
      %v7781 = vpop.permute.xlu0 %7780
      %7782 = vrot.lane.b32.xlu0 %v7723, 19
      %v7783 = vpop.permute.xlu0 %7782
      %7784 = vrot.lane.b32.xlu0 %v7724, 19
      %v7785 = vpop.permute.xlu0 %7784
      %7786 = vrot.lane.b32.xlu0 %v7725, 19
      %v7787 = vpop.permute.xlu0 %7786
      %7788 = vrot.lane.b32.xlu0 %v7726, 19
      %v7789 = vpop.permute.xlu0 %7788
      %7790 = vrot.lane.b32.xlu0 %v7727, 19
      %v7791 = vpop.permute.xlu0 %7790
      %7792 = vrot.lane.b32.xlu0 %v7728, 19
      %v7793 = vpop.permute.xlu0 %7792
      %7794 = vrot.lane.b32.xlu0 %v7729, 19
      %v7795 = vpop.permute.xlu0 %7794
      %7796 = vrot.lane.b32.xlu0 %v7730, 19
      %v7797 = vpop.permute.xlu0 %7796
      %7798 = vrot.lane.b32.xlu0 %v7731, 19
      %v7799 = vpop.permute.xlu0 %7798
      %7800 = vrot.lane.b32.xlu0 %v7732, 19
      %v7801 = vpop.permute.xlu0 %7800
      %7802 = vrot.lane.b32.xlu0 %v7733, 19
      %v7803 = vpop.permute.xlu0 %7802
      %7804 = vrot.lane.b32.xlu0 %v7734, 19
      %v7805 = vpop.permute.xlu0 %7804
      %7806 = vrot.lane.b32.xlu0 %v7735, 19
      %v7807 = vpop.permute.xlu0 %7806
      %7808 = vrot.lane.b32.xlu0 %v7736, 19
      %v7809 = vpop.permute.xlu0 %7808
      %v7810 = vsel %vm176, %v7763, %v7765
      %v7811 = vsel %vm176, %v7765, %v7767
      %v7812 = vsel %vm176, %v7767, %v7769
      %v7813 = vsel %vm176, %v7769, %v7771
      %v7814 = vsel %vm176, %v7771, %v7773
      %v7815 = vsel %vm176, %v7775, %v7777
      %v7816 = vsel %vm176, %v7777, %v7779
      %v7817 = vsel %vm176, %v7779, %v7781
      %v7818 = vsel %vm176, %v7781, %v7783
      %v7819 = vsel %vm176, %v7783, %v7785
      %v7820 = vsel %vm176, %v7787, %v7789
      %v7821 = vsel %vm176, %v7789, %v7791
      %v7822 = vsel %vm176, %v7791, %v7793
      %v7823 = vsel %vm176, %v7793, %v7795
      %v7824 = vsel %vm176, %v7795, %v7797
      %v7825 = vsel %vm176, %v7799, %v7801
      %v7826 = vsel %vm176, %v7801, %v7803
      %v7827 = vsel %vm176, %v7803, %v7805
      %v7828 = vsel %vm176, %v7805, %v7807
      %v7829 = vsel %vm176, %v7807, %v7809
      %7854 = vst.msk [vmem:[#allocation2] sm:$0xff] %vm221, %v7763
      %7855 = vst [vmem:[#allocation2 + $0x8] sm:$0xff] %v7810
      %7856 = vst [vmem:[#allocation2 + $0x10] sm:$0xff] %v7811
      %7857 = vst [vmem:[#allocation2 + $0x18] sm:$0xff] %v7812
      %7858 = vst [vmem:[#allocation2 + $0x20] sm:$0xff] %v7813
      %7859 = vst.msk [vmem:[#allocation2 + $0x28] sm:$0xff] %vm227, %v7814
      %7860 = vst.msk [vmem:[#allocation2 + $0x30] sm:$0xff] %vm221, %v7775
      %7861 = vst [vmem:[#allocation2 + $0x38] sm:$0xff] %v7815
      %7862 = vst [vmem:[#allocation2 + $0x40] sm:$0xff] %v7816
      %7863 = vst [vmem:[#allocation2 + $0x48] sm:$0xff] %v7817
      %7864 = vst [vmem:[#allocation2 + $0x50] sm:$0xff] %v7818
      %7865 = vst.msk [vmem:[#allocation2 + $0x58] sm:$0xff] %vm227, %v7819
      %7866 = vst.msk [vmem:[#allocation2 + $0x60] sm:$0xff] %vm221, %v7787
      %7867 = vst [vmem:[#allocation2 + $0x68] sm:$0xff] %v7820
      %7868 = vst [vmem:[#allocation2 + $0x70] sm:$0xff] %v7821
      %7869 = vst [vmem:[#allocation2 + $0x78] sm:$0xff] %v7822
      %7870 = vst [vmem:[#allocation2 + $0x80] sm:$0xff] %v7823
      %7871 = vst.msk [vmem:[#allocation2 + $0x88] sm:$0xff] %vm227, %v7824
      %7872 = vst.msk [vmem:[#allocation2 + $0x90] sm:$0xff] %vm221, %v7799
      %7873 = vst [vmem:[#allocation2 + $0x98] sm:$0xff] %v7825
      %7874 = vst [vmem:[#allocation2 + $0xa0] sm:$0xff] %v7826
      %7875 = vst [vmem:[#allocation2 + $0xa8] sm:$0xff] %v7827
      %7876 = vst [vmem:[#allocation2 + $0xb0] sm:$0xff] %v7828
      %7877 = vst.msk [vmem:[#allocation2 + $0xb8] sm:$0xff] %vm227, %v7829
      %v7878 = vld [vmem:[#allocation2] sm:$0xff]
      %v7879 = vld [vmem:[#allocation2 + $0x8] sm:$0xff]
      %v7880 = vld [vmem:[#allocation2 + $0x10] sm:$0xff]
      %v7881 = vld [vmem:[#allocation2 + $0x18] sm:$0xff]
      %v7882 = vld [vmem:[#allocation2 + $0x20] sm:$0xff]
      %v7883 = vld [vmem:[#allocation2 + $0x28] sm:$0xff]
      %v7884 = vld [vmem:[#allocation2 + $0x30] sm:$0xff]
      %v7885 = vld [vmem:[#allocation2 + $0x38] sm:$0xff]
      %v7886 = vld [vmem:[#allocation2 + $0x40] sm:$0xff]
      %v7887 = vld [vmem:[#allocation2 + $0x48] sm:$0xff]
      %v7888 = vld [vmem:[#allocation2 + $0x50] sm:$0xff]
      %v7889 = vld [vmem:[#allocation2 + $0x58] sm:$0xff]
      %v7890 = vld [vmem:[#allocation2 + $0x60] sm:$0xff]
      %v7891 = vld [vmem:[#allocation2 + $0x68] sm:$0xff]
      %v7892 = vld [vmem:[#allocation2 + $0x70] sm:$0xff]
      %v7893 = vld [vmem:[#allocation2 + $0x78] sm:$0xff]
      %v7894 = vld [vmem:[#allocation2 + $0x80] sm:$0xff]
      %v7895 = vld [vmem:[#allocation2 + $0x88] sm:$0xff]
      %v7896 = vld [vmem:[#allocation2 + $0x90] sm:$0xff]
      %v7897 = vld [vmem:[#allocation2 + $0x98] sm:$0xff]
      %v7898 = vld [vmem:[#allocation2 + $0xa0] sm:$0xff]
      %v7899 = vld [vmem:[#allocation2 + $0xa8] sm:$0xff]
      %v7900 = vld [vmem:[#allocation2 + $0xb0] sm:$0xff]
      %v7901 = vld [vmem:[#allocation2 + $0xb8] sm:$0xff]
      %7902 = vst [vmem:[#allocation3] sm:$0xff] %v7878
      %7903 = vst [vmem:[#allocation3 + $0x8] sm:$0xff] %v7879
      %7904 = vst [vmem:[#allocation3 + $0x10] sm:$0xff] %v7880
      %7905 = vst [vmem:[#allocation3 + $0x18] sm:$0xff] %v7881
      %7906 = vst [vmem:[#allocation3 + $0x20] sm:$0xff] %v7882
      %7907 = vst.msk [vmem:[#allocation3 + $0x28] sm:$0xff] %vm276, %v7883
      %7908 = vst [vmem:[#allocation3 + $0x30] sm:$0xff] %v7884
      %7909 = vst [vmem:[#allocation3 + $0x38] sm:$0xff] %v7885
      %7910 = vst [vmem:[#allocation3 + $0x40] sm:$0xff] %v7886
      %7911 = vst [vmem:[#allocation3 + $0x48] sm:$0xff] %v7887
      %7912 = vst [vmem:[#allocation3 + $0x50] sm:$0xff] %v7888
      %7913 = vst.msk [vmem:[#allocation3 + $0x58] sm:$0xff] %vm276, %v7889
      %7914 = vst [vmem:[#allocation3 + $0x60] sm:$0xff] %v7890
      %7915 = vst [vmem:[#allocation3 + $0x68] sm:$0xff] %v7891
      %7916 = vst [vmem:[#allocation3 + $0x70] sm:$0xff] %v7892
      %7917 = vst [vmem:[#allocation3 + $0x78] sm:$0xff] %v7893
      %7918 = vst [vmem:[#allocation3 + $0x80] sm:$0xff] %v7894
      %7919 = vst.msk [vmem:[#allocation3 + $0x88] sm:$0xff] %vm276, %v7895
      %7920 = vst [vmem:[#allocation3 + $0x90] sm:$0xff] %v7896
      %7921 = vst [vmem:[#allocation3 + $0x98] sm:$0xff] %v7897
      %7922 = vst [vmem:[#allocation3 + $0xa0] sm:$0xff] %v7898
      %7923 = vst [vmem:[#allocation3 + $0xa8] sm:$0xff] %v7899
      %7924 = vst [vmem:[#allocation3 + $0xb0] sm:$0xff] %v7900
      %7925 = vst.msk [vmem:[#allocation3 + $0xb8] sm:$0xff] %vm276, %v7901
      %v7926 = vld [vmem:[#allocation2] sm:$0xff]
      %v7927 = vld [vmem:[#allocation2 + $0x8] sm:$0xff]
      %v7928 = vld [vmem:[#allocation2 + $0x10] sm:$0xff]
      %v7929 = vld [vmem:[#allocation2 + $0x18] sm:$0xff]
      %v7930 = vld [vmem:[#allocation2 + $0x20] sm:$0xff]
      %v7931 = vld [vmem:[#allocation2 + $0x28] sm:$0xff]
      %v7932 = vld [vmem:[#allocation2 + $0x30] sm:$0xff]
      %v7933 = vld [vmem:[#allocation2 + $0x38] sm:$0xff]
      %v7934 = vld [vmem:[#allocation2 + $0x40] sm:$0xff]
      %v7935 = vld [vmem:[#allocation2 + $0x48] sm:$0xff]
      %v7936 = vld [vmem:[#allocation2 + $0x50] sm:$0xff]
      %v7937 = vld [vmem:[#allocation2 + $0x58] sm:$0xff]
      %v7938 = vld [vmem:[#allocation2 + $0x60] sm:$0xff]
      %v7939 = vld [vmem:[#allocation2 + $0x68] sm:$0xff]
      %v7940 = vld [vmem:[#allocation2 + $0x70] sm:$0xff]
      %v7941 = vld [vmem:[#allocation2 + $0x78] sm:$0xff]
      %v7942 = vld [vmem:[#allocation2 + $0x80] sm:$0xff]
      %v7943 = vld [vmem:[#allocation2 + $0x88] sm:$0xff]
      %v7944 = vld [vmem:[#allocation2 + $0x90] sm:$0xff]
      %v7945 = vld [vmem:[#allocation2 + $0x98] sm:$0xff]
      %v7946 = vld [vmem:[#allocation2 + $0xa0] sm:$0xff]
      %v7947 = vld [vmem:[#allocation2 + $0xa8] sm:$0xff]
      %v7948 = vld [vmem:[#allocation2 + $0xb0] sm:$0xff]
      %v7949 = vld [vmem:[#allocation2 + $0xb8] sm:$0xff]
      %7974 = vrot.lane.b32.xlu0 %v7926, 127
      %v7975 = vpop.permute.xlu0 %7974
      %7976 = vrot.lane.b32.xlu0 %v7927, 127
      %v7977 = vpop.permute.xlu0 %7976
      %7978 = vrot.lane.b32.xlu0 %v7928, 127
      %v7979 = vpop.permute.xlu0 %7978
      %7980 = vrot.lane.b32.xlu0 %v7929, 127
      %v7981 = vpop.permute.xlu0 %7980
      %7982 = vrot.lane.b32.xlu0 %v7930, 127
      %v7983 = vpop.permute.xlu0 %7982
      %7984 = vrot.lane.b32.xlu0 %v7931, 127
      %v7985 = vpop.permute.xlu0 %7984
      %7986 = vrot.lane.b32.xlu0 %v7932, 127
      %v7987 = vpop.permute.xlu0 %7986
      %7988 = vrot.lane.b32.xlu0 %v7933, 127
      %v7989 = vpop.permute.xlu0 %7988
      %7990 = vrot.lane.b32.xlu0 %v7934, 127
      %v7991 = vpop.permute.xlu0 %7990
      %7992 = vrot.lane.b32.xlu0 %v7935, 127
      %v7993 = vpop.permute.xlu0 %7992
      %7994 = vrot.lane.b32.xlu0 %v7936, 127
      %v7995 = vpop.permute.xlu0 %7994
      %7996 = vrot.lane.b32.xlu0 %v7937, 127
      %v7997 = vpop.permute.xlu0 %7996
      %7998 = vrot.lane.b32.xlu0 %v7938, 127
      %v7999 = vpop.permute.xlu0 %7998
      %8000 = vrot.lane.b32.xlu0 %v7939, 127
      %v8001 = vpop.permute.xlu0 %8000
      %8002 = vrot.lane.b32.xlu0 %v7940, 127
      %v8003 = vpop.permute.xlu0 %8002
      %8004 = vrot.lane.b32.xlu0 %v7941, 127
      %v8005 = vpop.permute.xlu0 %8004
      %8006 = vrot.lane.b32.xlu0 %v7942, 127
      %v8007 = vpop.permute.xlu0 %8006
      %8008 = vrot.lane.b32.xlu0 %v7943, 127
      %v8009 = vpop.permute.xlu0 %8008
      %8010 = vrot.lane.b32.xlu0 %v7944, 127
      %v8011 = vpop.permute.xlu0 %8010
      %8012 = vrot.lane.b32.xlu0 %v7945, 127
      %v8013 = vpop.permute.xlu0 %8012
      %8014 = vrot.lane.b32.xlu0 %v7946, 127
      %v8015 = vpop.permute.xlu0 %8014
      %8016 = vrot.lane.b32.xlu0 %v7947, 127
      %v8017 = vpop.permute.xlu0 %8016
      %8018 = vrot.lane.b32.xlu0 %v7948, 127
      %v8019 = vpop.permute.xlu0 %8018
      %8020 = vrot.lane.b32.xlu0 %v7949, 127
      %v8021 = vpop.permute.xlu0 %8020
      %v8022 = vsel %vm392, %v7975, %v7977
      %v8023 = vsel %vm392, %v7977, %v7979
      %v8024 = vsel %vm392, %v7979, %v7981
      %v8025 = vsel %vm392, %v7981, %v7983
      %v8026 = vsel %vm392, %v7983, %v7985
      %v8027 = vsel %vm392, %v7987, %v7989
      %v8028 = vsel %vm392, %v7989, %v7991
      %v8029 = vsel %vm392, %v7991, %v7993
      %v8030 = vsel %vm392, %v7993, %v7995
      %v8031 = vsel %vm392, %v7995, %v7997
      %v8032 = vsel %vm392, %v7999, %v8001
      %v8033 = vsel %vm392, %v8001, %v8003
      %v8034 = vsel %vm392, %v8003, %v8005
      %v8035 = vsel %vm392, %v8005, %v8007
      %v8036 = vsel %vm392, %v8007, %v8009
      %v8037 = vsel %vm392, %v8011, %v8013
      %v8038 = vsel %vm392, %v8013, %v8015
      %v8039 = vsel %vm392, %v8015, %v8017
      %v8040 = vsel %vm392, %v8017, %v8019
      %v8041 = vsel %vm392, %v8019, %v8021
      %8066 = vst [vmem:[#allocation3 + $0xc0] sm:$0xff] %v8022
      %8067 = vst [vmem:[#allocation3 + $0xc8] sm:$0xff] %v8023
      %8068 = vst [vmem:[#allocation3 + $0xd0] sm:$0xff] %v8024
      %8069 = vst [vmem:[#allocation3 + $0xd8] sm:$0xff] %v8025
      %8070 = vst [vmem:[#allocation3 + $0xe0] sm:$0xff] %v8026
      %8071 = vst.msk [vmem:[#allocation3 + $0xe8] sm:$0xff] %vm276, %v7985
      %8072 = vst [vmem:[#allocation3 + $0xf0] sm:$0xff] %v8027
      %8073 = vst [vmem:[#allocation3 + $0xf8] sm:$0xff] %v8028
      %8074 = vst [vmem:[#allocation3 + $0x100] sm:$0xff] %v8029
      %8075 = vst [vmem:[#allocation3 + $0x108] sm:$0xff] %v8030
      %8076 = vst [vmem:[#allocation3 + $0x110] sm:$0xff] %v8031
      %8077 = vst.msk [vmem:[#allocation3 + $0x118] sm:$0xff] %vm276, %v7997
      %8078 = vst [vmem:[#allocation3 + $0x120] sm:$0xff] %v8032
      %8079 = vst [vmem:[#allocation3 + $0x128] sm:$0xff] %v8033
      %8080 = vst [vmem:[#allocation3 + $0x130] sm:$0xff] %v8034
      %8081 = vst [vmem:[#allocation3 + $0x138] sm:$0xff] %v8035
      %8082 = vst [vmem:[#allocation3 + $0x140] sm:$0xff] %v8036
      %8083 = vst.msk [vmem:[#allocation3 + $0x148] sm:$0xff] %vm276, %v8009
      %8084 = vst [vmem:[#allocation3 + $0x150] sm:$0xff] %v8037
      %8085 = vst [vmem:[#allocation3 + $0x158] sm:$0xff] %v8038
      %8086 = vst [vmem:[#allocation3 + $0x160] sm:$0xff] %v8039
      %8087 = vst [vmem:[#allocation3 + $0x168] sm:$0xff] %v8040
      %8088 = vst [vmem:[#allocation3 + $0x170] sm:$0xff] %v8041
      %8089 = vst.msk [vmem:[#allocation3 + $0x178] sm:$0xff] %vm276, %v8021
      %v8090 = vld [vmem:[#allocation2] sm:$0xff]
      %v8091 = vld [vmem:[#allocation2 + $0x8] sm:$0xff]
      %v8092 = vld [vmem:[#allocation2 + $0x10] sm:$0xff]
      %v8093 = vld [vmem:[#allocation2 + $0x18] sm:$0xff]
      %v8094 = vld [vmem:[#allocation2 + $0x20] sm:$0xff]
      %v8095 = vld [vmem:[#allocation2 + $0x28] sm:$0xff]
      %v8096 = vld [vmem:[#allocation2 + $0x30] sm:$0xff]
      %v8097 = vld [vmem:[#allocation2 + $0x38] sm:$0xff]
      %v8098 = vld [vmem:[#allocation2 + $0x40] sm:$0xff]
      %v8099 = vld [vmem:[#allocation2 + $0x48] sm:$0xff]
      %v8100 = vld [vmem:[#allocation2 + $0x50] sm:$0xff]
      %v8101 = vld [vmem:[#allocation2 + $0x58] sm:$0xff]
      %v8102 = vld [vmem:[#allocation2 + $0x60] sm:$0xff]
      %v8103 = vld [vmem:[#allocation2 + $0x68] sm:$0xff]
      %v8104 = vld [vmem:[#allocation2 + $0x70] sm:$0xff]
      %v8105 = vld [vmem:[#allocation2 + $0x78] sm:$0xff]
      %v8106 = vld [vmem:[#allocation2 + $0x80] sm:$0xff]
      %v8107 = vld [vmem:[#allocation2 + $0x88] sm:$0xff]
      %v8108 = vld [vmem:[#allocation2 + $0x90] sm:$0xff]
      %v8109 = vld [vmem:[#allocation2 + $0x98] sm:$0xff]
      %v8110 = vld [vmem:[#allocation2 + $0xa0] sm:$0xff]
      %v8111 = vld [vmem:[#allocation2 + $0xa8] sm:$0xff]
      %v8112 = vld [vmem:[#allocation2 + $0xb0] sm:$0xff]
      %v8113 = vld [vmem:[#allocation2 + $0xb8] sm:$0xff]
      %8138 = vrot.lane.b32.xlu0 %v8090, 126
      %v8139 = vpop.permute.xlu0 %8138
      %8140 = vrot.lane.b32.xlu0 %v8091, 126
      %v8141 = vpop.permute.xlu0 %8140
      %8142 = vrot.lane.b32.xlu0 %v8092, 126
      %v8143 = vpop.permute.xlu0 %8142
      %8144 = vrot.lane.b32.xlu0 %v8093, 126
      %v8145 = vpop.permute.xlu0 %8144
      %8146 = vrot.lane.b32.xlu0 %v8094, 126
      %v8147 = vpop.permute.xlu0 %8146
      %8148 = vrot.lane.b32.xlu0 %v8095, 126
      %v8149 = vpop.permute.xlu0 %8148
      %8150 = vrot.lane.b32.xlu0 %v8096, 126
      %v8151 = vpop.permute.xlu0 %8150
      %8152 = vrot.lane.b32.xlu0 %v8097, 126
      %v8153 = vpop.permute.xlu0 %8152
      %8154 = vrot.lane.b32.xlu0 %v8098, 126
      %v8155 = vpop.permute.xlu0 %8154
      %8156 = vrot.lane.b32.xlu0 %v8099, 126
      %v8157 = vpop.permute.xlu0 %8156
      %8158 = vrot.lane.b32.xlu0 %v8100, 126
      %v8159 = vpop.permute.xlu0 %8158
      %8160 = vrot.lane.b32.xlu0 %v8101, 126
      %v8161 = vpop.permute.xlu0 %8160
      %8162 = vrot.lane.b32.xlu0 %v8102, 126
      %v8163 = vpop.permute.xlu0 %8162
      %8164 = vrot.lane.b32.xlu0 %v8103, 126
      %v8165 = vpop.permute.xlu0 %8164
      %8166 = vrot.lane.b32.xlu0 %v8104, 126
      %v8167 = vpop.permute.xlu0 %8166
      %8168 = vrot.lane.b32.xlu0 %v8105, 126
      %v8169 = vpop.permute.xlu0 %8168
      %8170 = vrot.lane.b32.xlu0 %v8106, 126
      %v8171 = vpop.permute.xlu0 %8170
      %8172 = vrot.lane.b32.xlu0 %v8107, 126
      %v8173 = vpop.permute.xlu0 %8172
      %8174 = vrot.lane.b32.xlu0 %v8108, 126
      %v8175 = vpop.permute.xlu0 %8174
      %8176 = vrot.lane.b32.xlu0 %v8109, 126
      %v8177 = vpop.permute.xlu0 %8176
      %8178 = vrot.lane.b32.xlu0 %v8110, 126
      %v8179 = vpop.permute.xlu0 %8178
      %8180 = vrot.lane.b32.xlu0 %v8111, 126
      %v8181 = vpop.permute.xlu0 %8180
      %8182 = vrot.lane.b32.xlu0 %v8112, 126
      %v8183 = vpop.permute.xlu0 %8182
      %8184 = vrot.lane.b32.xlu0 %v8113, 126
      %v8185 = vpop.permute.xlu0 %8184
      %v8186 = vsel %vm557, %v8139, %v8141
      %v8187 = vsel %vm557, %v8141, %v8143
      %v8188 = vsel %vm557, %v8143, %v8145
      %v8189 = vsel %vm557, %v8145, %v8147
      %v8190 = vsel %vm557, %v8147, %v8149
      %v8191 = vsel %vm557, %v8151, %v8153
      %v8192 = vsel %vm557, %v8153, %v8155
      %v8193 = vsel %vm557, %v8155, %v8157
      %v8194 = vsel %vm557, %v8157, %v8159
      %v8195 = vsel %vm557, %v8159, %v8161
      %v8196 = vsel %vm557, %v8163, %v8165
      %v8197 = vsel %vm557, %v8165, %v8167
      %v8198 = vsel %vm557, %v8167, %v8169
      %v8199 = vsel %vm557, %v8169, %v8171
      %v8200 = vsel %vm557, %v8171, %v8173
      %v8201 = vsel %vm557, %v8175, %v8177
      %v8202 = vsel %vm557, %v8177, %v8179
      %v8203 = vsel %vm557, %v8179, %v8181
      %v8204 = vsel %vm557, %v8181, %v8183
      %v8205 = vsel %vm557, %v8183, %v8185
      %8230 = vst [vmem:[#allocation3 + $0x180] sm:$0xff] %v8186
      %8231 = vst [vmem:[#allocation3 + $0x188] sm:$0xff] %v8187
      %8232 = vst [vmem:[#allocation3 + $0x190] sm:$0xff] %v8188
      %8233 = vst [vmem:[#allocation3 + $0x198] sm:$0xff] %v8189
      %8234 = vst [vmem:[#allocation3 + $0x1a0] sm:$0xff] %v8190
      %8235 = vst.msk [vmem:[#allocation3 + $0x1a8] sm:$0xff] %vm276, %v8149
      %8236 = vst [vmem:[#allocation3 + $0x1b0] sm:$0xff] %v8191
      %8237 = vst [vmem:[#allocation3 + $0x1b8] sm:$0xff] %v8192
      %8238 = vst [vmem:[#allocation3 + $0x1c0] sm:$0xff] %v8193
      %8239 = vst [vmem:[#allocation3 + $0x1c8] sm:$0xff] %v8194
      %8240 = vst [vmem:[#allocation3 + $0x1d0] sm:$0xff] %v8195
      %8241 = vst.msk [vmem:[#allocation3 + $0x1d8] sm:$0xff] %vm276, %v8161
      %8242 = vst [vmem:[#allocation3 + $0x1e0] sm:$0xff] %v8196
      %8243 = vst [vmem:[#allocation3 + $0x1e8] sm:$0xff] %v8197
      %8244 = vst [vmem:[#allocation3 + $0x1f0] sm:$0xff] %v8198
      %8245 = vst [vmem:[#allocation3 + $0x1f8] sm:$0xff] %v8199
      %8246 = vst [vmem:[#allocation3 + $0x200] sm:$0xff] %v8200
      %8247 = vst.msk [vmem:[#allocation3 + $0x208] sm:$0xff] %vm276, %v8173
      %8248 = vst [vmem:[#allocation3 + $0x210] sm:$0xff] %v8201
      %8249 = vst [vmem:[#allocation3 + $0x218] sm:$0xff] %v8202
      %8250 = vst [vmem:[#allocation3 + $0x220] sm:$0xff] %v8203
      %8251 = vst [vmem:[#allocation3 + $0x228] sm:$0xff] %v8204
      %8252 = vst [vmem:[#allocation3 + $0x230] sm:$0xff] %v8205
      %8253 = vst.msk [vmem:[#allocation3 + $0x238] sm:$0xff] %vm276, %v8185
      %v8254 = vld [vmem:[#allocation2] sm:$0xff]
      %v8255 = vld [vmem:[#allocation2 + $0x8] sm:$0xff]
      %v8256 = vld [vmem:[#allocation2 + $0x10] sm:$0xff]
      %v8257 = vld [vmem:[#allocation2 + $0x18] sm:$0xff]
      %v8258 = vld [vmem:[#allocation2 + $0x20] sm:$0xff]
      %v8259 = vld [vmem:[#allocation2 + $0x28] sm:$0xff]
      %v8260 = vld [vmem:[#allocation2 + $0x30] sm:$0xff]
      %v8261 = vld [vmem:[#allocation2 + $0x38] sm:$0xff]
      %v8262 = vld [vmem:[#allocation2 + $0x40] sm:$0xff]
      %v8263 = vld [vmem:[#allocation2 + $0x48] sm:$0xff]
      %v8264 = vld [vmem:[#allocation2 + $0x50] sm:$0xff]
      %v8265 = vld [vmem:[#allocation2 + $0x58] sm:$0xff]
      %v8266 = vld [vmem:[#allocation2 + $0x60] sm:$0xff]
      %v8267 = vld [vmem:[#allocation2 + $0x68] sm:$0xff]
      %v8268 = vld [vmem:[#allocation2 + $0x70] sm:$0xff]
      %v8269 = vld [vmem:[#allocation2 + $0x78] sm:$0xff]
      %v8270 = vld [vmem:[#allocation2 + $0x80] sm:$0xff]
      %v8271 = vld [vmem:[#allocation2 + $0x88] sm:$0xff]
      %v8272 = vld [vmem:[#allocation2 + $0x90] sm:$0xff]
      %v8273 = vld [vmem:[#allocation2 + $0x98] sm:$0xff]
      %v8274 = vld [vmem:[#allocation2 + $0xa0] sm:$0xff]
      %v8275 = vld [vmem:[#allocation2 + $0xa8] sm:$0xff]
      %v8276 = vld [vmem:[#allocation2 + $0xb0] sm:$0xff]
      %v8277 = vld [vmem:[#allocation2 + $0xb8] sm:$0xff]
      %8302 = vrot.lane.b32.xlu0 %v8254, 110
      %v8303 = vpop.permute.xlu0 %8302
      %8304 = vrot.lane.b32.xlu0 %v8255, 110
      %v8305 = vpop.permute.xlu0 %8304
      %8306 = vrot.lane.b32.xlu0 %v8256, 110
      %v8307 = vpop.permute.xlu0 %8306
      %8308 = vrot.lane.b32.xlu0 %v8257, 110
      %v8309 = vpop.permute.xlu0 %8308
      %8310 = vrot.lane.b32.xlu0 %v8258, 110
      %v8311 = vpop.permute.xlu0 %8310
      %8312 = vrot.lane.b32.xlu0 %v8259, 110
      %v8313 = vpop.permute.xlu0 %8312
      %8314 = vrot.lane.b32.xlu0 %v8260, 110
      %v8315 = vpop.permute.xlu0 %8314
      %8316 = vrot.lane.b32.xlu0 %v8261, 110
      %v8317 = vpop.permute.xlu0 %8316
      %8318 = vrot.lane.b32.xlu0 %v8262, 110
      %v8319 = vpop.permute.xlu0 %8318
      %8320 = vrot.lane.b32.xlu0 %v8263, 110
      %v8321 = vpop.permute.xlu0 %8320
      %8322 = vrot.lane.b32.xlu0 %v8264, 110
      %v8323 = vpop.permute.xlu0 %8322
      %8324 = vrot.lane.b32.xlu0 %v8265, 110
      %v8325 = vpop.permute.xlu0 %8324
      %8326 = vrot.lane.b32.xlu0 %v8266, 110
      %v8327 = vpop.permute.xlu0 %8326
      %8328 = vrot.lane.b32.xlu0 %v8267, 110
      %v8329 = vpop.permute.xlu0 %8328
      %8330 = vrot.lane.b32.xlu0 %v8268, 110
      %v8331 = vpop.permute.xlu0 %8330
      %8332 = vrot.lane.b32.xlu0 %v8269, 110
      %v8333 = vpop.permute.xlu0 %8332
      %8334 = vrot.lane.b32.xlu0 %v8270, 110
      %v8335 = vpop.permute.xlu0 %8334
      %8336 = vrot.lane.b32.xlu0 %v8271, 110
      %v8337 = vpop.permute.xlu0 %8336
      %8338 = vrot.lane.b32.xlu0 %v8272, 110
      %v8339 = vpop.permute.xlu0 %8338
      %8340 = vrot.lane.b32.xlu0 %v8273, 110
      %v8341 = vpop.permute.xlu0 %8340
      %8342 = vrot.lane.b32.xlu0 %v8274, 110
      %v8343 = vpop.permute.xlu0 %8342
      %8344 = vrot.lane.b32.xlu0 %v8275, 110
      %v8345 = vpop.permute.xlu0 %8344
      %8346 = vrot.lane.b32.xlu0 %v8276, 110
      %v8347 = vpop.permute.xlu0 %8346
      %8348 = vrot.lane.b32.xlu0 %v8277, 110
      %v8349 = vpop.permute.xlu0 %8348
      %v8350 = vsel %vm722, %v8303, %v8305
      %v8351 = vsel %vm722, %v8305, %v8307
      %v8352 = vsel %vm722, %v8307, %v8309
      %v8353 = vsel %vm722, %v8309, %v8311
      %v8354 = vsel %vm722, %v8311, %v8313
      %v8355 = vsel %vm722, %v8315, %v8317
      %v8356 = vsel %vm722, %v8317, %v8319
      %v8357 = vsel %vm722, %v8319, %v8321
      %v8358 = vsel %vm722, %v8321, %v8323
      %v8359 = vsel %vm722, %v8323, %v8325
      %v8360 = vsel %vm722, %v8327, %v8329
      %v8361 = vsel %vm722, %v8329, %v8331
      %v8362 = vsel %vm722, %v8331, %v8333
      %v8363 = vsel %vm722, %v8333, %v8335
      %v8364 = vsel %vm722, %v8335, %v8337
      %v8365 = vsel %vm722, %v8339, %v8341
      %v8366 = vsel %vm722, %v8341, %v8343
      %v8367 = vsel %vm722, %v8343, %v8345
      %v8368 = vsel %vm722, %v8345, %v8347
      %v8369 = vsel %vm722, %v8347, %v8349
      %8394 = vst [vmem:[#allocation3 + $0x240] sm:$0xff] %v8350
      %8395 = vst [vmem:[#allocation3 + $0x248] sm:$0xff] %v8351
      %8396 = vst [vmem:[#allocation3 + $0x250] sm:$0xff] %v8352
      %8397 = vst [vmem:[#allocation3 + $0x258] sm:$0xff] %v8353
      %8398 = vst [vmem:[#allocation3 + $0x260] sm:$0xff] %v8354
      %8399 = vst.msk [vmem:[#allocation3 + $0x268] sm:$0xff] %vm276, %v8313
      %8400 = vst [vmem:[#allocation3 + $0x270] sm:$0xff] %v8355
      %8401 = vst [vmem:[#allocation3 + $0x278] sm:$0xff] %v8356
      %8402 = vst [vmem:[#allocation3 + $0x280] sm:$0xff] %v8357
      %8403 = vst [vmem:[#allocation3 + $0x288] sm:$0xff] %v8358
      %8404 = vst [vmem:[#allocation3 + $0x290] sm:$0xff] %v8359
      %8405 = vst.msk [vmem:[#allocation3 + $0x298] sm:$0xff] %vm276, %v8325
      %8406 = vst [vmem:[#allocation3 + $0x2a0] sm:$0xff] %v8360
      %8407 = vst [vmem:[#allocation3 + $0x2a8] sm:$0xff] %v8361
      %8408 = vst [vmem:[#allocation3 + $0x2b0] sm:$0xff] %v8362
      %8409 = vst [vmem:[#allocation3 + $0x2b8] sm:$0xff] %v8363
      %8410 = vst [vmem:[#allocation3 + $0x2c0] sm:$0xff] %v8364
      %8411 = vst.msk [vmem:[#allocation3 + $0x2c8] sm:$0xff] %vm276, %v8337
      %8412 = vst [vmem:[#allocation3 + $0x2d0] sm:$0xff] %v8365
      %8413 = vst [vmem:[#allocation3 + $0x2d8] sm:$0xff] %v8366
      %8414 = vst [vmem:[#allocation3 + $0x2e0] sm:$0xff] %v8367
      %8415 = vst [vmem:[#allocation3 + $0x2e8] sm:$0xff] %v8368
      %8416 = vst [vmem:[#allocation3 + $0x2f0] sm:$0xff] %v8369
      %8417 = vst.msk [vmem:[#allocation3 + $0x2f8] sm:$0xff] %vm276, %v8349
      %v8418 = vld [vmem:[#allocation2] sm:$0xff]
      %v8419 = vld [vmem:[#allocation2 + $0x8] sm:$0xff]
      %v8420 = vld [vmem:[#allocation2 + $0x10] sm:$0xff]
      %v8421 = vld [vmem:[#allocation2 + $0x18] sm:$0xff]
      %v8422 = vld [vmem:[#allocation2 + $0x20] sm:$0xff]
      %v8423 = vld [vmem:[#allocation2 + $0x28] sm:$0xff]
      %v8424 = vld [vmem:[#allocation2 + $0x30] sm:$0xff]
      %v8425 = vld [vmem:[#allocation2 + $0x38] sm:$0xff]
      %v8426 = vld [vmem:[#allocation2 + $0x40] sm:$0xff]
      %v8427 = vld [vmem:[#allocation2 + $0x48] sm:$0xff]
      %v8428 = vld [vmem:[#allocation2 + $0x50] sm:$0xff]
      %v8429 = vld [vmem:[#allocation2 + $0x58] sm:$0xff]
      %v8430 = vld [vmem:[#allocation2 + $0x60] sm:$0xff]
      %v8431 = vld [vmem:[#allocation2 + $0x68] sm:$0xff]
      %v8432 = vld [vmem:[#allocation2 + $0x70] sm:$0xff]
      %v8433 = vld [vmem:[#allocation2 + $0x78] sm:$0xff]
      %v8434 = vld [vmem:[#allocation2 + $0x80] sm:$0xff]
      %v8435 = vld [vmem:[#allocation2 + $0x88] sm:$0xff]
      %v8436 = vld [vmem:[#allocation2 + $0x90] sm:$0xff]
      %v8437 = vld [vmem:[#allocation2 + $0x98] sm:$0xff]
      %v8438 = vld [vmem:[#allocation2 + $0xa0] sm:$0xff]
      %v8439 = vld [vmem:[#allocation2 + $0xa8] sm:$0xff]
      %v8440 = vld [vmem:[#allocation2 + $0xb0] sm:$0xff]
      %v8441 = vld [vmem:[#allocation2 + $0xb8] sm:$0xff]
      %8466 = vrot.lane.b32.xlu0 %v8418, 109
      %v8467 = vpop.permute.xlu0 %8466
      %8468 = vrot.lane.b32.xlu0 %v8419, 109
      %v8469 = vpop.permute.xlu0 %8468
      %8470 = vrot.lane.b32.xlu0 %v8420, 109
      %v8471 = vpop.permute.xlu0 %8470
      %8472 = vrot.lane.b32.xlu0 %v8421, 109
      %v8473 = vpop.permute.xlu0 %8472
      %8474 = vrot.lane.b32.xlu0 %v8422, 109
      %v8475 = vpop.permute.xlu0 %8474
      %8476 = vrot.lane.b32.xlu0 %v8423, 109
      %v8477 = vpop.permute.xlu0 %8476
      %8478 = vrot.lane.b32.xlu0 %v8424, 109
      %v8479 = vpop.permute.xlu0 %8478
      %8480 = vrot.lane.b32.xlu0 %v8425, 109
      %v8481 = vpop.permute.xlu0 %8480
      %8482 = vrot.lane.b32.xlu0 %v8426, 109
      %v8483 = vpop.permute.xlu0 %8482
      %8484 = vrot.lane.b32.xlu0 %v8427, 109
      %v8485 = vpop.permute.xlu0 %8484
      %8486 = vrot.lane.b32.xlu0 %v8428, 109
      %v8487 = vpop.permute.xlu0 %8486
      %8488 = vrot.lane.b32.xlu0 %v8429, 109
      %v8489 = vpop.permute.xlu0 %8488
      %8490 = vrot.lane.b32.xlu0 %v8430, 109
      %v8491 = vpop.permute.xlu0 %8490
      %8492 = vrot.lane.b32.xlu0 %v8431, 109
      %v8493 = vpop.permute.xlu0 %8492
      %8494 = vrot.lane.b32.xlu0 %v8432, 109
      %v8495 = vpop.permute.xlu0 %8494
      %8496 = vrot.lane.b32.xlu0 %v8433, 109
      %v8497 = vpop.permute.xlu0 %8496
      %8498 = vrot.lane.b32.xlu0 %v8434, 109
      %v8499 = vpop.permute.xlu0 %8498
      %8500 = vrot.lane.b32.xlu0 %v8435, 109
      %v8501 = vpop.permute.xlu0 %8500
      %8502 = vrot.lane.b32.xlu0 %v8436, 109
      %v8503 = vpop.permute.xlu0 %8502
      %8504 = vrot.lane.b32.xlu0 %v8437, 109
      %v8505 = vpop.permute.xlu0 %8504
      %8506 = vrot.lane.b32.xlu0 %v8438, 109
      %v8507 = vpop.permute.xlu0 %8506
      %8508 = vrot.lane.b32.xlu0 %v8439, 109
      %v8509 = vpop.permute.xlu0 %8508
      %8510 = vrot.lane.b32.xlu0 %v8440, 109
      %v8511 = vpop.permute.xlu0 %8510
      %8512 = vrot.lane.b32.xlu0 %v8441, 109
      %v8513 = vpop.permute.xlu0 %8512
      %v8514 = vsel %vm887, %v8467, %v8469
      %v8515 = vsel %vm887, %v8469, %v8471
      %v8516 = vsel %vm887, %v8471, %v8473
      %v8517 = vsel %vm887, %v8473, %v8475
      %v8518 = vsel %vm887, %v8475, %v8477
      %v8519 = vsel %vm887, %v8479, %v8481
      %v8520 = vsel %vm887, %v8481, %v8483
      %v8521 = vsel %vm887, %v8483, %v8485
      %v8522 = vsel %vm887, %v8485, %v8487
      %v8523 = vsel %vm887, %v8487, %v8489
      %v8524 = vsel %vm887, %v8491, %v8493
      %v8525 = vsel %vm887, %v8493, %v8495
      %v8526 = vsel %vm887, %v8495, %v8497
      %v8527 = vsel %vm887, %v8497, %v8499
      %v8528 = vsel %vm887, %v8499, %v8501
      %v8529 = vsel %vm887, %v8503, %v8505
      %v8530 = vsel %vm887, %v8505, %v8507
      %v8531 = vsel %vm887, %v8507, %v8509
      %v8532 = vsel %vm887, %v8509, %v8511
      %v8533 = vsel %vm887, %v8511, %v8513
      %8558 = vst [vmem:[#allocation3 + $0x300] sm:$0xff] %v8514
      %8559 = vst [vmem:[#allocation3 + $0x308] sm:$0xff] %v8515
      %8560 = vst [vmem:[#allocation3 + $0x310] sm:$0xff] %v8516
      %8561 = vst [vmem:[#allocation3 + $0x318] sm:$0xff] %v8517
      %8562 = vst [vmem:[#allocation3 + $0x320] sm:$0xff] %v8518
      %8563 = vst.msk [vmem:[#allocation3 + $0x328] sm:$0xff] %vm276, %v8477
      %8564 = vst [vmem:[#allocation3 + $0x330] sm:$0xff] %v8519
      %8565 = vst [vmem:[#allocation3 + $0x338] sm:$0xff] %v8520
      %8566 = vst [vmem:[#allocation3 + $0x340] sm:$0xff] %v8521
      %8567 = vst [vmem:[#allocation3 + $0x348] sm:$0xff] %v8522
      %8568 = vst [vmem:[#allocation3 + $0x350] sm:$0xff] %v8523
      %8569 = vst.msk [vmem:[#allocation3 + $0x358] sm:$0xff] %vm276, %v8489
      %8570 = vst [vmem:[#allocation3 + $0x360] sm:$0xff] %v8524
      %8571 = vst [vmem:[#allocation3 + $0x368] sm:$0xff] %v8525
      %8572 = vst [vmem:[#allocation3 + $0x370] sm:$0xff] %v8526
      %8573 = vst [vmem:[#allocation3 + $0x378] sm:$0xff] %v8527
      %8574 = vst [vmem:[#allocation3 + $0x380] sm:$0xff] %v8528
      %8575 = vst.msk [vmem:[#allocation3 + $0x388] sm:$0xff] %vm276, %v8501
      %8576 = vst [vmem:[#allocation3 + $0x390] sm:$0xff] %v8529
      %8577 = vst [vmem:[#allocation3 + $0x398] sm:$0xff] %v8530
      %8578 = vst [vmem:[#allocation3 + $0x3a0] sm:$0xff] %v8531
      %8579 = vst [vmem:[#allocation3 + $0x3a8] sm:$0xff] %v8532
      %8580 = vst [vmem:[#allocation3 + $0x3b0] sm:$0xff] %v8533
      %8581 = vst.msk [vmem:[#allocation3 + $0x3b8] sm:$0xff] %vm276, %v8513
      %v8582 = vld [vmem:[#allocation2] sm:$0xff]
      %v8583 = vld [vmem:[#allocation2 + $0x8] sm:$0xff]
      %v8584 = vld [vmem:[#allocation2 + $0x10] sm:$0xff]
      %v8585 = vld [vmem:[#allocation2 + $0x18] sm:$0xff]
      %v8586 = vld [vmem:[#allocation2 + $0x20] sm:$0xff]
      %v8587 = vld [vmem:[#allocation2 + $0x28] sm:$0xff]
      %v8588 = vld [vmem:[#allocation2 + $0x30] sm:$0xff]
      %v8589 = vld [vmem:[#allocation2 + $0x38] sm:$0xff]
      %v8590 = vld [vmem:[#allocation2 + $0x40] sm:$0xff]
      %v8591 = vld [vmem:[#allocation2 + $0x48] sm:$0xff]
      %v8592 = vld [vmem:[#allocation2 + $0x50] sm:$0xff]
      %v8593 = vld [vmem:[#allocation2 + $0x58] sm:$0xff]
      %v8594 = vld [vmem:[#allocation2 + $0x60] sm:$0xff]
      %v8595 = vld [vmem:[#allocation2 + $0x68] sm:$0xff]
      %v8596 = vld [vmem:[#allocation2 + $0x70] sm:$0xff]
      %v8597 = vld [vmem:[#allocation2 + $0x78] sm:$0xff]
      %v8598 = vld [vmem:[#allocation2 + $0x80] sm:$0xff]
      %v8599 = vld [vmem:[#allocation2 + $0x88] sm:$0xff]
      %v8600 = vld [vmem:[#allocation2 + $0x90] sm:$0xff]
      %v8601 = vld [vmem:[#allocation2 + $0x98] sm:$0xff]
      %v8602 = vld [vmem:[#allocation2 + $0xa0] sm:$0xff]
      %v8603 = vld [vmem:[#allocation2 + $0xa8] sm:$0xff]
      %v8604 = vld [vmem:[#allocation2 + $0xb0] sm:$0xff]
      %v8605 = vld [vmem:[#allocation2 + $0xb8] sm:$0xff]
      %8630 = vrot.lane.b32.xlu0 %v8582, 108
      %v8631 = vpop.permute.xlu0 %8630
      %8632 = vrot.lane.b32.xlu0 %v8583, 108
      %v8633 = vpop.permute.xlu0 %8632
      %8634 = vrot.lane.b32.xlu0 %v8584, 108
      %v8635 = vpop.permute.xlu0 %8634
      %8636 = vrot.lane.b32.xlu0 %v8585, 108
      %v8637 = vpop.permute.xlu0 %8636
      %8638 = vrot.lane.b32.xlu0 %v8586, 108
      %v8639 = vpop.permute.xlu0 %8638
      %8640 = vrot.lane.b32.xlu0 %v8587, 108
      %v8641 = vpop.permute.xlu0 %8640
      %8642 = vrot.lane.b32.xlu0 %v8588, 108
      %v8643 = vpop.permute.xlu0 %8642
      %8644 = vrot.lane.b32.xlu0 %v8589, 108
      %v8645 = vpop.permute.xlu0 %8644
      %8646 = vrot.lane.b32.xlu0 %v8590, 108
      %v8647 = vpop.permute.xlu0 %8646
      %8648 = vrot.lane.b32.xlu0 %v8591, 108
      %v8649 = vpop.permute.xlu0 %8648
      %8650 = vrot.lane.b32.xlu0 %v8592, 108
      %v8651 = vpop.permute.xlu0 %8650
      %8652 = vrot.lane.b32.xlu0 %v8593, 108
      %v8653 = vpop.permute.xlu0 %8652
      %8654 = vrot.lane.b32.xlu0 %v8594, 108
      %v8655 = vpop.permute.xlu0 %8654
      %8656 = vrot.lane.b32.xlu0 %v8595, 108
      %v8657 = vpop.permute.xlu0 %8656
      %8658 = vrot.lane.b32.xlu0 %v8596, 108
      %v8659 = vpop.permute.xlu0 %8658
      %8660 = vrot.lane.b32.xlu0 %v8597, 108
      %v8661 = vpop.permute.xlu0 %8660
      %8662 = vrot.lane.b32.xlu0 %v8598, 108
      %v8663 = vpop.permute.xlu0 %8662
      %8664 = vrot.lane.b32.xlu0 %v8599, 108
      %v8665 = vpop.permute.xlu0 %8664
      %8666 = vrot.lane.b32.xlu0 %v8600, 108
      %v8667 = vpop.permute.xlu0 %8666
      %8668 = vrot.lane.b32.xlu0 %v8601, 108
      %v8669 = vpop.permute.xlu0 %8668
      %8670 = vrot.lane.b32.xlu0 %v8602, 108
      %v8671 = vpop.permute.xlu0 %8670
      %8672 = vrot.lane.b32.xlu0 %v8603, 108
      %v8673 = vpop.permute.xlu0 %8672
      %8674 = vrot.lane.b32.xlu0 %v8604, 108
      %v8675 = vpop.permute.xlu0 %8674
      %8676 = vrot.lane.b32.xlu0 %v8605, 108
      %v8677 = vpop.permute.xlu0 %8676
      %v8678 = vsel %vm1052, %v8631, %v8633
      %v8679 = vsel %vm1052, %v8633, %v8635
      %v8680 = vsel %vm1052, %v8635, %v8637
      %v8681 = vsel %vm1052, %v8637, %v8639
      %v8682 = vsel %vm1052, %v8639, %v8641
      %v8683 = vsel %vm1052, %v8643, %v8645
      %v8684 = vsel %vm1052, %v8645, %v8647
      %v8685 = vsel %vm1052, %v8647, %v8649
      %v8686 = vsel %vm1052, %v8649, %v8651
      %v8687 = vsel %vm1052, %v8651, %v8653
      %v8688 = vsel %vm1052, %v8655, %v8657
      %v8689 = vsel %vm1052, %v8657, %v8659
      %v8690 = vsel %vm1052, %v8659, %v8661
      %v8691 = vsel %vm1052, %v8661, %v8663
      %v8692 = vsel %vm1052, %v8663, %v8665
      %v8693 = vsel %vm1052, %v8667, %v8669
      %v8694 = vsel %vm1052, %v8669, %v8671
      %v8695 = vsel %vm1052, %v8671, %v8673
      %v8696 = vsel %vm1052, %v8673, %v8675
      %v8697 = vsel %vm1052, %v8675, %v8677
      %8722 = vst [vmem:[#allocation3 + $0x3c0] sm:$0xff] %v8678
      %8723 = vst [vmem:[#allocation3 + $0x3c8] sm:$0xff] %v8679
      %8724 = vst [vmem:[#allocation3 + $0x3d0] sm:$0xff] %v8680
      %8725 = vst [vmem:[#allocation3 + $0x3d8] sm:$0xff] %v8681
      %8726 = vst [vmem:[#allocation3 + $0x3e0] sm:$0xff] %v8682
      %8727 = vst.msk [vmem:[#allocation3 + $0x3e8] sm:$0xff] %vm276, %v8641
      %8728 = vst [vmem:[#allocation3 + $0x3f0] sm:$0xff] %v8683
      %8729 = vst [vmem:[#allocation3 + $0x3f8] sm:$0xff] %v8684
      %8730 = vst [vmem:[#allocation3 + $0x400] sm:$0xff] %v8685
      %8731 = vst [vmem:[#allocation3 + $0x408] sm:$0xff] %v8686
      %8732 = vst [vmem:[#allocation3 + $0x410] sm:$0xff] %v8687
      %8733 = vst.msk [vmem:[#allocation3 + $0x418] sm:$0xff] %vm276, %v8653
      %8734 = vst [vmem:[#allocation3 + $0x420] sm:$0xff] %v8688
      %8735 = vst [vmem:[#allocation3 + $0x428] sm:$0xff] %v8689
      %8736 = vst [vmem:[#allocation3 + $0x430] sm:$0xff] %v8690
      %8737 = vst [vmem:[#allocation3 + $0x438] sm:$0xff] %v8691
      %8738 = vst [vmem:[#allocation3 + $0x440] sm:$0xff] %v8692
      %8739 = vst.msk [vmem:[#allocation3 + $0x448] sm:$0xff] %vm276, %v8665
      %8740 = vst [vmem:[#allocation3 + $0x450] sm:$0xff] %v8693
      %8741 = vst [vmem:[#allocation3 + $0x458] sm:$0xff] %v8694
      %8742 = vst [vmem:[#allocation3 + $0x460] sm:$0xff] %v8695
      %8743 = vst [vmem:[#allocation3 + $0x468] sm:$0xff] %v8696
      %8744 = vst [vmem:[#allocation3 + $0x470] sm:$0xff] %v8697
      %8745 = vst.msk [vmem:[#allocation3 + $0x478] sm:$0xff] %vm276, %v8677
      %v8746 = vld [vmem:[#allocation2] sm:$0xff]
      %v8747 = vld [vmem:[#allocation2 + $0x8] sm:$0xff]
      %v8748 = vld [vmem:[#allocation2 + $0x10] sm:$0xff]
      %v8749 = vld [vmem:[#allocation2 + $0x18] sm:$0xff]
      %v8750 = vld [vmem:[#allocation2 + $0x20] sm:$0xff]
      %v8751 = vld [vmem:[#allocation2 + $0x28] sm:$0xff]
      %v8752 = vld [vmem:[#allocation2 + $0x30] sm:$0xff]
      %v8753 = vld [vmem:[#allocation2 + $0x38] sm:$0xff]
      %v8754 = vld [vmem:[#allocation2 + $0x40] sm:$0xff]
      %v8755 = vld [vmem:[#allocation2 + $0x48] sm:$0xff]
      %v8756 = vld [vmem:[#allocation2 + $0x50] sm:$0xff]
      %v8757 = vld [vmem:[#allocation2 + $0x58] sm:$0xff]
      %v8758 = vld [vmem:[#allocation2 + $0x60] sm:$0xff]
      %v8759 = vld [vmem:[#allocation2 + $0x68] sm:$0xff]
      %v8760 = vld [vmem:[#allocation2 + $0x70] sm:$0xff]
      %v8761 = vld [vmem:[#allocation2 + $0x78] sm:$0xff]
      %v8762 = vld [vmem:[#allocation2 + $0x80] sm:$0xff]
      %v8763 = vld [vmem:[#allocation2 + $0x88] sm:$0xff]
      %v8764 = vld [vmem:[#allocation2 + $0x90] sm:$0xff]
      %v8765 = vld [vmem:[#allocation2 + $0x98] sm:$0xff]
      %v8766 = vld [vmem:[#allocation2 + $0xa0] sm:$0xff]
      %v8767 = vld [vmem:[#allocation2 + $0xa8] sm:$0xff]
      %v8768 = vld [vmem:[#allocation2 + $0xb0] sm:$0xff]
      %v8769 = vld [vmem:[#allocation2 + $0xb8] sm:$0xff]
      %8794 = vrot.lane.b32.xlu0 %v8746, 92
      %v8795 = vpop.permute.xlu0 %8794
      %8796 = vrot.lane.b32.xlu0 %v8747, 92
      %v8797 = vpop.permute.xlu0 %8796
      %8798 = vrot.lane.b32.xlu0 %v8748, 92
      %v8799 = vpop.permute.xlu0 %8798
      %8800 = vrot.lane.b32.xlu0 %v8749, 92
      %v8801 = vpop.permute.xlu0 %8800
      %8802 = vrot.lane.b32.xlu0 %v8750, 92
      %v8803 = vpop.permute.xlu0 %8802
      %8804 = vrot.lane.b32.xlu0 %v8751, 92
      %v8805 = vpop.permute.xlu0 %8804
      %8806 = vrot.lane.b32.xlu0 %v8752, 92
      %v8807 = vpop.permute.xlu0 %8806
      %8808 = vrot.lane.b32.xlu0 %v8753, 92
      %v8809 = vpop.permute.xlu0 %8808
      %8810 = vrot.lane.b32.xlu0 %v8754, 92
      %v8811 = vpop.permute.xlu0 %8810
      %8812 = vrot.lane.b32.xlu0 %v8755, 92
      %v8813 = vpop.permute.xlu0 %8812
      %8814 = vrot.lane.b32.xlu0 %v8756, 92
      %v8815 = vpop.permute.xlu0 %8814
      %8816 = vrot.lane.b32.xlu0 %v8757, 92
      %v8817 = vpop.permute.xlu0 %8816
      %8818 = vrot.lane.b32.xlu0 %v8758, 92
      %v8819 = vpop.permute.xlu0 %8818
      %8820 = vrot.lane.b32.xlu0 %v8759, 92
      %v8821 = vpop.permute.xlu0 %8820
      %8822 = vrot.lane.b32.xlu0 %v8760, 92
      %v8823 = vpop.permute.xlu0 %8822
      %8824 = vrot.lane.b32.xlu0 %v8761, 92
      %v8825 = vpop.permute.xlu0 %8824
      %8826 = vrot.lane.b32.xlu0 %v8762, 92
      %v8827 = vpop.permute.xlu0 %8826
      %8828 = vrot.lane.b32.xlu0 %v8763, 92
      %v8829 = vpop.permute.xlu0 %8828
      %8830 = vrot.lane.b32.xlu0 %v8764, 92
      %v8831 = vpop.permute.xlu0 %8830
      %8832 = vrot.lane.b32.xlu0 %v8765, 92
      %v8833 = vpop.permute.xlu0 %8832
      %8834 = vrot.lane.b32.xlu0 %v8766, 92
      %v8835 = vpop.permute.xlu0 %8834
      %8836 = vrot.lane.b32.xlu0 %v8767, 92
      %v8837 = vpop.permute.xlu0 %8836
      %8838 = vrot.lane.b32.xlu0 %v8768, 92
      %v8839 = vpop.permute.xlu0 %8838
      %8840 = vrot.lane.b32.xlu0 %v8769, 92
      %v8841 = vpop.permute.xlu0 %8840
      %v8842 = vsel %vm1217, %v8795, %v8797
      %v8843 = vsel %vm1217, %v8797, %v8799
      %v8844 = vsel %vm1217, %v8799, %v8801
      %v8845 = vsel %vm1217, %v8801, %v8803
      %v8846 = vsel %vm1217, %v8803, %v8805
      %v8847 = vsel %vm1217, %v8807, %v8809
      %v8848 = vsel %vm1217, %v8809, %v8811
      %v8849 = vsel %vm1217, %v8811, %v8813
      %v8850 = vsel %vm1217, %v8813, %v8815
      %v8851 = vsel %vm1217, %v8815, %v8817
      %v8852 = vsel %vm1217, %v8819, %v8821
      %v8853 = vsel %vm1217, %v8821, %v8823
      %v8854 = vsel %vm1217, %v8823, %v8825
      %v8855 = vsel %vm1217, %v8825, %v8827
      %v8856 = vsel %vm1217, %v8827, %v8829
      %v8857 = vsel %vm1217, %v8831, %v8833
      %v8858 = vsel %vm1217, %v8833, %v8835
      %v8859 = vsel %vm1217, %v8835, %v8837
      %v8860 = vsel %vm1217, %v8837, %v8839
      %v8861 = vsel %vm1217, %v8839, %v8841
      %8886 = vst [vmem:[#allocation3 + $0x480] sm:$0xff] %v8842
      %8887 = vst [vmem:[#allocation3 + $0x488] sm:$0xff] %v8843
      %8888 = vst [vmem:[#allocation3 + $0x490] sm:$0xff] %v8844
      %8889 = vst [vmem:[#allocation3 + $0x498] sm:$0xff] %v8845
      %8890 = vst [vmem:[#allocation3 + $0x4a0] sm:$0xff] %v8846
      %8891 = vst.msk [vmem:[#allocation3 + $0x4a8] sm:$0xff] %vm276, %v8805
      %8892 = vst [vmem:[#allocation3 + $0x4b0] sm:$0xff] %v8847
      %8893 = vst [vmem:[#allocation3 + $0x4b8] sm:$0xff] %v8848
      %8894 = vst [vmem:[#allocation3 + $0x4c0] sm:$0xff] %v8849
      %8895 = vst [vmem:[#allocation3 + $0x4c8] sm:$0xff] %v8850
      %8896 = vst [vmem:[#allocation3 + $0x4d0] sm:$0xff] %v8851
      %8897 = vst.msk [vmem:[#allocation3 + $0x4d8] sm:$0xff] %vm276, %v8817
      %8898 = vst [vmem:[#allocation3 + $0x4e0] sm:$0xff] %v8852
      %8899 = vst [vmem:[#allocation3 + $0x4e8] sm:$0xff] %v8853
      %8900 = vst [vmem:[#allocation3 + $0x4f0] sm:$0xff] %v8854
      %8901 = vst [vmem:[#allocation3 + $0x4f8] sm:$0xff] %v8855
      %8902 = vst [vmem:[#allocation3 + $0x500] sm:$0xff] %v8856
      %8903 = vst.msk [vmem:[#allocation3 + $0x508] sm:$0xff] %vm276, %v8829
      %8904 = vst [vmem:[#allocation3 + $0x510] sm:$0xff] %v8857
      %8905 = vst [vmem:[#allocation3 + $0x518] sm:$0xff] %v8858
      %8906 = vst [vmem:[#allocation3 + $0x520] sm:$0xff] %v8859
      %8907 = vst [vmem:[#allocation3 + $0x528] sm:$0xff] %v8860
      %8908 = vst [vmem:[#allocation3 + $0x530] sm:$0xff] %v8861
      %8909 = vst.msk [vmem:[#allocation3 + $0x538] sm:$0xff] %vm276, %v8841
      %v8910 = vld [vmem:[#allocation2] sm:$0xff]
      %v8911 = vld [vmem:[#allocation2 + $0x8] sm:$0xff]
      %v8912 = vld [vmem:[#allocation2 + $0x10] sm:$0xff]
      %v8913 = vld [vmem:[#allocation2 + $0x18] sm:$0xff]
      %v8914 = vld [vmem:[#allocation2 + $0x20] sm:$0xff]
      %v8915 = vld [vmem:[#allocation2 + $0x28] sm:$0xff]
      %v8916 = vld [vmem:[#allocation2 + $0x30] sm:$0xff]
      %v8917 = vld [vmem:[#allocation2 + $0x38] sm:$0xff]
      %v8918 = vld [vmem:[#allocation2 + $0x40] sm:$0xff]
      %v8919 = vld [vmem:[#allocation2 + $0x48] sm:$0xff]
      %v8920 = vld [vmem:[#allocation2 + $0x50] sm:$0xff]
      %v8921 = vld [vmem:[#allocation2 + $0x58] sm:$0xff]
      %v8922 = vld [vmem:[#allocation2 + $0x60] sm:$0xff]
      %v8923 = vld [vmem:[#allocation2 + $0x68] sm:$0xff]
      %v8924 = vld [vmem:[#allocation2 + $0x70] sm:$0xff]
      %v8925 = vld [vmem:[#allocation2 + $0x78] sm:$0xff]
      %v8926 = vld [vmem:[#allocation2 + $0x80] sm:$0xff]
      %v8927 = vld [vmem:[#allocation2 + $0x88] sm:$0xff]
      %v8928 = vld [vmem:[#allocation2 + $0x90] sm:$0xff]
      %v8929 = vld [vmem:[#allocation2 + $0x98] sm:$0xff]
      %v8930 = vld [vmem:[#allocation2 + $0xa0] sm:$0xff]
      %v8931 = vld [vmem:[#allocation2 + $0xa8] sm:$0xff]
      %v8932 = vld [vmem:[#allocation2 + $0xb0] sm:$0xff]
      %v8933 = vld [vmem:[#allocation2 + $0xb8] sm:$0xff]
      %8958 = vrot.lane.b32.xlu0 %v8910, 91
      %v8959 = vpop.permute.xlu0 %8958
      %8960 = vrot.lane.b32.xlu0 %v8911, 91
      %v8961 = vpop.permute.xlu0 %8960
      %8962 = vrot.lane.b32.xlu0 %v8912, 91
      %v8963 = vpop.permute.xlu0 %8962
      %8964 = vrot.lane.b32.xlu0 %v8913, 91
      %v8965 = vpop.permute.xlu0 %8964
      %8966 = vrot.lane.b32.xlu0 %v8914, 91
      %v8967 = vpop.permute.xlu0 %8966
      %8968 = vrot.lane.b32.xlu0 %v8915, 91
      %v8969 = vpop.permute.xlu0 %8968
      %8970 = vrot.lane.b32.xlu0 %v8916, 91
      %v8971 = vpop.permute.xlu0 %8970
      %8972 = vrot.lane.b32.xlu0 %v8917, 91
      %v8973 = vpop.permute.xlu0 %8972
      %8974 = vrot.lane.b32.xlu0 %v8918, 91
      %v8975 = vpop.permute.xlu0 %8974
      %8976 = vrot.lane.b32.xlu0 %v8919, 91
      %v8977 = vpop.permute.xlu0 %8976
      %8978 = vrot.lane.b32.xlu0 %v8920, 91
      %v8979 = vpop.permute.xlu0 %8978
      %8980 = vrot.lane.b32.xlu0 %v8921, 91
      %v8981 = vpop.permute.xlu0 %8980
      %8982 = vrot.lane.b32.xlu0 %v8922, 91
      %v8983 = vpop.permute.xlu0 %8982
      %8984 = vrot.lane.b32.xlu0 %v8923, 91
      %v8985 = vpop.permute.xlu0 %8984
      %8986 = vrot.lane.b32.xlu0 %v8924, 91
      %v8987 = vpop.permute.xlu0 %8986
      %8988 = vrot.lane.b32.xlu0 %v8925, 91
      %v8989 = vpop.permute.xlu0 %8988
      %8990 = vrot.lane.b32.xlu0 %v8926, 91
      %v8991 = vpop.permute.xlu0 %8990
      %8992 = vrot.lane.b32.xlu0 %v8927, 91
      %v8993 = vpop.permute.xlu0 %8992
      %8994 = vrot.lane.b32.xlu0 %v8928, 91
      %v8995 = vpop.permute.xlu0 %8994
      %8996 = vrot.lane.b32.xlu0 %v8929, 91
      %v8997 = vpop.permute.xlu0 %8996
      %8998 = vrot.lane.b32.xlu0 %v8930, 91
      %v8999 = vpop.permute.xlu0 %8998
      %9000 = vrot.lane.b32.xlu0 %v8931, 91
      %v9001 = vpop.permute.xlu0 %9000
      %9002 = vrot.lane.b32.xlu0 %v8932, 91
      %v9003 = vpop.permute.xlu0 %9002
      %9004 = vrot.lane.b32.xlu0 %v8933, 91
      %v9005 = vpop.permute.xlu0 %9004
      %v9006 = vsel %vm1382, %v8959, %v8961
      %v9007 = vsel %vm1382, %v8961, %v8963
      %v9008 = vsel %vm1382, %v8963, %v8965
      %v9009 = vsel %vm1382, %v8965, %v8967
      %v9010 = vsel %vm1382, %v8967, %v8969
      %v9011 = vsel %vm1382, %v8971, %v8973
      %v9012 = vsel %vm1382, %v8973, %v8975
      %v9013 = vsel %vm1382, %v8975, %v8977
      %v9014 = vsel %vm1382, %v8977, %v8979
      %v9015 = vsel %vm1382, %v8979, %v8981
      %v9016 = vsel %vm1382, %v8983, %v8985
      %v9017 = vsel %vm1382, %v8985, %v8987
      %v9018 = vsel %vm1382, %v8987, %v8989
      %v9019 = vsel %vm1382, %v8989, %v8991
      %v9020 = vsel %vm1382, %v8991, %v8993
      %v9021 = vsel %vm1382, %v8995, %v8997
      %v9022 = vsel %vm1382, %v8997, %v8999
      %v9023 = vsel %vm1382, %v8999, %v9001
      %v9024 = vsel %vm1382, %v9001, %v9003
      %v9025 = vsel %vm1382, %v9003, %v9005
      %9050 = vst [vmem:[#allocation3 + $0x540] sm:$0xff] %v9006
      %9051 = vst [vmem:[#allocation3 + $0x548] sm:$0xff] %v9007
      %9052 = vst [vmem:[#allocation3 + $0x550] sm:$0xff] %v9008
      %9053 = vst [vmem:[#allocation3 + $0x558] sm:$0xff] %v9009
      %9054 = vst [vmem:[#allocation3 + $0x560] sm:$0xff] %v9010
      %9055 = vst.msk [vmem:[#allocation3 + $0x568] sm:$0xff] %vm276, %v8969
      %9056 = vst [vmem:[#allocation3 + $0x570] sm:$0xff] %v9011
      %9057 = vst [vmem:[#allocation3 + $0x578] sm:$0xff] %v9012
      %9058 = vst [vmem:[#allocation3 + $0x580] sm:$0xff] %v9013
      %9059 = vst [vmem:[#allocation3 + $0x588] sm:$0xff] %v9014
      %9060 = vst [vmem:[#allocation3 + $0x590] sm:$0xff] %v9015
      %9061 = vst.msk [vmem:[#allocation3 + $0x598] sm:$0xff] %vm276, %v8981
      %9062 = vst [vmem:[#allocation3 + $0x5a0] sm:$0xff] %v9016
      %9063 = vst [vmem:[#allocation3 + $0x5a8] sm:$0xff] %v9017
      %9064 = vst [vmem:[#allocation3 + $0x5b0] sm:$0xff] %v9018
      %9065 = vst [vmem:[#allocation3 + $0x5b8] sm:$0xff] %v9019
      %9066 = vst [vmem:[#allocation3 + $0x5c0] sm:$0xff] %v9020
      %9067 = vst.msk [vmem:[#allocation3 + $0x5c8] sm:$0xff] %vm276, %v8993
      %9068 = vst [vmem:[#allocation3 + $0x5d0] sm:$0xff] %v9021
      %9069 = vst [vmem:[#allocation3 + $0x5d8] sm:$0xff] %v9022
      %9070 = vst [vmem:[#allocation3 + $0x5e0] sm:$0xff] %v9023
      %9071 = vst [vmem:[#allocation3 + $0x5e8] sm:$0xff] %v9024
      %9072 = vst [vmem:[#allocation3 + $0x5f0] sm:$0xff] %v9025
      %9073 = vst.msk [vmem:[#allocation3 + $0x5f8] sm:$0xff] %vm276, %v9005
      %v9074 = vld [vmem:[#allocation2] sm:$0xff]
      %v9075 = vld [vmem:[#allocation2 + $0x8] sm:$0xff]
      %v9076 = vld [vmem:[#allocation2 + $0x10] sm:$0xff]
      %v9077 = vld [vmem:[#allocation2 + $0x18] sm:$0xff]
      %v9078 = vld [vmem:[#allocation2 + $0x20] sm:$0xff]
      %v9079 = vld [vmem:[#allocation2 + $0x28] sm:$0xff]
      %v9080 = vld [vmem:[#allocation2 + $0x30] sm:$0xff]
      %v9081 = vld [vmem:[#allocation2 + $0x38] sm:$0xff]
      %v9082 = vld [vmem:[#allocation2 + $0x40] sm:$0xff]
      %v9083 = vld [vmem:[#allocation2 + $0x48] sm:$0xff]
      %v9084 = vld [vmem:[#allocation2 + $0x50] sm:$0xff]
      %v9085 = vld [vmem:[#allocation2 + $0x58] sm:$0xff]
      %v9086 = vld [vmem:[#allocation2 + $0x60] sm:$0xff]
      %v9087 = vld [vmem:[#allocation2 + $0x68] sm:$0xff]
      %v9088 = vld [vmem:[#allocation2 + $0x70] sm:$0xff]
      %v9089 = vld [vmem:[#allocation2 + $0x78] sm:$0xff]
      %v9090 = vld [vmem:[#allocation2 + $0x80] sm:$0xff]
      %v9091 = vld [vmem:[#allocation2 + $0x88] sm:$0xff]
      %v9092 = vld [vmem:[#allocation2 + $0x90] sm:$0xff]
      %v9093 = vld [vmem:[#allocation2 + $0x98] sm:$0xff]
      %v9094 = vld [vmem:[#allocation2 + $0xa0] sm:$0xff]
      %v9095 = vld [vmem:[#allocation2 + $0xa8] sm:$0xff]
      %v9096 = vld [vmem:[#allocation2 + $0xb0] sm:$0xff]
      %v9097 = vld [vmem:[#allocation2 + $0xb8] sm:$0xff]
      %9122 = vrot.lane.b32.xlu0 %v9074, 90
      %v9123 = vpop.permute.xlu0 %9122
      %9124 = vrot.lane.b32.xlu0 %v9075, 90
      %v9125 = vpop.permute.xlu0 %9124
      %9126 = vrot.lane.b32.xlu0 %v9076, 90
      %v9127 = vpop.permute.xlu0 %9126
      %9128 = vrot.lane.b32.xlu0 %v9077, 90
      %v9129 = vpop.permute.xlu0 %9128
      %9130 = vrot.lane.b32.xlu0 %v9078, 90
      %v9131 = vpop.permute.xlu0 %9130
      %9132 = vrot.lane.b32.xlu0 %v9079, 90
      %v9133 = vpop.permute.xlu0 %9132
      %9134 = vrot.lane.b32.xlu0 %v9080, 90
      %v9135 = vpop.permute.xlu0 %9134
      %9136 = vrot.lane.b32.xlu0 %v9081, 90
      %v9137 = vpop.permute.xlu0 %9136
      %9138 = vrot.lane.b32.xlu0 %v9082, 90
      %v9139 = vpop.permute.xlu0 %9138
      %9140 = vrot.lane.b32.xlu0 %v9083, 90
      %v9141 = vpop.permute.xlu0 %9140
      %9142 = vrot.lane.b32.xlu0 %v9084, 90
      %v9143 = vpop.permute.xlu0 %9142
      %9144 = vrot.lane.b32.xlu0 %v9085, 90
      %v9145 = vpop.permute.xlu0 %9144
      %9146 = vrot.lane.b32.xlu0 %v9086, 90
      %v9147 = vpop.permute.xlu0 %9146
      %9148 = vrot.lane.b32.xlu0 %v9087, 90
      %v9149 = vpop.permute.xlu0 %9148
      %9150 = vrot.lane.b32.xlu0 %v9088, 90
      %v9151 = vpop.permute.xlu0 %9150
      %9152 = vrot.lane.b32.xlu0 %v9089, 90
      %v9153 = vpop.permute.xlu0 %9152
      %9154 = vrot.lane.b32.xlu0 %v9090, 90
      %v9155 = vpop.permute.xlu0 %9154
      %9156 = vrot.lane.b32.xlu0 %v9091, 90
      %v9157 = vpop.permute.xlu0 %9156
      %9158 = vrot.lane.b32.xlu0 %v9092, 90
      %v9159 = vpop.permute.xlu0 %9158
      %9160 = vrot.lane.b32.xlu0 %v9093, 90
      %v9161 = vpop.permute.xlu0 %9160
      %9162 = vrot.lane.b32.xlu0 %v9094, 90
      %v9163 = vpop.permute.xlu0 %9162
      %9164 = vrot.lane.b32.xlu0 %v9095, 90
      %v9165 = vpop.permute.xlu0 %9164
      %9166 = vrot.lane.b32.xlu0 %v9096, 90
      %v9167 = vpop.permute.xlu0 %9166
      %9168 = vrot.lane.b32.xlu0 %v9097, 90
      %v9169 = vpop.permute.xlu0 %9168
      %v9170 = vsel %vm1547, %v9123, %v9125
      %v9171 = vsel %vm1547, %v9125, %v9127
      %v9172 = vsel %vm1547, %v9127, %v9129
      %v9173 = vsel %vm1547, %v9129, %v9131
      %v9174 = vsel %vm1547, %v9131, %v9133
      %v9175 = vsel %vm1547, %v9135, %v9137
      %v9176 = vsel %vm1547, %v9137, %v9139
      %v9177 = vsel %vm1547, %v9139, %v9141
      %v9178 = vsel %vm1547, %v9141, %v9143
      %v9179 = vsel %vm1547, %v9143, %v9145
      %v9180 = vsel %vm1547, %v9147, %v9149
      %v9181 = vsel %vm1547, %v9149, %v9151
      %v9182 = vsel %vm1547, %v9151, %v9153
      %v9183 = vsel %vm1547, %v9153, %v9155
      %v9184 = vsel %vm1547, %v9155, %v9157
      %v9185 = vsel %vm1547, %v9159, %v9161
      %v9186 = vsel %vm1547, %v9161, %v9163
      %v9187 = vsel %vm1547, %v9163, %v9165
      %v9188 = vsel %vm1547, %v9165, %v9167
      %v9189 = vsel %vm1547, %v9167, %v9169
      %9214 = vst [vmem:[#allocation3 + $0x600] sm:$0xff] %v9170
      %9215 = vst [vmem:[#allocation3 + $0x608] sm:$0xff] %v9171
      %9216 = vst [vmem:[#allocation3 + $0x610] sm:$0xff] %v9172
      %9217 = vst [vmem:[#allocation3 + $0x618] sm:$0xff] %v9173
      %9218 = vst [vmem:[#allocation3 + $0x620] sm:$0xff] %v9174
      %9219 = vst.msk [vmem:[#allocation3 + $0x628] sm:$0xff] %vm276, %v9133
      %9220 = vst [vmem:[#allocation3 + $0x630] sm:$0xff] %v9175
      %9221 = vst [vmem:[#allocation3 + $0x638] sm:$0xff] %v9176
      %9222 = vst [vmem:[#allocation3 + $0x640] sm:$0xff] %v9177
      %9223 = vst [vmem:[#allocation3 + $0x648] sm:$0xff] %v9178
      %9224 = vst [vmem:[#allocation3 + $0x650] sm:$0xff] %v9179
      %9225 = vst.msk [vmem:[#allocation3 + $0x658] sm:$0xff] %vm276, %v9145
      %9226 = vst [vmem:[#allocation3 + $0x660] sm:$0xff] %v9180
      %9227 = vst [vmem:[#allocation3 + $0x668] sm:$0xff] %v9181
      %9228 = vst [vmem:[#allocation3 + $0x670] sm:$0xff] %v9182
      %9229 = vst [vmem:[#allocation3 + $0x678] sm:$0xff] %v9183
      %9230 = vst [vmem:[#allocation3 + $0x680] sm:$0xff] %v9184
      %9231 = vst.msk [vmem:[#allocation3 + $0x688] sm:$0xff] %vm276, %v9157
      %9232 = vst [vmem:[#allocation3 + $0x690] sm:$0xff] %v9185
      %9233 = vst [vmem:[#allocation3 + $0x698] sm:$0xff] %v9186
      %9234 = vst [vmem:[#allocation3 + $0x6a0] sm:$0xff] %v9187
      %9235 = vst [vmem:[#allocation3 + $0x6a8] sm:$0xff] %v9188
      %9236 = vst [vmem:[#allocation3 + $0x6b0] sm:$0xff] %v9189
      %9237 = vst.msk [vmem:[#allocation3 + $0x6b8] sm:$0xff] %vm276, %v9169
      %s9238 = smul.u32 %s7737, 12
      %s9239 = smul.addr %s9238, 8
      %s9240 = scalar_lea.vmem [#allocation4], %s9239
      %v9241 = vld [vmem:[%s9240] sm:$0xff]
      %v9242 = vld [vmem:[%s9240 + $0x8] sm:$0xff]
      %v9243 = vld [vmem:[%s9240 + $0x10] sm:$0xff]
      %v9244 = vld [vmem:[%s9240 + $0x18] sm:$0xff]
      %v9245 = vld [vmem:[%s9240 + $0x20] sm:$0xff]
      %v9246 = vld [vmem:[%s9240 + $0x28] sm:$0xff]
      %v9247 = vld [vmem:[%s9240 + $0x30] sm:$0xff]
      %v9248 = vld [vmem:[%s9240 + $0x38] sm:$0xff]
      %v9249 = vld [vmem:[%s9240 + $0x40] sm:$0xff]
      %v9250 = vld [vmem:[%s9240 + $0x48] sm:$0xff]
      %v9251 = vld [vmem:[%s9240 + $0x50] sm:$0xff]
      %v9252 = vld [vmem:[%s9240 + $0x58] sm:$0xff]
      %v9253 = vld [vmem:[#allocation3] sm:$0xff]
      %v9254 = vld [vmem:[#allocation3 + $0x8] sm:$0xff]
      %v9255 = vld [vmem:[#allocation3 + $0x10] sm:$0xff]
      %v9256 = vld [vmem:[#allocation3 + $0x18] sm:$0xff]
      %v9257 = vld [vmem:[#allocation3 + $0x20] sm:$0xff]
      %v9258 = vld [vmem:[#allocation3 + $0x28] sm:$0xff]
      %v9259 = vld [vmem:[#allocation3 + $0x30] sm:$0xff]
      %v9260 = vld [vmem:[#allocation3 + $0x38] sm:$0xff]
      %v9261 = vld [vmem:[#allocation3 + $0x40] sm:$0xff]
      %v9262 = vld [vmem:[#allocation3 + $0x48] sm:$0xff]
      %v9263 = vld [vmem:[#allocation3 + $0x50] sm:$0xff]
      %v9264 = vld [vmem:[#allocation3 + $0x58] sm:$0xff]
      %v9265 = vld [vmem:[#allocation3 + $0x60] sm:$0xff]
      %v9266 = vld [vmem:[#allocation3 + $0x68] sm:$0xff]
      %v9267 = vld [vmem:[#allocation3 + $0x70] sm:$0xff]
      %v9268 = vld [vmem:[#allocation3 + $0x78] sm:$0xff]
      %v9269 = vld [vmem:[#allocation3 + $0x80] sm:$0xff]
      %v9270 = vld [vmem:[#allocation3 + $0x88] sm:$0xff]
      %v9271 = vld [vmem:[#allocation3 + $0x90] sm:$0xff]
      %v9272 = vld [vmem:[#allocation3 + $0x98] sm:$0xff]
      %v9273 = vld [vmem:[#allocation3 + $0xa0] sm:$0xff]
      %v9274 = vld [vmem:[#allocation3 + $0xa8] sm:$0xff]
      %v9275 = vld [vmem:[#allocation3 + $0xb0] sm:$0xff]
      %v9276 = vld [vmem:[#allocation3 + $0xb8] sm:$0xff]
      %v9277 = vld [vmem:[#allocation3 + $0xc0] sm:$0xff]
      %v9278 = vld [vmem:[#allocation3 + $0xc8] sm:$0xff]
      %v9279 = vld [vmem:[#allocation3 + $0xd0] sm:$0xff]
      %v9280 = vld [vmem:[#allocation3 + $0xd8] sm:$0xff]
      %v9281 = vld [vmem:[#allocation3 + $0xe0] sm:$0xff]
      %v9282 = vld [vmem:[#allocation3 + $0xe8] sm:$0xff]
      %v9283 = vld [vmem:[#allocation3 + $0xf0] sm:$0xff]
      %v9284 = vld [vmem:[#allocation3 + $0xf8] sm:$0xff]
      %v9285 = vld [vmem:[#allocation3 + $0x100] sm:$0xff]
      %v9286 = vld [vmem:[#allocation3 + $0x108] sm:$0xff]
      %v9287 = vld [vmem:[#allocation3 + $0x110] sm:$0xff]
      %v9288 = vld [vmem:[#allocation3 + $0x118] sm:$0xff]
      %v9289 = vld [vmem:[#allocation3 + $0x120] sm:$0xff]
      %v9290 = vld [vmem:[#allocation3 + $0x128] sm:$0xff]
      %v9291 = vld [vmem:[#allocation3 + $0x130] sm:$0xff]
      %v9292 = vld [vmem:[#allocation3 + $0x138] sm:$0xff]
      %v9293 = vld [vmem:[#allocation3 + $0x140] sm:$0xff]
      %v9294 = vld [vmem:[#allocation3 + $0x148] sm:$0xff]
      %v9295 = vld [vmem:[#allocation3 + $0x150] sm:$0xff]
      %v9296 = vld [vmem:[#allocation3 + $0x158] sm:$0xff]
      %v9297 = vld [vmem:[#allocation3 + $0x160] sm:$0xff]
      %v9298 = vld [vmem:[#allocation3 + $0x168] sm:$0xff]
      %v9299 = vld [vmem:[#allocation3 + $0x170] sm:$0xff]
      %v9300 = vld [vmem:[#allocation3 + $0x178] sm:$0xff]
      %v9301 = vld [vmem:[#allocation3 + $0x180] sm:$0xff]
      %v9302 = vld [vmem:[#allocation3 + $0x188] sm:$0xff]
      %v9303 = vld [vmem:[#allocation3 + $0x190] sm:$0xff]
      %v9304 = vld [vmem:[#allocation3 + $0x198] sm:$0xff]
      %v9305 = vld [vmem:[#allocation3 + $0x1a0] sm:$0xff]
      %v9306 = vld [vmem:[#allocation3 + $0x1a8] sm:$0xff]
      %v9307 = vld [vmem:[#allocation3 + $0x1b0] sm:$0xff]
      %v9308 = vld [vmem:[#allocation3 + $0x1b8] sm:$0xff]
      %v9309 = vld [vmem:[#allocation3 + $0x1c0] sm:$0xff]
      %v9310 = vld [vmem:[#allocation3 + $0x1c8] sm:$0xff]
      %v9311 = vld [vmem:[#allocation3 + $0x1d0] sm:$0xff]
      %v9312 = vld [vmem:[#allocation3 + $0x1d8] sm:$0xff]
      %v9313 = vld [vmem:[#allocation3 + $0x1e0] sm:$0xff]
      %v9314 = vld [vmem:[#allocation3 + $0x1e8] sm:$0xff]
      %v9315 = vld [vmem:[#allocation3 + $0x1f0] sm:$0xff]
      %v9316 = vld [vmem:[#allocation3 + $0x1f8] sm:$0xff]
      %v9317 = vld [vmem:[#allocation3 + $0x200] sm:$0xff]
      %v9318 = vld [vmem:[#allocation3 + $0x208] sm:$0xff]
      %v9319 = vld [vmem:[#allocation3 + $0x210] sm:$0xff]
      %v9320 = vld [vmem:[#allocation3 + $0x218] sm:$0xff]
      %v9321 = vld [vmem:[#allocation3 + $0x220] sm:$0xff]
      %v9322 = vld [vmem:[#allocation3 + $0x228] sm:$0xff]
      %v9323 = vld [vmem:[#allocation3 + $0x230] sm:$0xff]
      %v9324 = vld [vmem:[#allocation3 + $0x238] sm:$0xff]
      %v9325 = vld [vmem:[#allocation3 + $0x240] sm:$0xff]
      %v9326 = vld [vmem:[#allocation3 + $0x248] sm:$0xff]
      %v9327 = vld [vmem:[#allocation3 + $0x250] sm:$0xff]
      %v9328 = vld [vmem:[#allocation3 + $0x258] sm:$0xff]
      %v9329 = vld [vmem:[#allocation3 + $0x260] sm:$0xff]
      %v9330 = vld [vmem:[#allocation3 + $0x268] sm:$0xff]
      %v9331 = vld [vmem:[#allocation3 + $0x270] sm:$0xff]
      %v9332 = vld [vmem:[#allocation3 + $0x278] sm:$0xff]
      %v9333 = vld [vmem:[#allocation3 + $0x280] sm:$0xff]
      %v9334 = vld [vmem:[#allocation3 + $0x288] sm:$0xff]
      %v9335 = vld [vmem:[#allocation3 + $0x290] sm:$0xff]
      %v9336 = vld [vmem:[#allocation3 + $0x298] sm:$0xff]
      %v9337 = vld [vmem:[#allocation3 + $0x2a0] sm:$0xff]
      %v9338 = vld [vmem:[#allocation3 + $0x2a8] sm:$0xff]
      %v9339 = vld [vmem:[#allocation3 + $0x2b0] sm:$0xff]
      %v9340 = vld [vmem:[#allocation3 + $0x2b8] sm:$0xff]
      %v9341 = vld [vmem:[#allocation3 + $0x2c0] sm:$0xff]
      %v9342 = vld [vmem:[#allocation3 + $0x2c8] sm:$0xff]
      %v9343 = vld [vmem:[#allocation3 + $0x2d0] sm:$0xff]
      %v9344 = vld [vmem:[#allocation3 + $0x2d8] sm:$0xff]
      %v9345 = vld [vmem:[#allocation3 + $0x2e0] sm:$0xff]
      %v9346 = vld [vmem:[#allocation3 + $0x2e8] sm:$0xff]
      %v9347 = vld [vmem:[#allocation3 + $0x2f0] sm:$0xff]
      %v9348 = vld [vmem:[#allocation3 + $0x2f8] sm:$0xff]
      %v9349 = vld [vmem:[#allocation3 + $0x300] sm:$0xff]
      %v9350 = vld [vmem:[#allocation3 + $0x308] sm:$0xff]
      %v9351 = vld [vmem:[#allocation3 + $0x310] sm:$0xff]
      %v9352 = vld [vmem:[#allocation3 + $0x318] sm:$0xff]
      %v9353 = vld [vmem:[#allocation3 + $0x320] sm:$0xff]
      %v9354 = vld [vmem:[#allocation3 + $0x328] sm:$0xff]
      %v9355 = vld [vmem:[#allocation3 + $0x330] sm:$0xff]
      %v9356 = vld [vmem:[#allocation3 + $0x338] sm:$0xff]
      %v9357 = vld [vmem:[#allocation3 + $0x340] sm:$0xff]
      %v9358 = vld [vmem:[#allocation3 + $0x348] sm:$0xff]
      %v9359 = vld [vmem:[#allocation3 + $0x350] sm:$0xff]
      %v9360 = vld [vmem:[#allocation3 + $0x358] sm:$0xff]
      %v9361 = vld [vmem:[#allocation3 + $0x360] sm:$0xff]
      %v9362 = vld [vmem:[#allocation3 + $0x368] sm:$0xff]
      %v9363 = vld [vmem:[#allocation3 + $0x370] sm:$0xff]
      %v9364 = vld [vmem:[#allocation3 + $0x378] sm:$0xff]
      %v9365 = vld [vmem:[#allocation3 + $0x380] sm:$0xff]
      %v9366 = vld [vmem:[#allocation3 + $0x388] sm:$0xff]
      %v9367 = vld [vmem:[#allocation3 + $0x390] sm:$0xff]
      %v9368 = vld [vmem:[#allocation3 + $0x398] sm:$0xff]
      %v9369 = vld [vmem:[#allocation3 + $0x3a0] sm:$0xff]
      %v9370 = vld [vmem:[#allocation3 + $0x3a8] sm:$0xff]
      %v9371 = vld [vmem:[#allocation3 + $0x3b0] sm:$0xff]
      %v9372 = vld [vmem:[#allocation3 + $0x3b8] sm:$0xff]
      %v9373 = vld [vmem:[#allocation3 + $0x3c0] sm:$0xff]
      %v9374 = vld [vmem:[#allocation3 + $0x3c8] sm:$0xff]
      %v9375 = vld [vmem:[#allocation3 + $0x3d0] sm:$0xff]
      %v9376 = vld [vmem:[#allocation3 + $0x3d8] sm:$0xff]
      %v9377 = vld [vmem:[#allocation3 + $0x3e0] sm:$0xff]
      %v9378 = vld [vmem:[#allocation3 + $0x3e8] sm:$0xff]
      %v9379 = vld [vmem:[#allocation3 + $0x3f0] sm:$0xff]
      %v9380 = vld [vmem:[#allocation3 + $0x3f8] sm:$0xff]
      %v9381 = vld [vmem:[#allocation3 + $0x400] sm:$0xff]
      %v9382 = vld [vmem:[#allocation3 + $0x408] sm:$0xff]
      %v9383 = vld [vmem:[#allocation3 + $0x410] sm:$0xff]
      %v9384 = vld [vmem:[#allocation3 + $0x418] sm:$0xff]
      %v9385 = vld [vmem:[#allocation3 + $0x420] sm:$0xff]
      %v9386 = vld [vmem:[#allocation3 + $0x428] sm:$0xff]
      %v9387 = vld [vmem:[#allocation3 + $0x430] sm:$0xff]
      %v9388 = vld [vmem:[#allocation3 + $0x438] sm:$0xff]
      %v9389 = vld [vmem:[#allocation3 + $0x440] sm:$0xff]
      %v9390 = vld [vmem:[#allocation3 + $0x448] sm:$0xff]
      %v9391 = vld [vmem:[#allocation3 + $0x450] sm:$0xff]
      %v9392 = vld [vmem:[#allocation3 + $0x458] sm:$0xff]
      %v9393 = vld [vmem:[#allocation3 + $0x460] sm:$0xff]
      %v9394 = vld [vmem:[#allocation3 + $0x468] sm:$0xff]
      %v9395 = vld [vmem:[#allocation3 + $0x470] sm:$0xff]
      %v9396 = vld [vmem:[#allocation3 + $0x478] sm:$0xff]
      %v9397 = vld [vmem:[#allocation3 + $0x480] sm:$0xff]
      %v9398 = vld [vmem:[#allocation3 + $0x488] sm:$0xff]
      %v9399 = vld [vmem:[#allocation3 + $0x490] sm:$0xff]
      %v9400 = vld [vmem:[#allocation3 + $0x498] sm:$0xff]
      %v9401 = vld [vmem:[#allocation3 + $0x4a0] sm:$0xff]
      %v9402 = vld [vmem:[#allocation3 + $0x4a8] sm:$0xff]
      %v9403 = vld [vmem:[#allocation3 + $0x4b0] sm:$0xff]
      %v9404 = vld [vmem:[#allocation3 + $0x4b8] sm:$0xff]
      %v9405 = vld [vmem:[#allocation3 + $0x4c0] sm:$0xff]
      %v9406 = vld [vmem:[#allocation3 + $0x4c8] sm:$0xff]
      %v9407 = vld [vmem:[#allocation3 + $0x4d0] sm:$0xff]
      %v9408 = vld [vmem:[#allocation3 + $0x4d8] sm:$0xff]
      %v9409 = vld [vmem:[#allocation3 + $0x4e0] sm:$0xff]
      %v9410 = vld [vmem:[#allocation3 + $0x4e8] sm:$0xff]
      %v9411 = vld [vmem:[#allocation3 + $0x4f0] sm:$0xff]
      %v9412 = vld [vmem:[#allocation3 + $0x4f8] sm:$0xff]
      %v9413 = vld [vmem:[#allocation3 + $0x500] sm:$0xff]
      %v9414 = vld [vmem:[#allocation3 + $0x508] sm:$0xff]
      %v9415 = vld [vmem:[#allocation3 + $0x510] sm:$0xff]
      %v9416 = vld [vmem:[#allocation3 + $0x518] sm:$0xff]
      %v9417 = vld [vmem:[#allocation3 + $0x520] sm:$0xff]
      %v9418 = vld [vmem:[#allocation3 + $0x528] sm:$0xff]
      %v9419 = vld [vmem:[#allocation3 + $0x530] sm:$0xff]
      %v9420 = vld [vmem:[#allocation3 + $0x538] sm:$0xff]
      %v9421 = vld [vmem:[#allocation3 + $0x540] sm:$0xff]
      %v9422 = vld [vmem:[#allocation3 + $0x548] sm:$0xff]
      %v9423 = vld [vmem:[#allocation3 + $0x550] sm:$0xff]
      %v9424 = vld [vmem:[#allocation3 + $0x558] sm:$0xff]
      %v9425 = vld [vmem:[#allocation3 + $0x560] sm:$0xff]
      %v9426 = vld [vmem:[#allocation3 + $0x568] sm:$0xff]
      %v9427 = vld [vmem:[#allocation3 + $0x570] sm:$0xff]
      %v9428 = vld [vmem:[#allocation3 + $0x578] sm:$0xff]
      %v9429 = vld [vmem:[#allocation3 + $0x580] sm:$0xff]
      %v9430 = vld [vmem:[#allocation3 + $0x588] sm:$0xff]
      %v9431 = vld [vmem:[#allocation3 + $0x590] sm:$0xff]
      %v9432 = vld [vmem:[#allocation3 + $0x598] sm:$0xff]
      %v9433 = vld [vmem:[#allocation3 + $0x5a0] sm:$0xff]
      %v9434 = vld [vmem:[#allocation3 + $0x5a8] sm:$0xff]
      %v9435 = vld [vmem:[#allocation3 + $0x5b0] sm:$0xff]
      %v9436 = vld [vmem:[#allocation3 + $0x5b8] sm:$0xff]
      %v9437 = vld [vmem:[#allocation3 + $0x5c0] sm:$0xff]
      %v9438 = vld [vmem:[#allocation3 + $0x5c8] sm:$0xff]
      %v9439 = vld [vmem:[#allocation3 + $0x5d0] sm:$0xff]
      %v9440 = vld [vmem:[#allocation3 + $0x5d8] sm:$0xff]
      %v9441 = vld [vmem:[#allocation3 + $0x5e0] sm:$0xff]
      %v9442 = vld [vmem:[#allocation3 + $0x5e8] sm:$0xff]
      %v9443 = vld [vmem:[#allocation3 + $0x5f0] sm:$0xff]
      %v9444 = vld [vmem:[#allocation3 + $0x5f8] sm:$0xff]
      %v9445 = vld [vmem:[#allocation3 + $0x600] sm:$0xff]
      %v9446 = vld [vmem:[#allocation3 + $0x608] sm:$0xff]
      %v9447 = vld [vmem:[#allocation3 + $0x610] sm:$0xff]
      %v9448 = vld [vmem:[#allocation3 + $0x618] sm:$0xff]
      %v9449 = vld [vmem:[#allocation3 + $0x620] sm:$0xff]
      %v9450 = vld [vmem:[#allocation3 + $0x628] sm:$0xff]
      %v9451 = vld [vmem:[#allocation3 + $0x630] sm:$0xff]
      %v9452 = vld [vmem:[#allocation3 + $0x638] sm:$0xff]
      %v9453 = vld [vmem:[#allocation3 + $0x640] sm:$0xff]
      %v9454 = vld [vmem:[#allocation3 + $0x648] sm:$0xff]
      %v9455 = vld [vmem:[#allocation3 + $0x650] sm:$0xff]
      %v9456 = vld [vmem:[#allocation3 + $0x658] sm:$0xff]
      %v9457 = vld [vmem:[#allocation3 + $0x660] sm:$0xff]
      %v9458 = vld [vmem:[#allocation3 + $0x668] sm:$0xff]
      %v9459 = vld [vmem:[#allocation3 + $0x670] sm:$0xff]
      %v9460 = vld [vmem:[#allocation3 + $0x678] sm:$0xff]
      %v9461 = vld [vmem:[#allocation3 + $0x680] sm:$0xff]
      %v9462 = vld [vmem:[#allocation3 + $0x688] sm:$0xff]
      %v9463 = vld [vmem:[#allocation3 + $0x690] sm:$0xff]
      %v9464 = vld [vmem:[#allocation3 + $0x698] sm:$0xff]
      %v9465 = vld [vmem:[#allocation3 + $0x6a0] sm:$0xff]
      %v9466 = vld [vmem:[#allocation3 + $0x6a8] sm:$0xff]
      %v9467 = vld [vmem:[#allocation3 + $0x6b0] sm:$0xff]
      %v9468 = vld [vmem:[#allocation3 + $0x6b8] sm:$0xff]
      %v9470 = vsel %vm1847, %v9243, 0
      %v9473 = vsel %vm1847, %v9246, 0
      %v9476 = vsel %vm1847, %v9249, 0
      %v9479 = vsel %vm1847, %v9252, 0
      %9481 = vmatprep.subr.mxu0 %v9254
      %9482 = vmatpush1.msra.mxu0 %v9253
      %9483 = vmatprep.subr.mxu0 %v9260
      %9484 = vmatpush1.msra.mxu0 %v9259
      %9485 = vmatprep.subr.mxu0 %v9266
      %9486 = vmatpush1.msra.mxu0 %v9265
      %9487 = vmatprep.subr.mxu0 %v9272
      %9488 = vmatpush1.msra.mxu0 %v9271
      %9489 = vmatprep.subr.mxu0 %v9278
      %9490 = vmatpush1.msra.mxu0 %v9277
      %9491 = vmatprep.subr.mxu0 %v9284
      %9492 = vmatpush1.msra.mxu0 %v9283
      %9493 = vmatprep.subr.mxu0 %v9290
      %9494 = vmatpush1.msra.mxu0 %v9289
      %9495 = vmatprep.subr.mxu0 %v9296
      %9496 = vmatpush1.msra.mxu0 %v9295
      %9497 = vmatprep.subr.mxu0 %v9302
      %9498 = vmatpush1.msra.mxu0 %v9301
      %9499 = vmatprep.subr.mxu0 %v9308
      %9500 = vmatpush1.msra.mxu0 %v9307
      %9501 = vmatprep.subr.mxu0 %v9314
      %9502 = vmatpush1.msra.mxu0 %v9313
      %9503 = vmatprep.subr.mxu0 %v9320
      %9504 = vmatpush1.msra.mxu0 %v9319
      %9505 = vmatprep.subr.mxu0 %v9326
      %9506 = vmatpush1.msra.mxu0 %v9325
      %9507 = vmatprep.subr.mxu0 %v9332
      %9508 = vmatpush1.msra.mxu0 %v9331
      %9509 = vmatprep.subr.mxu0 %v9338
      %9510 = vmatpush1.msra.mxu0 %v9337
      %9511 = vmatprep.subr.mxu0 %v9344
      %9512 = vmatpush1.msra.mxu0 %v9343
      %9513 = vmatprep.subr.mxu0 %v9350
      %9514 = vmatpush1.msra.mxu0 %v9349
      %9515 = vmatprep.subr.mxu0 %v9356
      %9516 = vmatpush1.msra.mxu0 %v9355
      %9517 = vmatprep.subr.mxu0 %v9362
      %9518 = vmatpush1.msra.mxu0 %v9361
      %9519 = vmatprep.subr.mxu0 %v9368
      %9520 = vmatpush1.msra.mxu0 %v9367
      %9521 = vmatprep.subr.mxu0 %v9374
      %9522 = vmatpush1.msra.mxu0 %v9373
      %9523 = vmatprep.subr.mxu0 %v9380
      %9524 = vmatpush1.msra.mxu0 %v9379
      %9525 = vmatprep.subr.mxu0 %v9386
      %9526 = vmatpush1.msra.mxu0 %v9385
      %9527 = vmatprep.subr.mxu0 %v9392
      %9528 = vmatpush1.msra.mxu0 %v9391
      %9529 = vmatprep.subr.mxu0 %v9398
      %9530 = vmatpush1.msra.mxu0 %v9397
      %9531 = vmatprep.subr.mxu0 %v9404
      %9532 = vmatpush1.msra.mxu0 %v9403
      %9533 = vmatprep.subr.mxu0 %v9410
      %9534 = vmatpush1.msra.mxu0 %v9409
      %9535 = vmatprep.subr.mxu0 %v9416
      %9536 = vmatpush1.msra.mxu0 %v9415
      %9537 = vmatprep.subr.mxu0 %v9422
      %9538 = vmatpush1.msra.mxu0 %v9421
      %9539 = vmatprep.subr.mxu0 %v9428
      %9540 = vmatpush1.msra.mxu0 %v9427
      %9541 = vmatprep.subr.mxu0 %v9434
      %9542 = vmatpush1.msra.mxu0 %v9433
      %9543 = vmatprep.subr.mxu0 %v9440
      %9544 = vmatpush1.msra.mxu0 %v9439
      %9545 = vmatprep.mubr.f32.mxu0 %v9242
      %9546 = vmatmul.mubr.f32.gmra.mrb[0].mxu0 %v9241
      %v9547 = vpop.f32.mrb[0].mxu0
      %v9548 = vadd.f32 0.0, %v9547
      %v9549 = vpop.f32.mrb[0].mxu0
      %v9550 = vadd.f32 0.0, %v9549
      %9551 = vmatprep.mubr.f32.mxu0 %v9245
      %9552 = vmatmul.mubr.f32.gmra.mrb[0].mxu0 %v9244
      %v9553 = vpop.f32.mrb[0].mxu0
      %v9554 = vadd.f32 0.0, %v9553
      %v9555 = vpop.f32.mrb[0].mxu0
      %v9556 = vadd.f32 0.0, %v9555
      %9557 = vmatprep.mubr.f32.mxu0 %v9248
      %9558 = vmatmul.mubr.f32.gmra.mrb[0].mxu0 %v9247
      %v9559 = vpop.f32.mrb[0].mxu0
      %v9560 = vadd.f32 0.0, %v9559
      %v9561 = vpop.f32.mrb[0].mxu0
      %v9562 = vadd.f32 0.0, %v9561
      %9563 = vmatprep.mubr.f32.mxu0 %v9251
      %9564 = vmatmul.mubr.f32.gmra.mrb[0].mxu0 %v9250
      %v9565 = vpop.f32.mrb[0].mxu0
      %v9566 = vadd.f32 0.0, %v9565
      %v9567 = vpop.f32.mrb[0].mxu0
      %v9568 = vadd.f32 0.0, %v9567
      %9569 = vdwg.mxu0
      %9570 = vmatprep.subr.mxu0 %v9446
      %9571 = vmatpush1.msra.mxu0 %v9445
      %9572 = vmatprep.subr.mxu0 %v9452
      %9573 = vmatpush1.msra.mxu0 %v9451
      %9574 = vmatprep.subr.mxu0 %v9458
      %9575 = vmatpush1.msra.mxu0 %v9457
      %9576 = vmatprep.subr.mxu0 %v9464
      %9577 = vmatpush1.msra.mxu0 %v9463
      %9578 = vmatprep.subr.mxu0 0.0
      %9579 = vmatpush1.msra.mxu0 0.0
      %9580 = vmatprep.subr.mxu0 0.0
      %9581 = vmatpush1.msra.mxu0 0.0
      %9582 = vmatprep.subr.mxu0 0.0
      %9583 = vmatpush1.msra.mxu0 0.0
      %9584 = vmatprep.subr.mxu0 0.0
      %9585 = vmatpush1.msra.mxu0 0.0
      %9586 = vmatprep.subr.mxu0 0.0
      %9587 = vmatpush1.msra.mxu0 0.0
      %9588 = vmatprep.subr.mxu0 0.0
      %9589 = vmatpush1.msra.mxu0 0.0
      %9590 = vmatprep.subr.mxu0 0.0
      %9591 = vmatpush1.msra.mxu0 0.0
      %9592 = vmatprep.subr.mxu0 0.0
      %9593 = vmatpush1.msra.mxu0 0.0
      %9594 = vmatprep.subr.mxu0 0.0
      %9595 = vmatpush1.msra.mxu0 0.0
      %9596 = vmatprep.subr.mxu0 0.0
      %9597 = vmatpush1.msra.mxu0 0.0
      %9598 = vmatprep.subr.mxu0 0.0
      %9599 = vmatpush1.msra.mxu0 0.0
      %9600 = vmatprep.subr.mxu0 0.0
      %9601 = vmatpush1.msra.mxu0 0.0
      %9602 = vmatprep.subr.mxu0 0.0
      %9603 = vmatpush1.msra.mxu0 0.0
      %9604 = vmatprep.subr.mxu0 0.0
      %9605 = vmatpush1.msra.mxu0 0.0
      %9606 = vmatprep.subr.mxu0 0.0
      %9607 = vmatpush1.msra.mxu0 0.0
      %9608 = vmatprep.subr.mxu0 0.0
      %9609 = vmatpush1.msra.mxu0 0.0
      %9610 = vmatprep.subr.mxu0 0.0
      %9611 = vmatpush1.msra.mxu0 0.0
      %9612 = vmatprep.subr.mxu0 0.0
      %9613 = vmatpush1.msra.mxu0 0.0
      %9614 = vmatprep.subr.mxu0 0.0
      %9615 = vmatpush1.msra.mxu0 0.0
      %9616 = vmatprep.subr.mxu0 0.0
      %9617 = vmatpush1.msra.mxu0 0.0
      %9618 = vmatprep.subr.mxu0 0.0
      %9619 = vmatpush1.msra.mxu0 0.0
      %9620 = vmatprep.subr.mxu0 0.0
      %9621 = vmatpush1.msra.mxu0 0.0
      %9622 = vmatprep.subr.mxu0 0.0
      %9623 = vmatpush1.msra.mxu0 0.0
      %9624 = vmatprep.subr.mxu0 0.0
      %9625 = vmatpush1.msra.mxu0 0.0
      %9626 = vmatprep.subr.mxu0 0.0
      %9627 = vmatpush1.msra.mxu0 0.0
      %9628 = vmatprep.subr.mxu0 0.0
      %9629 = vmatpush1.msra.mxu0 0.0
      %9630 = vmatprep.subr.mxu0 0.0
      %9631 = vmatpush1.msra.mxu0 0.0
      %9632 = vmatprep.subr.mxu0 0.0
      %9633 = vmatpush1.msra.mxu0 0.0
      %9634 = vmatprep.mubr.f32.mxu0 0.0
      %9635 = vmatmul.mubr.f32.gmra.mrb[0].mxu0 %v9470
      %v9636 = vpop.f32.mrb[0].mxu0
      %v9637 = vadd.f32 %v9548, %v9636
      %v9638 = vpop.f32.mrb[0].mxu0
      %v9639 = vadd.f32 %v9550, %v9638
      %9640 = vmatprep.mubr.f32.mxu0 0.0
      %9641 = vmatmul.mubr.f32.gmra.mrb[0].mxu0 %v9473
      %v9642 = vpop.f32.mrb[0].mxu0
      %v9643 = vadd.f32 %v9554, %v9642
      %v9644 = vpop.f32.mrb[0].mxu0
      %v9645 = vadd.f32 %v9556, %v9644
      %9646 = vmatprep.mubr.f32.mxu0 0.0
      %9647 = vmatmul.mubr.f32.gmra.mrb[0].mxu0 %v9476
      %v9648 = vpop.f32.mrb[0].mxu0
      %v9649 = vadd.f32 %v9560, %v9648
      %v9650 = vpop.f32.mrb[0].mxu0
      %v9651 = vadd.f32 %v9562, %v9650
      %9652 = vmatprep.mubr.f32.mxu0 0.0
      %9653 = vmatmul.mubr.f32.gmra.mrb[0].mxu0 %v9479
      %v9654 = vpop.f32.mrb[0].mxu0
      %v9655 = vadd.f32 %v9566, %v9654
      %v9656 = vpop.f32.mrb[0].mxu0
      %v9657 = vadd.f32 %v9568, %v9656
      %9658 = vdwg.mxu0
      %9659 = vmatprep.subr.mxu0 %v9256
      %9660 = vmatpush1.msra.mxu0 %v9255
      %9661 = vmatprep.subr.mxu0 %v9262
      %9662 = vmatpush1.msra.mxu0 %v9261
      %9663 = vmatprep.subr.mxu0 %v9268
      %9664 = vmatpush1.msra.mxu0 %v9267
      %9665 = vmatprep.subr.mxu0 %v9274
      %9666 = vmatpush1.msra.mxu0 %v9273
      %9667 = vmatprep.subr.mxu0 %v9280
      %9668 = vmatpush1.msra.mxu0 %v9279
      %9669 = vmatprep.subr.mxu0 %v9286
      %9670 = vmatpush1.msra.mxu0 %v9285
      %9671 = vmatprep.subr.mxu0 %v9292
      %9672 = vmatpush1.msra.mxu0 %v9291
      %9673 = vmatprep.subr.mxu0 %v9298
      %9674 = vmatpush1.msra.mxu0 %v9297
      %9675 = vmatprep.subr.mxu0 %v9304
      %9676 = vmatpush1.msra.mxu0 %v9303
      %9677 = vmatprep.subr.mxu0 %v9310
      %9678 = vmatpush1.msra.mxu0 %v9309
      %9679 = vmatprep.subr.mxu0 %v9316
      %9680 = vmatpush1.msra.mxu0 %v9315
      %9681 = vmatprep.subr.mxu0 %v9322
      %9682 = vmatpush1.msra.mxu0 %v9321
      %9683 = vmatprep.subr.mxu0 %v9328
      %9684 = vmatpush1.msra.mxu0 %v9327
      %9685 = vmatprep.subr.mxu0 %v9334
      %9686 = vmatpush1.msra.mxu0 %v9333
      %9687 = vmatprep.subr.mxu0 %v9340
      %9688 = vmatpush1.msra.mxu0 %v9339
      %9689 = vmatprep.subr.mxu0 %v9346
      %9690 = vmatpush1.msra.mxu0 %v9345
      %9691 = vmatprep.subr.mxu0 %v9352
      %9692 = vmatpush1.msra.mxu0 %v9351
      %9693 = vmatprep.subr.mxu0 %v9358
      %9694 = vmatpush1.msra.mxu0 %v9357
      %9695 = vmatprep.subr.mxu0 %v9364
      %9696 = vmatpush1.msra.mxu0 %v9363
      %9697 = vmatprep.subr.mxu0 %v9370
      %9698 = vmatpush1.msra.mxu0 %v9369
      %9699 = vmatprep.subr.mxu0 %v9376
      %9700 = vmatpush1.msra.mxu0 %v9375
      %9701 = vmatprep.subr.mxu0 %v9382
      %9702 = vmatpush1.msra.mxu0 %v9381
      %9703 = vmatprep.subr.mxu0 %v9388
      %9704 = vmatpush1.msra.mxu0 %v9387
      %9705 = vmatprep.subr.mxu0 %v9394
      %9706 = vmatpush1.msra.mxu0 %v9393
      %9707 = vmatprep.subr.mxu0 %v9400
      %9708 = vmatpush1.msra.mxu0 %v9399
      %9709 = vmatprep.subr.mxu0 %v9406
      %9710 = vmatpush1.msra.mxu0 %v9405
      %9711 = vmatprep.subr.mxu0 %v9412
      %9712 = vmatpush1.msra.mxu0 %v9411
      %9713 = vmatprep.subr.mxu0 %v9418
      %9714 = vmatpush1.msra.mxu0 %v9417
      %9715 = vmatprep.subr.mxu0 %v9424
      %9716 = vmatpush1.msra.mxu0 %v9423
      %9717 = vmatprep.subr.mxu0 %v9430
      %9718 = vmatpush1.msra.mxu0 %v9429
      %9719 = vmatprep.subr.mxu0 %v9436
      %9720 = vmatpush1.msra.mxu0 %v9435
      %9721 = vmatprep.subr.mxu0 %v9442
      %9722 = vmatpush1.msra.mxu0 %v9441
      %9723 = vmatprep.mubr.f32.mxu0 %v9242
      %9724 = vmatmul.mubr.f32.gmra.mrb[0].mxu0 %v9241
      %v9725 = vpop.f32.mrb[0].mxu0
      %v9726 = vadd.f32 0.0, %v9725
      %v9727 = vpop.f32.mrb[0].mxu0
      %v9728 = vadd.f32 0.0, %v9727
      %9729 = vmatprep.mubr.f32.mxu0 %v9245
      %9730 = vmatmul.mubr.f32.gmra.mrb[0].mxu0 %v9244
      %v9731 = vpop.f32.mrb[0].mxu0
      %v9732 = vadd.f32 0.0, %v9731
      %v9733 = vpop.f32.mrb[0].mxu0
      %v9734 = vadd.f32 0.0, %v9733
      %9735 = vmatprep.mubr.f32.mxu0 %v9248
      %9736 = vmatmul.mubr.f32.gmra.mrb[0].mxu0 %v9247
      %v9737 = vpop.f32.mrb[0].mxu0
      %v9738 = vadd.f32 0.0, %v9737
      %v9739 = vpop.f32.mrb[0].mxu0
      %v9740 = vadd.f32 0.0, %v9739
      %9741 = vmatprep.mubr.f32.mxu0 %v9251
      %9742 = vmatmul.mubr.f32.gmra.mrb[0].mxu0 %v9250
      %v9743 = vpop.f32.mrb[0].mxu0
      %v9744 = vadd.f32 0.0, %v9743
      %v9745 = vpop.f32.mrb[0].mxu0
      %v9746 = vadd.f32 0.0, %v9745
      %9747 = vdwg.mxu0
      %9748 = vmatprep.subr.mxu0 %v9448
      %9749 = vmatpush1.msra.mxu0 %v9447
      %9750 = vmatprep.subr.mxu0 %v9454
      %9751 = vmatpush1.msra.mxu0 %v9453
      %9752 = vmatprep.subr.mxu0 %v9460
      %9753 = vmatpush1.msra.mxu0 %v9459
      %9754 = vmatprep.subr.mxu0 %v9466
      %9755 = vmatpush1.msra.mxu0 %v9465
      %9756 = vmatprep.subr.mxu0 0.0
      %9757 = vmatpush1.msra.mxu0 0.0
      %9758 = vmatprep.subr.mxu0 0.0
      %9759 = vmatpush1.msra.mxu0 0.0
      %9760 = vmatprep.subr.mxu0 0.0
      %9761 = vmatpush1.msra.mxu0 0.0
      %9762 = vmatprep.subr.mxu0 0.0
      %9763 = vmatpush1.msra.mxu0 0.0
      %9764 = vmatprep.subr.mxu0 0.0
      %9765 = vmatpush1.msra.mxu0 0.0
      %9766 = vmatprep.subr.mxu0 0.0
      %9767 = vmatpush1.msra.mxu0 0.0
      %9768 = vmatprep.subr.mxu0 0.0
      %9769 = vmatpush1.msra.mxu0 0.0
      %9770 = vmatprep.subr.mxu0 0.0
      %9771 = vmatpush1.msra.mxu0 0.0
      %9772 = vmatprep.subr.mxu0 0.0
      %9773 = vmatpush1.msra.mxu0 0.0
      %9774 = vmatprep.subr.mxu0 0.0
      %9775 = vmatpush1.msra.mxu0 0.0
      %9776 = vmatprep.subr.mxu0 0.0
      %9777 = vmatpush1.msra.mxu0 0.0
      %9778 = vmatprep.subr.mxu0 0.0
      %9779 = vmatpush1.msra.mxu0 0.0
      %9780 = vmatprep.subr.mxu0 0.0
      %9781 = vmatpush1.msra.mxu0 0.0
      %9782 = vmatprep.subr.mxu0 0.0
      %9783 = vmatpush1.msra.mxu0 0.0
      %9784 = vmatprep.subr.mxu0 0.0
      %9785 = vmatpush1.msra.mxu0 0.0
      %9786 = vmatprep.subr.mxu0 0.0
      %9787 = vmatpush1.msra.mxu0 0.0
      %9788 = vmatprep.subr.mxu0 0.0
      %9789 = vmatpush1.msra.mxu0 0.0
      %9790 = vmatprep.subr.mxu0 0.0
      %9791 = vmatpush1.msra.mxu0 0.0
      %9792 = vmatprep.subr.mxu0 0.0
      %9793 = vmatpush1.msra.mxu0 0.0
      %9794 = vmatprep.subr.mxu0 0.0
      %9795 = vmatpush1.msra.mxu0 0.0
      %9796 = vmatprep.subr.mxu0 0.0
      %9797 = vmatpush1.msra.mxu0 0.0
      %9798 = vmatprep.subr.mxu0 0.0
      %9799 = vmatpush1.msra.mxu0 0.0
      %9800 = vmatprep.subr.mxu0 0.0
      %9801 = vmatpush1.msra.mxu0 0.0
      %9802 = vmatprep.subr.mxu0 0.0
      %9803 = vmatpush1.msra.mxu0 0.0
      %9804 = vmatprep.subr.mxu0 0.0
      %9805 = vmatpush1.msra.mxu0 0.0
      %9806 = vmatprep.subr.mxu0 0.0
      %9807 = vmatpush1.msra.mxu0 0.0
      %9808 = vmatprep.subr.mxu0 0.0
      %9809 = vmatpush1.msra.mxu0 0.0
      %9810 = vmatprep.subr.mxu0 0.0
      %9811 = vmatpush1.msra.mxu0 0.0
      %9812 = vmatprep.mubr.f32.mxu0 0.0
      %9813 = vmatmul.mubr.f32.gmra.mrb[0].mxu0 %v9470
      %v9814 = vpop.f32.mrb[0].mxu0
      %v9815 = vadd.f32 %v9726, %v9814
      %v9816 = vpop.f32.mrb[0].mxu0
      %v9817 = vadd.f32 %v9728, %v9816
      %9818 = vmatprep.mubr.f32.mxu0 0.0
      %9819 = vmatmul.mubr.f32.gmra.mrb[0].mxu0 %v9473
      %v9820 = vpop.f32.mrb[0].mxu0
      %v9821 = vadd.f32 %v9732, %v9820
      %v9822 = vpop.f32.mrb[0].mxu0
      %v9823 = vadd.f32 %v9734, %v9822
      %9824 = vmatprep.mubr.f32.mxu0 0.0
      %9825 = vmatmul.mubr.f32.gmra.mrb[0].mxu0 %v9476
      %v9826 = vpop.f32.mrb[0].mxu0
      %v9827 = vadd.f32 %v9738, %v9826
      %v9828 = vpop.f32.mrb[0].mxu0
      %v9829 = vadd.f32 %v9740, %v9828
      %9830 = vmatprep.mubr.f32.mxu0 0.0
      %9831 = vmatmul.mubr.f32.gmra.mrb[0].mxu0 %v9479
      %v9832 = vpop.f32.mrb[0].mxu0
      %v9833 = vadd.f32 %v9744, %v9832
      %v9834 = vpop.f32.mrb[0].mxu0
      %v9835 = vadd.f32 %v9746, %v9834
      %9836 = vdwg.mxu0
      %9837 = vmatprep.subr.mxu0 %v9258
      %9838 = vmatpush1.msra.mxu0 %v9257
      %9839 = vmatprep.subr.mxu0 %v9264
      %9840 = vmatpush1.msra.mxu0 %v9263
      %9841 = vmatprep.subr.mxu0 %v9270
      %9842 = vmatpush1.msra.mxu0 %v9269
      %9843 = vmatprep.subr.mxu0 %v9276
      %9844 = vmatpush1.msra.mxu0 %v9275
      %9845 = vmatprep.subr.mxu0 %v9282
      %9846 = vmatpush1.msra.mxu0 %v9281
      %9847 = vmatprep.subr.mxu0 %v9288
      %9848 = vmatpush1.msra.mxu0 %v9287
      %9849 = vmatprep.subr.mxu0 %v9294
      %9850 = vmatpush1.msra.mxu0 %v9293
      %9851 = vmatprep.subr.mxu0 %v9300
      %9852 = vmatpush1.msra.mxu0 %v9299
      %9853 = vmatprep.subr.mxu0 %v9306
      %9854 = vmatpush1.msra.mxu0 %v9305
      %9855 = vmatprep.subr.mxu0 %v9312
      %9856 = vmatpush1.msra.mxu0 %v9311
      %9857 = vmatprep.subr.mxu0 %v9318
      %9858 = vmatpush1.msra.mxu0 %v9317
      %9859 = vmatprep.subr.mxu0 %v9324
      %9860 = vmatpush1.msra.mxu0 %v9323
      %9861 = vmatprep.subr.mxu0 %v9330
      %9862 = vmatpush1.msra.mxu0 %v9329
      %9863 = vmatprep.subr.mxu0 %v9336
      %9864 = vmatpush1.msra.mxu0 %v9335
      %9865 = vmatprep.subr.mxu0 %v9342
      %9866 = vmatpush1.msra.mxu0 %v9341
      %9867 = vmatprep.subr.mxu0 %v9348
      %9868 = vmatpush1.msra.mxu0 %v9347
      %9869 = vmatprep.subr.mxu0 %v9354
      %9870 = vmatpush1.msra.mxu0 %v9353
      %9871 = vmatprep.subr.mxu0 %v9360
      %9872 = vmatpush1.msra.mxu0 %v9359
      %9873 = vmatprep.subr.mxu0 %v9366
      %9874 = vmatpush1.msra.mxu0 %v9365
      %9875 = vmatprep.subr.mxu0 %v9372
      %9876 = vmatpush1.msra.mxu0 %v9371
      %9877 = vmatprep.subr.mxu0 %v9378
      %9878 = vmatpush1.msra.mxu0 %v9377
      %9879 = vmatprep.subr.mxu0 %v9384
      %9880 = vmatpush1.msra.mxu0 %v9383
      %9881 = vmatprep.subr.mxu0 %v9390
      %9882 = vmatpush1.msra.mxu0 %v9389
      %9883 = vmatprep.subr.mxu0 %v9396
      %9884 = vmatpush1.msra.mxu0 %v9395
      %9885 = vmatprep.subr.mxu0 %v9402
      %9886 = vmatpush1.msra.mxu0 %v9401
      %9887 = vmatprep.subr.mxu0 %v9408
      %9888 = vmatpush1.msra.mxu0 %v9407
      %9889 = vmatprep.subr.mxu0 %v9414
      %9890 = vmatpush1.msra.mxu0 %v9413
      %9891 = vmatprep.subr.mxu0 %v9420
      %9892 = vmatpush1.msra.mxu0 %v9419
      %9893 = vmatprep.subr.mxu0 %v9426
      %9894 = vmatpush1.msra.mxu0 %v9425
      %9895 = vmatprep.subr.mxu0 %v9432
      %9896 = vmatpush1.msra.mxu0 %v9431
      %9897 = vmatprep.subr.mxu0 %v9438
      %9898 = vmatpush1.msra.mxu0 %v9437
      %9899 = vmatprep.subr.mxu0 %v9444
      %9900 = vmatpush1.msra.mxu0 %v9443
      %9901 = vmatprep.mubr.f32.mxu0 %v9242
      %9902 = vmatmul.mubr.f32.gmra.mrb[0].mxu0 %v9241
      %v9903 = vpop.f32.mrb[0].mxu0
      %v9904 = vadd.f32 0.0, %v9903
      %v9905 = vpop.f32.mrb[0].mxu0
      %v9906 = vadd.f32 0.0, %v9905
      %9907 = vmatprep.mubr.f32.mxu0 %v9245
      %9908 = vmatmul.mubr.f32.gmra.mrb[0].mxu0 %v9244
      %v9909 = vpop.f32.mrb[0].mxu0
      %v9910 = vadd.f32 0.0, %v9909
      %v9911 = vpop.f32.mrb[0].mxu0
      %v9912 = vadd.f32 0.0, %v9911
      %9913 = vmatprep.mubr.f32.mxu0 %v9248
      %9914 = vmatmul.mubr.f32.gmra.mrb[0].mxu0 %v9247
      %v9915 = vpop.f32.mrb[0].mxu0
      %v9916 = vadd.f32 0.0, %v9915
      %v9917 = vpop.f32.mrb[0].mxu0
      %v9918 = vadd.f32 0.0, %v9917
      %9919 = vmatprep.mubr.f32.mxu0 %v9251
      %9920 = vmatmul.mubr.f32.gmra.mrb[0].mxu0 %v9250
      %v9921 = vpop.f32.mrb[0].mxu0
      %v9922 = vadd.f32 0.0, %v9921
      %v9923 = vpop.f32.mrb[0].mxu0
      %v9924 = vadd.f32 0.0, %v9923
      %9925 = vdwg.mxu0
      %9926 = vmatprep.subr.mxu0 %v9450
      %9927 = vmatpush1.msra.mxu0 %v9449
      %9928 = vmatprep.subr.mxu0 %v9456
      %9929 = vmatpush1.msra.mxu0 %v9455
      %9930 = vmatprep.subr.mxu0 %v9462
      %9931 = vmatpush1.msra.mxu0 %v9461
      %9932 = vmatprep.subr.mxu0 %v9468
      %9933 = vmatpush1.msra.mxu0 %v9467
      %9934 = vmatprep.subr.mxu0 0.0
      %9935 = vmatpush1.msra.mxu0 0.0
      %9936 = vmatprep.subr.mxu0 0.0
      %9937 = vmatpush1.msra.mxu0 0.0
      %9938 = vmatprep.subr.mxu0 0.0
      %9939 = vmatpush1.msra.mxu0 0.0
      %9940 = vmatprep.subr.mxu0 0.0
      %9941 = vmatpush1.msra.mxu0 0.0
      %9942 = vmatprep.subr.mxu0 0.0
      %9943 = vmatpush1.msra.mxu0 0.0
      %9944 = vmatprep.subr.mxu0 0.0
      %9945 = vmatpush1.msra.mxu0 0.0
      %9946 = vmatprep.subr.mxu0 0.0
      %9947 = vmatpush1.msra.mxu0 0.0
      %9948 = vmatprep.subr.mxu0 0.0
      %9949 = vmatpush1.msra.mxu0 0.0
      %9950 = vmatprep.subr.mxu0 0.0
      %9951 = vmatpush1.msra.mxu0 0.0
      %9952 = vmatprep.subr.mxu0 0.0
      %9953 = vmatpush1.msra.mxu0 0.0
      %9954 = vmatprep.subr.mxu0 0.0
      %9955 = vmatpush1.msra.mxu0 0.0
      %9956 = vmatprep.subr.mxu0 0.0
      %9957 = vmatpush1.msra.mxu0 0.0
      %9958 = vmatprep.subr.mxu0 0.0
      %9959 = vmatpush1.msra.mxu0 0.0
      %9960 = vmatprep.subr.mxu0 0.0
      %9961 = vmatpush1.msra.mxu0 0.0
      %9962 = vmatprep.subr.mxu0 0.0
      %9963 = vmatpush1.msra.mxu0 0.0
      %9964 = vmatprep.subr.mxu0 0.0
      %9965 = vmatpush1.msra.mxu0 0.0
      %9966 = vmatprep.subr.mxu0 0.0
      %9967 = vmatpush1.msra.mxu0 0.0
      %9968 = vmatprep.subr.mxu0 0.0
      %9969 = vmatpush1.msra.mxu0 0.0
      %9970 = vmatprep.subr.mxu0 0.0
      %9971 = vmatpush1.msra.mxu0 0.0
      %9972 = vmatprep.subr.mxu0 0.0
      %9973 = vmatpush1.msra.mxu0 0.0
      %9974 = vmatprep.subr.mxu0 0.0
      %9975 = vmatpush1.msra.mxu0 0.0
      %9976 = vmatprep.subr.mxu0 0.0
      %9977 = vmatpush1.msra.mxu0 0.0
      %9978 = vmatprep.subr.mxu0 0.0
      %9979 = vmatpush1.msra.mxu0 0.0
      %9980 = vmatprep.subr.mxu0 0.0
      %9981 = vmatpush1.msra.mxu0 0.0
      %9982 = vmatprep.subr.mxu0 0.0
      %9983 = vmatpush1.msra.mxu0 0.0
      %9984 = vmatprep.subr.mxu0 0.0
      %9985 = vmatpush1.msra.mxu0 0.0
      %9986 = vmatprep.subr.mxu0 0.0
      %9987 = vmatpush1.msra.mxu0 0.0
      %9988 = vmatprep.subr.mxu0 0.0
      %9989 = vmatpush1.msra.mxu0 0.0
      %9990 = vmatprep.mubr.f32.mxu0 0.0
      %9991 = vmatmul.mubr.f32.gmra.mrb[0].mxu0 %v9470
      %v9992 = vpop.f32.mrb[0].mxu0
      %v9993 = vadd.f32 %v9904, %v9992
      %v9994 = vpop.f32.mrb[0].mxu0
      %v9995 = vadd.f32 %v9906, %v9994
      %9996 = vmatprep.mubr.f32.mxu0 0.0
      %9997 = vmatmul.mubr.f32.gmra.mrb[0].mxu0 %v9473
      %v9998 = vpop.f32.mrb[0].mxu0
      %v9999 = vadd.f32 %v9910, %v9998
      %v10000 = vpop.f32.mrb[0].mxu0
      %v10001 = vadd.f32 %v9912, %v10000
      %10002 = vmatprep.mubr.f32.mxu0 0.0
      %10003 = vmatmul.mubr.f32.gmra.mrb[0].mxu0 %v9476
      %v10004 = vpop.f32.mrb[0].mxu0
      %v10005 = vadd.f32 %v9916, %v10004
      %v10006 = vpop.f32.mrb[0].mxu0
      %v10007 = vadd.f32 %v9918, %v10006
      %10008 = vmatprep.mubr.f32.mxu0 0.0
      %10009 = vmatmul.mubr.f32.gmra.mrb[0].mxu0 %v9479
      %v10010 = vpop.f32.mrb[0].mxu0
      %v10011 = vadd.f32 %v9922, %v10010
      %v10012 = vpop.f32.mrb[0].mxu0
      %v10013 = vadd.f32 %v9924, %v10012
      %10014 = vdwg.mxu0
      %v10015 = vmul.f32 %v9637, %v2398
      %v10016 = vmul.f32 %v9639, %v2402
      %v10017 = vmul.f32 %v9815, %v2406
      %v10018 = vmul.f32 %v9817, %v2410
      %v10019 = vmul.f32 %v9993, %v2414
      %v10020 = vmul.f32 %v9995, %v2418
      %v10021 = vmul.f32 %v9643, %v2398
      %v10022 = vmul.f32 %v9645, %v2402
      %v10023 = vmul.f32 %v9821, %v2406
      %v10024 = vmul.f32 %v9823, %v2410
      %v10025 = vmul.f32 %v9999, %v2414
      %v10026 = vmul.f32 %v10001, %v2418
      %v10027 = vmul.f32 %v9649, %v2398
      %v10028 = vmul.f32 %v9651, %v2402
      %v10029 = vmul.f32 %v9827, %v2406
      %v10030 = vmul.f32 %v9829, %v2410
      %v10031 = vmul.f32 %v10005, %v2414
      %v10032 = vmul.f32 %v10007, %v2418
      %v10033 = vmul.f32 %v9655, %v2398
      %v10034 = vmul.f32 %v9657, %v2402
      %v10035 = vmul.f32 %v9833, %v2406
      %v10036 = vmul.f32 %v9835, %v2410
      %v10037 = vmul.f32 %v10011, %v2414
      %v10038 = vmul.f32 %v10013, %v2418
      %v10039 = vadd.f32 %v10015, %v10016
      %v10040 = vadd.f32 %v10039, %v10017
      %v10041 = vadd.f32 %v10040, %v10018
      %v10042 = vadd.f32 %v10041, %v10019
      %v10043 = vsel %vm276, %v10020, 0.0
      %v10044 = vadd.f32 %v10042, %v10043
      %10045 = vadd.xlane.f32.xlu0 %v10044
      %v10046 = vpop.xlane.xlu0 %10045
      %v10047 = vadd.f32 %v10021, %v10022
      %v10048 = vadd.f32 %v10047, %v10023
      %v10049 = vadd.f32 %v10048, %v10024
      %v10050 = vadd.f32 %v10049, %v10025
      %v10051 = vsel %vm276, %v10026, 0.0
      %v10052 = vadd.f32 %v10050, %v10051
      %10053 = vadd.xlane.f32.xlu0 %v10052
      %v10054 = vpop.xlane.xlu0 %10053
      %v10055 = vadd.f32 %v10027, %v10028
      %v10056 = vadd.f32 %v10055, %v10029
      %v10057 = vadd.f32 %v10056, %v10030
      %v10058 = vadd.f32 %v10057, %v10031
      %v10059 = vsel %vm276, %v10032, 0.0
      %v10060 = vadd.f32 %v10058, %v10059
      %10061 = vadd.xlane.f32.xlu0 %v10060
      %v10062 = vpop.xlane.xlu0 %10061
      %v10063 = vadd.f32 %v10033, %v10034
      %v10064 = vadd.f32 %v10063, %v10035
      %v10065 = vadd.f32 %v10064, %v10036
      %v10066 = vadd.f32 %v10065, %v10037
      %v10067 = vsel %vm276, %v10038, 0.0
      %v10068 = vadd.f32 %v10066, %v10067
      %10069 = vadd.xlane.f32.xlu0 %v10068
      %v10070 = vpop.xlane.xlu0 %10069
      %v10071 = vmul.f32 %v10015, %v10015
      %v10072 = vmul.f32 %v10016, %v10016
      %v10073 = vmul.f32 %v10017, %v10017
      %v10074 = vmul.f32 %v10018, %v10018
      %v10075 = vmul.f32 %v10019, %v10019
      %v10076 = vmul.f32 %v10020, %v10020
      %v10077 = vmul.f32 %v10021, %v10021
      %v10078 = vmul.f32 %v10022, %v10022
      %v10079 = vmul.f32 %v10023, %v10023
      %v10080 = vmul.f32 %v10024, %v10024
      %v10081 = vmul.f32 %v10025, %v10025
      %v10082 = vmul.f32 %v10026, %v10026
      %v10083 = vmul.f32 %v10027, %v10027
      %v10084 = vmul.f32 %v10028, %v10028
      %v10085 = vmul.f32 %v10029, %v10029
      %v10086 = vmul.f32 %v10030, %v10030
      %v10087 = vmul.f32 %v10031, %v10031
      %v10088 = vmul.f32 %v10032, %v10032
      %v10089 = vmul.f32 %v10033, %v10033
      %v10090 = vmul.f32 %v10034, %v10034
      %v10091 = vmul.f32 %v10035, %v10035
      %v10092 = vmul.f32 %v10036, %v10036
      %v10093 = vmul.f32 %v10037, %v10037
      %v10094 = vmul.f32 %v10038, %v10038
      %v10095 = vadd.f32 %v10071, %v10072
      %v10096 = vadd.f32 %v10095, %v10073
      %v10097 = vadd.f32 %v10096, %v10074
      %v10098 = vadd.f32 %v10097, %v10075
      %v10099 = vsel %vm276, %v10076, 0.0
      %v10100 = vadd.f32 %v10098, %v10099
      %10101 = vadd.xlane.f32.xlu0 %v10100
      %v10102 = vpop.xlane.xlu0 %10101
      %v10103 = vadd.f32 %v10077, %v10078
      %v10104 = vadd.f32 %v10103, %v10079
      %v10105 = vadd.f32 %v10104, %v10080
      %v10106 = vadd.f32 %v10105, %v10081
      %v10107 = vsel %vm276, %v10082, 0.0
      %v10108 = vadd.f32 %v10106, %v10107
      %10109 = vadd.xlane.f32.xlu0 %v10108
      %v10110 = vpop.xlane.xlu0 %10109
      %v10111 = vadd.f32 %v10083, %v10084
      %v10112 = vadd.f32 %v10111, %v10085
      %v10113 = vadd.f32 %v10112, %v10086
      %v10114 = vadd.f32 %v10113, %v10087
      %v10115 = vsel %vm276, %v10088, 0.0
      %v10116 = vadd.f32 %v10114, %v10115
      %10117 = vadd.xlane.f32.xlu0 %v10116
      %v10118 = vpop.xlane.xlu0 %10117
      %v10119 = vadd.f32 %v10089, %v10090
      %v10120 = vadd.f32 %v10119, %v10091
      %v10121 = vadd.f32 %v10120, %v10092
      %v10122 = vadd.f32 %v10121, %v10093
      %v10123 = vsel %vm276, %v10094, 0.0
      %v10124 = vadd.f32 %v10122, %v10123
      %10125 = vadd.xlane.f32.xlu0 %v10124
      %v10126 = vpop.xlane.xlu0 %10125
      %v10127 = vmul.f32 %v10046, 0.001953125
      %v10128 = vmul.f32 %v10054, 0.001953125
      %v10129 = vmul.f32 %v10062, 0.001953125
      %v10130 = vmul.f32 %v10070, 0.001953125
      %v10131 = vmul.f32 %v10102, 0.001953125
      %v10132 = vmul.f32 %v10110, 0.001953125
      %v10133 = vmul.f32 %v10118, 0.001953125
      %v10134 = vmul.f32 %v10126, 0.001953125
      %v10135 = vmul.f32 %v10127, %v10127
      %v10136 = vmul.f32 %v10128, %v10128
      %v10137 = vmul.f32 %v10129, %v10129
      %v10138 = vmul.f32 %v10130, %v10130
      %v10139 = vsub.f32 %v10131, %v10135
      %v10140 = vsub.f32 %v10132, %v10136
      %v10141 = vsub.f32 %v10133, %v10137
      %v10142 = vsub.f32 %v10134, %v10138
      %v10143 = vmax.f32 %v10139, 0.0
      %v10144 = vmax.f32 %v10140, 0.0
      %v10145 = vmax.f32 %v10141, 0.0
      %v10146 = vmax.f32 %v10142, 0.0
      %v10147 = vsub.f32 %v9637, %v10127
      %v10148 = vsub.f32 %v9639, %v10127
      %v10149 = vsub.f32 %v9815, %v10127
      %v10150 = vsub.f32 %v9817, %v10127
      %v10151 = vsub.f32 %v9993, %v10127
      %v10152 = vsub.f32 %v9995, %v10127
      %v10153 = vsub.f32 %v9643, %v10128
      %v10154 = vsub.f32 %v9645, %v10128
      %v10155 = vsub.f32 %v9821, %v10128
      %v10156 = vsub.f32 %v9823, %v10128
      %v10157 = vsub.f32 %v9999, %v10128
      %v10158 = vsub.f32 %v10001, %v10128
      %v10159 = vsub.f32 %v9649, %v10129
      %v10160 = vsub.f32 %v9651, %v10129
      %v10161 = vsub.f32 %v9827, %v10129
      %v10162 = vsub.f32 %v9829, %v10129
      %v10163 = vsub.f32 %v10005, %v10129
      %v10164 = vsub.f32 %v10007, %v10129
      %v10165 = vsub.f32 %v9655, %v10130
      %v10166 = vsub.f32 %v9657, %v10130
      %v10167 = vsub.f32 %v9833, %v10130
      %v10168 = vsub.f32 %v9835, %v10130
      %v10169 = vsub.f32 %v10011, %v10130
      %v10170 = vsub.f32 %v10013, %v10130
      %v10171 = vadd.f32 %v10143, 1e-05
      %v10172 = vadd.f32 %v10144, 1e-05
      %v10173 = vadd.f32 %v10145, 1e-05
      %v10174 = vadd.f32 %v10146, 1e-05
      %v10175 = vrsqrt.pop %v10171
      %v10176 = vrsqrt.pop %v10172
      %v10177 = vrsqrt.pop %v10173
      %v10178 = vrsqrt.pop %v10174
      %v10179 = vmul.f32 %v10147, %v10175
      %v10180 = vmul.f32 %v10148, %v10175
      %v10181 = vmul.f32 %v10149, %v10175
      %v10182 = vmul.f32 %v10150, %v10175
      %v10183 = vmul.f32 %v10151, %v10175
      %v10184 = vmul.f32 %v10152, %v10175
      %v10185 = vmul.f32 %v10153, %v10176
      %v10186 = vmul.f32 %v10154, %v10176
      %v10187 = vmul.f32 %v10155, %v10176
      %v10188 = vmul.f32 %v10156, %v10176
      %v10189 = vmul.f32 %v10157, %v10176
      %v10190 = vmul.f32 %v10158, %v10176
      %v10191 = vmul.f32 %v10159, %v10177
      %v10192 = vmul.f32 %v10160, %v10177
      %v10193 = vmul.f32 %v10161, %v10177
      %v10194 = vmul.f32 %v10162, %v10177
      %v10195 = vmul.f32 %v10163, %v10177
      %v10196 = vmul.f32 %v10164, %v10177
      %v10197 = vmul.f32 %v10165, %v10178
      %v10198 = vmul.f32 %v10166, %v10178
      %v10199 = vmul.f32 %v10167, %v10178
      %v10200 = vmul.f32 %v10168, %v10178
      %v10201 = vmul.f32 %v10169, %v10178
      %v10202 = vmul.f32 %v10170, %v10178
      %v10203 = vmax.f32 %v10179, 0.0
      %v10204 = vmax.f32 %v10180, 0.0
      %v10205 = vmax.f32 %v10181, 0.0
      %v10206 = vmax.f32 %v10182, 0.0
      %v10207 = vmax.f32 %v10183, 0.0
      %v10208 = vmax.f32 %v10184, 0.0
      %v10209 = vmax.f32 %v10185, 0.0
      %v10210 = vmax.f32 %v10186, 0.0
      %v10211 = vmax.f32 %v10187, 0.0
      %v10212 = vmax.f32 %v10188, 0.0
      %v10213 = vmax.f32 %v10189, 0.0
      %v10214 = vmax.f32 %v10190, 0.0
      %v10215 = vmax.f32 %v10191, 0.0
      %v10216 = vmax.f32 %v10192, 0.0
      %v10217 = vmax.f32 %v10193, 0.0
      %v10218 = vmax.f32 %v10194, 0.0
      %v10219 = vmax.f32 %v10195, 0.0
      %v10220 = vmax.f32 %v10196, 0.0
      %v10221 = vmax.f32 %v10197, 0.0
      %v10222 = vmax.f32 %v10198, 0.0
      %v10223 = vmax.f32 %v10199, 0.0
      %v10224 = vmax.f32 %v10200, 0.0
      %v10225 = vmax.f32 %v10201, 0.0
      %v10226 = vmax.f32 %v10202, 0.0
      %v10227 = vmul.f32 %v10203, %v2398
      %v10228 = vmul.f32 %v10204, %v2402
      %v10229 = vmul.f32 %v10205, %v2406
      %v10230 = vmul.f32 %v10206, %v2410
      %v10231 = vmul.f32 %v10207, %v2414
      %v10232 = vmul.f32 %v10208, %v2418
      %v10233 = vmul.f32 %v10209, %v2398
      %v10234 = vmul.f32 %v10210, %v2402
      %v10235 = vmul.f32 %v10211, %v2406
      %v10236 = vmul.f32 %v10212, %v2410
      %v10237 = vmul.f32 %v10213, %v2414
      %v10238 = vmul.f32 %v10214, %v2418
      %v10239 = vmul.f32 %v10215, %v2398
      %v10240 = vmul.f32 %v10216, %v2402
      %v10241 = vmul.f32 %v10217, %v2406
      %v10242 = vmul.f32 %v10218, %v2410
      %v10243 = vmul.f32 %v10219, %v2414
      %v10244 = vmul.f32 %v10220, %v2418
      %v10245 = vmul.f32 %v10221, %v2398
      %v10246 = vmul.f32 %v10222, %v2402
      %v10247 = vmul.f32 %v10223, %v2406
      %v10248 = vmul.f32 %v10224, %v2410
      %v10249 = vmul.f32 %v10225, %v2414
      %v10250 = vmul.f32 %v10226, %v2418
      %v10251 = vadd.f32 %v10227, %v10227
      %v10252 = vadd.f32 %v10228, %v10228
      %v10253 = vadd.f32 %v10229, %v10229
      %v10254 = vadd.f32 %v10230, %v10230
      %v10255 = vadd.f32 %v10231, %v10231
      %v10256 = vadd.f32 %v10232, %v10232
      %v10257 = vadd.f32 %v10233, %v10233
      %v10258 = vadd.f32 %v10234, %v10234
      %v10259 = vadd.f32 %v10235, %v10235
      %v10260 = vadd.f32 %v10236, %v10236
      %v10261 = vadd.f32 %v10237, %v10237
      %v10262 = vadd.f32 %v10238, %v10238
      %v10263 = vadd.f32 %v10239, %v10239
      %v10264 = vadd.f32 %v10240, %v10240
      %v10265 = vadd.f32 %v10241, %v10241
      %v10266 = vadd.f32 %v10242, %v10242
      %v10267 = vadd.f32 %v10243, %v10243
      %v10268 = vadd.f32 %v10244, %v10244
      %v10269 = vadd.f32 %v10245, %v10245
      %v10270 = vadd.f32 %v10246, %v10246
      %v10271 = vadd.f32 %v10247, %v10247
      %v10272 = vadd.f32 %v10248, %v10248
      %v10273 = vadd.f32 %v10249, %v10249
      %v10274 = vadd.f32 %v10250, %v10250
      %v10275 = vadd.f32 %v10251, %v2398
      %v10276 = vadd.f32 %v10252, %v2402
      %v10277 = vadd.f32 %v10253, %v2406
      %v10278 = vadd.f32 %v10254, %v2410
      %v10279 = vadd.f32 %v10255, %v2414
      %v10280 = vadd.f32 %v10256, %v2418
      %v10281 = vadd.f32 %v10257, %v2398
      %v10282 = vadd.f32 %v10258, %v2402
      %v10283 = vadd.f32 %v10259, %v2406
      %v10284 = vadd.f32 %v10260, %v2410
      %v10285 = vadd.f32 %v10261, %v2414
      %v10286 = vadd.f32 %v10262, %v2418
      %v10287 = vadd.f32 %v10263, %v2398
      %v10288 = vadd.f32 %v10264, %v2402
      %v10289 = vadd.f32 %v10265, %v2406
      %v10290 = vadd.f32 %v10266, %v2410
      %v10291 = vadd.f32 %v10267, %v2414
      %v10292 = vadd.f32 %v10268, %v2418
      %v10293 = vadd.f32 %v10269, %v2398
      %v10294 = vadd.f32 %v10270, %v2402
      %v10295 = vadd.f32 %v10271, %v2406
      %v10296 = vadd.f32 %v10272, %v2410
      %v10297 = vadd.f32 %v10273, %v2414
      %v10298 = vadd.f32 %v10274, %v2418
      %v10299 = vmul.f32 %v10275, 2.0
      %v10300 = vmul.f32 %v10276, 2.0
      %v10301 = vmul.f32 %v10277, 2.0
      %v10302 = vmul.f32 %v10278, 2.0
      %v10303 = vmul.f32 %v10279, 2.0
      %v10304 = vmul.f32 %v10280, 2.0
      %v10305 = vmul.f32 %v10281, 2.0
      %v10306 = vmul.f32 %v10282, 2.0
      %v10307 = vmul.f32 %v10283, 2.0
      %v10308 = vmul.f32 %v10284, 2.0
      %v10309 = vmul.f32 %v10285, 2.0
      %v10310 = vmul.f32 %v10286, 2.0
      %v10311 = vmul.f32 %v10287, 2.0
      %v10312 = vmul.f32 %v10288, 2.0
      %v10313 = vmul.f32 %v10289, 2.0
      %v10314 = vmul.f32 %v10290, 2.0
      %v10315 = vmul.f32 %v10291, 2.0
      %v10316 = vmul.f32 %v10292, 2.0
      %v10317 = vmul.f32 %v10293, 2.0
      %v10318 = vmul.f32 %v10294, 2.0
      %v10319 = vmul.f32 %v10295, 2.0
      %v10320 = vmul.f32 %v10296, 2.0
      %v10321 = vmul.f32 %v10297, 2.0
      %v10322 = vmul.f32 %v10298, 2.0
    $region22: #{forward.1} parent=1 // loop_footer
      %s78 = sadd.s32 1, %s74
    $region23: #{forward.1} parent=1 // loop_footer_branch
      %73 = sbr.rel target = $region19
    $region24: #{forward.1} parent=1 // loop_exit
      _
    %v10329 = vcombine.low %v79, %v80
    %v10330 = vcombine.low %v81, %v82
    %v10331 = vcombine.low %v83, %v84
    %10335 = vst [vmem:[%s3] sm:$0x77] %v10329
    %10336 = vst [vmem:[%s3 + $0x8] sm:$0x77] %v10330
    %vm10337 = vcmask 63492
    %vm10338 = vmor %vm10337, %vm66
    %10339 = vst.msk [vmem:[%s3 + $0x10] sm:$0x77] %vm10338, %v10331
    // Predicated region
    $region25: #{forward.1} parent=1 // pred_check
      _
    $region26: #{forward.1} parent=1 // pred_check_branch
      %10341 = sbr.rel (0) target = $region28
    $region27: #{forward.1} parent=1 // pred_region
      _
    $region28: #{forward.1} parent=1 // pred_fallthru
      _
    // Predicated region
    $region29: #{forward.1} parent=1 // pred_check
      _
    $region30: #{forward.1} parent=1 // pred_check_branch
      %10343 = sbr.rel (0) target = $region32
    $region31: #{forward.1} parent=1 // pred_region
      _
    $region32: #{forward.1} parent=1 // pred_fallthru
      _
    %10344 = vsyncpa [#allocation5], 1

</llo_original>
